<compile_context>
chip_gen: v5e
topology: v5e:2x2
jax: 0.10.0
libtpu: 0.0.40
codegen_flags: <defaults>
</compile_context>

<pallas_src>
import functools
import math

import jax
import jax.numpy as jnp
import numpy as np
from jax.experimental import pallas as pl
from jax.experimental.pallas import tpu as pltpu


# ----------------------------------------------------------------------------
# In-kernel helpers (traced at kernel build time; all loops are static).
# ----------------------------------------------------------------------------
def _build_im2col(xbuf, h, length, ksize):
    """Write im2col of h (cin, length) into xbuf[0:ksize*cin, 0:length].

    Row block t holds h zero-padded by (ksize-1)//2 and shifted by t, so that
    (W_r @ X)[o*cout + co, l] == sum_{t,ci} W[o, t, co, ci] * h_pad[ci, l + t].
    Padding is realized by zero-filling the scratch region, not jnp.pad.
    """
    cin = h.shape[0]
    pad = (ksize - 1) // 2
    rows = ksize * cin
    xbuf[0:rows, 0:length] = jnp.zeros((rows, length), jnp.float32)
    for t in range(ksize):
        lo = max(0, pad - t)
        hi = min(length, length + pad - t)
        if hi <= lo:          # tap lies entirely in the zero halo (ksize > length)
            continue
        xbuf[t * cin:(t + 1) * cin, lo:hi] = h[:, lo + t - pad:hi + t - pad]
    return rows


def _mixed_op(xbuf, rows, length, w_ref, b_ref, alpha_ref, mix_idx, n_ops, act):
    """One MixedOp: sum_o alpha[mix_idx, o] * act(conv_o(node) + b_o).

    All n_ops convolutions are evaluated with a single MXU matmul of the
    op-stacked weight matrix against the node's im2col matrix.
    """
    cout = w_ref.shape[0] // n_ops
    assert w_ref.shape[1] == rows
    x_cols = xbuf[0:rows, 0:length]                          # (Kmax*Cin, L)
    y = jnp.dot(w_ref[...], x_cols, preferred_element_type=jnp.float32)
    y = y + b_ref[...]                                       # (n_ops*cout, L)
    y = jnp.maximum(y, 0.0) if act == "relu" else jax.nn.sigmoid(y)
    acc = alpha_ref[mix_idx, 0] * y[0:cout, :]
    for o in range(1, n_ops):
        acc = acc + alpha_ref[mix_idx, o] * y[o * cout:(o + 1) * cout, :]
    return acc                                               # (cout, L)


def _run_cell(h0, length, kmax, n_ops, wb, alpha_ref, xbufs):
    """One Cell DAG (operation_number == 3) on a single batch element."""
    x0b, x1b, x2b = xbufs
    r0 = _build_im2col(x0b, h0, length, kmax)
    h1 = _mixed_op(x0b, r0, length, wb[0], wb[1], alpha_ref, 0, n_ops, "relu")
    r1 = _build_im2col(x1b, h1, length, kmax)
    h2 = (_mixed_op(x0b, r0, length, wb[2], wb[3], alpha_ref, 1, n_ops, "relu")
          + _mixed_op(x1b, r1, length, wb[4], wb[5], alpha_ref, 2, n_ops, "relu"))
    r2 = _build_im2col(x2b, h2, length, kmax)
    h3 = (_mixed_op(x0b, r0, length, wb[6], wb[7], alpha_ref, 3, n_ops, "sigmoid")
          + _mixed_op(x1b, r1, length, wb[8], wb[9], alpha_ref, 4, n_ops, "sigmoid")
          + _mixed_op(x2b, r2, length, wb[10], wb[11], alpha_ref, 5, n_ops, "sigmoid"))
    return h3 * (1.0 / 3.0)                                  # (1, length)


def _tcam_kernel(*refs, C, L, tam_kmax, cam_kmax, tam_nops, cam_nops):
    x_ref, g_ref = refs[0], refs[1]          # x block (1,C,L); pooled (1,1,C)
    tam_wb = refs[2:14]                      # 6 x (Wr, br) in matmul layout
    cam_wb = refs[14:26]
    atam_ref, acam_ref = refs[26], refs[27]  # SMEM (6, n_ops) mixture weights
    o_ref = refs[28]
    xbufs = refs[29:32]                      # im2col VMEM scratch (per node)

    x_b = x_ref[0]                                           # (C, L)
    g_b = g_ref[0]                                           # (1, C)

    # --- TAM cell: temporal attention map over the length axis -------------
    tam_scale = _run_cell(x_b, L, tam_kmax, tam_nops, tam_wb, atam_ref, xbufs)
    tam_out = x_b * tam_scale                                # (C, L)

    # --- CAM cell: per-channel attention map --------------------------------
    cam_scale = _run_cell(g_b, C, cam_kmax, cam_nops, cam_wb, acam_ref, xbufs)
    # out[c, l] = cam_scale[0, c] * x[c, l]; turn the (1, C) row into a (C, 1)
    # column with an iota mask (avoids an in-kernel transpose of a tiny array).
    rid = jax.lax.broadcasted_iota(jnp.int32, (C, C), 0)
    cid = jax.lax.broadcasted_iota(jnp.int32, (C, C), 1)
    eye_c = (rid == cid).astype(jnp.float32)
    cam_col = jnp.sum(eye_c * cam_scale, axis=1, keepdims=True)   # (C, 1)
    cam_out = x_b * cam_col                                  # (C, L)

    o_ref[0] = jnp.maximum(tam_out, cam_out)                 # single store


# ----------------------------------------------------------------------------
# Wrapper: one pallas_call for the whole module.
# ----------------------------------------------------------------------------
def tcam_p_pallas(x, tam_alpha, cam_alpha, tam_kparams, cam_kparams):
    """Fused TCAM_P forward.  x: (B, C, L) f32 -> (B, C, L) f32."""
    B, C, L = x.shape
    g = jnp.mean(x, axis=2)[:, None, :]                      # (B, 1, C) GAP over L

    flat_inputs = [x, g]
    for p in tam_kparams:
        flat_inputs += [p["Wr"], p["br"]]
    for p in cam_kparams:
        flat_inputs += [p["Wr"], p["br"]]
    flat_inputs += [tam_alpha, cam_alpha]

    tam_nops = tam_alpha.shape[1]
    cam_nops = cam_alpha.shape[1]
    tam_kmax = tam_kparams[0]["Wr"].shape[1] // C            # Kmax*Cin / Cin
    cam_kmax = cam_kparams[0]["Wr"].shape[1]                 # Cin == 1 for CAM
    hid_tam = tam_kparams[2]["Wr"].shape[1] // tam_kmax      # hidden width (32)
    hid_cam = cam_kparams[2]["Wr"].shape[1] // cam_kmax

    def whole2d(a):
        return pl.BlockSpec(a.shape, lambda b: (0, 0))

    in_specs = [
        pl.BlockSpec((1, C, L), lambda b: (b, 0, 0)),        # x, per-batch block
        pl.BlockSpec((1, 1, C), lambda b: (b, 0, 0)),        # pooled x
    ]
    for p in tam_kparams + cam_kparams:
        in_specs.append(whole2d(p["Wr"]))
        in_specs.append(whole2d(p["br"]))
    in_specs += [pl.BlockSpec(memory_space=pltpu.MemorySpace.SMEM)] * 2

    # One im2col scratch buffer per DAG node, sized for the larger cell use.
    lmax = max(L, C)
    r0 = max(tam_kmax * C, cam_kmax * 1)
    r12 = max(tam_kmax * hid_tam, cam_kmax * hid_cam)
    scratch_shapes = [
        pltpu.VMEM((r0, lmax), jnp.float32),
        pltpu.VMEM((r12, lmax), jnp.float32),
        pltpu.VMEM((r12, lmax), jnp.float32),
    ]

    kernel = functools.partial(
        _tcam_kernel, C=C, L=L, tam_kmax=tam_kmax, cam_kmax=cam_kmax,
        tam_nops=tam_nops, cam_nops=cam_nops)

    return pl.pallas_call(
        kernel,
        out_shape=jax.ShapeDtypeStruct((B, C, L), jnp.float32),
        grid=(B,),
        in_specs=in_specs,
        out_specs=pl.BlockSpec((1, C, L), lambda b: (b, 0, 0)),
        scratch_shapes=scratch_shapes,
        compiler_params=pltpu.CompilerParams(
            dimension_semantics=("parallel",)),
    )(*flat_inputs)


# ----------------------------------------------------------------------------
# Parameters: canonical conv-bank form + conversion to the kernel matmul layout.
# ----------------------------------------------------------------------------
def build_cell_params(key, C, operation_number, ksizes):
    """Canonical per-MixedOp params: W (n_ops, Kmax, Cout, Cin), b (n_ops, Cout, 1).
    Ops with k < Kmax are zero-embedded (centered) so all ops share Kmax taps."""
    channel_list = [32] * (operation_number + 1)
    channel_list[0] = C
    channel_list[-1] = 1
    kmax = max(ksizes)
    n_ops = len(ksizes)
    params = []
    for i in range(operation_number):
        for j in range(i + 1):
            cin, cout = channel_list[j], channel_list[i + 1]
            key, kb = jax.random.split(key)
            W = jnp.zeros((n_ops, kmax, cout, cin), jnp.float32)
            b = jax.random.normal(kb, (n_ops, cout, 1), dtype=jnp.float32) * 0.05
            for o, k in enumerate(ksizes):
                key, kw = jax.random.split(key)
                w_o = jax.random.normal(kw, (k, cout, cin), dtype=jnp.float32)
                w_o = w_o * (1.0 / math.sqrt(cin * k))
                off = (kmax - k) // 2
                W = W.at[o, off:off + k].set(w_o)
            params.append({"W": W, "b": b})
    return params


def to_kernel_layout(params):
    """Wr (n_ops*Cout, Kmax*Cin): row o*Cout+co, col t*Cin+ci; br (n_ops*Cout, 1)."""
    out = []
    for p in params:
        W, b = p["W"], p["b"]
        n_ops, kmax, cout, cin = W.shape
        Wr = jnp.transpose(W, (0, 2, 1, 3)).reshape(n_ops * cout, kmax * cin)
        br = jnp.reshape(b, (n_ops * cout, 1))
        out.append({"Wr": Wr, "br": br})
    return out


# ----------------------------------------------------------------------------
# Pure-JAX reference (mirrors the PyTorch control flow exactly) for checking.
# ----------------------------------------------------------------------------
def mixed_op_ref(x, params, alpha, act):
    B, Cin, L = x.shape
    W, bvec = params["W"], params["b"]
    n_ops, Kmax, Cout, _ = W.shape
    pad = (Kmax - 1) // 2
    x_pad = jnp.pad(x, ((0, 0), (0, 0), (pad, pad)))
    out = jnp.zeros((B, Cout, L), jnp.float32)
    for o in range(n_ops):
        acc = jnp.broadcast_to(bvec[o][None], (B, Cout, L))
        for t in range(Kmax):
            acc = acc + jnp.einsum("dc,bcl->bdl", W[o, t], x_pad[:, :, t:t + L])
        av = jnp.maximum(acc, 0.0) if act == "relu" else jax.nn.sigmoid(acc)
        out = out + alpha[o] * av
    return out


def cell_forward_ref(x, mix_params, arch_w, operation_number, cell_type):
    input_x = x
    if cell_type != "TAM":
        x = jnp.mean(x, axis=2)[:, None, :]
    funcs = ["relu"] * math.factorial(operation_number)
    funcs[-operation_number:] = ["sigmoid"] * operation_number
    total_x = []
    add_x = x
    idx = 0
    for i in range(operation_number):
        total_x.append(add_x)
        now_x = 0.0
        for j in range(i + 1):
            now_x = mixed_op_ref(total_x[j], mix_params[idx], arch_w[idx], funcs[idx]) + now_x
            idx += 1
        add_x = now_x
    x = add_x / operation_number
    if cell_type == "TAM":
        return input_x * x
    return input_x * jnp.reshape(x, (input_x.shape[0], input_x.shape[1], 1))


def tcam_p_ref(x, tam_w, cam_w, tam_params, cam_params):
    tam_out = cell_forward_ref(x, tam_params, tam_w, 3, "TAM")
    cam_out = cell_forward_ref(x, cam_params, cam_w, 3, "CAM")
    return jnp.maximum(tam_out, cam_out)


@jax.jit
def run_pallas(x, tam_w, cam_w, tam_k, cam_k):
    return tcam_p_pallas(x, tam_w, cam_w, tam_k, cam_k)


if __name__ == "__main__":
    key = jax.random.PRNGKey(0)
    B, C, L = 2, 4, 16
    k_x, k_tw, k_cw, k_tp, k_cp = jax.random.split(key, 5)

    x = jax.random.normal(k_x, (B, C, L), dtype=jnp.float32)

    tam_ksizes = [1, 3, 5, 7, 9, 11]              # ops_number = 6 (TAM cell)
    cam_ksizes = [1, 3, 5, 7, 9, 11, 13, 15]      # ops_number = 8 (CAM cell)

    tam_params = build_cell_params(k_tp, C, 3, tam_ksizes)
    cam_params = build_cell_params(k_cp, 1, 3, cam_ksizes)
    tam_k = to_kernel_layout(tam_params)
    cam_k = to_kernel_layout(cam_params)

    # Architecture (mixture) weights: one row per MixedOp, softmaxed.
    tam_w = jax.nn.softmax(
        jax.random.normal(k_tw, (6, len(tam_ksizes)), jnp.float32), axis=-1)
    cam_w = jax.nn.softmax(
        jax.random.normal(k_cw, (6, len(cam_ksizes)), jnp.float32), axis=-1)

    out = run_pallas(x, tam_w, cam_w, tam_k, cam_k)
    out = jax.block_until_ready(out)

    ref = tcam_p_ref(x, tam_w, cam_w, tam_params, cam_params)
    np.testing.assert_allclose(np.asarray(out), np.asarray(ref), atol=1e-4, rtol=1e-3)

    print("KERNEL_OK")
</pallas_src>

<mosaic_0001>
module attributes {stable_mosaic.version = 11 : i64} {
  func.func @_tcam_kernel(%arg0: i32, %arg1: memref<1x4x16xf32, #tpu.memory_space<vmem>>, %arg2: memref<1x1x4xf32, #tpu.memory_space<vmem>>, %arg3: memref<192x44xf32, #tpu.memory_space<vmem>>, %arg4: memref<192x1xf32, #tpu.memory_space<vmem>>, %arg5: memref<192x44xf32, #tpu.memory_space<vmem>>, %arg6: memref<192x1xf32, #tpu.memory_space<vmem>>, %arg7: memref<192x352xf32, #tpu.memory_space<vmem>>, %arg8: memref<192x1xf32, #tpu.memory_space<vmem>>, %arg9: memref<6x44xf32, #tpu.memory_space<vmem>>, %arg10: memref<6x1xf32, #tpu.memory_space<vmem>>, %arg11: memref<6x352xf32, #tpu.memory_space<vmem>>, %arg12: memref<6x1xf32, #tpu.memory_space<vmem>>, %arg13: memref<6x352xf32, #tpu.memory_space<vmem>>, %arg14: memref<6x1xf32, #tpu.memory_space<vmem>>, %arg15: memref<256x15xf32, #tpu.memory_space<vmem>>, %arg16: memref<256x1xf32, #tpu.memory_space<vmem>>, %arg17: memref<256x15xf32, #tpu.memory_space<vmem>>, %arg18: memref<256x1xf32, #tpu.memory_space<vmem>>, %arg19: memref<256x480xf32, #tpu.memory_space<vmem>>, %arg20: memref<256x1xf32, #tpu.memory_space<vmem>>, %arg21: memref<8x15xf32, #tpu.memory_space<vmem>>, %arg22: memref<8x1xf32, #tpu.memory_space<vmem>>, %arg23: memref<8x480xf32, #tpu.memory_space<vmem>>, %arg24: memref<8x1xf32, #tpu.memory_space<vmem>>, %arg25: memref<8x480xf32, #tpu.memory_space<vmem>>, %arg26: memref<8x1xf32, #tpu.memory_space<vmem>>, %arg27: memref<6x6xf32, #tpu.memory_space<smem>>, %arg28: memref<6x8xf32, #tpu.memory_space<smem>>, %arg29: memref<1x4x16xf32, #tpu.memory_space<vmem>>, %arg30: memref<44x16xf32, #tpu.memory_space<vmem>>, %arg31: memref<480x16xf32, #tpu.memory_space<vmem>>, %arg32: memref<480x16xf32, #tpu.memory_space<vmem>>) attributes {dimension_semantics = [#tpu.dimension_semantics<parallel>], iteration_bounds = array<i64: 2>, scalar_prefetch = 0 : i64, scratch_operands = 3 : i64, tpu.core_type = #tpu.core_type<tc>, window_params = [{transform_indices = @transform_0, window_bounds = array<i64: 1, 4, 16>}, {transform_indices = @transform_1, window_bounds = array<i64: 1, 1, 4>}, {pipeline_mode = #tpu.pipeline_mode<synchronous>, transform_indices = @transform_2, window_bounds = array<i64: 192, 44>}, {pipeline_mode = #tpu.pipeline_mode<synchronous>, transform_indices = @transform_3, window_bounds = array<i64: 192, 1>}, {pipeline_mode = #tpu.pipeline_mode<synchronous>, transform_indices = @transform_4, window_bounds = array<i64: 192, 44>}, {pipeline_mode = #tpu.pipeline_mode<synchronous>, transform_indices = @transform_5, window_bounds = array<i64: 192, 1>}, {pipeline_mode = #tpu.pipeline_mode<synchronous>, transform_indices = @transform_6, window_bounds = array<i64: 192, 352>}, {pipeline_mode = #tpu.pipeline_mode<synchronous>, transform_indices = @transform_7, window_bounds = array<i64: 192, 1>}, {pipeline_mode = #tpu.pipeline_mode<synchronous>, transform_indices = @transform_8, window_bounds = array<i64: 6, 44>}, {pipeline_mode = #tpu.pipeline_mode<synchronous>, transform_indices = @transform_9, window_bounds = array<i64: 6, 1>}, {pipeline_mode = #tpu.pipeline_mode<synchronous>, transform_indices = @transform_10, window_bounds = array<i64: 6, 352>}, {pipeline_mode = #tpu.pipeline_mode<synchronous>, transform_indices = @transform_11, window_bounds = array<i64: 6, 1>}, {pipeline_mode = #tpu.pipeline_mode<synchronous>, transform_indices = @transform_12, window_bounds = array<i64: 6, 352>}, {pipeline_mode = #tpu.pipeline_mode<synchronous>, transform_indices = @transform_13, window_bounds = array<i64: 6, 1>}, {pipeline_mode = #tpu.pipeline_mode<synchronous>, transform_indices = @transform_14, window_bounds = array<i64: 256, 15>}, {pipeline_mode = #tpu.pipeline_mode<synchronous>, transform_indices = @transform_15, window_bounds = array<i64: 256, 1>}, {pipeline_mode = #tpu.pipeline_mode<synchronous>, transform_indices = @transform_16, window_bounds = array<i64: 256, 15>}, {pipeline_mode = #tpu.pipeline_mode<synchronous>, transform_indices = @transform_17, window_bounds = array<i64: 256, 1>}, {pipeline_mode = #tpu.pipeline_mode<synchronous>, transform_indices = @transform_18, window_bounds = array<i64: 256, 480>}, {pipeline_mode = #tpu.pipeline_mode<synchronous>, transform_indices = @transform_19, window_bounds = array<i64: 256, 1>}, {pipeline_mode = #tpu.pipeline_mode<synchronous>, transform_indices = @transform_20, window_bounds = array<i64: 8, 15>}, {pipeline_mode = #tpu.pipeline_mode<synchronous>, transform_indices = @transform_21, window_bounds = array<i64: 8, 1>}, {pipeline_mode = #tpu.pipeline_mode<synchronous>, transform_indices = @transform_22, window_bounds = array<i64: 8, 480>}, {pipeline_mode = #tpu.pipeline_mode<synchronous>, transform_indices = @transform_23, window_bounds = array<i64: 8, 1>}, {pipeline_mode = #tpu.pipeline_mode<synchronous>, transform_indices = @transform_24, window_bounds = array<i64: 8, 480>}, {pipeline_mode = #tpu.pipeline_mode<synchronous>, transform_indices = @transform_25, window_bounds = array<i64: 8, 1>}, {transform_indices = @transform_26, window_bounds = array<i64: 6, 6>}, {transform_indices = @transform_27, window_bounds = array<i64: 6, 8>}, {transform_indices = @transform_28, window_bounds = array<i64: 1, 4, 16>}]} {
    %c0 = arith.constant 0 : index
    %c0_0 = arith.constant 0 : index
    %c0_1 = arith.constant 0 : index
    %0 = vector.load %arg1[%c0, %c0_0, %c0_1] : memref<1x4x16xf32, #tpu.memory_space<vmem>>, vector<1x4x16xf32>
    %1 = vector.shape_cast %0 : vector<1x4x16xf32> to vector<4x16xf32>
    %c0_2 = arith.constant 0 : index
    %c0_3 = arith.constant 0 : index
    %c0_4 = arith.constant 0 : index
    %2 = vector.load %arg2[%c0_2, %c0_3, %c0_4] : memref<1x1x4xf32, #tpu.memory_space<vmem>>, vector<1x1x4xf32>
    %3 = vector.shape_cast %2 : vector<1x1x4xf32> to vector<1x4xf32>
    %cst = arith.constant 0.000000e+00 : f32
    %4 = vector.broadcast %cst : f32 to vector<44x16xf32>
    %c0_5 = arith.constant 0 : index
    %c0_6 = arith.constant 0 : index
    %5 = vector.load %arg30[%c0_5, %c0_6] : memref<44x16xf32, #tpu.memory_space<vmem>>, vector<44x16xf32>
    tpu.vector_store %arg30[%c0_5, %c0_6], %4 {strides = array<i32>} : memref<44x16xf32, #tpu.memory_space<vmem>>, vector<44x16xf32>,
    %6 = vector.extract_strided_slice %1 {offsets = [0, 0], sizes = [4, 11], strides = [1, 1]} : vector<4x16xf32> to vector<4x11xf32>
    %c0_7 = arith.constant 0 : index
    %c5 = arith.constant 5 : index
    %7 = vector.load %arg30[%c0_7, %c5] : memref<44x16xf32, #tpu.memory_space<vmem>>, vector<4x11xf32>
    tpu.vector_store %arg30[%c0_7, %c5], %6 {strides = array<i32>} : memref<44x16xf32, #tpu.memory_space<vmem>>, vector<4x11xf32>,
    %8 = vector.extract_strided_slice %1 {offsets = [0, 0], sizes = [4, 12], strides = [1, 1]} : vector<4x16xf32> to vector<4x12xf32>
    %c4 = arith.constant 4 : index
    %c4_8 = arith.constant 4 : index
    %9 = vector.load %arg30[%c4, %c4_8] : memref<44x16xf32, #tpu.memory_space<vmem>>, vector<4x12xf32>
    tpu.vector_store %arg30[%c4, %c4_8], %8 {strides = array<i32>} : memref<44x16xf32, #tpu.memory_space<vmem>>, vector<4x12xf32>,
    %10 = vector.extract_strided_slice %1 {offsets = [0, 0], sizes = [4, 13], strides = [1, 1]} : vector<4x16xf32> to vector<4x13xf32>
    %c8 = arith.constant 8 : index
    %c3 = arith.constant 3 : index
    %11 = vector.load %arg30[%c8, %c3] : memref<44x16xf32, #tpu.memory_space<vmem>>, vector<4x13xf32>
    tpu.vector_store %arg30[%c8, %c3], %10 {strides = array<i32>} : memref<44x16xf32, #tpu.memory_space<vmem>>, vector<4x13xf32>,
    %12 = vector.extract_strided_slice %1 {offsets = [0, 0], sizes = [4, 14], strides = [1, 1]} : vector<4x16xf32> to vector<4x14xf32>
    %c12 = arith.constant 12 : index
    %c2 = arith.constant 2 : index
    %13 = vector.load %arg30[%c12, %c2] : memref<44x16xf32, #tpu.memory_space<vmem>>, vector<4x14xf32>
    tpu.vector_store %arg30[%c12, %c2], %12 {strides = array<i32>} : memref<44x16xf32, #tpu.memory_space<vmem>>, vector<4x14xf32>,
    %14 = vector.extract_strided_slice %1 {offsets = [0, 0], sizes = [4, 15], strides = [1, 1]} : vector<4x16xf32> to vector<4x15xf32>
    %c16 = arith.constant 16 : index
    %c1 = arith.constant 1 : index
    %15 = vector.load %arg30[%c16, %c1] : memref<44x16xf32, #tpu.memory_space<vmem>>, vector<4x15xf32>
    tpu.vector_store %arg30[%c16, %c1], %14 {strides = array<i32>} : memref<44x16xf32, #tpu.memory_space<vmem>>, vector<4x15xf32>,
    %c20 = arith.constant 20 : index
    %c0_9 = arith.constant 0 : index
    %16 = vector.load %arg30[%c20, %c0_9] : memref<44x16xf32, #tpu.memory_space<vmem>>, vector<4x16xf32>
    tpu.vector_store %arg30[%c20, %c0_9], %1 {strides = array<i32>} : memref<44x16xf32, #tpu.memory_space<vmem>>, vector<4x16xf32>,
    %17 = vector.extract_strided_slice %1 {offsets = [0, 1], sizes = [4, 15], strides = [1, 1]} : vector<4x16xf32> to vector<4x15xf32>
    %c24 = arith.constant 24 : index
    %c0_10 = arith.constant 0 : index
    %18 = vector.load %arg30[%c24, %c0_10] : memref<44x16xf32, #tpu.memory_space<vmem>>, vector<4x15xf32>
    tpu.vector_store %arg30[%c24, %c0_10], %17 {strides = array<i32>} : memref<44x16xf32, #tpu.memory_space<vmem>>, vector<4x15xf32>,
    %19 = vector.extract_strided_slice %1 {offsets = [0, 2], sizes = [4, 14], strides = [1, 1]} : vector<4x16xf32> to vector<4x14xf32>
    %c28 = arith.constant 28 : index
    %c0_11 = arith.constant 0 : index
    %20 = vector.load %arg30[%c28, %c0_11] : memref<44x16xf32, #tpu.memory_space<vmem>>, vector<4x14xf32>
    tpu.vector_store %arg30[%c28, %c0_11], %19 {strides = array<i32>} : memref<44x16xf32, #tpu.memory_space<vmem>>, vector<4x14xf32>,
    %21 = vector.extract_strided_slice %1 {offsets = [0, 3], sizes = [4, 13], strides = [1, 1]} : vector<4x16xf32> to vector<4x13xf32>
    %c32 = arith.constant 32 : index
    %c0_12 = arith.constant 0 : index
    %22 = vector.load %arg30[%c32, %c0_12] : memref<44x16xf32, #tpu.memory_space<vmem>>, vector<4x13xf32>
    tpu.vector_store %arg30[%c32, %c0_12], %21 {strides = array<i32>} : memref<44x16xf32, #tpu.memory_space<vmem>>, vector<4x13xf32>,
    %23 = vector.extract_strided_slice %1 {offsets = [0, 4], sizes = [4, 12], strides = [1, 1]} : vector<4x16xf32> to vector<4x12xf32>
    %c36 = arith.constant 36 : index
    %c0_13 = arith.constant 0 : index
    %24 = vector.load %arg30[%c36, %c0_13] : memref<44x16xf32, #tpu.memory_space<vmem>>, vector<4x12xf32>
    tpu.vector_store %arg30[%c36, %c0_13], %23 {strides = array<i32>} : memref<44x16xf32, #tpu.memory_space<vmem>>, vector<4x12xf32>,
    %25 = vector.extract_strided_slice %1 {offsets = [0, 5], sizes = [4, 11], strides = [1, 1]} : vector<4x16xf32> to vector<4x11xf32>
    %c40 = arith.constant 40 : index
    %c0_14 = arith.constant 0 : index
    %26 = vector.load %arg30[%c40, %c0_14] : memref<44x16xf32, #tpu.memory_space<vmem>>, vector<4x11xf32>
    tpu.vector_store %arg30[%c40, %c0_14], %25 {strides = array<i32>} : memref<44x16xf32, #tpu.memory_space<vmem>>, vector<4x11xf32>,
    %c0_15 = arith.constant 0 : index
    %c0_16 = arith.constant 0 : index
    %27 = vector.load %arg30[%c0_15, %c0_16] : memref<44x16xf32, #tpu.memory_space<vmem>>, vector<44x16xf32>
    %c0_17 = arith.constant 0 : index
    %c0_18 = arith.constant 0 : index
    %28 = vector.load %arg3[%c0_17, %c0_18] : memref<192x44xf32, #tpu.memory_space<vmem>>, vector<192x44xf32>
    %cst_19 = arith.constant dense<0.000000e+00> : vector<192x16xf32>
    %29 = tpu.matmul %28, %27, %cst_19 {dimension_numbers = #tpu.dot_dimension_numbers<[1], [0], [0], [1], [0, 0, 1, 1], [], []>} : vector<192x44xf32>, vector<44x16xf32>, vector<192x16xf32> -> vector<192x16xf32>
    %c0_20 = arith.constant 0 : index
    %c0_21 = arith.constant 0 : index
    %30 = vector.load %arg4[%c0_20, %c0_21] : memref<192x1xf32, #tpu.memory_space<vmem>>, vector<192x1xf32>
    %31 = vector.broadcast %30 : vector<192x1xf32> to vector<192x16xf32>
    %32 = arith.addf %29, %31 : vector<192x16xf32>
    %cst_22 = arith.constant 0.000000e+00 : f32
    %33 = vector.broadcast %cst_22 : f32 to vector<192x16xf32>
    %34 = arith.maximumf %32, %33 : vector<192x16xf32>
    %c0_23 = arith.constant 0 : index
    %c0_24 = arith.constant 0 : index
    %35 = memref.load %arg27[%c0_23, %c0_24] : memref<6x6xf32, #tpu.memory_space<smem>>
    %36 = vector.extract_strided_slice %34 {offsets = [0, 0], sizes = [32, 16], strides = [1, 1]} : vector<192x16xf32> to vector<32x16xf32>
    %37 = vector.broadcast %35 : f32 to vector<32x16xf32>
    %38 = arith.mulf %37, %36 : vector<32x16xf32>
    %c0_25 = arith.constant 0 : index
    %c1_26 = arith.constant 1 : index
    %39 = memref.load %arg27[%c0_25, %c1_26] : memref<6x6xf32, #tpu.memory_space<smem>>
    %40 = vector.extract_strided_slice %34 {offsets = [32, 0], sizes = [32, 16], strides = [1, 1]} : vector<192x16xf32> to vector<32x16xf32>
    %41 = vector.broadcast %39 : f32 to vector<32x16xf32>
    %42 = arith.mulf %41, %40 : vector<32x16xf32>
    %43 = arith.addf %38, %42 : vector<32x16xf32>
    %c0_27 = arith.constant 0 : index
    %c2_28 = arith.constant 2 : index
    %44 = memref.load %arg27[%c0_27, %c2_28] : memref<6x6xf32, #tpu.memory_space<smem>>
    %45 = vector.extract_strided_slice %34 {offsets = [64, 0], sizes = [32, 16], strides = [1, 1]} : vector<192x16xf32> to vector<32x16xf32>
    %46 = vector.broadcast %44 : f32 to vector<32x16xf32>
    %47 = arith.mulf %46, %45 : vector<32x16xf32>
    %48 = arith.addf %43, %47 : vector<32x16xf32>
    %c0_29 = arith.constant 0 : index
    %c3_30 = arith.constant 3 : index
    %49 = memref.load %arg27[%c0_29, %c3_30] : memref<6x6xf32, #tpu.memory_space<smem>>
    %50 = vector.extract_strided_slice %34 {offsets = [96, 0], sizes = [32, 16], strides = [1, 1]} : vector<192x16xf32> to vector<32x16xf32>
    %51 = vector.broadcast %49 : f32 to vector<32x16xf32>
    %52 = arith.mulf %51, %50 : vector<32x16xf32>
    %53 = arith.addf %48, %52 : vector<32x16xf32>
    %c0_31 = arith.constant 0 : index
    %c4_32 = arith.constant 4 : index
    %54 = memref.load %arg27[%c0_31, %c4_32] : memref<6x6xf32, #tpu.memory_space<smem>>
    %55 = vector.extract_strided_slice %34 {offsets = [128, 0], sizes = [32, 16], strides = [1, 1]} : vector<192x16xf32> to vector<32x16xf32>
    %56 = vector.broadcast %54 : f32 to vector<32x16xf32>
    %57 = arith.mulf %56, %55 : vector<32x16xf32>
    %58 = arith.addf %53, %57 : vector<32x16xf32>
    %c0_33 = arith.constant 0 : index
    %c5_34 = arith.constant 5 : index
    %59 = memref.load %arg27[%c0_33, %c5_34] : memref<6x6xf32, #tpu.memory_space<smem>>
    %60 = vector.extract_strided_slice %34 {offsets = [160, 0], sizes = [32, 16], strides = [1, 1]} : vector<192x16xf32> to vector<32x16xf32>
    %61 = vector.broadcast %59 : f32 to vector<32x16xf32>
    %62 = arith.mulf %61, %60 : vector<32x16xf32>
    %63 = arith.addf %58, %62 : vector<32x16xf32>
    %cst_35 = arith.constant 0.000000e+00 : f32
    %64 = vector.broadcast %cst_35 : f32 to vector<352x16xf32>
    %c0_36 = arith.constant 0 : index
    %c0_37 = arith.constant 0 : index
    %65 = vector.load %arg31[%c0_36, %c0_37] : memref<480x16xf32, #tpu.memory_space<vmem>>, vector<352x16xf32>
    tpu.vector_store %arg31[%c0_36, %c0_37], %64 {strides = array<i32>} : memref<480x16xf32, #tpu.memory_space<vmem>>, vector<352x16xf32>,
    %66 = vector.extract_strided_slice %63 {offsets = [0, 0], sizes = [32, 11], strides = [1, 1]} : vector<32x16xf32> to vector<32x11xf32>
    %c0_38 = arith.constant 0 : index
    %c5_39 = arith.constant 5 : index
    %67 = vector.load %arg31[%c0_38, %c5_39] : memref<480x16xf32, #tpu.memory_space<vmem>>, vector<32x11xf32>
    tpu.vector_store %arg31[%c0_38, %c5_39], %66 {strides = array<i32>} : memref<480x16xf32, #tpu.memory_space<vmem>>, vector<32x11xf32>,
    %68 = vector.extract_strided_slice %63 {offsets = [0, 0], sizes = [32, 12], strides = [1, 1]} : vector<32x16xf32> to vector<32x12xf32>
    %c32_40 = arith.constant 32 : index
    %c4_41 = arith.constant 4 : index
    %69 = vector.load %arg31[%c32_40, %c4_41] : memref<480x16xf32, #tpu.memory_space<vmem>>, vector<32x12xf32>
    tpu.vector_store %arg31[%c32_40, %c4_41], %68 {strides = array<i32>} : memref<480x16xf32, #tpu.memory_space<vmem>>, vector<32x12xf32>,
    %70 = vector.extract_strided_slice %63 {offsets = [0, 0], sizes = [32, 13], strides = [1, 1]} : vector<32x16xf32> to vector<32x13xf32>
    %c64 = arith.constant 64 : index
    %c3_42 = arith.constant 3 : index
    %71 = vector.load %arg31[%c64, %c3_42] : memref<480x16xf32, #tpu.memory_space<vmem>>, vector<32x13xf32>
    tpu.vector_store %arg31[%c64, %c3_42], %70 {strides = array<i32>} : memref<480x16xf32, #tpu.memory_space<vmem>>, vector<32x13xf32>,
    %72 = vector.extract_strided_slice %63 {offsets = [0, 0], sizes = [32, 14], strides = [1, 1]} : vector<32x16xf32> to vector<32x14xf32>
    %c96 = arith.constant 96 : index
    %c2_43 = arith.constant 2 : index
    %73 = vector.load %arg31[%c96, %c2_43] : memref<480x16xf32, #tpu.memory_space<vmem>>, vector<32x14xf32>
    tpu.vector_store %arg31[%c96, %c2_43], %72 {strides = array<i32>} : memref<480x16xf32, #tpu.memory_space<vmem>>, vector<32x14xf32>,
    %74 = vector.extract_strided_slice %63 {offsets = [0, 0], sizes = [32, 15], strides = [1, 1]} : vector<32x16xf32> to vector<32x15xf32>
    %c128 = arith.constant 128 : index
    %c1_44 = arith.constant 1 : index
    %75 = vector.load %arg31[%c128, %c1_44] : memref<480x16xf32, #tpu.memory_space<vmem>>, vector<32x15xf32>
    tpu.vector_store %arg31[%c128, %c1_44], %74 {strides = array<i32>} : memref<480x16xf32, #tpu.memory_space<vmem>>, vector<32x15xf32>,
    %c160 = arith.constant 160 : index
    %c0_45 = arith.constant 0 : index
    %76 = vector.load %arg31[%c160, %c0_45] : memref<480x16xf32, #tpu.memory_space<vmem>>, vector<32x16xf32>
    tpu.vector_store %arg31[%c160, %c0_45], %63 {strides = array<i32>} : memref<480x16xf32, #tpu.memory_space<vmem>>, vector<32x16xf32>,
    %77 = vector.extract_strided_slice %63 {offsets = [0, 1], sizes = [32, 15], strides = [1, 1]} : vector<32x16xf32> to vector<32x15xf32>
    %c192 = arith.constant 192 : index
    %c0_46 = arith.constant 0 : index
    %78 = vector.load %arg31[%c192, %c0_46] : memref<480x16xf32, #tpu.memory_space<vmem>>, vector<32x15xf32>
    tpu.vector_store %arg31[%c192, %c0_46], %77 {strides = array<i32>} : memref<480x16xf32, #tpu.memory_space<vmem>>, vector<32x15xf32>,
    %79 = vector.extract_strided_slice %63 {offsets = [0, 2], sizes = [32, 14], strides = [1, 1]} : vector<32x16xf32> to vector<32x14xf32>
    %c224 = arith.constant 224 : index
    %c0_47 = arith.constant 0 : index
    %80 = vector.load %arg31[%c224, %c0_47] : memref<480x16xf32, #tpu.memory_space<vmem>>, vector<32x14xf32>
    tpu.vector_store %arg31[%c224, %c0_47], %79 {strides = array<i32>} : memref<480x16xf32, #tpu.memory_space<vmem>>, vector<32x14xf32>,
    %81 = vector.extract_strided_slice %63 {offsets = [0, 3], sizes = [32, 13], strides = [1, 1]} : vector<32x16xf32> to vector<32x13xf32>
    %c256 = arith.constant 256 : index
    %c0_48 = arith.constant 0 : index
    %82 = vector.load %arg31[%c256, %c0_48] : memref<480x16xf32, #tpu.memory_space<vmem>>, vector<32x13xf32>
    tpu.vector_store %arg31[%c256, %c0_48], %81 {strides = array<i32>} : memref<480x16xf32, #tpu.memory_space<vmem>>, vector<32x13xf32>,
    %83 = vector.extract_strided_slice %63 {offsets = [0, 4], sizes = [32, 12], strides = [1, 1]} : vector<32x16xf32> to vector<32x12xf32>
    %c288 = arith.constant 288 : index
    %c0_49 = arith.constant 0 : index
    %84 = vector.load %arg31[%c288, %c0_49] : memref<480x16xf32, #tpu.memory_space<vmem>>, vector<32x12xf32>
    tpu.vector_store %arg31[%c288, %c0_49], %83 {strides = array<i32>} : memref<480x16xf32, #tpu.memory_space<vmem>>, vector<32x12xf32>,
    %85 = vector.extract_strided_slice %63 {offsets = [0, 5], sizes = [32, 11], strides = [1, 1]} : vector<32x16xf32> to vector<32x11xf32>
    %c320 = arith.constant 320 : index
    %c0_50 = arith.constant 0 : index
    %86 = vector.load %arg31[%c320, %c0_50] : memref<480x16xf32, #tpu.memory_space<vmem>>, vector<32x11xf32>
    tpu.vector_store %arg31[%c320, %c0_50], %85 {strides = array<i32>} : memref<480x16xf32, #tpu.memory_space<vmem>>, vector<32x11xf32>,
    %c0_51 = arith.constant 0 : index
    %c0_52 = arith.constant 0 : index
    %87 = vector.load %arg30[%c0_51, %c0_52] : memref<44x16xf32, #tpu.memory_space<vmem>>, vector<44x16xf32>
    %c0_53 = arith.constant 0 : index
    %c0_54 = arith.constant 0 : index
    %88 = vector.load %arg5[%c0_53, %c0_54] : memref<192x44xf32, #tpu.memory_space<vmem>>, vector<192x44xf32>
    %cst_55 = arith.constant dense<0.000000e+00> : vector<192x16xf32>
    %89 = tpu.matmul %88, %87, %cst_55 {dimension_numbers = #tpu.dot_dimension_numbers<[1], [0], [0], [1], [0, 0, 1, 1], [], []>} : vector<192x44xf32>, vector<44x16xf32>, vector<192x16xf32> -> vector<192x16xf32>
    %c0_56 = arith.constant 0 : index
    %c0_57 = arith.constant 0 : index
    %90 = vector.load %arg6[%c0_56, %c0_57] : memref<192x1xf32, #tpu.memory_space<vmem>>, vector<192x1xf32>
    %91 = vector.broadcast %90 : vector<192x1xf32> to vector<192x16xf32>
    %92 = arith.addf %89, %91 : vector<192x16xf32>
    %cst_58 = arith.constant 0.000000e+00 : f32
    %93 = vector.broadcast %cst_58 : f32 to vector<192x16xf32>
    %94 = arith.maximumf %92, %93 : vector<192x16xf32>
    %c1_59 = arith.constant 1 : index
    %c0_60 = arith.constant 0 : index
    %95 = memref.load %arg27[%c1_59, %c0_60] : memref<6x6xf32, #tpu.memory_space<smem>>
    %96 = vector.extract_strided_slice %94 {offsets = [0, 0], sizes = [32, 16], strides = [1, 1]} : vector<192x16xf32> to vector<32x16xf32>
    %97 = vector.broadcast %95 : f32 to vector<32x16xf32>
    %98 = arith.mulf %97, %96 : vector<32x16xf32>
    %c1_61 = arith.constant 1 : index
    %c1_62 = arith.constant 1 : index
    %99 = memref.load %arg27[%c1_61, %c1_62] : memref<6x6xf32, #tpu.memory_space<smem>>
    %100 = vector.extract_strided_slice %94 {offsets = [32, 0], sizes = [32, 16], strides = [1, 1]} : vector<192x16xf32> to vector<32x16xf32>
    %101 = vector.broadcast %99 : f32 to vector<32x16xf32>
    %102 = arith.mulf %101, %100 : vector<32x16xf32>
    %103 = arith.addf %98, %102 : vector<32x16xf32>
    %c1_63 = arith.constant 1 : index
    %c2_64 = arith.constant 2 : index
    %104 = memref.load %arg27[%c1_63, %c2_64] : memref<6x6xf32, #tpu.memory_space<smem>>
    %105 = vector.extract_strided_slice %94 {offsets = [64, 0], sizes = [32, 16], strides = [1, 1]} : vector<192x16xf32> to vector<32x16xf32>
    %106 = vector.broadcast %104 : f32 to vector<32x16xf32>
    %107 = arith.mulf %106, %105 : vector<32x16xf32>
    %108 = arith.addf %103, %107 : vector<32x16xf32>
    %c1_65 = arith.constant 1 : index
    %c3_66 = arith.constant 3 : index
    %109 = memref.load %arg27[%c1_65, %c3_66] : memref<6x6xf32, #tpu.memory_space<smem>>
    %110 = vector.extract_strided_slice %94 {offsets = [96, 0], sizes = [32, 16], strides = [1, 1]} : vector<192x16xf32> to vector<32x16xf32>
    %111 = vector.broadcast %109 : f32 to vector<32x16xf32>
    %112 = arith.mulf %111, %110 : vector<32x16xf32>
    %113 = arith.addf %108, %112 : vector<32x16xf32>
    %c1_67 = arith.constant 1 : index
    %c4_68 = arith.constant 4 : index
    %114 = memref.load %arg27[%c1_67, %c4_68] : memref<6x6xf32, #tpu.memory_space<smem>>
    %115 = vector.extract_strided_slice %94 {offsets = [128, 0], sizes = [32, 16], strides = [1, 1]} : vector<192x16xf32> to vector<32x16xf32>
    %116 = vector.broadcast %114 : f32 to vector<32x16xf32>
    %117 = arith.mulf %116, %115 : vector<32x16xf32>
    %118 = arith.addf %113, %117 : vector<32x16xf32>
    %c1_69 = arith.constant 1 : index
    %c5_70 = arith.constant 5 : index
    %119 = memref.load %arg27[%c1_69, %c5_70] : memref<6x6xf32, #tpu.memory_space<smem>>
    %120 = vector.extract_strided_slice %94 {offsets = [160, 0], sizes = [32, 16], strides = [1, 1]} : vector<192x16xf32> to vector<32x16xf32>
    %121 = vector.broadcast %119 : f32 to vector<32x16xf32>
    %122 = arith.mulf %121, %120 : vector<32x16xf32>
    %123 = arith.addf %118, %122 : vector<32x16xf32>
    %c0_71 = arith.constant 0 : index
    %c0_72 = arith.constant 0 : index
    %124 = vector.load %arg31[%c0_71, %c0_72] : memref<480x16xf32, #tpu.memory_space<vmem>>, vector<352x16xf32>
    %c0_73 = arith.constant 0 : index
    %c0_74 = arith.constant 0 : index
    %125 = vector.load %arg7[%c0_73, %c0_74] : memref<192x352xf32, #tpu.memory_space<vmem>>, vector<192x352xf32>
    %cst_75 = arith.constant dense<0.000000e+00> : vector<192x16xf32>
    %126 = tpu.matmul %125, %124, %cst_75 {dimension_numbers = #tpu.dot_dimension_numbers<[1], [0], [0], [1], [0, 0, 1, 1], [], []>} : vector<192x352xf32>, vector<352x16xf32>, vector<192x16xf32> -> vector<192x16xf32>
    %c0_76 = arith.constant 0 : index
    %c0_77 = arith.constant 0 : index
    %127 = vector.load %arg8[%c0_76, %c0_77] : memref<192x1xf32, #tpu.memory_space<vmem>>, vector<192x1xf32>
    %128 = vector.broadcast %127 : vector<192x1xf32> to vector<192x16xf32>
    %129 = arith.addf %126, %128 : vector<192x16xf32>
    %cst_78 = arith.constant 0.000000e+00 : f32
    %130 = vector.broadcast %cst_78 : f32 to vector<192x16xf32>
    %131 = arith.maximumf %129, %130 : vector<192x16xf32>
    %c2_79 = arith.constant 2 : index
    %c0_80 = arith.constant 0 : index
    %132 = memref.load %arg27[%c2_79, %c0_80] : memref<6x6xf32, #tpu.memory_space<smem>>
    %133 = vector.extract_strided_slice %131 {offsets = [0, 0], sizes = [32, 16], strides = [1, 1]} : vector<192x16xf32> to vector<32x16xf32>
    %134 = vector.broadcast %132 : f32 to vector<32x16xf32>
    %135 = arith.mulf %134, %133 : vector<32x16xf32>
    %c2_81 = arith.constant 2 : index
    %c1_82 = arith.constant 1 : index
    %136 = memref.load %arg27[%c2_81, %c1_82] : memref<6x6xf32, #tpu.memory_space<smem>>
    %137 = vector.extract_strided_slice %131 {offsets = [32, 0], sizes = [32, 16], strides = [1, 1]} : vector<192x16xf32> to vector<32x16xf32>
    %138 = vector.broadcast %136 : f32 to vector<32x16xf32>
    %139 = arith.mulf %138, %137 : vector<32x16xf32>
    %140 = arith.addf %135, %139 : vector<32x16xf32>
    %c2_83 = arith.constant 2 : index
    %c2_84 = arith.constant 2 : index
    %141 = memref.load %arg27[%c2_83, %c2_84] : memref<6x6xf32, #tpu.memory_space<smem>>
    %142 = vector.extract_strided_slice %131 {offsets = [64, 0], sizes = [32, 16], strides = [1, 1]} : vector<192x16xf32> to vector<32x16xf32>
    %143 = vector.broadcast %141 : f32 to vector<32x16xf32>
    %144 = arith.mulf %143, %142 : vector<32x16xf32>
    %145 = arith.addf %140, %144 : vector<32x16xf32>
    %c2_85 = arith.constant 2 : index
    %c3_86 = arith.constant 3 : index
    %146 = memref.load %arg27[%c2_85, %c3_86] : memref<6x6xf32, #tpu.memory_space<smem>>
    %147 = vector.extract_strided_slice %131 {offsets = [96, 0], sizes = [32, 16], strides = [1, 1]} : vector<192x16xf32> to vector<32x16xf32>
    %148 = vector.broadcast %146 : f32 to vector<32x16xf32>
    %149 = arith.mulf %148, %147 : vector<32x16xf32>
    %150 = arith.addf %145, %149 : vector<32x16xf32>
    %c2_87 = arith.constant 2 : index
    %c4_88 = arith.constant 4 : index
    %151 = memref.load %arg27[%c2_87, %c4_88] : memref<6x6xf32, #tpu.memory_space<smem>>
    %152 = vector.extract_strided_slice %131 {offsets = [128, 0], sizes = [32, 16], strides = [1, 1]} : vector<192x16xf32> to vector<32x16xf32>
    %153 = vector.broadcast %151 : f32 to vector<32x16xf32>
    %154 = arith.mulf %153, %152 : vector<32x16xf32>
    %155 = arith.addf %150, %154 : vector<32x16xf32>
    %c2_89 = arith.constant 2 : index
    %c5_90 = arith.constant 5 : index
    %156 = memref.load %arg27[%c2_89, %c5_90] : memref<6x6xf32, #tpu.memory_space<smem>>
    %157 = vector.extract_strided_slice %131 {offsets = [160, 0], sizes = [32, 16], strides = [1, 1]} : vector<192x16xf32> to vector<32x16xf32>
    %158 = vector.broadcast %156 : f32 to vector<32x16xf32>
    %159 = arith.mulf %158, %157 : vector<32x16xf32>
    %160 = arith.addf %155, %159 : vector<32x16xf32>
    %161 = arith.addf %123, %160 : vector<32x16xf32>
    %cst_91 = arith.constant 0.000000e+00 : f32
    %162 = vector.broadcast %cst_91 : f32 to vector<352x16xf32>
    %c0_92 = arith.constant 0 : index
    %c0_93 = arith.constant 0 : index
    %163 = vector.load %arg32[%c0_92, %c0_93] : memref<480x16xf32, #tpu.memory_space<vmem>>, vector<352x16xf32>
    tpu.vector_store %arg32[%c0_92, %c0_93], %162 {strides = array<i32>} : memref<480x16xf32, #tpu.memory_space<vmem>>, vector<352x16xf32>,
    %164 = vector.extract_strided_slice %161 {offsets = [0, 0], sizes = [32, 11], strides = [1, 1]} : vector<32x16xf32> to vector<32x11xf32>
    %c0_94 = arith.constant 0 : index
    %c5_95 = arith.constant 5 : index
    %165 = vector.load %arg32[%c0_94, %c5_95] : memref<480x16xf32, #tpu.memory_space<vmem>>, vector<32x11xf32>
    tpu.vector_store %arg32[%c0_94, %c5_95], %164 {strides = array<i32>} : memref<480x16xf32, #tpu.memory_space<vmem>>, vector<32x11xf32>,
    %166 = vector.extract_strided_slice %161 {offsets = [0, 0], sizes = [32, 12], strides = [1, 1]} : vector<32x16xf32> to vector<32x12xf32>
    %c32_96 = arith.constant 32 : index
    %c4_97 = arith.constant 4 : index
    %167 = vector.load %arg32[%c32_96, %c4_97] : memref<480x16xf32, #tpu.memory_space<vmem>>, vector<32x12xf32>
    tpu.vector_store %arg32[%c32_96, %c4_97], %166 {strides = array<i32>} : memref<480x16xf32, #tpu.memory_space<vmem>>, vector<32x12xf32>,
    %168 = vector.extract_strided_slice %161 {offsets = [0, 0], sizes = [32, 13], strides = [1, 1]} : vector<32x16xf32> to vector<32x13xf32>
    %c64_98 = arith.constant 64 : index
    %c3_99 = arith.constant 3 : index
    %169 = vector.load %arg32[%c64_98, %c3_99] : memref<480x16xf32, #tpu.memory_space<vmem>>, vector<32x13xf32>
    tpu.vector_store %arg32[%c64_98, %c3_99], %168 {strides = array<i32>} : memref<480x16xf32, #tpu.memory_space<vmem>>, vector<32x13xf32>,
    %170 = vector.extract_strided_slice %161 {offsets = [0, 0], sizes = [32, 14], strides = [1, 1]} : vector<32x16xf32> to vector<32x14xf32>
    %c96_100 = arith.constant 96 : index
    %c2_101 = arith.constant 2 : index
    %171 = vector.load %arg32[%c96_100, %c2_101] : memref<480x16xf32, #tpu.memory_space<vmem>>, vector<32x14xf32>
    tpu.vector_store %arg32[%c96_100, %c2_101], %170 {strides = array<i32>} : memref<480x16xf32, #tpu.memory_space<vmem>>, vector<32x14xf32>,
    %172 = vector.extract_strided_slice %161 {offsets = [0, 0], sizes = [32, 15], strides = [1, 1]} : vector<32x16xf32> to vector<32x15xf32>
    %c128_102 = arith.constant 128 : index
    %c1_103 = arith.constant 1 : index
    %173 = vector.load %arg32[%c128_102, %c1_103] : memref<480x16xf32, #tpu.memory_space<vmem>>, vector<32x15xf32>
    tpu.vector_store %arg32[%c128_102, %c1_103], %172 {strides = array<i32>} : memref<480x16xf32, #tpu.memory_space<vmem>>, vector<32x15xf32>,
    %c160_104 = arith.constant 160 : index
    %c0_105 = arith.constant 0 : index
    %174 = vector.load %arg32[%c160_104, %c0_105] : memref<480x16xf32, #tpu.memory_space<vmem>>, vector<32x16xf32>
    tpu.vector_store %arg32[%c160_104, %c0_105], %161 {strides = array<i32>} : memref<480x16xf32, #tpu.memory_space<vmem>>, vector<32x16xf32>,
    %175 = vector.extract_strided_slice %161 {offsets = [0, 1], sizes = [32, 15], strides = [1, 1]} : vector<32x16xf32> to vector<32x15xf32>
    %c192_106 = arith.constant 192 : index
    %c0_107 = arith.constant 0 : index
    %176 = vector.load %arg32[%c192_106, %c0_107] : memref<480x16xf32, #tpu.memory_space<vmem>>, vector<32x15xf32>
    tpu.vector_store %arg32[%c192_106, %c0_107], %175 {strides = array<i32>} : memref<480x16xf32, #tpu.memory_space<vmem>>, vector<32x15xf32>,
    %177 = vector.extract_strided_slice %161 {offsets = [0, 2], sizes = [32, 14], strides = [1, 1]} : vector<32x16xf32> to vector<32x14xf32>
    %c224_108 = arith.constant 224 : index
    %c0_109 = arith.constant 0 : index
    %178 = vector.load %arg32[%c224_108, %c0_109] : memref<480x16xf32, #tpu.memory_space<vmem>>, vector<32x14xf32>
    tpu.vector_store %arg32[%c224_108, %c0_109], %177 {strides = array<i32>} : memref<480x16xf32, #tpu.memory_space<vmem>>, vector<32x14xf32>,
    %179 = vector.extract_strided_slice %161 {offsets = [0, 3], sizes = [32, 13], strides = [1, 1]} : vector<32x16xf32> to vector<32x13xf32>
    %c256_110 = arith.constant 256 : index
    %c0_111 = arith.constant 0 : index
    %180 = vector.load %arg32[%c256_110, %c0_111] : memref<480x16xf32, #tpu.memory_space<vmem>>, vector<32x13xf32>
    tpu.vector_store %arg32[%c256_110, %c0_111], %179 {strides = array<i32>} : memref<480x16xf32, #tpu.memory_space<vmem>>, vector<32x13xf32>,
    %181 = vector.extract_strided_slice %161 {offsets = [0, 4], sizes = [32, 12], strides = [1, 1]} : vector<32x16xf32> to vector<32x12xf32>
    %c288_112 = arith.constant 288 : index
    %c0_113 = arith.constant 0 : index
    %182 = vector.load %arg32[%c288_112, %c0_113] : memref<480x16xf32, #tpu.memory_space<vmem>>, vector<32x12xf32>
    tpu.vector_store %arg32[%c288_112, %c0_113], %181 {strides = array<i32>} : memref<480x16xf32, #tpu.memory_space<vmem>>, vector<32x12xf32>,
    %183 = vector.extract_strided_slice %161 {offsets = [0, 5], sizes = [32, 11], strides = [1, 1]} : vector<32x16xf32> to vector<32x11xf32>
    %c320_114 = arith.constant 320 : index
    %c0_115 = arith.constant 0 : index
    %184 = vector.load %arg32[%c320_114, %c0_115] : memref<480x16xf32, #tpu.memory_space<vmem>>, vector<32x11xf32>
    tpu.vector_store %arg32[%c320_114, %c0_115], %183 {strides = array<i32>} : memref<480x16xf32, #tpu.memory_space<vmem>>, vector<32x11xf32>,
    %c0_116 = arith.constant 0 : index
    %c0_117 = arith.constant 0 : index
    %185 = vector.load %arg30[%c0_116, %c0_117] : memref<44x16xf32, #tpu.memory_space<vmem>>, vector<44x16xf32>
    %c0_118 = arith.constant 0 : index
    %c0_119 = arith.constant 0 : index
    %186 = vector.load %arg9[%c0_118, %c0_119] : memref<6x44xf32, #tpu.memory_space<vmem>>, vector<6x44xf32>
    %cst_120 = arith.constant dense<0.000000e+00> : vector<6x16xf32>
    %187 = tpu.matmul %186, %185, %cst_120 {dimension_numbers = #tpu.dot_dimension_numbers<[1], [0], [0], [1], [0, 0, 1, 1], [], []>} : vector<6x44xf32>, vector<44x16xf32>, vector<6x16xf32> -> vector<6x16xf32>
    %c0_121 = arith.constant 0 : index
    %c0_122 = arith.constant 0 : index
    %188 = vector.load %arg10[%c0_121, %c0_122] : memref<6x1xf32, #tpu.memory_space<vmem>>, vector<6x1xf32>
    %189 = vector.broadcast %188 : vector<6x1xf32> to vector<6x16xf32>
    %190 = arith.addf %187, %189 : vector<6x16xf32>
    %191 = arith.negf %190 : vector<6x16xf32>
    %192 = math.exp %191 : vector<6x16xf32>
    %cst_123 = arith.constant 1.000000e+00 : f32
    %193 = vector.broadcast %cst_123 : f32 to vector<6x16xf32>
    %194 = arith.addf %193, %192 : vector<6x16xf32>
    %195 = arith.divf %193, %194 : vector<6x16xf32>
    %c3_124 = arith.constant 3 : index
    %c0_125 = arith.constant 0 : index
    %196 = memref.load %arg27[%c3_124, %c0_125] : memref<6x6xf32, #tpu.memory_space<smem>>
    %197 = vector.extract_strided_slice %195 {offsets = [0, 0], sizes = [1, 16], strides = [1, 1]} : vector<6x16xf32> to vector<1x16xf32>
    %198 = vector.broadcast %196 : f32 to vector<1x16xf32>
    %199 = arith.mulf %198, %197 : vector<1x16xf32>
    %c3_126 = arith.constant 3 : index
    %c1_127 = arith.constant 1 : index
    %200 = memref.load %arg27[%c3_126, %c1_127] : memref<6x6xf32, #tpu.memory_space<smem>>
    %201 = vector.extract_strided_slice %195 {offsets = [1, 0], sizes = [1, 16], strides = [1, 1]} : vector<6x16xf32> to vector<1x16xf32>
    %202 = vector.broadcast %200 : f32 to vector<1x16xf32>
    %203 = arith.mulf %202, %201 : vector<1x16xf32>
    %204 = arith.addf %199, %203 : vector<1x16xf32>
    %c3_128 = arith.constant 3 : index
    %c2_129 = arith.constant 2 : index
    %205 = memref.load %arg27[%c3_128, %c2_129] : memref<6x6xf32, #tpu.memory_space<smem>>
    %206 = vector.extract_strided_slice %195 {offsets = [2, 0], sizes = [1, 16], strides = [1, 1]} : vector<6x16xf32> to vector<1x16xf32>
    %207 = vector.broadcast %205 : f32 to vector<1x16xf32>
    %208 = arith.mulf %207, %206 : vector<1x16xf32>
    %209 = arith.addf %204, %208 : vector<1x16xf32>
    %c3_130 = arith.constant 3 : index
    %c3_131 = arith.constant 3 : index
    %210 = memref.load %arg27[%c3_130, %c3_131] : memref<6x6xf32, #tpu.memory_space<smem>>
    %211 = vector.extract_strided_slice %195 {offsets = [3, 0], sizes = [1, 16], strides = [1, 1]} : vector<6x16xf32> to vector<1x16xf32>
    %212 = vector.broadcast %210 : f32 to vector<1x16xf32>
    %213 = arith.mulf %212, %211 : vector<1x16xf32>
    %214 = arith.addf %209, %213 : vector<1x16xf32>
    %c3_132 = arith.constant 3 : index
    %c4_133 = arith.constant 4 : index
    %215 = memref.load %arg27[%c3_132, %c4_133] : memref<6x6xf32, #tpu.memory_space<smem>>
    %216 = vector.extract_strided_slice %195 {offsets = [4, 0], sizes = [1, 16], strides = [1, 1]} : vector<6x16xf32> to vector<1x16xf32>
    %217 = vector.broadcast %215 : f32 to vector<1x16xf32>
    %218 = arith.mulf %217, %216 : vector<1x16xf32>
    %219 = arith.addf %214, %218 : vector<1x16xf32>
    %c3_134 = arith.constant 3 : index
    %c5_135 = arith.constant 5 : index
    %220 = memref.load %arg27[%c3_134, %c5_135] : memref<6x6xf32, #tpu.memory_space<smem>>
    %221 = vector.extract_strided_slice %195 {offsets = [5, 0], sizes = [1, 16], strides = [1, 1]} : vector<6x16xf32> to vector<1x16xf32>
    %222 = vector.broadcast %220 : f32 to vector<1x16xf32>
    %223 = arith.mulf %222, %221 : vector<1x16xf32>
    %224 = arith.addf %219, %223 : vector<1x16xf32>
    %c0_136 = arith.constant 0 : index
    %c0_137 = arith.constant 0 : index
    %225 = vector.load %arg31[%c0_136, %c0_137] : memref<480x16xf32, #tpu.memory_space<vmem>>, vector<352x16xf32>
    %c0_138 = arith.constant 0 : index
    %c0_139 = arith.constant 0 : index
    %226 = vector.load %arg11[%c0_138, %c0_139] : memref<6x352xf32, #tpu.memory_space<vmem>>, vector<6x352xf32>
    %cst_140 = arith.constant dense<0.000000e+00> : vector<6x16xf32>
    %227 = tpu.matmul %226, %225, %cst_140 {dimension_numbers = #tpu.dot_dimension_numbers<[1], [0], [0], [1], [0, 0, 1, 1], [], []>} : vector<6x352xf32>, vector<352x16xf32>, vector<6x16xf32> -> vector<6x16xf32>
    %c0_141 = arith.constant 0 : index
    %c0_142 = arith.constant 0 : index
    %228 = vector.load %arg12[%c0_141, %c0_142] : memref<6x1xf32, #tpu.memory_space<vmem>>, vector<6x1xf32>
    %229 = vector.broadcast %228 : vector<6x1xf32> to vector<6x16xf32>
    %230 = arith.addf %227, %229 : vector<6x16xf32>
    %231 = arith.negf %230 : vector<6x16xf32>
    %232 = math.exp %231 : vector<6x16xf32>
    %cst_143 = arith.constant 1.000000e+00 : f32
    %233 = vector.broadcast %cst_143 : f32 to vector<6x16xf32>
    %234 = arith.addf %233, %232 : vector<6x16xf32>
    %235 = arith.divf %233, %234 : vector<6x16xf32>
    %c4_144 = arith.constant 4 : index
    %c0_145 = arith.constant 0 : index
    %236 = memref.load %arg27[%c4_144, %c0_145] : memref<6x6xf32, #tpu.memory_space<smem>>
    %237 = vector.extract_strided_slice %235 {offsets = [0, 0], sizes = [1, 16], strides = [1, 1]} : vector<6x16xf32> to vector<1x16xf32>
    %238 = vector.broadcast %236 : f32 to vector<1x16xf32>
    %239 = arith.mulf %238, %237 : vector<1x16xf32>
    %c4_146 = arith.constant 4 : index
    %c1_147 = arith.constant 1 : index
    %240 = memref.load %arg27[%c4_146, %c1_147] : memref<6x6xf32, #tpu.memory_space<smem>>
    %241 = vector.extract_strided_slice %235 {offsets = [1, 0], sizes = [1, 16], strides = [1, 1]} : vector<6x16xf32> to vector<1x16xf32>
    %242 = vector.broadcast %240 : f32 to vector<1x16xf32>
    %243 = arith.mulf %242, %241 : vector<1x16xf32>
    %244 = arith.addf %239, %243 : vector<1x16xf32>
    %c4_148 = arith.constant 4 : index
    %c2_149 = arith.constant 2 : index
    %245 = memref.load %arg27[%c4_148, %c2_149] : memref<6x6xf32, #tpu.memory_space<smem>>
    %246 = vector.extract_strided_slice %235 {offsets = [2, 0], sizes = [1, 16], strides = [1, 1]} : vector<6x16xf32> to vector<1x16xf32>
    %247 = vector.broadcast %245 : f32 to vector<1x16xf32>
    %248 = arith.mulf %247, %246 : vector<1x16xf32>
    %249 = arith.addf %244, %248 : vector<1x16xf32>
    %c4_150 = arith.constant 4 : index
    %c3_151 = arith.constant 3 : index
    %250 = memref.load %arg27[%c4_150, %c3_151] : memref<6x6xf32, #tpu.memory_space<smem>>
    %251 = vector.extract_strided_slice %235 {offsets = [3, 0], sizes = [1, 16], strides = [1, 1]} : vector<6x16xf32> to vector<1x16xf32>
    %252 = vector.broadcast %250 : f32 to vector<1x16xf32>
    %253 = arith.mulf %252, %251 : vector<1x16xf32>
    %254 = arith.addf %249, %253 : vector<1x16xf32>
    %c4_152 = arith.constant 4 : index
    %c4_153 = arith.constant 4 : index
    %255 = memref.load %arg27[%c4_152, %c4_153] : memref<6x6xf32, #tpu.memory_space<smem>>
    %256 = vector.extract_strided_slice %235 {offsets = [4, 0], sizes = [1, 16], strides = [1, 1]} : vector<6x16xf32> to vector<1x16xf32>
    %257 = vector.broadcast %255 : f32 to vector<1x16xf32>
    %258 = arith.mulf %257, %256 : vector<1x16xf32>
    %259 = arith.addf %254, %258 : vector<1x16xf32>
    %c4_154 = arith.constant 4 : index
    %c5_155 = arith.constant 5 : index
    %260 = memref.load %arg27[%c4_154, %c5_155] : memref<6x6xf32, #tpu.memory_space<smem>>
    %261 = vector.extract_strided_slice %235 {offsets = [5, 0], sizes = [1, 16], strides = [1, 1]} : vector<6x16xf32> to vector<1x16xf32>
    %262 = vector.broadcast %260 : f32 to vector<1x16xf32>
    %263 = arith.mulf %262, %261 : vector<1x16xf32>
    %264 = arith.addf %259, %263 : vector<1x16xf32>
    %265 = arith.addf %224, %264 : vector<1x16xf32>
    %c0_156 = arith.constant 0 : index
    %c0_157 = arith.constant 0 : index
    %266 = vector.load %arg32[%c0_156, %c0_157] : memref<480x16xf32, #tpu.memory_space<vmem>>, vector<352x16xf32>
    %c0_158 = arith.constant 0 : index
    %c0_159 = arith.constant 0 : index
    %267 = vector.load %arg13[%c0_158, %c0_159] : memref<6x352xf32, #tpu.memory_space<vmem>>, vector<6x352xf32>
    %cst_160 = arith.constant dense<0.000000e+00> : vector<6x16xf32>
    %268 = tpu.matmul %267, %266, %cst_160 {dimension_numbers = #tpu.dot_dimension_numbers<[1], [0], [0], [1], [0, 0, 1, 1], [], []>} : vector<6x352xf32>, vector<352x16xf32>, vector<6x16xf32> -> vector<6x16xf32>
    %c0_161 = arith.constant 0 : index
    %c0_162 = arith.constant 0 : index
    %269 = vector.load %arg14[%c0_161, %c0_162] : memref<6x1xf32, #tpu.memory_space<vmem>>, vector<6x1xf32>
    %270 = vector.broadcast %269 : vector<6x1xf32> to vector<6x16xf32>
    %271 = arith.addf %268, %270 : vector<6x16xf32>
    %272 = arith.negf %271 : vector<6x16xf32>
    %273 = math.exp %272 : vector<6x16xf32>
    %cst_163 = arith.constant 1.000000e+00 : f32
    %274 = vector.broadcast %cst_163 : f32 to vector<6x16xf32>
    %275 = arith.addf %274, %273 : vector<6x16xf32>
    %276 = arith.divf %274, %275 : vector<6x16xf32>
    %c5_164 = arith.constant 5 : index
    %c0_165 = arith.constant 0 : index
    %277 = memref.load %arg27[%c5_164, %c0_165] : memref<6x6xf32, #tpu.memory_space<smem>>
    %278 = vector.extract_strided_slice %276 {offsets = [0, 0], sizes = [1, 16], strides = [1, 1]} : vector<6x16xf32> to vector<1x16xf32>
    %279 = vector.broadcast %277 : f32 to vector<1x16xf32>
    %280 = arith.mulf %279, %278 : vector<1x16xf32>
    %c5_166 = arith.constant 5 : index
    %c1_167 = arith.constant 1 : index
    %281 = memref.load %arg27[%c5_166, %c1_167] : memref<6x6xf32, #tpu.memory_space<smem>>
    %282 = vector.extract_strided_slice %276 {offsets = [1, 0], sizes = [1, 16], strides = [1, 1]} : vector<6x16xf32> to vector<1x16xf32>
    %283 = vector.broadcast %281 : f32 to vector<1x16xf32>
    %284 = arith.mulf %283, %282 : vector<1x16xf32>
    %285 = arith.addf %280, %284 : vector<1x16xf32>
    %c5_168 = arith.constant 5 : index
    %c2_169 = arith.constant 2 : index
    %286 = memref.load %arg27[%c5_168, %c2_169] : memref<6x6xf32, #tpu.memory_space<smem>>
    %287 = vector.extract_strided_slice %276 {offsets = [2, 0], sizes = [1, 16], strides = [1, 1]} : vector<6x16xf32> to vector<1x16xf32>
    %288 = vector.broadcast %286 : f32 to vector<1x16xf32>
    %289 = arith.mulf %288, %287 : vector<1x16xf32>
    %290 = arith.addf %285, %289 : vector<1x16xf32>
    %c5_170 = arith.constant 5 : index
    %c3_171 = arith.constant 3 : index
    %291 = memref.load %arg27[%c5_170, %c3_171] : memref<6x6xf32, #tpu.memory_space<smem>>
    %292 = vector.extract_strided_slice %276 {offsets = [3, 0], sizes = [1, 16], strides = [1, 1]} : vector<6x16xf32> to vector<1x16xf32>
    %293 = vector.broadcast %291 : f32 to vector<1x16xf32>
    %294 = arith.mulf %293, %292 : vector<1x16xf32>
    %295 = arith.addf %290, %294 : vector<1x16xf32>
    %c5_172 = arith.constant 5 : index
    %c4_173 = arith.constant 4 : index
    %296 = memref.load %arg27[%c5_172, %c4_173] : memref<6x6xf32, #tpu.memory_space<smem>>
    %297 = vector.extract_strided_slice %276 {offsets = [4, 0], sizes = [1, 16], strides = [1, 1]} : vector<6x16xf32> to vector<1x16xf32>
    %298 = vector.broadcast %296 : f32 to vector<1x16xf32>
    %299 = arith.mulf %298, %297 : vector<1x16xf32>
    %300 = arith.addf %295, %299 : vector<1x16xf32>
    %c5_174 = arith.constant 5 : index
    %c5_175 = arith.constant 5 : index
    %301 = memref.load %arg27[%c5_174, %c5_175] : memref<6x6xf32, #tpu.memory_space<smem>>
    %302 = vector.extract_strided_slice %276 {offsets = [5, 0], sizes = [1, 16], strides = [1, 1]} : vector<6x16xf32> to vector<1x16xf32>
    %303 = vector.broadcast %301 : f32 to vector<1x16xf32>
    %304 = arith.mulf %303, %302 : vector<1x16xf32>
    %305 = arith.addf %300, %304 : vector<1x16xf32>
    %306 = arith.addf %265, %305 : vector<1x16xf32>
    %cst_176 = arith.constant 0.333333343 : f32
    %307 = vector.broadcast %cst_176 : f32 to vector<1x16xf32>
    %308 = arith.mulf %306, %307 : vector<1x16xf32>
    %309 = vector.broadcast %308 : vector<1x16xf32> to vector<4x16xf32>
    %310 = arith.mulf %1, %309 : vector<4x16xf32>
    %cst_177 = arith.constant 0.000000e+00 : f32
    %311 = vector.broadcast %cst_177 : f32 to vector<15x4xf32>
    %c0_178 = arith.constant 0 : index
    %c0_179 = arith.constant 0 : index
    %312 = vector.load %arg30[%c0_178, %c0_179] : memref<44x16xf32, #tpu.memory_space<vmem>>, vector<15x4xf32>
    tpu.vector_store %arg30[%c0_178, %c0_179], %311 {strides = array<i32>} : memref<44x16xf32, #tpu.memory_space<vmem>>, vector<15x4xf32>,
    %313 = vector.extract_strided_slice %3 {offsets = [0, 0], sizes = [1, 1], strides = [1, 1]} : vector<1x4xf32> to vector<1x1xf32>
    %c4_180 = arith.constant 4 : index
    %c3_181 = arith.constant 3 : index
    %314 = vector.load %arg30[%c4_180, %c3_181] : memref<44x16xf32, #tpu.memory_space<vmem>>, vector<1x1xf32>
    tpu.vector_store %arg30[%c4_180, %c3_181], %313 {strides = array<i32>} : memref<44x16xf32, #tpu.memory_space<vmem>>, vector<1x1xf32>,
    %315 = vector.extract_strided_slice %3 {offsets = [0, 0], sizes = [1, 2], strides = [1, 1]} : vector<1x4xf32> to vector<1x2xf32>
    %c5_182 = arith.constant 5 : index
    %c2_183 = arith.constant 2 : index
    %316 = vector.load %arg30[%c5_182, %c2_183] : memref<44x16xf32, #tpu.memory_space<vmem>>, vector<1x2xf32>
    tpu.vector_store %arg30[%c5_182, %c2_183], %315 {strides = array<i32>} : memref<44x16xf32, #tpu.memory_space<vmem>>, vector<1x2xf32>,
    %317 = vector.extract_strided_slice %3 {offsets = [0, 0], sizes = [1, 3], strides = [1, 1]} : vector<1x4xf32> to vector<1x3xf32>
    %c6 = arith.constant 6 : index
    %c1_184 = arith.constant 1 : index
    %318 = vector.load %arg30[%c6, %c1_184] : memref<44x16xf32, #tpu.memory_space<vmem>>, vector<1x3xf32>
    tpu.vector_store %arg30[%c6, %c1_184], %317 {strides = array<i32>} : memref<44x16xf32, #tpu.memory_space<vmem>>, vector<1x3xf32>,
    %c7 = arith.constant 7 : index
    %c0_185 = arith.constant 0 : index
    %319 = vector.load %arg30[%c7, %c0_185] : memref<44x16xf32, #tpu.memory_space<vmem>>, vector<1x4xf32>
    tpu.vector_store %arg30[%c7, %c0_185], %3 {strides = array<i32>} : memref<44x16xf32, #tpu.memory_space<vmem>>, vector<1x4xf32>,
    %320 = vector.extract_strided_slice %3 {offsets = [0, 1], sizes = [1, 3], strides = [1, 1]} : vector<1x4xf32> to vector<1x3xf32>
    %c8_186 = arith.constant 8 : index
    %c0_187 = arith.constant 0 : index
    %321 = vector.load %arg30[%c8_186, %c0_187] : memref<44x16xf32, #tpu.memory_space<vmem>>, vector<1x3xf32>
    tpu.vector_store %arg30[%c8_186, %c0_187], %320 {strides = array<i32>} : memref<44x16xf32, #tpu.memory_space<vmem>>, vector<1x3xf32>,
    %322 = vector.extract_strided_slice %3 {offsets = [0, 2], sizes = [1, 2], strides = [1, 1]} : vector<1x4xf32> to vector<1x2xf32>
    %c9 = arith.constant 9 : index
    %c0_188 = arith.constant 0 : index
    %323 = vector.load %arg30[%c9, %c0_188] : memref<44x16xf32, #tpu.memory_space<vmem>>, vector<1x2xf32>
    tpu.vector_store %arg30[%c9, %c0_188], %322 {strides = array<i32>} : memref<44x16xf32, #tpu.memory_space<vmem>>, vector<1x2xf32>,
    %324 = vector.extract_strided_slice %3 {offsets = [0, 3], sizes = [1, 1], strides = [1, 1]} : vector<1x4xf32> to vector<1x1xf32>
    %c10 = arith.constant 10 : index
    %c0_189 = arith.constant 0 : index
    %325 = vector.load %arg30[%c10, %c0_189] : memref<44x16xf32, #tpu.memory_space<vmem>>, vector<1x1xf32>
    tpu.vector_store %arg30[%c10, %c0_189], %324 {strides = array<i32>} : memref<44x16xf32, #tpu.memory_space<vmem>>, vector<1x1xf32>,
    %c0_190 = arith.constant 0 : index
    %c0_191 = arith.constant 0 : index
    %326 = vector.load %arg30[%c0_190, %c0_191] : memref<44x16xf32, #tpu.memory_space<vmem>>, vector<15x4xf32>
    %c0_192 = arith.constant 0 : index
    %c0_193 = arith.constant 0 : index
    %327 = vector.load %arg15[%c0_192, %c0_193] : memref<256x15xf32, #tpu.memory_space<vmem>>, vector<256x15xf32>
    %cst_194 = arith.constant dense<0.000000e+00> : vector<256x4xf32>
    %328 = tpu.matmul %327, %326, %cst_194 {dimension_numbers = #tpu.dot_dimension_numbers<[1], [0], [0], [1], [0, 0, 1, 1], [], []>} : vector<256x15xf32>, vector<15x4xf32>, vector<256x4xf32> -> vector<256x4xf32>
    %c0_195 = arith.constant 0 : index
    %c0_196 = arith.constant 0 : index
    %329 = vector.load %arg16[%c0_195, %c0_196] : memref<256x1xf32, #tpu.memory_space<vmem>>, vector<256x1xf32>
    %330 = vector.broadcast %329 : vector<256x1xf32> to vector<256x4xf32>
    %331 = arith.addf %328, %330 : vector<256x4xf32>
    %cst_197 = arith.constant 0.000000e+00 : f32
    %332 = vector.broadcast %cst_197 : f32 to vector<256x4xf32>
    %333 = arith.maximumf %331, %332 : vector<256x4xf32>
    %c0_198 = arith.constant 0 : index
    %c0_199 = arith.constant 0 : index
    %334 = memref.load %arg28[%c0_198, %c0_199] : memref<6x8xf32, #tpu.memory_space<smem>>
    %335 = vector.extract_strided_slice %333 {offsets = [0, 0], sizes = [32, 4], strides = [1, 1]} : vector<256x4xf32> to vector<32x4xf32>
    %336 = vector.broadcast %334 : f32 to vector<32x4xf32>
    %337 = arith.mulf %336, %335 : vector<32x4xf32>
    %c0_200 = arith.constant 0 : index
    %c1_201 = arith.constant 1 : index
    %338 = memref.load %arg28[%c0_200, %c1_201] : memref<6x8xf32, #tpu.memory_space<smem>>
    %339 = vector.extract_strided_slice %333 {offsets = [32, 0], sizes = [32, 4], strides = [1, 1]} : vector<256x4xf32> to vector<32x4xf32>
    %340 = vector.broadcast %338 : f32 to vector<32x4xf32>
    %341 = arith.mulf %340, %339 : vector<32x4xf32>
    %342 = arith.addf %337, %341 : vector<32x4xf32>
    %c0_202 = arith.constant 0 : index
    %c2_203 = arith.constant 2 : index
    %343 = memref.load %arg28[%c0_202, %c2_203] : memref<6x8xf32, #tpu.memory_space<smem>>
    %344 = vector.extract_strided_slice %333 {offsets = [64, 0], sizes = [32, 4], strides = [1, 1]} : vector<256x4xf32> to vector<32x4xf32>
    %345 = vector.broadcast %343 : f32 to vector<32x4xf32>
    %346 = arith.mulf %345, %344 : vector<32x4xf32>
    %347 = arith.addf %342, %346 : vector<32x4xf32>
    %c0_204 = arith.constant 0 : index
    %c3_205 = arith.constant 3 : index
    %348 = memref.load %arg28[%c0_204, %c3_205] : memref<6x8xf32, #tpu.memory_space<smem>>
    %349 = vector.extract_strided_slice %333 {offsets = [96, 0], sizes = [32, 4], strides = [1, 1]} : vector<256x4xf32> to vector<32x4xf32>
    %350 = vector.broadcast %348 : f32 to vector<32x4xf32>
    %351 = arith.mulf %350, %349 : vector<32x4xf32>
    %352 = arith.addf %347, %351 : vector<32x4xf32>
    %c0_206 = arith.constant 0 : index
    %c4_207 = arith.constant 4 : index
    %353 = memref.load %arg28[%c0_206, %c4_207] : memref<6x8xf32, #tpu.memory_space<smem>>
    %354 = vector.extract_strided_slice %333 {offsets = [128, 0], sizes = [32, 4], strides = [1, 1]} : vector<256x4xf32> to vector<32x4xf32>
    %355 = vector.broadcast %353 : f32 to vector<32x4xf32>
    %356 = arith.mulf %355, %354 : vector<32x4xf32>
    %357 = arith.addf %352, %356 : vector<32x4xf32>
    %c0_208 = arith.constant 0 : index
    %c5_209 = arith.constant 5 : index
    %358 = memref.load %arg28[%c0_208, %c5_209] : memref<6x8xf32, #tpu.memory_space<smem>>
    %359 = vector.extract_strided_slice %333 {offsets = [160, 0], sizes = [32, 4], strides = [1, 1]} : vector<256x4xf32> to vector<32x4xf32>
    %360 = vector.broadcast %358 : f32 to vector<32x4xf32>
    %361 = arith.mulf %360, %359 : vector<32x4xf32>
    %362 = arith.addf %357, %361 : vector<32x4xf32>
    %c0_210 = arith.constant 0 : index
    %c6_211 = arith.constant 6 : index
    %363 = memref.load %arg28[%c0_210, %c6_211] : memref<6x8xf32, #tpu.memory_space<smem>>
    %364 = vector.extract_strided_slice %333 {offsets = [192, 0], sizes = [32, 4], strides = [1, 1]} : vector<256x4xf32> to vector<32x4xf32>
    %365 = vector.broadcast %363 : f32 to vector<32x4xf32>
    %366 = arith.mulf %365, %364 : vector<32x4xf32>
    %367 = arith.addf %362, %366 : vector<32x4xf32>
    %c0_212 = arith.constant 0 : index
    %c7_213 = arith.constant 7 : index
    %368 = memref.load %arg28[%c0_212, %c7_213] : memref<6x8xf32, #tpu.memory_space<smem>>
    %369 = vector.extract_strided_slice %333 {offsets = [224, 0], sizes = [32, 4], strides = [1, 1]} : vector<256x4xf32> to vector<32x4xf32>
    %370 = vector.broadcast %368 : f32 to vector<32x4xf32>
    %371 = arith.mulf %370, %369 : vector<32x4xf32>
    %372 = arith.addf %367, %371 : vector<32x4xf32>
    %cst_214 = arith.constant 0.000000e+00 : f32
    %373 = vector.broadcast %cst_214 : f32 to vector<480x4xf32>
    %c0_215 = arith.constant 0 : index
    %c0_216 = arith.constant 0 : index
    %374 = vector.load %arg31[%c0_215, %c0_216] : memref<480x16xf32, #tpu.memory_space<vmem>>, vector<480x4xf32>
    tpu.vector_store %arg31[%c0_215, %c0_216], %373 {strides = array<i32>} : memref<480x16xf32, #tpu.memory_space<vmem>>, vector<480x4xf32>,
    %375 = vector.extract_strided_slice %372 {offsets = [0, 0], sizes = [32, 1], strides = [1, 1]} : vector<32x4xf32> to vector<32x1xf32>
    %c128_217 = arith.constant 128 : index
    %c3_218 = arith.constant 3 : index
    %376 = vector.load %arg31[%c128_217, %c3_218] : memref<480x16xf32, #tpu.memory_space<vmem>>, vector<32x1xf32>
    tpu.vector_store %arg31[%c128_217, %c3_218], %375 {strides = array<i32>} : memref<480x16xf32, #tpu.memory_space<vmem>>, vector<32x1xf32>,
    %377 = vector.extract_strided_slice %372 {offsets = [0, 0], sizes = [32, 2], strides = [1, 1]} : vector<32x4xf32> to vector<32x2xf32>
    %c160_219 = arith.constant 160 : index
    %c2_220 = arith.constant 2 : index
    %378 = vector.load %arg31[%c160_219, %c2_220] : memref<480x16xf32, #tpu.memory_space<vmem>>, vector<32x2xf32>
    tpu.vector_store %arg31[%c160_219, %c2_220], %377 {strides = array<i32>} : memref<480x16xf32, #tpu.memory_space<vmem>>, vector<32x2xf32>,
    %379 = vector.extract_strided_slice %372 {offsets = [0, 0], sizes = [32, 3], strides = [1, 1]} : vector<32x4xf32> to vector<32x3xf32>
    %c192_221 = arith.constant 192 : index
    %c1_222 = arith.constant 1 : index
    %380 = vector.load %arg31[%c192_221, %c1_222] : memref<480x16xf32, #tpu.memory_space<vmem>>, vector<32x3xf32>
    tpu.vector_store %arg31[%c192_221, %c1_222], %379 {strides = array<i32>} : memref<480x16xf32, #tpu.memory_space<vmem>>, vector<32x3xf32>,
    %c224_223 = arith.constant 224 : index
    %c0_224 = arith.constant 0 : index
    %381 = vector.load %arg31[%c224_223, %c0_224] : memref<480x16xf32, #tpu.memory_space<vmem>>, vector<32x4xf32>
    tpu.vector_store %arg31[%c224_223, %c0_224], %372 {strides = array<i32>} : memref<480x16xf32, #tpu.memory_space<vmem>>, vector<32x4xf32>,
    %382 = vector.extract_strided_slice %372 {offsets = [0, 1], sizes = [32, 3], strides = [1, 1]} : vector<32x4xf32> to vector<32x3xf32>
    %c256_225 = arith.constant 256 : index
    %c0_226 = arith.constant 0 : index
    %383 = vector.load %arg31[%c256_225, %c0_226] : memref<480x16xf32, #tpu.memory_space<vmem>>, vector<32x3xf32>
    tpu.vector_store %arg31[%c256_225, %c0_226], %382 {strides = array<i32>} : memref<480x16xf32, #tpu.memory_space<vmem>>, vector<32x3xf32>,
    %384 = vector.extract_strided_slice %372 {offsets = [0, 2], sizes = [32, 2], strides = [1, 1]} : vector<32x4xf32> to vector<32x2xf32>
    %c288_227 = arith.constant 288 : index
    %c0_228 = arith.constant 0 : index
    %385 = vector.load %arg31[%c288_227, %c0_228] : memref<480x16xf32, #tpu.memory_space<vmem>>, vector<32x2xf32>
    tpu.vector_store %arg31[%c288_227, %c0_228], %384 {strides = array<i32>} : memref<480x16xf32, #tpu.memory_space<vmem>>, vector<32x2xf32>,
    %386 = vector.extract_strided_slice %372 {offsets = [0, 3], sizes = [32, 1], strides = [1, 1]} : vector<32x4xf32> to vector<32x1xf32>
    %c320_229 = arith.constant 320 : index
    %c0_230 = arith.constant 0 : index
    %387 = vector.load %arg31[%c320_229, %c0_230] : memref<480x16xf32, #tpu.memory_space<vmem>>, vector<32x1xf32>
    tpu.vector_store %arg31[%c320_229, %c0_230], %386 {strides = array<i32>} : memref<480x16xf32, #tpu.memory_space<vmem>>, vector<32x1xf32>,
    %c0_231 = arith.constant 0 : index
    %c0_232 = arith.constant 0 : index
    %388 = vector.load %arg30[%c0_231, %c0_232] : memref<44x16xf32, #tpu.memory_space<vmem>>, vector<15x4xf32>
    %c0_233 = arith.constant 0 : index
    %c0_234 = arith.constant 0 : index
    %389 = vector.load %arg17[%c0_233, %c0_234] : memref<256x15xf32, #tpu.memory_space<vmem>>, vector<256x15xf32>
    %cst_235 = arith.constant dense<0.000000e+00> : vector<256x4xf32>
    %390 = tpu.matmul %389, %388, %cst_235 {dimension_numbers = #tpu.dot_dimension_numbers<[1], [0], [0], [1], [0, 0, 1, 1], [], []>} : vector<256x15xf32>, vector<15x4xf32>, vector<256x4xf32> -> vector<256x4xf32>
    %c0_236 = arith.constant 0 : index
    %c0_237 = arith.constant 0 : index
    %391 = vector.load %arg18[%c0_236, %c0_237] : memref<256x1xf32, #tpu.memory_space<vmem>>, vector<256x1xf32>
    %392 = vector.broadcast %391 : vector<256x1xf32> to vector<256x4xf32>
    %393 = arith.addf %390, %392 : vector<256x4xf32>
    %cst_238 = arith.constant 0.000000e+00 : f32
    %394 = vector.broadcast %cst_238 : f32 to vector<256x4xf32>
    %395 = arith.maximumf %393, %394 : vector<256x4xf32>
    %c1_239 = arith.constant 1 : index
    %c0_240 = arith.constant 0 : index
    %396 = memref.load %arg28[%c1_239, %c0_240] : memref<6x8xf32, #tpu.memory_space<smem>>
    %397 = vector.extract_strided_slice %395 {offsets = [0, 0], sizes = [32, 4], strides = [1, 1]} : vector<256x4xf32> to vector<32x4xf32>
    %398 = vector.broadcast %396 : f32 to vector<32x4xf32>
    %399 = arith.mulf %398, %397 : vector<32x4xf32>
    %c1_241 = arith.constant 1 : index
    %c1_242 = arith.constant 1 : index
    %400 = memref.load %arg28[%c1_241, %c1_242] : memref<6x8xf32, #tpu.memory_space<smem>>
    %401 = vector.extract_strided_slice %395 {offsets = [32, 0], sizes = [32, 4], strides = [1, 1]} : vector<256x4xf32> to vector<32x4xf32>
    %402 = vector.broadcast %400 : f32 to vector<32x4xf32>
    %403 = arith.mulf %402, %401 : vector<32x4xf32>
    %404 = arith.addf %399, %403 : vector<32x4xf32>
    %c1_243 = arith.constant 1 : index
    %c2_244 = arith.constant 2 : index
    %405 = memref.load %arg28[%c1_243, %c2_244] : memref<6x8xf32, #tpu.memory_space<smem>>
    %406 = vector.extract_strided_slice %395 {offsets = [64, 0], sizes = [32, 4], strides = [1, 1]} : vector<256x4xf32> to vector<32x4xf32>
    %407 = vector.broadcast %405 : f32 to vector<32x4xf32>
    %408 = arith.mulf %407, %406 : vector<32x4xf32>
    %409 = arith.addf %404, %408 : vector<32x4xf32>
    %c1_245 = arith.constant 1 : index
    %c3_246 = arith.constant 3 : index
    %410 = memref.load %arg28[%c1_245, %c3_246] : memref<6x8xf32, #tpu.memory_space<smem>>
    %411 = vector.extract_strided_slice %395 {offsets = [96, 0], sizes = [32, 4], strides = [1, 1]} : vector<256x4xf32> to vector<32x4xf32>
    %412 = vector.broadcast %410 : f32 to vector<32x4xf32>
    %413 = arith.mulf %412, %411 : vector<32x4xf32>
    %414 = arith.addf %409, %413 : vector<32x4xf32>
    %c1_247 = arith.constant 1 : index
    %c4_248 = arith.constant 4 : index
    %415 = memref.load %arg28[%c1_247, %c4_248] : memref<6x8xf32, #tpu.memory_space<smem>>
    %416 = vector.extract_strided_slice %395 {offsets = [128, 0], sizes = [32, 4], strides = [1, 1]} : vector<256x4xf32> to vector<32x4xf32>
    %417 = vector.broadcast %415 : f32 to vector<32x4xf32>
    %418 = arith.mulf %417, %416 : vector<32x4xf32>
    %419 = arith.addf %414, %418 : vector<32x4xf32>
    %c1_249 = arith.constant 1 : index
    %c5_250 = arith.constant 5 : index
    %420 = memref.load %arg28[%c1_249, %c5_250] : memref<6x8xf32, #tpu.memory_space<smem>>
    %421 = vector.extract_strided_slice %395 {offsets = [160, 0], sizes = [32, 4], strides = [1, 1]} : vector<256x4xf32> to vector<32x4xf32>
    %422 = vector.broadcast %420 : f32 to vector<32x4xf32>
    %423 = arith.mulf %422, %421 : vector<32x4xf32>
    %424 = arith.addf %419, %423 : vector<32x4xf32>
    %c1_251 = arith.constant 1 : index
    %c6_252 = arith.constant 6 : index
    %425 = memref.load %arg28[%c1_251, %c6_252] : memref<6x8xf32, #tpu.memory_space<smem>>
    %426 = vector.extract_strided_slice %395 {offsets = [192, 0], sizes = [32, 4], strides = [1, 1]} : vector<256x4xf32> to vector<32x4xf32>
    %427 = vector.broadcast %425 : f32 to vector<32x4xf32>
    %428 = arith.mulf %427, %426 : vector<32x4xf32>
    %429 = arith.addf %424, %428 : vector<32x4xf32>
    %c1_253 = arith.constant 1 : index
    %c7_254 = arith.constant 7 : index
    %430 = memref.load %arg28[%c1_253, %c7_254] : memref<6x8xf32, #tpu.memory_space<smem>>
    %431 = vector.extract_strided_slice %395 {offsets = [224, 0], sizes = [32, 4], strides = [1, 1]} : vector<256x4xf32> to vector<32x4xf32>
    %432 = vector.broadcast %430 : f32 to vector<32x4xf32>
    %433 = arith.mulf %432, %431 : vector<32x4xf32>
    %434 = arith.addf %429, %433 : vector<32x4xf32>
    %c0_255 = arith.constant 0 : index
    %c0_256 = arith.constant 0 : index
    %435 = vector.load %arg31[%c0_255, %c0_256] : memref<480x16xf32, #tpu.memory_space<vmem>>, vector<480x4xf32>
    %c0_257 = arith.constant 0 : index
    %c0_258 = arith.constant 0 : index
    %436 = vector.load %arg19[%c0_257, %c0_258] : memref<256x480xf32, #tpu.memory_space<vmem>>, vector<256x480xf32>
    %cst_259 = arith.constant dense<0.000000e+00> : vector<256x4xf32>
    %437 = tpu.matmul %436, %435, %cst_259 {dimension_numbers = #tpu.dot_dimension_numbers<[1], [0], [0], [1], [0, 0, 1, 1], [], []>} : vector<256x480xf32>, vector<480x4xf32>, vector<256x4xf32> -> vector<256x4xf32>
    %c0_260 = arith.constant 0 : index
    %c0_261 = arith.constant 0 : index
    %438 = vector.load %arg20[%c0_260, %c0_261] : memref<256x1xf32, #tpu.memory_space<vmem>>, vector<256x1xf32>
    %439 = vector.broadcast %438 : vector<256x1xf32> to vector<256x4xf32>
    %440 = arith.addf %437, %439 : vector<256x4xf32>
    %cst_262 = arith.constant 0.000000e+00 : f32
    %441 = vector.broadcast %cst_262 : f32 to vector<256x4xf32>
    %442 = arith.maximumf %440, %441 : vector<256x4xf32>
    %c2_263 = arith.constant 2 : index
    %c0_264 = arith.constant 0 : index
    %443 = memref.load %arg28[%c2_263, %c0_264] : memref<6x8xf32, #tpu.memory_space<smem>>
    %444 = vector.extract_strided_slice %442 {offsets = [0, 0], sizes = [32, 4], strides = [1, 1]} : vector<256x4xf32> to vector<32x4xf32>
    %445 = vector.broadcast %443 : f32 to vector<32x4xf32>
    %446 = arith.mulf %445, %444 : vector<32x4xf32>
    %c2_265 = arith.constant 2 : index
    %c1_266 = arith.constant 1 : index
    %447 = memref.load %arg28[%c2_265, %c1_266] : memref<6x8xf32, #tpu.memory_space<smem>>
    %448 = vector.extract_strided_slice %442 {offsets = [32, 0], sizes = [32, 4], strides = [1, 1]} : vector<256x4xf32> to vector<32x4xf32>
    %449 = vector.broadcast %447 : f32 to vector<32x4xf32>
    %450 = arith.mulf %449, %448 : vector<32x4xf32>
    %451 = arith.addf %446, %450 : vector<32x4xf32>
    %c2_267 = arith.constant 2 : index
    %c2_268 = arith.constant 2 : index
    %452 = memref.load %arg28[%c2_267, %c2_268] : memref<6x8xf32, #tpu.memory_space<smem>>
    %453 = vector.extract_strided_slice %442 {offsets = [64, 0], sizes = [32, 4], strides = [1, 1]} : vector<256x4xf32> to vector<32x4xf32>
    %454 = vector.broadcast %452 : f32 to vector<32x4xf32>
    %455 = arith.mulf %454, %453 : vector<32x4xf32>
    %456 = arith.addf %451, %455 : vector<32x4xf32>
    %c2_269 = arith.constant 2 : index
    %c3_270 = arith.constant 3 : index
    %457 = memref.load %arg28[%c2_269, %c3_270] : memref<6x8xf32, #tpu.memory_space<smem>>
    %458 = vector.extract_strided_slice %442 {offsets = [96, 0], sizes = [32, 4], strides = [1, 1]} : vector<256x4xf32> to vector<32x4xf32>
    %459 = vector.broadcast %457 : f32 to vector<32x4xf32>
    %460 = arith.mulf %459, %458 : vector<32x4xf32>
    %461 = arith.addf %456, %460 : vector<32x4xf32>
    %c2_271 = arith.constant 2 : index
    %c4_272 = arith.constant 4 : index
    %462 = memref.load %arg28[%c2_271, %c4_272] : memref<6x8xf32, #tpu.memory_space<smem>>
    %463 = vector.extract_strided_slice %442 {offsets = [128, 0], sizes = [32, 4], strides = [1, 1]} : vector<256x4xf32> to vector<32x4xf32>
    %464 = vector.broadcast %462 : f32 to vector<32x4xf32>
    %465 = arith.mulf %464, %463 : vector<32x4xf32>
    %466 = arith.addf %461, %465 : vector<32x4xf32>
    %c2_273 = arith.constant 2 : index
    %c5_274 = arith.constant 5 : index
    %467 = memref.load %arg28[%c2_273, %c5_274] : memref<6x8xf32, #tpu.memory_space<smem>>
    %468 = vector.extract_strided_slice %442 {offsets = [160, 0], sizes = [32, 4], strides = [1, 1]} : vector<256x4xf32> to vector<32x4xf32>
    %469 = vector.broadcast %467 : f32 to vector<32x4xf32>
    %470 = arith.mulf %469, %468 : vector<32x4xf32>
    %471 = arith.addf %466, %470 : vector<32x4xf32>
    %c2_275 = arith.constant 2 : index
    %c6_276 = arith.constant 6 : index
    %472 = memref.load %arg28[%c2_275, %c6_276] : memref<6x8xf32, #tpu.memory_space<smem>>
    %473 = vector.extract_strided_slice %442 {offsets = [192, 0], sizes = [32, 4], strides = [1, 1]} : vector<256x4xf32> to vector<32x4xf32>
    %474 = vector.broadcast %472 : f32 to vector<32x4xf32>
    %475 = arith.mulf %474, %473 : vector<32x4xf32>
    %476 = arith.addf %471, %475 : vector<32x4xf32>
    %c2_277 = arith.constant 2 : index
    %c7_278 = arith.constant 7 : index
    %477 = memref.load %arg28[%c2_277, %c7_278] : memref<6x8xf32, #tpu.memory_space<smem>>
    %478 = vector.extract_strided_slice %442 {offsets = [224, 0], sizes = [32, 4], strides = [1, 1]} : vector<256x4xf32> to vector<32x4xf32>
    %479 = vector.broadcast %477 : f32 to vector<32x4xf32>
    %480 = arith.mulf %479, %478 : vector<32x4xf32>
    %481 = arith.addf %476, %480 : vector<32x4xf32>
    %482 = arith.addf %434, %481 : vector<32x4xf32>
    %cst_279 = arith.constant 0.000000e+00 : f32
    %483 = vector.broadcast %cst_279 : f32 to vector<480x4xf32>
    %c0_280 = arith.constant 0 : index
    %c0_281 = arith.constant 0 : index
    %484 = vector.load %arg32[%c0_280, %c0_281] : memref<480x16xf32, #tpu.memory_space<vmem>>, vector<480x4xf32>
    tpu.vector_store %arg32[%c0_280, %c0_281], %483 {strides = array<i32>} : memref<480x16xf32, #tpu.memory_space<vmem>>, vector<480x4xf32>,
    %485 = vector.extract_strided_slice %482 {offsets = [0, 0], sizes = [32, 1], strides = [1, 1]} : vector<32x4xf32> to vector<32x1xf32>
    %c128_282 = arith.constant 128 : index
    %c3_283 = arith.constant 3 : index
    %486 = vector.load %arg32[%c128_282, %c3_283] : memref<480x16xf32, #tpu.memory_space<vmem>>, vector<32x1xf32>
    tpu.vector_store %arg32[%c128_282, %c3_283], %485 {strides = array<i32>} : memref<480x16xf32, #tpu.memory_space<vmem>>, vector<32x1xf32>,
    %487 = vector.extract_strided_slice %482 {offsets = [0, 0], sizes = [32, 2], strides = [1, 1]} : vector<32x4xf32> to vector<32x2xf32>
    %c160_284 = arith.constant 160 : index
    %c2_285 = arith.constant 2 : index
    %488 = vector.load %arg32[%c160_284, %c2_285] : memref<480x16xf32, #tpu.memory_space<vmem>>, vector<32x2xf32>
    tpu.vector_store %arg32[%c160_284, %c2_285], %487 {strides = array<i32>} : memref<480x16xf32, #tpu.memory_space<vmem>>, vector<32x2xf32>,
    %489 = vector.extract_strided_slice %482 {offsets = [0, 0], sizes = [32, 3], strides = [1, 1]} : vector<32x4xf32> to vector<32x3xf32>
    %c192_286 = arith.constant 192 : index
    %c1_287 = arith.constant 1 : index
    %490 = vector.load %arg32[%c192_286, %c1_287] : memref<480x16xf32, #tpu.memory_space<vmem>>, vector<32x3xf32>
    tpu.vector_store %arg32[%c192_286, %c1_287], %489 {strides = array<i32>} : memref<480x16xf32, #tpu.memory_space<vmem>>, vector<32x3xf32>,
    %c224_288 = arith.constant 224 : index
    %c0_289 = arith.constant 0 : index
    %491 = vector.load %arg32[%c224_288, %c0_289] : memref<480x16xf32, #tpu.memory_space<vmem>>, vector<32x4xf32>
    tpu.vector_store %arg32[%c224_288, %c0_289], %482 {strides = array<i32>} : memref<480x16xf32, #tpu.memory_space<vmem>>, vector<32x4xf32>,
    %492 = vector.extract_strided_slice %482 {offsets = [0, 1], sizes = [32, 3], strides = [1, 1]} : vector<32x4xf32> to vector<32x3xf32>
    %c256_290 = arith.constant 256 : index
    %c0_291 = arith.constant 0 : index
    %493 = vector.load %arg32[%c256_290, %c0_291] : memref<480x16xf32, #tpu.memory_space<vmem>>, vector<32x3xf32>
    tpu.vector_store %arg32[%c256_290, %c0_291], %492 {strides = array<i32>} : memref<480x16xf32, #tpu.memory_space<vmem>>, vector<32x3xf32>,
    %494 = vector.extract_strided_slice %482 {offsets = [0, 2], sizes = [32, 2], strides = [1, 1]} : vector<32x4xf32> to vector<32x2xf32>
    %c288_292 = arith.constant 288 : index
    %c0_293 = arith.constant 0 : index
    %495 = vector.load %arg32[%c288_292, %c0_293] : memref<480x16xf32, #tpu.memory_space<vmem>>, vector<32x2xf32>
    tpu.vector_store %arg32[%c288_292, %c0_293], %494 {strides = array<i32>} : memref<480x16xf32, #tpu.memory_space<vmem>>, vector<32x2xf32>,
    %496 = vector.extract_strided_slice %482 {offsets = [0, 3], sizes = [32, 1], strides = [1, 1]} : vector<32x4xf32> to vector<32x1xf32>
    %c320_294 = arith.constant 320 : index
    %c0_295 = arith.constant 0 : index
    %497 = vector.load %arg32[%c320_294, %c0_295] : memref<480x16xf32, #tpu.memory_space<vmem>>, vector<32x1xf32>
    tpu.vector_store %arg32[%c320_294, %c0_295], %496 {strides = array<i32>} : memref<480x16xf32, #tpu.memory_space<vmem>>, vector<32x1xf32>,
    %c0_296 = arith.constant 0 : index
    %c0_297 = arith.constant 0 : index
    %498 = vector.load %arg30[%c0_296, %c0_297] : memref<44x16xf32, #tpu.memory_space<vmem>>, vector<15x4xf32>
    %c0_298 = arith.constant 0 : index
    %c0_299 = arith.constant 0 : index
    %499 = vector.load %arg21[%c0_298, %c0_299] : memref<8x15xf32, #tpu.memory_space<vmem>>, vector<8x15xf32>
    %cst_300 = arith.constant dense<0.000000e+00> : vector<8x4xf32>
    %500 = tpu.matmul %499, %498, %cst_300 {dimension_numbers = #tpu.dot_dimension_numbers<[1], [0], [0], [1], [0, 0, 1, 1], [], []>} : vector<8x15xf32>, vector<15x4xf32>, vector<8x4xf32> -> vector<8x4xf32>
    %c0_301 = arith.constant 0 : index
    %c0_302 = arith.constant 0 : index
    %501 = vector.load %arg22[%c0_301, %c0_302] : memref<8x1xf32, #tpu.memory_space<vmem>>, vector<8x1xf32>
    %502 = vector.broadcast %501 : vector<8x1xf32> to vector<8x4xf32>
    %503 = arith.addf %500, %502 : vector<8x4xf32>
    %504 = arith.negf %503 : vector<8x4xf32>
    %505 = math.exp %504 : vector<8x4xf32>
    %cst_303 = arith.constant 1.000000e+00 : f32
    %506 = vector.broadcast %cst_303 : f32 to vector<8x4xf32>
    %507 = arith.addf %506, %505 : vector<8x4xf32>
    %508 = arith.divf %506, %507 : vector<8x4xf32>
    %c3_304 = arith.constant 3 : index
    %c0_305 = arith.constant 0 : index
    %509 = memref.load %arg28[%c3_304, %c0_305] : memref<6x8xf32, #tpu.memory_space<smem>>
    %510 = vector.extract_strided_slice %508 {offsets = [0, 0], sizes = [1, 4], strides = [1, 1]} : vector<8x4xf32> to vector<1x4xf32>
    %511 = vector.broadcast %509 : f32 to vector<1x4xf32>
    %512 = arith.mulf %511, %510 : vector<1x4xf32>
    %c3_306 = arith.constant 3 : index
    %c1_307 = arith.constant 1 : index
    %513 = memref.load %arg28[%c3_306, %c1_307] : memref<6x8xf32, #tpu.memory_space<smem>>
    %514 = vector.extract_strided_slice %508 {offsets = [1, 0], sizes = [1, 4], strides = [1, 1]} : vector<8x4xf32> to vector<1x4xf32>
    %515 = vector.broadcast %513 : f32 to vector<1x4xf32>
    %516 = arith.mulf %515, %514 : vector<1x4xf32>
    %517 = arith.addf %512, %516 : vector<1x4xf32>
    %c3_308 = arith.constant 3 : index
    %c2_309 = arith.constant 2 : index
    %518 = memref.load %arg28[%c3_308, %c2_309] : memref<6x8xf32, #tpu.memory_space<smem>>
    %519 = vector.extract_strided_slice %508 {offsets = [2, 0], sizes = [1, 4], strides = [1, 1]} : vector<8x4xf32> to vector<1x4xf32>
    %520 = vector.broadcast %518 : f32 to vector<1x4xf32>
    %521 = arith.mulf %520, %519 : vector<1x4xf32>
    %522 = arith.addf %517, %521 : vector<1x4xf32>
    %c3_310 = arith.constant 3 : index
    %c3_311 = arith.constant 3 : index
    %523 = memref.load %arg28[%c3_310, %c3_311] : memref<6x8xf32, #tpu.memory_space<smem>>
    %524 = vector.extract_strided_slice %508 {offsets = [3, 0], sizes = [1, 4], strides = [1, 1]} : vector<8x4xf32> to vector<1x4xf32>
    %525 = vector.broadcast %523 : f32 to vector<1x4xf32>
    %526 = arith.mulf %525, %524 : vector<1x4xf32>
    %527 = arith.addf %522, %526 : vector<1x4xf32>
    %c3_312 = arith.constant 3 : index
    %c4_313 = arith.constant 4 : index
    %528 = memref.load %arg28[%c3_312, %c4_313] : memref<6x8xf32, #tpu.memory_space<smem>>
    %529 = vector.extract_strided_slice %508 {offsets = [4, 0], sizes = [1, 4], strides = [1, 1]} : vector<8x4xf32> to vector<1x4xf32>
    %530 = vector.broadcast %528 : f32 to vector<1x4xf32>
    %531 = arith.mulf %530, %529 : vector<1x4xf32>
    %532 = arith.addf %527, %531 : vector<1x4xf32>
    %c3_314 = arith.constant 3 : index
    %c5_315 = arith.constant 5 : index
    %533 = memref.load %arg28[%c3_314, %c5_315] : memref<6x8xf32, #tpu.memory_space<smem>>
    %534 = vector.extract_strided_slice %508 {offsets = [5, 0], sizes = [1, 4], strides = [1, 1]} : vector<8x4xf32> to vector<1x4xf32>
    %535 = vector.broadcast %533 : f32 to vector<1x4xf32>
    %536 = arith.mulf %535, %534 : vector<1x4xf32>
    %537 = arith.addf %532, %536 : vector<1x4xf32>
    %c3_316 = arith.constant 3 : index
    %c6_317 = arith.constant 6 : index
    %538 = memref.load %arg28[%c3_316, %c6_317] : memref<6x8xf32, #tpu.memory_space<smem>>
    %539 = vector.extract_strided_slice %508 {offsets = [6, 0], sizes = [1, 4], strides = [1, 1]} : vector<8x4xf32> to vector<1x4xf32>
    %540 = vector.broadcast %538 : f32 to vector<1x4xf32>
    %541 = arith.mulf %540, %539 : vector<1x4xf32>
    %542 = arith.addf %537, %541 : vector<1x4xf32>
    %c3_318 = arith.constant 3 : index
    %c7_319 = arith.constant 7 : index
    %543 = memref.load %arg28[%c3_318, %c7_319] : memref<6x8xf32, #tpu.memory_space<smem>>
    %544 = vector.extract_strided_slice %508 {offsets = [7, 0], sizes = [1, 4], strides = [1, 1]} : vector<8x4xf32> to vector<1x4xf32>
    %545 = vector.broadcast %543 : f32 to vector<1x4xf32>
    %546 = arith.mulf %545, %544 : vector<1x4xf32>
    %547 = arith.addf %542, %546 : vector<1x4xf32>
    %c0_320 = arith.constant 0 : index
    %c0_321 = arith.constant 0 : index
    %548 = vector.load %arg31[%c0_320, %c0_321] : memref<480x16xf32, #tpu.memory_space<vmem>>, vector<480x4xf32>
    %c0_322 = arith.constant 0 : index
    %c0_323 = arith.constant 0 : index
    %549 = vector.load %arg23[%c0_322, %c0_323] : memref<8x480xf32, #tpu.memory_space<vmem>>, vector<8x480xf32>
    %cst_324 = arith.constant dense<0.000000e+00> : vector<8x4xf32>
    %550 = tpu.matmul %549, %548, %cst_324 {dimension_numbers = #tpu.dot_dimension_numbers<[1], [0], [0], [1], [0, 0, 1, 1], [], []>} : vector<8x480xf32>, vector<480x4xf32>, vector<8x4xf32> -> vector<8x4xf32>
    %c0_325 = arith.constant 0 : index
    %c0_326 = arith.constant 0 : index
    %551 = vector.load %arg24[%c0_325, %c0_326] : memref<8x1xf32, #tpu.memory_space<vmem>>, vector<8x1xf32>
    %552 = vector.broadcast %551 : vector<8x1xf32> to vector<8x4xf32>
    %553 = arith.addf %550, %552 : vector<8x4xf32>
    %554 = arith.negf %553 : vector<8x4xf32>
    %555 = math.exp %554 : vector<8x4xf32>
    %cst_327 = arith.constant 1.000000e+00 : f32
    %556 = vector.broadcast %cst_327 : f32 to vector<8x4xf32>
    %557 = arith.addf %556, %555 : vector<8x4xf32>
    %558 = arith.divf %556, %557 : vector<8x4xf32>
    %c4_328 = arith.constant 4 : index
    %c0_329 = arith.constant 0 : index
    %559 = memref.load %arg28[%c4_328, %c0_329] : memref<6x8xf32, #tpu.memory_space<smem>>
    %560 = vector.extract_strided_slice %558 {offsets = [0, 0], sizes = [1, 4], strides = [1, 1]} : vector<8x4xf32> to vector<1x4xf32>
    %561 = vector.broadcast %559 : f32 to vector<1x4xf32>
    %562 = arith.mulf %561, %560 : vector<1x4xf32>
    %c4_330 = arith.constant 4 : index
    %c1_331 = arith.constant 1 : index
    %563 = memref.load %arg28[%c4_330, %c1_331] : memref<6x8xf32, #tpu.memory_space<smem>>
    %564 = vector.extract_strided_slice %558 {offsets = [1, 0], sizes = [1, 4], strides = [1, 1]} : vector<8x4xf32> to vector<1x4xf32>
    %565 = vector.broadcast %563 : f32 to vector<1x4xf32>
    %566 = arith.mulf %565, %564 : vector<1x4xf32>
    %567 = arith.addf %562, %566 : vector<1x4xf32>
    %c4_332 = arith.constant 4 : index
    %c2_333 = arith.constant 2 : index
    %568 = memref.load %arg28[%c4_332, %c2_333] : memref<6x8xf32, #tpu.memory_space<smem>>
    %569 = vector.extract_strided_slice %558 {offsets = [2, 0], sizes = [1, 4], strides = [1, 1]} : vector<8x4xf32> to vector<1x4xf32>
    %570 = vector.broadcast %568 : f32 to vector<1x4xf32>
    %571 = arith.mulf %570, %569 : vector<1x4xf32>
    %572 = arith.addf %567, %571 : vector<1x4xf32>
    %c4_334 = arith.constant 4 : index
    %c3_335 = arith.constant 3 : index
    %573 = memref.load %arg28[%c4_334, %c3_335] : memref<6x8xf32, #tpu.memory_space<smem>>
    %574 = vector.extract_strided_slice %558 {offsets = [3, 0], sizes = [1, 4], strides = [1, 1]} : vector<8x4xf32> to vector<1x4xf32>
    %575 = vector.broadcast %573 : f32 to vector<1x4xf32>
    %576 = arith.mulf %575, %574 : vector<1x4xf32>
    %577 = arith.addf %572, %576 : vector<1x4xf32>
    %c4_336 = arith.constant 4 : index
    %c4_337 = arith.constant 4 : index
    %578 = memref.load %arg28[%c4_336, %c4_337] : memref<6x8xf32, #tpu.memory_space<smem>>
    %579 = vector.extract_strided_slice %558 {offsets = [4, 0], sizes = [1, 4], strides = [1, 1]} : vector<8x4xf32> to vector<1x4xf32>
    %580 = vector.broadcast %578 : f32 to vector<1x4xf32>
    %581 = arith.mulf %580, %579 : vector<1x4xf32>
    %582 = arith.addf %577, %581 : vector<1x4xf32>
    %c4_338 = arith.constant 4 : index
    %c5_339 = arith.constant 5 : index
    %583 = memref.load %arg28[%c4_338, %c5_339] : memref<6x8xf32, #tpu.memory_space<smem>>
    %584 = vector.extract_strided_slice %558 {offsets = [5, 0], sizes = [1, 4], strides = [1, 1]} : vector<8x4xf32> to vector<1x4xf32>
    %585 = vector.broadcast %583 : f32 to vector<1x4xf32>
    %586 = arith.mulf %585, %584 : vector<1x4xf32>
    %587 = arith.addf %582, %586 : vector<1x4xf32>
    %c4_340 = arith.constant 4 : index
    %c6_341 = arith.constant 6 : index
    %588 = memref.load %arg28[%c4_340, %c6_341] : memref<6x8xf32, #tpu.memory_space<smem>>
    %589 = vector.extract_strided_slice %558 {offsets = [6, 0], sizes = [1, 4], strides = [1, 1]} : vector<8x4xf32> to vector<1x4xf32>
    %590 = vector.broadcast %588 : f32 to vector<1x4xf32>
    %591 = arith.mulf %590, %589 : vector<1x4xf32>
    %592 = arith.addf %587, %591 : vector<1x4xf32>
    %c4_342 = arith.constant 4 : index
    %c7_343 = arith.constant 7 : index
    %593 = memref.load %arg28[%c4_342, %c7_343] : memref<6x8xf32, #tpu.memory_space<smem>>
    %594 = vector.extract_strided_slice %558 {offsets = [7, 0], sizes = [1, 4], strides = [1, 1]} : vector<8x4xf32> to vector<1x4xf32>
    %595 = vector.broadcast %593 : f32 to vector<1x4xf32>
    %596 = arith.mulf %595, %594 : vector<1x4xf32>
    %597 = arith.addf %592, %596 : vector<1x4xf32>
    %598 = arith.addf %547, %597 : vector<1x4xf32>
    %c0_344 = arith.constant 0 : index
    %c0_345 = arith.constant 0 : index
    %599 = vector.load %arg32[%c0_344, %c0_345] : memref<480x16xf32, #tpu.memory_space<vmem>>, vector<480x4xf32>
    %c0_346 = arith.constant 0 : index
    %c0_347 = arith.constant 0 : index
    %600 = vector.load %arg25[%c0_346, %c0_347] : memref<8x480xf32, #tpu.memory_space<vmem>>, vector<8x480xf32>
    %cst_348 = arith.constant dense<0.000000e+00> : vector<8x4xf32>
    %601 = tpu.matmul %600, %599, %cst_348 {dimension_numbers = #tpu.dot_dimension_numbers<[1], [0], [0], [1], [0, 0, 1, 1], [], []>} : vector<8x480xf32>, vector<480x4xf32>, vector<8x4xf32> -> vector<8x4xf32>
    %c0_349 = arith.constant 0 : index
    %c0_350 = arith.constant 0 : index
    %602 = vector.load %arg26[%c0_349, %c0_350] : memref<8x1xf32, #tpu.memory_space<vmem>>, vector<8x1xf32>
    %603 = vector.broadcast %602 : vector<8x1xf32> to vector<8x4xf32>
    %604 = arith.addf %601, %603 : vector<8x4xf32>
    %605 = arith.negf %604 : vector<8x4xf32>
    %606 = math.exp %605 : vector<8x4xf32>
    %cst_351 = arith.constant 1.000000e+00 : f32
    %607 = vector.broadcast %cst_351 : f32 to vector<8x4xf32>
    %608 = arith.addf %607, %606 : vector<8x4xf32>
    %609 = arith.divf %607, %608 : vector<8x4xf32>
    %c5_352 = arith.constant 5 : index
    %c0_353 = arith.constant 0 : index
    %610 = memref.load %arg28[%c5_352, %c0_353] : memref<6x8xf32, #tpu.memory_space<smem>>
    %611 = vector.extract_strided_slice %609 {offsets = [0, 0], sizes = [1, 4], strides = [1, 1]} : vector<8x4xf32> to vector<1x4xf32>
    %612 = vector.broadcast %610 : f32 to vector<1x4xf32>
    %613 = arith.mulf %612, %611 : vector<1x4xf32>
    %c5_354 = arith.constant 5 : index
    %c1_355 = arith.constant 1 : index
    %614 = memref.load %arg28[%c5_354, %c1_355] : memref<6x8xf32, #tpu.memory_space<smem>>
    %615 = vector.extract_strided_slice %609 {offsets = [1, 0], sizes = [1, 4], strides = [1, 1]} : vector<8x4xf32> to vector<1x4xf32>
    %616 = vector.broadcast %614 : f32 to vector<1x4xf32>
    %617 = arith.mulf %616, %615 : vector<1x4xf32>
    %618 = arith.addf %613, %617 : vector<1x4xf32>
    %c5_356 = arith.constant 5 : index
    %c2_357 = arith.constant 2 : index
    %619 = memref.load %arg28[%c5_356, %c2_357] : memref<6x8xf32, #tpu.memory_space<smem>>
    %620 = vector.extract_strided_slice %609 {offsets = [2, 0], sizes = [1, 4], strides = [1, 1]} : vector<8x4xf32> to vector<1x4xf32>
    %621 = vector.broadcast %619 : f32 to vector<1x4xf32>
    %622 = arith.mulf %621, %620 : vector<1x4xf32>
    %623 = arith.addf %618, %622 : vector<1x4xf32>
    %c5_358 = arith.constant 5 : index
    %c3_359 = arith.constant 3 : index
    %624 = memref.load %arg28[%c5_358, %c3_359] : memref<6x8xf32, #tpu.memory_space<smem>>
    %625 = vector.extract_strided_slice %609 {offsets = [3, 0], sizes = [1, 4], strides = [1, 1]} : vector<8x4xf32> to vector<1x4xf32>
    %626 = vector.broadcast %624 : f32 to vector<1x4xf32>
    %627 = arith.mulf %626, %625 : vector<1x4xf32>
    %628 = arith.addf %623, %627 : vector<1x4xf32>
    %c5_360 = arith.constant 5 : index
    %c4_361 = arith.constant 4 : index
    %629 = memref.load %arg28[%c5_360, %c4_361] : memref<6x8xf32, #tpu.memory_space<smem>>
    %630 = vector.extract_strided_slice %609 {offsets = [4, 0], sizes = [1, 4], strides = [1, 1]} : vector<8x4xf32> to vector<1x4xf32>
    %631 = vector.broadcast %629 : f32 to vector<1x4xf32>
    %632 = arith.mulf %631, %630 : vector<1x4xf32>
    %633 = arith.addf %628, %632 : vector<1x4xf32>
    %c5_362 = arith.constant 5 : index
    %c5_363 = arith.constant 5 : index
    %634 = memref.load %arg28[%c5_362, %c5_363] : memref<6x8xf32, #tpu.memory_space<smem>>
    %635 = vector.extract_strided_slice %609 {offsets = [5, 0], sizes = [1, 4], strides = [1, 1]} : vector<8x4xf32> to vector<1x4xf32>
    %636 = vector.broadcast %634 : f32 to vector<1x4xf32>
    %637 = arith.mulf %636, %635 : vector<1x4xf32>
    %638 = arith.addf %633, %637 : vector<1x4xf32>
    %c5_364 = arith.constant 5 : index
    %c6_365 = arith.constant 6 : index
    %639 = memref.load %arg28[%c5_364, %c6_365] : memref<6x8xf32, #tpu.memory_space<smem>>
    %640 = vector.extract_strided_slice %609 {offsets = [6, 0], sizes = [1, 4], strides = [1, 1]} : vector<8x4xf32> to vector<1x4xf32>
    %641 = vector.broadcast %639 : f32 to vector<1x4xf32>
    %642 = arith.mulf %641, %640 : vector<1x4xf32>
    %643 = arith.addf %638, %642 : vector<1x4xf32>
    %c5_366 = arith.constant 5 : index
    %c7_367 = arith.constant 7 : index
    %644 = memref.load %arg28[%c5_366, %c7_367] : memref<6x8xf32, #tpu.memory_space<smem>>
    %645 = vector.extract_strided_slice %609 {offsets = [7, 0], sizes = [1, 4], strides = [1, 1]} : vector<8x4xf32> to vector<1x4xf32>
    %646 = vector.broadcast %644 : f32 to vector<1x4xf32>
    %647 = arith.mulf %646, %645 : vector<1x4xf32>
    %648 = arith.addf %643, %647 : vector<1x4xf32>
    %649 = arith.addf %598, %648 : vector<1x4xf32>
    %cst_368 = arith.constant 0.333333343 : f32
    %650 = vector.broadcast %cst_368 : f32 to vector<1x4xf32>
    %651 = arith.mulf %649, %650 : vector<1x4xf32>
    %652 = tpu.iota {dimensions = array<i32: 0>} : vector<4x4xi32>
    %653 = tpu.iota {dimensions = array<i32: 1>} : vector<4x4xi32>
    %654 = arith.cmpi eq, %652, %653 : vector<4x4xi32>
    %655 = arith.extui %654 : vector<4x4xi1> to vector<4x4xi32>
    %656 = arith.sitofp %655 : vector<4x4xi32> to vector<4x4xf32>
    %657 = vector.broadcast %651 : vector<1x4xf32> to vector<4x4xf32>
    %658 = arith.mulf %656, %657 : vector<4x4xf32>
    %cst_369 = arith.constant dense<0.000000e+00> : vector<4xf32>
    %659 = vector.multi_reduction <add>, %658, %cst_369 [1] : vector<4x4xf32> to vector<4xf32>
    %660 = vector.shape_cast %659 : vector<4xf32> to vector<4x1xf32>
    %661 = vector.broadcast %660 : vector<4x1xf32> to vector<4x16xf32>
    %662 = arith.mulf %1, %661 : vector<4x16xf32>
    %663 = arith.maximumf %310, %662 : vector<4x16xf32>
    %c0_370 = arith.constant 0 : index
    %c0_371 = arith.constant 0 : index
    %c0_372 = arith.constant 0 : index
    %664 = vector.load %arg29[%c0_370, %c0_371, %c0_372] : memref<1x4x16xf32, #tpu.memory_space<vmem>>, vector<1x4x16xf32>
    %665 = vector.shape_cast %664 : vector<1x4x16xf32> to vector<4x16xf32>
    %666 = vector.shape_cast %663 : vector<4x16xf32> to vector<1x4x16xf32>
    tpu.vector_store %arg29[%c0_370, %c0_371, %c0_372], %666 {strides = array<i32>} : memref<1x4x16xf32, #tpu.memory_space<vmem>>, vector<1x4x16xf32>,
    return
  }
  func.func @transform_0(%arg0: i32) -> (i32, i32, i32) {
    %c0_i32 = arith.constant 0 : i32
    %c0_i32_0 = arith.constant 0 : i32
    %c0_i32_1 = arith.constant 0 : i32
    return %arg0, %c0_i32, %c0_i32_0 : i32, i32, i32
  }
  func.func @transform_1(%arg0: i32) -> (i32, i32, i32) {
    %c0_i32 = arith.constant 0 : i32
    %c0_i32_0 = arith.constant 0 : i32
    %c0_i32_1 = arith.constant 0 : i32
    return %arg0, %c0_i32, %c0_i32_0 : i32, i32, i32
  }
  func.func @transform_2(%arg0: i32) -> (i32, i32) {
    %c0_i32 = arith.constant 0 : i32
    %c0_i32_0 = arith.constant 0 : i32
    %c0_i32_1 = arith.constant 0 : i32
    return %c0_i32, %c0_i32_0 : i32, i32
  }
  func.func @transform_3(%arg0: i32) -> (i32, i32) {
    %c0_i32 = arith.constant 0 : i32
    %c0_i32_0 = arith.constant 0 : i32
    %c0_i32_1 = arith.constant 0 : i32
    return %c0_i32, %c0_i32_0 : i32, i32
  }
  func.func @transform_4(%arg0: i32) -> (i32, i32) {
    %c0_i32 = arith.constant 0 : i32
    %c0_i32_0 = arith.constant 0 : i32
    %c0_i32_1 = arith.constant 0 : i32
    return %c0_i32, %c0_i32_0 : i32, i32
  }
  func.func @transform_5(%arg0: i32) -> (i32, i32) {
    %c0_i32 = arith.constant 0 : i32
    %c0_i32_0 = arith.constant 0 : i32
    %c0_i32_1 = arith.constant 0 : i32
    return %c0_i32, %c0_i32_0 : i32, i32
  }
  func.func @transform_6(%arg0: i32) -> (i32, i32) {
    %c0_i32 = arith.constant 0 : i32
    %c0_i32_0 = arith.constant 0 : i32
    %c0_i32_1 = arith.constant 0 : i32
    return %c0_i32, %c0_i32_0 : i32, i32
  }
  func.func @transform_7(%arg0: i32) -> (i32, i32) {
    %c0_i32 = arith.constant 0 : i32
    %c0_i32_0 = arith.constant 0 : i32
    %c0_i32_1 = arith.constant 0 : i32
    return %c0_i32, %c0_i32_0 : i32, i32
  }
  func.func @transform_8(%arg0: i32) -> (i32, i32) {
    %c0_i32 = arith.constant 0 : i32
    %c0_i32_0 = arith.constant 0 : i32
    %c0_i32_1 = arith.constant 0 : i32
    return %c0_i32, %c0_i32_0 : i32, i32
  }
  func.func @transform_9(%arg0: i32) -> (i32, i32) {
    %c0_i32 = arith.constant 0 : i32
    %c0_i32_0 = arith.constant 0 : i32
    %c0_i32_1 = arith.constant 0 : i32
    return %c0_i32, %c0_i32_0 : i32, i32
  }
  func.func @transform_10(%arg0: i32) -> (i32, i32) {
    %c0_i32 = arith.constant 0 : i32
    %c0_i32_0 = arith.constant 0 : i32
    %c0_i32_1 = arith.constant 0 : i32
    return %c0_i32, %c0_i32_0 : i32, i32
  }
  func.func @transform_11(%arg0: i32) -> (i32, i32) {
    %c0_i32 = arith.constant 0 : i32
    %c0_i32_0 = arith.constant 0 : i32
    %c0_i32_1 = arith.constant 0 : i32
    return %c0_i32, %c0_i32_0 : i32, i32
  }
  func.func @transform_12(%arg0: i32) -> (i32, i32) {
    %c0_i32 = arith.constant 0 : i32
    %c0_i32_0 = arith.constant 0 : i32
    %c0_i32_1 = arith.constant 0 : i32
    return %c0_i32, %c0_i32_0 : i32, i32
  }
  func.func @transform_13(%arg0: i32) -> (i32, i32) {
    %c0_i32 = arith.constant 0 : i32
    %c0_i32_0 = arith.constant 0 : i32
    %c0_i32_1 = arith.constant 0 : i32
    return %c0_i32, %c0_i32_0 : i32, i32
  }
  func.func @transform_14(%arg0: i32) -> (i32, i32) {
    %c0_i32 = arith.constant 0 : i32
    %c0_i32_0 = arith.constant 0 : i32
    %c0_i32_1 = arith.constant 0 : i32
    return %c0_i32, %c0_i32_0 : i32, i32
  }
  func.func @transform_15(%arg0: i32) -> (i32, i32) {
    %c0_i32 = arith.constant 0 : i32
    %c0_i32_0 = arith.constant 0 : i32
    %c0_i32_1 = arith.constant 0 : i32
    return %c0_i32, %c0_i32_0 : i32, i32
  }
  func.func @transform_16(%arg0: i32) -> (i32, i32) {
    %c0_i32 = arith.constant 0 : i32
    %c0_i32_0 = arith.constant 0 : i32
    %c0_i32_1 = arith.constant 0 : i32
    return %c0_i32, %c0_i32_0 : i32, i32
  }
  func.func @transform_17(%arg0: i32) -> (i32, i32) {
    %c0_i32 = arith.constant 0 : i32
    %c0_i32_0 = arith.constant 0 : i32
    %c0_i32_1 = arith.constant 0 : i32
    return %c0_i32, %c0_i32_0 : i32, i32
  }
  func.func @transform_18(%arg0: i32) -> (i32, i32) {
    %c0_i32 = arith.constant 0 : i32
    %c0_i32_0 = arith.constant 0 : i32
    %c0_i32_1 = arith.constant 0 : i32
    return %c0_i32, %c0_i32_0 : i32, i32
  }
  func.func @transform_19(%arg0: i32) -> (i32, i32) {
    %c0_i32 = arith.constant 0 : i32
    %c0_i32_0 = arith.constant 0 : i32
    %c0_i32_1 = arith.constant 0 : i32
    return %c0_i32, %c0_i32_0 : i32, i32
  }
  func.func @transform_20(%arg0: i32) -> (i32, i32) {
    %c0_i32 = arith.constant 0 : i32
    %c0_i32_0 = arith.constant 0 : i32
    %c0_i32_1 = arith.constant 0 : i32
    return %c0_i32, %c0_i32_0 : i32, i32
  }
  func.func @transform_21(%arg0: i32) -> (i32, i32) {
    %c0_i32 = arith.constant 0 : i32
    %c0_i32_0 = arith.constant 0 : i32
    %c0_i32_1 = arith.constant 0 : i32
    return %c0_i32, %c0_i32_0 : i32, i32
  }
  func.func @transform_22(%arg0: i32) -> (i32, i32) {
    %c0_i32 = arith.constant 0 : i32
    %c0_i32_0 = arith.constant 0 : i32
    %c0_i32_1 = arith.constant 0 : i32
    return %c0_i32, %c0_i32_0 : i32, i32
  }
  func.func @transform_23(%arg0: i32) -> (i32, i32) {
    %c0_i32 = arith.constant 0 : i32
    %c0_i32_0 = arith.constant 0 : i32
    %c0_i32_1 = arith.constant 0 : i32
    return %c0_i32, %c0_i32_0 : i32, i32
  }
  func.func @transform_24(%arg0: i32) -> (i32, i32) {
    %c0_i32 = arith.constant 0 : i32
    %c0_i32_0 = arith.constant 0 : i32
    %c0_i32_1 = arith.constant 0 : i32
    return %c0_i32, %c0_i32_0 : i32, i32
  }
  func.func @transform_25(%arg0: i32) -> (i32, i32) {
    %c0_i32 = arith.constant 0 : i32
    %c0_i32_0 = arith.constant 0 : i32
    %c0_i32_1 = arith.constant 0 : i32
    return %c0_i32, %c0_i32_0 : i32, i32
  }
  func.func @transform_26(%arg0: i32) -> (i32, i32) {
    %c0_i32 = arith.constant 0 : i32
    %c0_i32_0 = arith.constant 0 : i32
    %c0_i32_1 = arith.constant 0 : i32
    return %c0_i32, %c0_i32_0 : i32, i32
  }
  func.func @transform_27(%arg0: i32) -> (i32, i32) {
    %c0_i32 = arith.constant 0 : i32
    %c0_i32_0 = arith.constant 0 : i32
    %c0_i32_1 = arith.constant 0 : i32
    return %c0_i32, %c0_i32_0 : i32, i32
  }
  func.func @transform_28(%arg0: i32) -> (i32, i32, i32) {
    %c0_i32 = arith.constant 0 : i32
    %c0_i32_0 = arith.constant 0 : i32
    %c0_i32_1 = arith.constant 0 : i32
    return %arg0, %c0_i32, %c0_i32_0 : i32, i32, i32
  }
}

</mosaic_0001>

<llo_original>
// kernel: run_pallas.1
$region0: #{run_pallas.1}
  #allocation0 [shape = 'u32[]', space=smem, size = 0x4, offset = 0x4, fixed_abs, tag = 'smem constant byte address 0x4 - core index']
  #allocation1 [shape = 'u32[72,128]{1,0:T(1,128)}', space=vmem, size = 0x9000, scoped, tag = 'internal scratch']
  #allocation2 [shape = 'f32[44,16]{1,0:T(8,128)}', space=vmem, size = 0x6000, scoped, tag = 'scratch operand']
  #allocation3 [shape = 'f32[480,16]{1,0:T(8,128)}', space=vmem, size = 0x3c000, scoped, tag = 'scratch operand']
  #allocation4 [shape = 'f32[480,16]{1,0:T(8,128)}', space=vmem, size = 0x3c000, scoped, tag = 'scratch operand']
  %s0 = inlined_call_operand.vmem [shape: f32[2,4,16], index: 0, kind: input, shape index: {}]
  %s1 = inlined_call_operand.vmem [shape: f32[2,1,4], index: 1, kind: input, shape index: {}]
  %s2 = inlined_call_operand.vmem [shape: f32[192,44], index: 2, kind: input, shape index: {}]
  %s3 = inlined_call_operand.vmem [shape: f32[192,1], index: 3, kind: input, shape index: {}]
  %s4 = inlined_call_operand.vmem [shape: f32[192,44], index: 4, kind: input, shape index: {}]
  %s5 = inlined_call_operand.vmem [shape: f32[192,1], index: 5, kind: input, shape index: {}]
  %s6 = inlined_call_operand.vmem [shape: f32[192,352], index: 6, kind: input, shape index: {}]
  %s7 = inlined_call_operand.vmem [shape: f32[192,1], index: 7, kind: input, shape index: {}]
  %s8 = inlined_call_operand.vmem [shape: f32[6,44], index: 8, kind: input, shape index: {}]
  %s9 = inlined_call_operand.vmem [shape: f32[6,1], index: 9, kind: input, shape index: {}]
  %s10 = inlined_call_operand.vmem [shape: f32[6,352], index: 10, kind: input, shape index: {}]
  %s11 = inlined_call_operand.vmem [shape: f32[6,1], index: 11, kind: input, shape index: {}]
  %s12 = inlined_call_operand.vmem [shape: f32[6,352], index: 12, kind: input, shape index: {}]
  %s13 = inlined_call_operand.vmem [shape: f32[6,1], index: 13, kind: input, shape index: {}]
  %s14 = inlined_call_operand.vmem [shape: f32[256,15], index: 14, kind: input, shape index: {}]
  %s15 = inlined_call_operand.vmem [shape: f32[256,1], index: 15, kind: input, shape index: {}]
  %s16 = inlined_call_operand.vmem [shape: f32[256,15], index: 16, kind: input, shape index: {}]
  %s17 = inlined_call_operand.vmem [shape: f32[256,1], index: 17, kind: input, shape index: {}]
  %s18 = inlined_call_operand.vmem [shape: f32[256,480], index: 18, kind: input, shape index: {}]
  %s19 = inlined_call_operand.vmem [shape: f32[256,1], index: 19, kind: input, shape index: {}]
  %s20 = inlined_call_operand.vmem [shape: f32[8,15], index: 20, kind: input, shape index: {}]
  %s21 = inlined_call_operand.vmem [shape: f32[8,1], index: 21, kind: input, shape index: {}]
  %s22 = inlined_call_operand.vmem [shape: f32[8,480], index: 22, kind: input, shape index: {}]
  %s23 = inlined_call_operand.vmem [shape: f32[8,1], index: 23, kind: input, shape index: {}]
  %s24 = inlined_call_operand.vmem [shape: f32[8,480], index: 24, kind: input, shape index: {}]
  %s25 = inlined_call_operand.vmem [shape: f32[8,1], index: 25, kind: input, shape index: {}]
  %s26 = inlined_call_operand.vmem [shape: f32[6,6], index: 26, kind: input, shape index: {}]
  %s27 = inlined_call_operand.vmem [shape: f32[6,8], index: 27, kind: input, shape index: {}]
  %s28 = inlined_call_operand.hbm [shape: f32[2,4,16], index: 28, kind: output, shape index: {}]
  %s29 = sld [smem:[#allocation0]]
  $region153: #{run_pallas.1} parent=0
    _
  %s31 = ssub.s32 1, %s29
  %s32 = scalar_select 0, %s31, %s29
  $region1: #{run_pallas.1} parent=0
    #allocation5 [shape = 'u8[4096]{0}', space=smem, size = 0x1000, scoped, tag = 'input window, operand 26, single buffered']
    #allocation6 [shape = 's32[2]{0}', space=sflag, size = 0x8, scoped, tag = 'scoped memory for run_pallas.1']
    #allocation7 [shape = 's32[2]{0}', space=sflag, size = 0x8, scoped, tag = 'scoped memory for run_pallas.1']
    #allocation8 [shape = 'u8[4096]{0}', space=smem, size = 0x1000, scoped, tag = 'input window, operand 27, single buffered']
    #allocation9 [shape = 's32[1]{0}', space=sflag, size = 0x4, scoped, tag = 'scoped memory for run_pallas.1']
    #allocation10 [shape = 'u8[4096]{0}', space=vmem, size = 0x1000, scoped, tag = 'output window, operand 0']
    %33 = vsyncpa [#allocation7], 0
    %34 = vsyncpa [#allocation9], 0
    %35 = vsyncpa [#allocation6], 0
    %s36 = scalar_lea.sflag [#allocation6], 1
    %37 = vsyncpa %s36, 0
    loop: start=0, step=1, limit=4
    $region2: #{run_pallas.1} parent=1 // loop_pre_header
      _
    $region3: #{run_pallas.1} parent=1 // loop_header
      %s39 = sphi 0, %s43
      %p40 = scmp.ge.s32.totalorder %s39, 4
      %s49 = sphi 0, %s51
      %s52 = sphi 0, %s49
      %s53 = sphi 0, %s52
      %s69 = sphi 0, %s53
      %s75 = sphi 0, %s77
      %s78 = sphi 0, %s75
      %s79 = sphi 0, %s78
      %s95 = sphi 0, %s79
      %s99 = sphi 0, %s99
      %s101 = sphi 0, %s99
      %s102 = sphi 0, %s101
      %s116 = sphi 0, %s102
      %s120 = sphi 0, %s120
      %s122 = sphi 0, %s120
      %s123 = sphi 0, %s122
      %s137 = sphi 0, %s123
      %s141 = sphi 0, %s141
      %s143 = sphi 0, %s141
      %s144 = sphi 0, %s143
      %s158 = sphi 0, %s144
      %s162 = sphi 0, %s162
      %s164 = sphi 0, %s162
      %s165 = sphi 0, %s164
      %s179 = sphi 0, %s165
      %s183 = sphi 0, %s183
      %s185 = sphi 0, %s183
      %s186 = sphi 0, %s185
      %s200 = sphi 0, %s186
      %s204 = sphi 0, %s204
      %s206 = sphi 0, %s204
      %s207 = sphi 0, %s206
      %s221 = sphi 0, %s207
      %s225 = sphi 0, %s225
      %s227 = sphi 0, %s225
      %s228 = sphi 0, %s227
      %s242 = sphi 0, %s228
      %s246 = sphi 0, %s246
      %s248 = sphi 0, %s246
      %s249 = sphi 0, %s248
      %s263 = sphi 0, %s249
      %s267 = sphi 0, %s267
      %s269 = sphi 0, %s267
      %s270 = sphi 0, %s269
      %s284 = sphi 0, %s270
      %s288 = sphi 0, %s288
      %s290 = sphi 0, %s288
      %s291 = sphi 0, %s290
      %s305 = sphi 0, %s291
      %s309 = sphi 0, %s309
      %s311 = sphi 0, %s309
      %s312 = sphi 0, %s311
      %s326 = sphi 0, %s312
      %s330 = sphi 0, %s330
      %s332 = sphi 0, %s330
      %s333 = sphi 0, %s332
      %s347 = sphi 0, %s333
      %s351 = sphi 0, %s351
      %s353 = sphi 0, %s351
      %s354 = sphi 0, %s353
      %s368 = sphi 0, %s354
      %s372 = sphi 0, %s372
      %s374 = sphi 0, %s372
      %s375 = sphi 0, %s374
      %s389 = sphi 0, %s375
      %s393 = sphi 0, %s393
      %s395 = sphi 0, %s393
      %s396 = sphi 0, %s395
      %s410 = sphi 0, %s396
      %s414 = sphi 0, %s414
      %s416 = sphi 0, %s414
      %s417 = sphi 0, %s416
      %s431 = sphi 0, %s417
      %s435 = sphi 0, %s435
      %s437 = sphi 0, %s435
      %s438 = sphi 0, %s437
      %s452 = sphi 0, %s438
      %s456 = sphi 0, %s456
      %s458 = sphi 0, %s456
      %s459 = sphi 0, %s458
      %s473 = sphi 0, %s459
      %s477 = sphi 0, %s477
      %s479 = sphi 0, %s477
      %s480 = sphi 0, %s479
      %s494 = sphi 0, %s480
      %s498 = sphi 0, %s498
      %s500 = sphi 0, %s498
      %s501 = sphi 0, %s500
      %s515 = sphi 0, %s501
      %s519 = sphi 0, %s519
      %s521 = sphi 0, %s519
      %s522 = sphi 0, %s521
      %s536 = sphi 0, %s522
      %s540 = sphi 0, %s540
      %s542 = sphi 0, %s540
      %s543 = sphi 0, %s542
      %s557 = sphi 0, %s543
      %s561 = sphi 0, %s561
      %s563 = sphi 0, %s561
      %s564 = sphi 0, %s563
      %s578 = sphi 0, %s564
      %s582 = sphi 0, %s582
      %s584 = sphi 0, %s582
      %s585 = sphi 0, %s584
      %s599 = sphi 0, %s585
      %s603 = sphi 0, %s603
      %s605 = sphi 0, %s603
      %s606 = sphi 0, %s605
      %s620 = sphi 0, %s606
      %s624 = sphi 0, %s624
      %s626 = sphi 0, %s624
      %s627 = sphi 0, %s626
      %s641 = sphi 0, %s627
      %s647 = sphi 0, %s649
      %s650 = sphi 0, %s647
      %s651 = sphi 0, %s650
      %s667 = sphi 0, %s651
    $region4: #{run_pallas.1} parent=1 // loop_header_branch
      %42 = sbr.rel (%p40) target = $region8
    $region5: #{run_pallas.1} parent=1 // loop_body
      %s44 = ssub.s32 %s39, 1
      %s45 = ssub.s32 %s39, 2
      %s46 = sadd.s32 %s39, 1
      %s47 = ssub.s32 %s39, %s46
      %p48 = scmp.eq.s32.totalorder %s47, 0
      %s50 = sadd.s32 %s49, 1
      %s51 = scalar_select %p48, %s49, %s50
      %p54 = pneg %p48
      %p55 = scmp.eq.s32.totalorder %s39, 1
      %p56 = por %p54, %p55
      %p57 = scmp.ne.s32.totalorder %s49, %s52
      %p58 = scmp.eq.s32.totalorder %s39, 0
      %p59 = por %p57, %p58
      %p60 = scmp.ne.s32.totalorder %s49, %s52
      %p61 = scmp.eq.s32.totalorder %s44, 1
      %p62 = por %p60, %p61
      %p63 = scmp.ne.s32.totalorder %s52, %s53
      %p64 = scmp.eq.s32.totalorder %s44, 0
      %p65 = por %p63, %p64
      %p66 = scmp.ne.s32.totalorder %s52, %s53
      %p67 = scmp.eq.s32.totalorder %s45, 1
      %p68 = por %p66, %p67
      %p70 = scmp.ne.s32.totalorder %s53, %s69
      %p71 = scmp.eq.s32.totalorder %s45, 0
      %p72 = por %p70, %p71
      %s73 = ssub.s32 %s39, %s46
      %p74 = scmp.eq.s32.totalorder %s73, 0
      %s76 = sadd.s32 %s75, 1
      %s77 = scalar_select %p74, %s75, %s76
      %p80 = pneg %p74
      %p81 = scmp.eq.s32.totalorder %s39, 1
      %p82 = por %p80, %p81
      %p83 = scmp.ne.s32.totalorder %s75, %s78
      %p84 = scmp.eq.s32.totalorder %s39, 0
      %p85 = por %p83, %p84
      %p86 = scmp.ne.s32.totalorder %s75, %s78
      %p87 = scmp.eq.s32.totalorder %s44, 1
      %p88 = por %p86, %p87
      %p89 = scmp.ne.s32.totalorder %s78, %s79
      %p90 = scmp.eq.s32.totalorder %s44, 0
      %p91 = por %p89, %p90
      %p92 = scmp.ne.s32.totalorder %s78, %s79
      %p93 = scmp.eq.s32.totalorder %s45, 1
      %p94 = por %p92, %p93
      %p96 = scmp.ne.s32.totalorder %s79, %s95
      %p97 = scmp.eq.s32.totalorder %s45, 0
      %p98 = por %p96, %p97
      %s100 = sadd.s32 %s99, 1
      %p103 = scmp.eq.s32.totalorder %s39, 1
      %p104 = scmp.ne.s32.totalorder %s99, %s101
      %p105 = scmp.eq.s32.totalorder %s39, 0
      %p106 = por %p104, %p105
      %p107 = scmp.ne.s32.totalorder %s99, %s101
      %p108 = scmp.eq.s32.totalorder %s44, 1
      %p109 = por %p107, %p108
      %p110 = scmp.ne.s32.totalorder %s101, %s102
      %p111 = scmp.eq.s32.totalorder %s44, 0
      %p112 = por %p110, %p111
      %p113 = scmp.ne.s32.totalorder %s101, %s102
      %p114 = scmp.eq.s32.totalorder %s45, 1
      %p115 = por %p113, %p114
      %p117 = scmp.ne.s32.totalorder %s102, %s116
      %p118 = scmp.eq.s32.totalorder %s45, 0
      %p119 = por %p117, %p118
      %s121 = sadd.s32 %s120, 1
      %p124 = scmp.eq.s32.totalorder %s39, 1
      %p125 = scmp.ne.s32.totalorder %s120, %s122
      %p126 = scmp.eq.s32.totalorder %s39, 0
      %p127 = por %p125, %p126
      %p128 = scmp.ne.s32.totalorder %s120, %s122
      %p129 = scmp.eq.s32.totalorder %s44, 1
      %p130 = por %p128, %p129
      %p131 = scmp.ne.s32.totalorder %s122, %s123
      %p132 = scmp.eq.s32.totalorder %s44, 0
      %p133 = por %p131, %p132
      %p134 = scmp.ne.s32.totalorder %s122, %s123
      %p135 = scmp.eq.s32.totalorder %s45, 1
      %p136 = por %p134, %p135
      %p138 = scmp.ne.s32.totalorder %s123, %s137
      %p139 = scmp.eq.s32.totalorder %s45, 0
      %p140 = por %p138, %p139
      %s142 = sadd.s32 %s141, 1
      %p145 = scmp.eq.s32.totalorder %s39, 1
      %p146 = scmp.ne.s32.totalorder %s141, %s143
      %p147 = scmp.eq.s32.totalorder %s39, 0
      %p148 = por %p146, %p147
      %p149 = scmp.ne.s32.totalorder %s141, %s143
      %p150 = scmp.eq.s32.totalorder %s44, 1
      %p151 = por %p149, %p150
      %p152 = scmp.ne.s32.totalorder %s143, %s144
      %p153 = scmp.eq.s32.totalorder %s44, 0
      %p154 = por %p152, %p153
      %p155 = scmp.ne.s32.totalorder %s143, %s144
      %p156 = scmp.eq.s32.totalorder %s45, 1
      %p157 = por %p155, %p156
      %p159 = scmp.ne.s32.totalorder %s144, %s158
      %p160 = scmp.eq.s32.totalorder %s45, 0
      %p161 = por %p159, %p160
      %s163 = sadd.s32 %s162, 1
      %p166 = scmp.eq.s32.totalorder %s39, 1
      %p167 = scmp.ne.s32.totalorder %s162, %s164
      %p168 = scmp.eq.s32.totalorder %s39, 0
      %p169 = por %p167, %p168
      %p170 = scmp.ne.s32.totalorder %s162, %s164
      %p171 = scmp.eq.s32.totalorder %s44, 1
      %p172 = por %p170, %p171
      %p173 = scmp.ne.s32.totalorder %s164, %s165
      %p174 = scmp.eq.s32.totalorder %s44, 0
      %p175 = por %p173, %p174
      %p176 = scmp.ne.s32.totalorder %s164, %s165
      %p177 = scmp.eq.s32.totalorder %s45, 1
      %p178 = por %p176, %p177
      %p180 = scmp.ne.s32.totalorder %s165, %s179
      %p181 = scmp.eq.s32.totalorder %s45, 0
      %p182 = por %p180, %p181
      %s184 = sadd.s32 %s183, 1
      %p187 = scmp.eq.s32.totalorder %s39, 1
      %p188 = scmp.ne.s32.totalorder %s183, %s185
      %p189 = scmp.eq.s32.totalorder %s39, 0
      %p190 = por %p188, %p189
      %p191 = scmp.ne.s32.totalorder %s183, %s185
      %p192 = scmp.eq.s32.totalorder %s44, 1
      %p193 = por %p191, %p192
      %p194 = scmp.ne.s32.totalorder %s185, %s186
      %p195 = scmp.eq.s32.totalorder %s44, 0
      %p196 = por %p194, %p195
      %p197 = scmp.ne.s32.totalorder %s185, %s186
      %p198 = scmp.eq.s32.totalorder %s45, 1
      %p199 = por %p197, %p198
      %p201 = scmp.ne.s32.totalorder %s186, %s200
      %p202 = scmp.eq.s32.totalorder %s45, 0
      %p203 = por %p201, %p202
      %s205 = sadd.s32 %s204, 1
      %p208 = scmp.eq.s32.totalorder %s39, 1
      %p209 = scmp.ne.s32.totalorder %s204, %s206
      %p210 = scmp.eq.s32.totalorder %s39, 0
      %p211 = por %p209, %p210
      %p212 = scmp.ne.s32.totalorder %s204, %s206
      %p213 = scmp.eq.s32.totalorder %s44, 1
      %p214 = por %p212, %p213
      %p215 = scmp.ne.s32.totalorder %s206, %s207
      %p216 = scmp.eq.s32.totalorder %s44, 0
      %p217 = por %p215, %p216
      %p218 = scmp.ne.s32.totalorder %s206, %s207
      %p219 = scmp.eq.s32.totalorder %s45, 1
      %p220 = por %p218, %p219
      %p222 = scmp.ne.s32.totalorder %s207, %s221
      %p223 = scmp.eq.s32.totalorder %s45, 0
      %p224 = por %p222, %p223
      %s226 = sadd.s32 %s225, 1
      %p229 = scmp.eq.s32.totalorder %s39, 1
      %p230 = scmp.ne.s32.totalorder %s225, %s227
      %p231 = scmp.eq.s32.totalorder %s39, 0
      %p232 = por %p230, %p231
      %p233 = scmp.ne.s32.totalorder %s225, %s227
      %p234 = scmp.eq.s32.totalorder %s44, 1
      %p235 = por %p233, %p234
      %p236 = scmp.ne.s32.totalorder %s227, %s228
      %p237 = scmp.eq.s32.totalorder %s44, 0
      %p238 = por %p236, %p237
      %p239 = scmp.ne.s32.totalorder %s227, %s228
      %p240 = scmp.eq.s32.totalorder %s45, 1
      %p241 = por %p239, %p240
      %p243 = scmp.ne.s32.totalorder %s228, %s242
      %p244 = scmp.eq.s32.totalorder %s45, 0
      %p245 = por %p243, %p244
      %s247 = sadd.s32 %s246, 1
      %p250 = scmp.eq.s32.totalorder %s39, 1
      %p251 = scmp.ne.s32.totalorder %s246, %s248
      %p252 = scmp.eq.s32.totalorder %s39, 0
      %p253 = por %p251, %p252
      %p254 = scmp.ne.s32.totalorder %s246, %s248
      %p255 = scmp.eq.s32.totalorder %s44, 1
      %p256 = por %p254, %p255
      %p257 = scmp.ne.s32.totalorder %s248, %s249
      %p258 = scmp.eq.s32.totalorder %s44, 0
      %p259 = por %p257, %p258
      %p260 = scmp.ne.s32.totalorder %s248, %s249
      %p261 = scmp.eq.s32.totalorder %s45, 1
      %p262 = por %p260, %p261
      %p264 = scmp.ne.s32.totalorder %s249, %s263
      %p265 = scmp.eq.s32.totalorder %s45, 0
      %p266 = por %p264, %p265
      %s268 = sadd.s32 %s267, 1
      %p271 = scmp.eq.s32.totalorder %s39, 1
      %p272 = scmp.ne.s32.totalorder %s267, %s269
      %p273 = scmp.eq.s32.totalorder %s39, 0
      %p274 = por %p272, %p273
      %p275 = scmp.ne.s32.totalorder %s267, %s269
      %p276 = scmp.eq.s32.totalorder %s44, 1
      %p277 = por %p275, %p276
      %p278 = scmp.ne.s32.totalorder %s269, %s270
      %p279 = scmp.eq.s32.totalorder %s44, 0
      %p280 = por %p278, %p279
      %p281 = scmp.ne.s32.totalorder %s269, %s270
      %p282 = scmp.eq.s32.totalorder %s45, 1
      %p283 = por %p281, %p282
      %p285 = scmp.ne.s32.totalorder %s270, %s284
      %p286 = scmp.eq.s32.totalorder %s45, 0
      %p287 = por %p285, %p286
      %s289 = sadd.s32 %s288, 1
      %p292 = scmp.eq.s32.totalorder %s39, 1
      %p293 = scmp.ne.s32.totalorder %s288, %s290
      %p294 = scmp.eq.s32.totalorder %s39, 0
      %p295 = por %p293, %p294
      %p296 = scmp.ne.s32.totalorder %s288, %s290
      %p297 = scmp.eq.s32.totalorder %s44, 1
      %p298 = por %p296, %p297
      %p299 = scmp.ne.s32.totalorder %s290, %s291
      %p300 = scmp.eq.s32.totalorder %s44, 0
      %p301 = por %p299, %p300
      %p302 = scmp.ne.s32.totalorder %s290, %s291
      %p303 = scmp.eq.s32.totalorder %s45, 1
      %p304 = por %p302, %p303
      %p306 = scmp.ne.s32.totalorder %s291, %s305
      %p307 = scmp.eq.s32.totalorder %s45, 0
      %p308 = por %p306, %p307
      %s310 = sadd.s32 %s309, 1
      %p313 = scmp.eq.s32.totalorder %s39, 1
      %p314 = scmp.ne.s32.totalorder %s309, %s311
      %p315 = scmp.eq.s32.totalorder %s39, 0
      %p316 = por %p314, %p315
      %p317 = scmp.ne.s32.totalorder %s309, %s311
      %p318 = scmp.eq.s32.totalorder %s44, 1
      %p319 = por %p317, %p318
      %p320 = scmp.ne.s32.totalorder %s311, %s312
      %p321 = scmp.eq.s32.totalorder %s44, 0
      %p322 = por %p320, %p321
      %p323 = scmp.ne.s32.totalorder %s311, %s312
      %p324 = scmp.eq.s32.totalorder %s45, 1
      %p325 = por %p323, %p324
      %p327 = scmp.ne.s32.totalorder %s312, %s326
      %p328 = scmp.eq.s32.totalorder %s45, 0
      %p329 = por %p327, %p328
      %s331 = sadd.s32 %s330, 1
      %p334 = scmp.eq.s32.totalorder %s39, 1
      %p335 = scmp.ne.s32.totalorder %s330, %s332
      %p336 = scmp.eq.s32.totalorder %s39, 0
      %p337 = por %p335, %p336
      %p338 = scmp.ne.s32.totalorder %s330, %s332
      %p339 = scmp.eq.s32.totalorder %s44, 1
      %p340 = por %p338, %p339
      %p341 = scmp.ne.s32.totalorder %s332, %s333
      %p342 = scmp.eq.s32.totalorder %s44, 0
      %p343 = por %p341, %p342
      %p344 = scmp.ne.s32.totalorder %s332, %s333
      %p345 = scmp.eq.s32.totalorder %s45, 1
      %p346 = por %p344, %p345
      %p348 = scmp.ne.s32.totalorder %s333, %s347
      %p349 = scmp.eq.s32.totalorder %s45, 0
      %p350 = por %p348, %p349
      %s352 = sadd.s32 %s351, 1
      %p355 = scmp.eq.s32.totalorder %s39, 1
      %p356 = scmp.ne.s32.totalorder %s351, %s353
      %p357 = scmp.eq.s32.totalorder %s39, 0
      %p358 = por %p356, %p357
      %p359 = scmp.ne.s32.totalorder %s351, %s353
      %p360 = scmp.eq.s32.totalorder %s44, 1
      %p361 = por %p359, %p360
      %p362 = scmp.ne.s32.totalorder %s353, %s354
      %p363 = scmp.eq.s32.totalorder %s44, 0
      %p364 = por %p362, %p363
      %p365 = scmp.ne.s32.totalorder %s353, %s354
      %p366 = scmp.eq.s32.totalorder %s45, 1
      %p367 = por %p365, %p366
      %p369 = scmp.ne.s32.totalorder %s354, %s368
      %p370 = scmp.eq.s32.totalorder %s45, 0
      %p371 = por %p369, %p370
      %s373 = sadd.s32 %s372, 1
      %p376 = scmp.eq.s32.totalorder %s39, 1
      %p377 = scmp.ne.s32.totalorder %s372, %s374
      %p378 = scmp.eq.s32.totalorder %s39, 0
      %p379 = por %p377, %p378
      %p380 = scmp.ne.s32.totalorder %s372, %s374
      %p381 = scmp.eq.s32.totalorder %s44, 1
      %p382 = por %p380, %p381
      %p383 = scmp.ne.s32.totalorder %s374, %s375
      %p384 = scmp.eq.s32.totalorder %s44, 0
      %p385 = por %p383, %p384
      %p386 = scmp.ne.s32.totalorder %s374, %s375
      %p387 = scmp.eq.s32.totalorder %s45, 1
      %p388 = por %p386, %p387
      %p390 = scmp.ne.s32.totalorder %s375, %s389
      %p391 = scmp.eq.s32.totalorder %s45, 0
      %p392 = por %p390, %p391
      %s394 = sadd.s32 %s393, 1
      %p397 = scmp.eq.s32.totalorder %s39, 1
      %p398 = scmp.ne.s32.totalorder %s393, %s395
      %p399 = scmp.eq.s32.totalorder %s39, 0
      %p400 = por %p398, %p399
      %p401 = scmp.ne.s32.totalorder %s393, %s395
      %p402 = scmp.eq.s32.totalorder %s44, 1
      %p403 = por %p401, %p402
      %p404 = scmp.ne.s32.totalorder %s395, %s396
      %p405 = scmp.eq.s32.totalorder %s44, 0
      %p406 = por %p404, %p405
      %p407 = scmp.ne.s32.totalorder %s395, %s396
      %p408 = scmp.eq.s32.totalorder %s45, 1
      %p409 = por %p407, %p408
      %p411 = scmp.ne.s32.totalorder %s396, %s410
      %p412 = scmp.eq.s32.totalorder %s45, 0
      %p413 = por %p411, %p412
      %s415 = sadd.s32 %s414, 1
      %p418 = scmp.eq.s32.totalorder %s39, 1
      %p419 = scmp.ne.s32.totalorder %s414, %s416
      %p420 = scmp.eq.s32.totalorder %s39, 0
      %p421 = por %p419, %p420
      %p422 = scmp.ne.s32.totalorder %s414, %s416
      %p423 = scmp.eq.s32.totalorder %s44, 1
      %p424 = por %p422, %p423
      %p425 = scmp.ne.s32.totalorder %s416, %s417
      %p426 = scmp.eq.s32.totalorder %s44, 0
      %p427 = por %p425, %p426
      %p428 = scmp.ne.s32.totalorder %s416, %s417
      %p429 = scmp.eq.s32.totalorder %s45, 1
      %p430 = por %p428, %p429
      %p432 = scmp.ne.s32.totalorder %s417, %s431
      %p433 = scmp.eq.s32.totalorder %s45, 0
      %p434 = por %p432, %p433
      %s436 = sadd.s32 %s435, 1
      %p439 = scmp.eq.s32.totalorder %s39, 1
      %p440 = scmp.ne.s32.totalorder %s435, %s437
      %p441 = scmp.eq.s32.totalorder %s39, 0
      %p442 = por %p440, %p441
      %p443 = scmp.ne.s32.totalorder %s435, %s437
      %p444 = scmp.eq.s32.totalorder %s44, 1
      %p445 = por %p443, %p444
      %p446 = scmp.ne.s32.totalorder %s437, %s438
      %p447 = scmp.eq.s32.totalorder %s44, 0
      %p448 = por %p446, %p447
      %p449 = scmp.ne.s32.totalorder %s437, %s438
      %p450 = scmp.eq.s32.totalorder %s45, 1
      %p451 = por %p449, %p450
      %p453 = scmp.ne.s32.totalorder %s438, %s452
      %p454 = scmp.eq.s32.totalorder %s45, 0
      %p455 = por %p453, %p454
      %s457 = sadd.s32 %s456, 1
      %p460 = scmp.eq.s32.totalorder %s39, 1
      %p461 = scmp.ne.s32.totalorder %s456, %s458
      %p462 = scmp.eq.s32.totalorder %s39, 0
      %p463 = por %p461, %p462
      %p464 = scmp.ne.s32.totalorder %s456, %s458
      %p465 = scmp.eq.s32.totalorder %s44, 1
      %p466 = por %p464, %p465
      %p467 = scmp.ne.s32.totalorder %s458, %s459
      %p468 = scmp.eq.s32.totalorder %s44, 0
      %p469 = por %p467, %p468
      %p470 = scmp.ne.s32.totalorder %s458, %s459
      %p471 = scmp.eq.s32.totalorder %s45, 1
      %p472 = por %p470, %p471
      %p474 = scmp.ne.s32.totalorder %s459, %s473
      %p475 = scmp.eq.s32.totalorder %s45, 0
      %p476 = por %p474, %p475
      %s478 = sadd.s32 %s477, 1
      %p481 = scmp.eq.s32.totalorder %s39, 1
      %p482 = scmp.ne.s32.totalorder %s477, %s479
      %p483 = scmp.eq.s32.totalorder %s39, 0
      %p484 = por %p482, %p483
      %p485 = scmp.ne.s32.totalorder %s477, %s479
      %p486 = scmp.eq.s32.totalorder %s44, 1
      %p487 = por %p485, %p486
      %p488 = scmp.ne.s32.totalorder %s479, %s480
      %p489 = scmp.eq.s32.totalorder %s44, 0
      %p490 = por %p488, %p489
      %p491 = scmp.ne.s32.totalorder %s479, %s480
      %p492 = scmp.eq.s32.totalorder %s45, 1
      %p493 = por %p491, %p492
      %p495 = scmp.ne.s32.totalorder %s480, %s494
      %p496 = scmp.eq.s32.totalorder %s45, 0
      %p497 = por %p495, %p496
      %s499 = sadd.s32 %s498, 1
      %p502 = scmp.eq.s32.totalorder %s39, 1
      %p503 = scmp.ne.s32.totalorder %s498, %s500
      %p504 = scmp.eq.s32.totalorder %s39, 0
      %p505 = por %p503, %p504
      %p506 = scmp.ne.s32.totalorder %s498, %s500
      %p507 = scmp.eq.s32.totalorder %s44, 1
      %p508 = por %p506, %p507
      %p509 = scmp.ne.s32.totalorder %s500, %s501
      %p510 = scmp.eq.s32.totalorder %s44, 0
      %p511 = por %p509, %p510
      %p512 = scmp.ne.s32.totalorder %s500, %s501
      %p513 = scmp.eq.s32.totalorder %s45, 1
      %p514 = por %p512, %p513
      %p516 = scmp.ne.s32.totalorder %s501, %s515
      %p517 = scmp.eq.s32.totalorder %s45, 0
      %p518 = por %p516, %p517
      %s520 = sadd.s32 %s519, 1
      %p523 = scmp.eq.s32.totalorder %s39, 1
      %p524 = scmp.ne.s32.totalorder %s519, %s521
      %p525 = scmp.eq.s32.totalorder %s39, 0
      %p526 = por %p524, %p525
      %p527 = scmp.ne.s32.totalorder %s519, %s521
      %p528 = scmp.eq.s32.totalorder %s44, 1
      %p529 = por %p527, %p528
      %p530 = scmp.ne.s32.totalorder %s521, %s522
      %p531 = scmp.eq.s32.totalorder %s44, 0
      %p532 = por %p530, %p531
      %p533 = scmp.ne.s32.totalorder %s521, %s522
      %p534 = scmp.eq.s32.totalorder %s45, 1
      %p535 = por %p533, %p534
      %p537 = scmp.ne.s32.totalorder %s522, %s536
      %p538 = scmp.eq.s32.totalorder %s45, 0
      %p539 = por %p537, %p538
      %s541 = sadd.s32 %s540, 1
      %p544 = scmp.eq.s32.totalorder %s39, 1
      %p545 = scmp.ne.s32.totalorder %s540, %s542
      %p546 = scmp.eq.s32.totalorder %s39, 0
      %p547 = por %p545, %p546
      %p548 = scmp.ne.s32.totalorder %s540, %s542
      %p549 = scmp.eq.s32.totalorder %s44, 1
      %p550 = por %p548, %p549
      %p551 = scmp.ne.s32.totalorder %s542, %s543
      %p552 = scmp.eq.s32.totalorder %s44, 0
      %p553 = por %p551, %p552
      %p554 = scmp.ne.s32.totalorder %s542, %s543
      %p555 = scmp.eq.s32.totalorder %s45, 1
      %p556 = por %p554, %p555
      %p558 = scmp.ne.s32.totalorder %s543, %s557
      %p559 = scmp.eq.s32.totalorder %s45, 0
      %p560 = por %p558, %p559
      %s562 = sadd.s32 %s561, 1
      %p565 = scmp.eq.s32.totalorder %s39, 1
      %p566 = scmp.ne.s32.totalorder %s561, %s563
      %p567 = scmp.eq.s32.totalorder %s39, 0
      %p568 = por %p566, %p567
      %p569 = scmp.ne.s32.totalorder %s561, %s563
      %p570 = scmp.eq.s32.totalorder %s44, 1
      %p571 = por %p569, %p570
      %p572 = scmp.ne.s32.totalorder %s563, %s564
      %p573 = scmp.eq.s32.totalorder %s44, 0
      %p574 = por %p572, %p573
      %p575 = scmp.ne.s32.totalorder %s563, %s564
      %p576 = scmp.eq.s32.totalorder %s45, 1
      %p577 = por %p575, %p576
      %p579 = scmp.ne.s32.totalorder %s564, %s578
      %p580 = scmp.eq.s32.totalorder %s45, 0
      %p581 = por %p579, %p580
      %s583 = sadd.s32 %s582, 1
      %p586 = scmp.eq.s32.totalorder %s39, 1
      %p587 = scmp.ne.s32.totalorder %s582, %s584
      %p588 = scmp.eq.s32.totalorder %s39, 0
      %p589 = por %p587, %p588
      %p590 = scmp.ne.s32.totalorder %s582, %s584
      %p591 = scmp.eq.s32.totalorder %s44, 1
      %p592 = por %p590, %p591
      %p593 = scmp.ne.s32.totalorder %s584, %s585
      %p594 = scmp.eq.s32.totalorder %s44, 0
      %p595 = por %p593, %p594
      %p596 = scmp.ne.s32.totalorder %s584, %s585
      %p597 = scmp.eq.s32.totalorder %s45, 1
      %p598 = por %p596, %p597
      %p600 = scmp.ne.s32.totalorder %s585, %s599
      %p601 = scmp.eq.s32.totalorder %s45, 0
      %p602 = por %p600, %p601
      %s604 = sadd.s32 %s603, 1
      %p607 = scmp.eq.s32.totalorder %s39, 1
      %p608 = scmp.ne.s32.totalorder %s603, %s605
      %p609 = scmp.eq.s32.totalorder %s39, 0
      %p610 = por %p608, %p609
      %p611 = scmp.ne.s32.totalorder %s603, %s605
      %p612 = scmp.eq.s32.totalorder %s44, 1
      %p613 = por %p611, %p612
      %p614 = scmp.ne.s32.totalorder %s605, %s606
      %p615 = scmp.eq.s32.totalorder %s44, 0
      %p616 = por %p614, %p615
      %p617 = scmp.ne.s32.totalorder %s605, %s606
      %p618 = scmp.eq.s32.totalorder %s45, 1
      %p619 = por %p617, %p618
      %p621 = scmp.ne.s32.totalorder %s606, %s620
      %p622 = scmp.eq.s32.totalorder %s45, 0
      %p623 = por %p621, %p622
      %s625 = sadd.s32 %s624, 1
      %p628 = scmp.eq.s32.totalorder %s39, 1
      %p629 = scmp.ne.s32.totalorder %s624, %s626
      %p630 = scmp.eq.s32.totalorder %s39, 0
      %p631 = por %p629, %p630
      %p632 = scmp.ne.s32.totalorder %s624, %s626
      %p633 = scmp.eq.s32.totalorder %s44, 1
      %p634 = por %p632, %p633
      %p635 = scmp.ne.s32.totalorder %s626, %s627
      %p636 = scmp.eq.s32.totalorder %s44, 0
      %p637 = por %p635, %p636
      %p638 = scmp.ne.s32.totalorder %s626, %s627
      %p639 = scmp.eq.s32.totalorder %s45, 1
      %p640 = por %p638, %p639
      %p642 = scmp.ne.s32.totalorder %s627, %s641
      %p643 = scmp.eq.s32.totalorder %s45, 0
      %p644 = por %p642, %p643
      %s645 = ssub.s32 %s39, %s46
      %p646 = scmp.eq.s32.totalorder %s645, 0
      %s648 = sadd.s32 %s647, 1
      %s649 = scalar_select %p646, %s647, %s648
      %p652 = pneg %p646
      %p653 = scmp.eq.s32.totalorder %s39, 1
      %p654 = por %p652, %p653
      %p655 = scmp.ne.s32.totalorder %s647, %s650
      %p656 = scmp.eq.s32.totalorder %s39, 0
      %p657 = por %p655, %p656
      %p658 = scmp.ne.s32.totalorder %s647, %s650
      %p659 = scmp.eq.s32.totalorder %s44, 1
      %p660 = por %p658, %p659
      %p661 = scmp.ne.s32.totalorder %s650, %s651
      %p662 = scmp.eq.s32.totalorder %s44, 0
      %p663 = por %p661, %p662
      %p664 = scmp.ne.s32.totalorder %s650, %s651
      %p665 = scmp.eq.s32.totalorder %s45, 1
      %p666 = por %p664, %p665
      %p668 = scmp.ne.s32.totalorder %s651, %s667
      %p669 = scmp.eq.s32.totalorder %s45, 0
      %p670 = por %p668, %p669
      %p671 = scmp.le.s32.totalorder 1, %s39
      %p672 = scmp.lt.s32.totalorder %s39, 3
      %p673 = pnand %p671, %p672
      %p674 = pneg %p673
      // Predicated region
      $region9: #{run_pallas.1} parent=5 // pred_check
        _
      $region10: #{run_pallas.1} parent=5 // pred_check_branch
        %676 = sbr.rel (%p673) target = $region12
      $region11: #{run_pallas.1} parent=5 // pred_region
        %s677 = ssub.s32 %s39, 1
        // Predicated region
        $region13: #{run_pallas.1} parent=11 // pred_check
          %p678 = pneg %p112
        $region14: #{run_pallas.1} parent=11 // pred_check_branch
          %680 = sbr.rel (%p678) target = $region16
        $region15: #{run_pallas.1} parent=11 // pred_region
          _
        $region16: #{run_pallas.1} parent=11 // pred_fallthru
          _
        // Predicated region
        $region17: #{run_pallas.1} parent=11 // pred_check
          %p681 = pneg %p133
        $region18: #{run_pallas.1} parent=11 // pred_check_branch
          %683 = sbr.rel (%p681) target = $region20
        $region19: #{run_pallas.1} parent=11 // pred_region
          _
        $region20: #{run_pallas.1} parent=11 // pred_fallthru
          _
        // Predicated region
        $region21: #{run_pallas.1} parent=11 // pred_check
          %p684 = pneg %p154
        $region22: #{run_pallas.1} parent=11 // pred_check_branch
          %686 = sbr.rel (%p684) target = $region24
        $region23: #{run_pallas.1} parent=11 // pred_region
          _
        $region24: #{run_pallas.1} parent=11 // pred_fallthru
          _
        // Predicated region
        $region25: #{run_pallas.1} parent=11 // pred_check
          %p687 = pneg %p175
        $region26: #{run_pallas.1} parent=11 // pred_check_branch
          %689 = sbr.rel (%p687) target = $region28
        $region27: #{run_pallas.1} parent=11 // pred_region
          _
        $region28: #{run_pallas.1} parent=11 // pred_fallthru
          _
        // Predicated region
        $region29: #{run_pallas.1} parent=11 // pred_check
          %p690 = pneg %p196
        $region30: #{run_pallas.1} parent=11 // pred_check_branch
          %692 = sbr.rel (%p690) target = $region32
        $region31: #{run_pallas.1} parent=11 // pred_region
          _
        $region32: #{run_pallas.1} parent=11 // pred_fallthru
          _
        // Predicated region
        $region33: #{run_pallas.1} parent=11 // pred_check
          %p693 = pneg %p217
        $region34: #{run_pallas.1} parent=11 // pred_check_branch
          %695 = sbr.rel (%p693) target = $region36
        $region35: #{run_pallas.1} parent=11 // pred_region
          _
        $region36: #{run_pallas.1} parent=11 // pred_fallthru
          _
        // Predicated region
        $region37: #{run_pallas.1} parent=11 // pred_check
          %p696 = pneg %p238
        $region38: #{run_pallas.1} parent=11 // pred_check_branch
          %698 = sbr.rel (%p696) target = $region40
        $region39: #{run_pallas.1} parent=11 // pred_region
          _
        $region40: #{run_pallas.1} parent=11 // pred_fallthru
          _
        // Predicated region
        $region41: #{run_pallas.1} parent=11 // pred_check
          %p699 = pneg %p259
        $region42: #{run_pallas.1} parent=11 // pred_check_branch
          %701 = sbr.rel (%p699) target = $region44
        $region43: #{run_pallas.1} parent=11 // pred_region
          _
        $region44: #{run_pallas.1} parent=11 // pred_fallthru
          _
        // Predicated region
        $region45: #{run_pallas.1} parent=11 // pred_check
          %p702 = pneg %p280
        $region46: #{run_pallas.1} parent=11 // pred_check_branch
          %704 = sbr.rel (%p702) target = $region48
        $region47: #{run_pallas.1} parent=11 // pred_region
          _
        $region48: #{run_pallas.1} parent=11 // pred_fallthru
          _
        // Predicated region
        $region49: #{run_pallas.1} parent=11 // pred_check
          %p705 = pneg %p301
        $region50: #{run_pallas.1} parent=11 // pred_check_branch
          %707 = sbr.rel (%p705) target = $region52
        $region51: #{run_pallas.1} parent=11 // pred_region
          _
        $region52: #{run_pallas.1} parent=11 // pred_fallthru
          _
        // Predicated region
        $region53: #{run_pallas.1} parent=11 // pred_check
          %p708 = pneg %p322
        $region54: #{run_pallas.1} parent=11 // pred_check_branch
          %710 = sbr.rel (%p708) target = $region56
        $region55: #{run_pallas.1} parent=11 // pred_region
          _
        $region56: #{run_pallas.1} parent=11 // pred_fallthru
          _
        // Predicated region
        $region57: #{run_pallas.1} parent=11 // pred_check
          %p711 = pneg %p343
        $region58: #{run_pallas.1} parent=11 // pred_check_branch
          %713 = sbr.rel (%p711) target = $region60
        $region59: #{run_pallas.1} parent=11 // pred_region
          _
        $region60: #{run_pallas.1} parent=11 // pred_fallthru
          _
        // Predicated region
        $region61: #{run_pallas.1} parent=11 // pred_check
          %p714 = pneg %p364
        $region62: #{run_pallas.1} parent=11 // pred_check_branch
          %716 = sbr.rel (%p714) target = $region64
        $region63: #{run_pallas.1} parent=11 // pred_region
          _
        $region64: #{run_pallas.1} parent=11 // pred_fallthru
          _
        // Predicated region
        $region65: #{run_pallas.1} parent=11 // pred_check
          %p717 = pneg %p385
        $region66: #{run_pallas.1} parent=11 // pred_check_branch
          %719 = sbr.rel (%p717) target = $region68
        $region67: #{run_pallas.1} parent=11 // pred_region
          _
        $region68: #{run_pallas.1} parent=11 // pred_fallthru
          _
        // Predicated region
        $region69: #{run_pallas.1} parent=11 // pred_check
          %p720 = pneg %p406
        $region70: #{run_pallas.1} parent=11 // pred_check_branch
          %722 = sbr.rel (%p720) target = $region72
        $region71: #{run_pallas.1} parent=11 // pred_region
          _
        $region72: #{run_pallas.1} parent=11 // pred_fallthru
          _
        // Predicated region
        $region73: #{run_pallas.1} parent=11 // pred_check
          %p723 = pneg %p427
        $region74: #{run_pallas.1} parent=11 // pred_check_branch
          %725 = sbr.rel (%p723) target = $region76
        $region75: #{run_pallas.1} parent=11 // pred_region
          _
        $region76: #{run_pallas.1} parent=11 // pred_fallthru
          _
        // Predicated region
        $region77: #{run_pallas.1} parent=11 // pred_check
          %p726 = pneg %p448
        $region78: #{run_pallas.1} parent=11 // pred_check_branch
          %728 = sbr.rel (%p726) target = $region80
        $region79: #{run_pallas.1} parent=11 // pred_region
          _
        $region80: #{run_pallas.1} parent=11 // pred_fallthru
          _
        // Predicated region
        $region81: #{run_pallas.1} parent=11 // pred_check
          %p729 = pneg %p469
        $region82: #{run_pallas.1} parent=11 // pred_check_branch
          %731 = sbr.rel (%p729) target = $region84
        $region83: #{run_pallas.1} parent=11 // pred_region
          _
        $region84: #{run_pallas.1} parent=11 // pred_fallthru
          _
        // Predicated region
        $region85: #{run_pallas.1} parent=11 // pred_check
          %p732 = pneg %p490
        $region86: #{run_pallas.1} parent=11 // pred_check_branch
          %734 = sbr.rel (%p732) target = $region88
        $region87: #{run_pallas.1} parent=11 // pred_region
          _
        $region88: #{run_pallas.1} parent=11 // pred_fallthru
          _
        // Predicated region
        $region89: #{run_pallas.1} parent=11 // pred_check
          %p735 = pneg %p511
        $region90: #{run_pallas.1} parent=11 // pred_check_branch
          %737 = sbr.rel (%p735) target = $region92
        $region91: #{run_pallas.1} parent=11 // pred_region
          _
        $region92: #{run_pallas.1} parent=11 // pred_fallthru
          _
        // Predicated region
        $region93: #{run_pallas.1} parent=11 // pred_check
          %p738 = pneg %p532
        $region94: #{run_pallas.1} parent=11 // pred_check_branch
          %740 = sbr.rel (%p738) target = $region96
        $region95: #{run_pallas.1} parent=11 // pred_region
          _
        $region96: #{run_pallas.1} parent=11 // pred_fallthru
          _
        // Predicated region
        $region97: #{run_pallas.1} parent=11 // pred_check
          %p741 = pneg %p553
        $region98: #{run_pallas.1} parent=11 // pred_check_branch
          %743 = sbr.rel (%p741) target = $region100
        $region99: #{run_pallas.1} parent=11 // pred_region
          _
        $region100: #{run_pallas.1} parent=11 // pred_fallthru
          _
        // Predicated region
        $region101: #{run_pallas.1} parent=11 // pred_check
          %p744 = pneg %p574
        $region102: #{run_pallas.1} parent=11 // pred_check_branch
          %746 = sbr.rel (%p744) target = $region104
        $region103: #{run_pallas.1} parent=11 // pred_region
          _
        $region104: #{run_pallas.1} parent=11 // pred_fallthru
          _
        // Predicated region
        $region105: #{run_pallas.1} parent=11 // pred_check
          %p747 = pneg %p595
        $region106: #{run_pallas.1} parent=11 // pred_check_branch
          %749 = sbr.rel (%p747) target = $region108
        $region107: #{run_pallas.1} parent=11 // pred_region
          _
        $region108: #{run_pallas.1} parent=11 // pred_fallthru
          _
        // Predicated region
        $region109: #{run_pallas.1} parent=11 // pred_check
          %p750 = pneg %p616
        $region110: #{run_pallas.1} parent=11 // pred_check_branch
          %752 = sbr.rel (%p750) target = $region112
        $region111: #{run_pallas.1} parent=11 // pred_region
          %754 = vsyncadd [#allocation7], 0
          %s756 = sshll.u32 %s26, 4
          %s757 = int_to_ptr.vmem [resolvable:$true] %s756
          %759 = dma.vmem_to_smem %s757, 128, [#allocation5], [#allocation7]
        $region112: #{run_pallas.1} parent=11 // pred_fallthru
          _
        // Predicated region
        $region113: #{run_pallas.1} parent=11 // pred_check
          %p760 = pneg %p637
        $region114: #{run_pallas.1} parent=11 // pred_check_branch
          %762 = sbr.rel (%p760) target = $region116
        $region115: #{run_pallas.1} parent=11 // pred_region
          %764 = vsyncadd [#allocation9], 0
          %s766 = sshll.u32 %s27, 4
          %s767 = int_to_ptr.vmem [resolvable:$true] %s766
          %769 = dma.vmem_to_smem %s767, 128, [#allocation8], [#allocation9]
        $region116: #{run_pallas.1} parent=11 // pred_fallthru
          _
      $region12: #{run_pallas.1} parent=5 // pred_fallthru
        _
      %p770 = scmp.lt.s32.totalorder %s39, 2
      // Predicated region
      $region117: #{run_pallas.1} parent=5 // pred_check
        %p771 = pneg %p770
      $region118: #{run_pallas.1} parent=5 // pred_check_branch
        %773 = sbr.rel (%p771) target = $region120
      $region119: #{run_pallas.1} parent=5 // pred_region
        // Predicated region
        $region121: #{run_pallas.1} parent=119 // pred_check
          %p774 = pneg %p59
        $region122: #{run_pallas.1} parent=119 // pred_check_branch
          %776 = sbr.rel (%p774) target = $region124
        $region123: #{run_pallas.1} parent=119 // pred_region
          %p777 = scmp.lt.s32.totalorder %s39, 1
          %s778 = scalar_select %p777, %s39, 1
          %s779 = smul.addr %s778, 4
          %s780 = scalar_lea.vmem %s0, %s779
        $region124: #{run_pallas.1} parent=119 // pred_fallthru
          _
        // Predicated region
        $region125: #{run_pallas.1} parent=119 // pred_check
          %p781 = pneg %p85
        $region126: #{run_pallas.1} parent=119 // pred_check_branch
          %783 = sbr.rel (%p781) target = $region128
        $region127: #{run_pallas.1} parent=119 // pred_region
          %p784 = scmp.lt.s32.totalorder %s39, 1
          %s785 = scalar_select %p784, %s39, 1
          %s786 = scalar_lea.vmem %s1, %s785
        $region128: #{run_pallas.1} parent=119 // pred_fallthru
          _
      $region120: #{run_pallas.1} parent=5 // pred_fallthru
        _
      %p787 = scmp.le.s32.totalorder 1, %s39
      %p788 = scmp.lt.s32.totalorder %s39, 3
      %p789 = pnand %p787, %p788
      %p790 = pneg %p789
      // Predicated region
      $region129: #{run_pallas.1} parent=5 // pred_check
        _
      $region130: #{run_pallas.1} parent=5 // pred_check_branch
        %792 = sbr.rel (%p789) target = $region132
      $region131: #{run_pallas.1} parent=5 // pred_region
        %s793 = ssub.s32 %s39, 1
        // Predicated region
        $region133: #{run_pallas.1} parent=131 // pred_check
          %p794 = pneg %p616
        $region134: #{run_pallas.1} parent=131 // pred_check_branch
          %796 = sbr.rel (%p794) target = $region136
        $region135: #{run_pallas.1} parent=131 // pred_region
          %798 = dma.done [#allocation7], 128
        $region136: #{run_pallas.1} parent=131 // pred_fallthru
          _
        // Predicated region
        $region137: #{run_pallas.1} parent=131 // pred_check
          %p799 = pneg %p637
        $region138: #{run_pallas.1} parent=131 // pred_check_branch
          %801 = sbr.rel (%p799) target = $region140
        $region139: #{run_pallas.1} parent=131 // pred_region
          %803 = dma.done [#allocation9], 128
        $region140: #{run_pallas.1} parent=131 // pred_fallthru
          _
        %804 = sfence
        %p805 = scmp.lt.s32.totalorder %s44, 1
        %s806 = scalar_select %p805, %s44, 1
        %s807 = smul.addr %s806, 4
        %s808 = scalar_lea.vmem %s0, %s807
        %p809 = pneg %p65
        %p810 = pneg %p62
        %p811 = scmp.lt.s32.totalorder %s44, 1
        %s812 = scalar_select %p811, %s44, 1
        %s813 = scalar_lea.vmem %s1, %s812
        %p814 = pneg %p91
        %p815 = pneg %p88
        %p816 = pneg %p112
        %p817 = pneg %p109
        %p818 = pneg %p133
        %p819 = pneg %p130
        %p820 = pneg %p154
        %p821 = pneg %p151
        %p822 = pneg %p175
        %p823 = pneg %p172
        %p824 = pneg %p196
        %p825 = pneg %p193
        %p826 = pneg %p217
        %p827 = pneg %p214
        %p828 = pneg %p238
        %p829 = pneg %p235
        %p830 = pneg %p259
        %p831 = pneg %p256
        %p832 = pneg %p280
        %p833 = pneg %p277
        %p834 = pneg %p301
        %p835 = pneg %p298
        %p836 = pneg %p322
        %p837 = pneg %p319
        %p838 = pneg %p343
        %p839 = pneg %p340
        %p840 = pneg %p364
        %p841 = pneg %p361
        %p842 = pneg %p385
        %p843 = pneg %p382
        %p844 = pneg %p406
        %p845 = pneg %p403
        %p846 = pneg %p427
        %p847 = pneg %p424
        %p848 = pneg %p448
        %p849 = pneg %p445
        %p850 = pneg %p469
        %p851 = pneg %p466
        %p852 = pneg %p490
        %p853 = pneg %p487
        %p854 = pneg %p511
        %p855 = pneg %p508
        %p856 = pneg %p532
        %p857 = pneg %p529
        %p858 = pneg %p553
        %p859 = pneg %p550
        %p860 = pneg %p574
        %p861 = pneg %p571
        %p862 = pneg %p595
        %p863 = pneg %p592
        %p864 = pneg %p616
        %p865 = pneg %p613
        %p866 = pneg %p637
        %p867 = pneg %p634
        %p868 = pneg %p663
        %p869 = pneg %p660
        %s870 = sand.u32 %s650, 1
        %s871 = scalar_lea.sflag [#allocation6], %s870
        %s872 = sand.u32 %s650, 1
        %s873 = smul.addr %s872, 4
        %s874 = scalar_lea.vmem [#allocation10], %s873
        %p875 = scmp.lt.s32.totalorder %s44, 1
        %s876 = scalar_select %p875, %s44, 1
        %s877 = smul.addr %s876, 4
        %s878 = scalar_lea.vmem %s0, %s877
        %p879 = scmp.lt.s32.totalorder %s44, 1
        %s880 = scalar_select %p879, %s44, 1
        %s881 = scalar_lea.vmem %s1, %s880
        %v882 = vld [vmem:[%s878] sm:$0xf]
        %v883 = vld [vmem:[%s881] sm:$0x1]
        %vm884 = vcmask 130048
        %885 = vst.msk [vmem:[#allocation2] sm:$0xff] %vm884, 0.0
        %886 = vst.msk [vmem:[#allocation2 + $0x8] sm:$0xff] %vm884, 0.0
        %887 = vst.msk [vmem:[#allocation2 + $0x10] sm:$0xff] %vm884, 0.0
        %888 = vst.msk [vmem:[#allocation2 + $0x18] sm:$0xff] %vm884, 0.0
        %889 = vst.msk [vmem:[#allocation2 + $0x20] sm:$0xff] %vm884, 0.0
        %vm890 = vcmask 125952
        %891 = vst.msk [vmem:[#allocation2 + $0x28] sm:$0xf] %vm890, 0.0
        %893 = vrot.lane.b32.xlu0 %v882, 5
        %v894 = vpop.permute.xlu0 %893
        %vm896 = vcmask 125992
        %897 = vst.msk [vmem:[#allocation2] sm:$0xf] %vm896, %v894
        %898 = vrot.lane.b32.xlu0 %v882, 4
        %v899 = vpop.permute.xlu0 %898
        %vm901 = vcmask 125984
        %902 = vst.msk [vmem:[#allocation2 + $0x4] sm:$0xf] %vm901, %v899
        %903 = vrot.lane.b32.xlu0 %v882, 3
        %v904 = vpop.permute.xlu0 %903
        %vm906 = vcmask 125976
        %907 = vst.msk [vmem:[#allocation2 + $0x8] sm:$0xf] %vm906, %v904
        %908 = vrot.lane.b32.xlu0 %v882, 2
        %v909 = vpop.permute.xlu0 %908
        %vm911 = vcmask 125968
        %912 = vst.msk [vmem:[#allocation2 + $0xc] sm:$0xf] %vm911, %v909
        %913 = vrot.lane.b32.xlu0 %v882, 1
        %v914 = vpop.permute.xlu0 %913
        %vm916 = vcmask 125960
        %917 = vst.msk [vmem:[#allocation2 + $0x10] sm:$0xf] %vm916, %v914
        %918 = vst.msk [vmem:[#allocation2 + $0x14] sm:$0xf] %vm890, %v882
        %919 = vrot.lane.b32.xlu0 %v882, 127
        %v920 = vpop.permute.xlu0 %919
        %vm922 = vcmask 117760
        %923 = vst.msk [vmem:[#allocation2 + $0x18] sm:$0xf] %vm922, %v920
        %924 = vrot.lane.b32.xlu0 %v882, 126
        %v925 = vpop.permute.xlu0 %924
        %vm927 = vcmask 109568
        %928 = vst.msk [vmem:[#allocation2 + $0x1c] sm:$0xf] %vm927, %v925
        %929 = vrot.lane.b32.xlu0 %v882, 125
        %v930 = vpop.permute.xlu0 %929
        %vm932 = vcmask 101376
        %933 = vst.msk [vmem:[#allocation2 + $0x20] sm:$0xf] %vm932, %v930
        %934 = vrot.lane.b32.xlu0 %v882, 124
        %v935 = vpop.permute.xlu0 %934
        %vm937 = vcmask 93184
        %938 = vst.msk [vmem:[#allocation2 + $0x24] sm:$0xf] %vm937, %v935
        %939 = vrot.lane.b32.xlu0 %v882, 123
        %v940 = vpop.permute.xlu0 %939
        %vm942 = vcmask 84992
        %943 = vst.msk [vmem:[#allocation2 + $0x28] sm:$0xf] %vm942, %v940
        %v944 = vld [vmem:[#allocation2] sm:$0xff]
        %v945 = vld [vmem:[#allocation2 + $0x8] sm:$0xff]
        %v946 = vld [vmem:[#allocation2 + $0x10] sm:$0xff]
        %v947 = vld [vmem:[#allocation2 + $0x18] sm:$0xff]
        %v948 = vld [vmem:[#allocation2 + $0x20] sm:$0xff]
        %v949 = vld [vmem:[#allocation2 + $0x28] sm:$0xf]
        %v950 = vld [vmem:[%s2] sm:$0xff]
        %v951 = vld [vmem:[%s2 + $0x8] sm:$0xff]
        %v952 = vld [vmem:[%s2 + $0x10] sm:$0xff]
        %v953 = vld [vmem:[%s2 + $0x18] sm:$0xff]
        %v954 = vld [vmem:[%s2 + $0x20] sm:$0xff]
        %v955 = vld [vmem:[%s2 + $0x28] sm:$0xff]
        %v956 = vld [vmem:[%s2 + $0x30] sm:$0xff]
        %v957 = vld [vmem:[%s2 + $0x38] sm:$0xff]
        %v958 = vld [vmem:[%s2 + $0x40] sm:$0xff]
        %v959 = vld [vmem:[%s2 + $0x48] sm:$0xff]
        %v960 = vld [vmem:[%s2 + $0x50] sm:$0xff]
        %v961 = vld [vmem:[%s2 + $0x58] sm:$0xff]
        %v962 = vld [vmem:[%s2 + $0x60] sm:$0xff]
        %v963 = vld [vmem:[%s2 + $0x68] sm:$0xff]
        %v964 = vld [vmem:[%s2 + $0x70] sm:$0xff]
        %v965 = vld [vmem:[%s2 + $0x78] sm:$0xff]
        %v966 = vld [vmem:[%s2 + $0x80] sm:$0xff]
        %v967 = vld [vmem:[%s2 + $0x88] sm:$0xff]
        %v968 = vld [vmem:[%s2 + $0x90] sm:$0xff]
        %v969 = vld [vmem:[%s2 + $0x98] sm:$0xff]
        %v970 = vld [vmem:[%s2 + $0xa0] sm:$0xff]
        %v971 = vld [vmem:[%s2 + $0xa8] sm:$0xff]
        %v972 = vld [vmem:[%s2 + $0xb0] sm:$0xff]
        %v973 = vld [vmem:[%s2 + $0xb8] sm:$0xff]
        %v974 = vld [vmem:[%s3] sm:$0xff]
        %v975 = vld [vmem:[%s3 + $0x8] sm:$0xff]
        %v976 = vld [vmem:[%s3 + $0x10] sm:$0xff]
        %v977 = vld [vmem:[%s3 + $0x18] sm:$0xff]
        %v978 = vld [vmem:[%s3 + $0x20] sm:$0xff]
        %v979 = vld [vmem:[%s3 + $0x28] sm:$0xff]
        %v980 = vld [vmem:[%s3 + $0x30] sm:$0xff]
        %v981 = vld [vmem:[%s3 + $0x38] sm:$0xff]
        %v982 = vld [vmem:[%s3 + $0x40] sm:$0xff]
        %v983 = vld [vmem:[%s3 + $0x48] sm:$0xff]
        %v984 = vld [vmem:[%s3 + $0x50] sm:$0xff]
        %v985 = vld [vmem:[%s3 + $0x58] sm:$0xff]
        %v986 = vld [vmem:[%s3 + $0x60] sm:$0xff]
        %v987 = vld [vmem:[%s3 + $0x68] sm:$0xff]
        %v988 = vld [vmem:[%s3 + $0x70] sm:$0xff]
        %v989 = vld [vmem:[%s3 + $0x78] sm:$0xff]
        %v990 = vld [vmem:[%s3 + $0x80] sm:$0xff]
        %v991 = vld [vmem:[%s3 + $0x88] sm:$0xff]
        %v992 = vld [vmem:[%s3 + $0x90] sm:$0xff]
        %v993 = vld [vmem:[%s3 + $0x98] sm:$0xff]
        %v994 = vld [vmem:[%s3 + $0xa0] sm:$0xff]
        %v995 = vld [vmem:[%s3 + $0xa8] sm:$0xff]
        %v996 = vld [vmem:[%s3 + $0xb0] sm:$0xff]
        %v997 = vld [vmem:[%s3 + $0xb8] sm:$0xff]
        %999 = vset.pattern.permute.xlu0 0
        %1000 = vperm.xlu0 %999, %v974
        %v1001 = vpop.permute.xlu0 %1000
        %1004 = vset.pattern.permute.xlu0 0
        %1005 = vperm.xlu0 %1004, %v975
        %v1006 = vpop.permute.xlu0 %1005
        %1009 = vset.pattern.permute.xlu0 0
        %1010 = vperm.xlu0 %1009, %v976
        %v1011 = vpop.permute.xlu0 %1010
        %1014 = vset.pattern.permute.xlu0 0
        %1015 = vperm.xlu0 %1014, %v977
        %v1016 = vpop.permute.xlu0 %1015
        %1019 = vset.pattern.permute.xlu0 0
        %1020 = vperm.xlu0 %1019, %v978
        %v1021 = vpop.permute.xlu0 %1020
        %1024 = vset.pattern.permute.xlu0 0
        %1025 = vperm.xlu0 %1024, %v979
        %v1026 = vpop.permute.xlu0 %1025
        %1029 = vset.pattern.permute.xlu0 0
        %1030 = vperm.xlu0 %1029, %v980
        %v1031 = vpop.permute.xlu0 %1030
        %1034 = vset.pattern.permute.xlu0 0
        %1035 = vperm.xlu0 %1034, %v981
        %v1036 = vpop.permute.xlu0 %1035
        %1039 = vset.pattern.permute.xlu0 0
        %1040 = vperm.xlu0 %1039, %v982
        %v1041 = vpop.permute.xlu0 %1040
        %1044 = vset.pattern.permute.xlu0 0
        %1045 = vperm.xlu0 %1044, %v983
        %v1046 = vpop.permute.xlu0 %1045
        %1049 = vset.pattern.permute.xlu0 0
        %1050 = vperm.xlu0 %1049, %v984
        %v1051 = vpop.permute.xlu0 %1050
        %1054 = vset.pattern.permute.xlu0 0
        %1055 = vperm.xlu0 %1054, %v985
        %v1056 = vpop.permute.xlu0 %1055
        %1059 = vset.pattern.permute.xlu0 0
        %1060 = vperm.xlu0 %1059, %v986
        %v1061 = vpop.permute.xlu0 %1060
        %1064 = vset.pattern.permute.xlu0 0
        %1065 = vperm.xlu0 %1064, %v987
        %v1066 = vpop.permute.xlu0 %1065
        %1069 = vset.pattern.permute.xlu0 0
        %1070 = vperm.xlu0 %1069, %v988
        %v1071 = vpop.permute.xlu0 %1070
        %1074 = vset.pattern.permute.xlu0 0
        %1075 = vperm.xlu0 %1074, %v989
        %v1076 = vpop.permute.xlu0 %1075
        %1079 = vset.pattern.permute.xlu0 0
        %1080 = vperm.xlu0 %1079, %v990
        %v1081 = vpop.permute.xlu0 %1080
        %1084 = vset.pattern.permute.xlu0 0
        %1085 = vperm.xlu0 %1084, %v991
        %v1086 = vpop.permute.xlu0 %1085
        %1089 = vset.pattern.permute.xlu0 0
        %1090 = vperm.xlu0 %1089, %v992
        %v1091 = vpop.permute.xlu0 %1090
        %1094 = vset.pattern.permute.xlu0 0
        %1095 = vperm.xlu0 %1094, %v993
        %v1096 = vpop.permute.xlu0 %1095
        %1099 = vset.pattern.permute.xlu0 0
        %1100 = vperm.xlu0 %1099, %v994
        %v1101 = vpop.permute.xlu0 %1100
        %1104 = vset.pattern.permute.xlu0 0
        %1105 = vperm.xlu0 %1104, %v995
        %v1106 = vpop.permute.xlu0 %1105
        %1109 = vset.pattern.permute.xlu0 0
        %1110 = vperm.xlu0 %1109, %v996
        %v1111 = vpop.permute.xlu0 %1110
        %1114 = vset.pattern.permute.xlu0 0
        %1115 = vperm.xlu0 %1114, %v997
        %v1116 = vpop.permute.xlu0 %1115
        %vm1118 = vcmask 359424
        %v1120 = vsel %vm1118, %v950, 0
        %v1123 = vsel %vm1118, %v951, 0
        %v1126 = vsel %vm1118, %v952, 0
        %v1129 = vsel %vm1118, %v953, 0
        %v1132 = vsel %vm1118, %v954, 0
        %v1135 = vsel %vm1118, %v955, 0
        %v1138 = vsel %vm1118, %v956, 0
        %v1141 = vsel %vm1118, %v957, 0
        %v1144 = vsel %vm1118, %v958, 0
        %v1147 = vsel %vm1118, %v959, 0
        %v1150 = vsel %vm1118, %v960, 0
        %v1153 = vsel %vm1118, %v961, 0
        %v1156 = vsel %vm1118, %v962, 0
        %v1159 = vsel %vm1118, %v963, 0
        %v1162 = vsel %vm1118, %v964, 0
        %v1165 = vsel %vm1118, %v965, 0
        %v1168 = vsel %vm1118, %v966, 0
        %v1171 = vsel %vm1118, %v967, 0
        %v1174 = vsel %vm1118, %v968, 0
        %v1177 = vsel %vm1118, %v969, 0
        %v1180 = vsel %vm1118, %v970, 0
        %v1183 = vsel %vm1118, %v971, 0
        %v1186 = vsel %vm1118, %v972, 0
        %v1189 = vsel %vm1118, %v973, 0
        %vm1191 = vcmask 1043456
        %v1193 = vsel %vm1191, %v949, 0
        %1195 = vmatpush.msra.mxu0 0.0
        %1196 = vmatpush.msra.mxu0 0.0
        %1197 = vmatpush.msra.mxu0 0.0
        %1198 = vmatpush.msra.mxu0 0.0
        %1199 = vmatpush.msra.mxu0 0.0
        %1200 = vmatpush.msra.mxu0 0.0
        %1201 = vmatpush.msra.mxu0 0.0
        %1202 = vmatpush.msra.mxu0 0.0
        %1203 = vmatpush.msra.mxu0 0.0
        %1204 = vmatpush.msra.mxu0 0.0
        %1205 = vmatpush.msra.mxu0 %v1193
        %1206 = vmatpush.msra.mxu0 %v948
        %1207 = vmatpush.msra.mxu0 %v947
        %1208 = vmatpush.msra.mxu0 %v946
        %1209 = vmatpush.msra.mxu0 %v945
        %1210 = vmatpush.msra.mxu0 %v944
        %1211 = vmatmul.f32.gmra.mxu0 %v1120
        %v1212 = vpop.f32.mrf.mxu0
        %v1213 = vadd.f32 %v1001, %v1212
        %1214 = vmatmul.f32.gmra.mxu0 %v1123
        %v1215 = vpop.f32.mrf.mxu0
        %v1216 = vadd.f32 %v1006, %v1215
        %1217 = vmatmul.f32.gmra.mxu0 %v1126
        %v1218 = vpop.f32.mrf.mxu0
        %v1219 = vadd.f32 %v1011, %v1218
        %1220 = vmatmul.f32.gmra.mxu0 %v1129
        %v1221 = vpop.f32.mrf.mxu0
        %v1222 = vadd.f32 %v1016, %v1221
        %1223 = vmatmul.f32.gmra.mxu0 %v1132
        %v1224 = vpop.f32.mrf.mxu0
        %v1225 = vadd.f32 %v1021, %v1224
        %1226 = vmatmul.f32.gmra.mxu0 %v1135
        %v1227 = vpop.f32.mrf.mxu0
        %v1228 = vadd.f32 %v1026, %v1227
        %1229 = vmatmul.f32.gmra.mxu0 %v1138
        %v1230 = vpop.f32.mrf.mxu0
        %v1231 = vadd.f32 %v1031, %v1230
        %1232 = vmatmul.f32.gmra.mxu0 %v1141
        %v1233 = vpop.f32.mrf.mxu0
        %v1234 = vadd.f32 %v1036, %v1233
        %1235 = vmatmul.f32.gmra.mxu0 %v1144
        %v1236 = vpop.f32.mrf.mxu0
        %v1237 = vadd.f32 %v1041, %v1236
        %1238 = vmatmul.f32.gmra.mxu0 %v1147
        %v1239 = vpop.f32.mrf.mxu0
        %v1240 = vadd.f32 %v1046, %v1239
        %1241 = vmatmul.f32.gmra.mxu0 %v1150
        %v1242 = vpop.f32.mrf.mxu0
        %v1243 = vadd.f32 %v1051, %v1242
        %1244 = vmatmul.f32.gmra.mxu0 %v1153
        %v1245 = vpop.f32.mrf.mxu0
        %v1246 = vadd.f32 %v1056, %v1245
        %1247 = vmatmul.f32.gmra.mxu0 %v1156
        %v1248 = vpop.f32.mrf.mxu0
        %v1249 = vadd.f32 %v1061, %v1248
        %1250 = vmatmul.f32.gmra.mxu0 %v1159
        %v1251 = vpop.f32.mrf.mxu0
        %v1252 = vadd.f32 %v1066, %v1251
        %1253 = vmatmul.f32.gmra.mxu0 %v1162
        %v1254 = vpop.f32.mrf.mxu0
        %v1255 = vadd.f32 %v1071, %v1254
        %1256 = vmatmul.f32.gmra.mxu0 %v1165
        %v1257 = vpop.f32.mrf.mxu0
        %v1258 = vadd.f32 %v1076, %v1257
        %1259 = vmatmul.f32.gmra.mxu0 %v1168
        %v1260 = vpop.f32.mrf.mxu0
        %v1261 = vadd.f32 %v1081, %v1260
        %1262 = vmatmul.f32.gmra.mxu0 %v1171
        %v1263 = vpop.f32.mrf.mxu0
        %v1264 = vadd.f32 %v1086, %v1263
        %1265 = vmatmul.f32.gmra.mxu0 %v1174
        %v1266 = vpop.f32.mrf.mxu0
        %v1267 = vadd.f32 %v1091, %v1266
        %1268 = vmatmul.f32.gmra.mxu0 %v1177
        %v1269 = vpop.f32.mrf.mxu0
        %v1270 = vadd.f32 %v1096, %v1269
        %1271 = vmatmul.f32.gmra.mxu0 %v1180
        %v1272 = vpop.f32.mrf.mxu0
        %v1273 = vadd.f32 %v1101, %v1272
        %1274 = vmatmul.f32.gmra.mxu0 %v1183
        %v1275 = vpop.f32.mrf.mxu0
        %v1276 = vadd.f32 %v1106, %v1275
        %1277 = vmatmul.f32.gmra.mxu0 %v1186
        %v1278 = vpop.f32.mrf.mxu0
        %v1279 = vadd.f32 %v1111, %v1278
        %1280 = vmatmul.f32.gmra.mxu0 %v1189
        %v1281 = vpop.f32.mrf.mxu0
        %v1282 = vadd.f32 %v1116, %v1281
        %1283 = vdwg.mxu0
        %v1284 = vmax.f32 %v1213, 0.0
        %v1285 = vmax.f32 %v1216, 0.0
        %v1286 = vmax.f32 %v1219, 0.0
        %v1287 = vmax.f32 %v1222, 0.0
        %v1288 = vmax.f32 %v1225, 0.0
        %v1289 = vmax.f32 %v1228, 0.0
        %v1290 = vmax.f32 %v1231, 0.0
        %v1291 = vmax.f32 %v1234, 0.0
        %v1292 = vmax.f32 %v1237, 0.0
        %v1293 = vmax.f32 %v1240, 0.0
        %v1294 = vmax.f32 %v1243, 0.0
        %v1295 = vmax.f32 %v1246, 0.0
        %v1296 = vmax.f32 %v1249, 0.0
        %v1297 = vmax.f32 %v1252, 0.0
        %v1298 = vmax.f32 %v1255, 0.0
        %v1299 = vmax.f32 %v1258, 0.0
        %v1300 = vmax.f32 %v1261, 0.0
        %v1301 = vmax.f32 %v1264, 0.0
        %v1302 = vmax.f32 %v1267, 0.0
        %v1303 = vmax.f32 %v1270, 0.0
        %v1304 = vmax.f32 %v1273, 0.0
        %v1305 = vmax.f32 %v1276, 0.0
        %v1306 = vmax.f32 %v1279, 0.0
        %v1307 = vmax.f32 %v1282, 0.0
        %s1308 = sld [smem:[#allocation5]]
        %v1309 = vstv %s1308
        %v1310 = vmul.f32 %v1309, %v1284
        %v1311 = vmul.f32 %v1309, %v1285
        %v1312 = vmul.f32 %v1309, %v1286
        %v1313 = vmul.f32 %v1309, %v1287
        %s1314 = sld [smem:[#allocation5 + $0x1]]
        %v1315 = vstv %s1314
        %v1316 = vmul.f32 %v1315, %v1288
        %v1317 = vmul.f32 %v1315, %v1289
        %v1318 = vmul.f32 %v1315, %v1290
        %v1319 = vmul.f32 %v1315, %v1291
        %v1320 = vadd.f32 %v1310, %v1316
        %v1321 = vadd.f32 %v1311, %v1317
        %v1322 = vadd.f32 %v1312, %v1318
        %v1323 = vadd.f32 %v1313, %v1319
        %s1324 = sld [smem:[#allocation5 + $0x2]]
        %v1325 = vstv %s1324
        %v1326 = vmul.f32 %v1325, %v1292
        %v1327 = vmul.f32 %v1325, %v1293
        %v1328 = vmul.f32 %v1325, %v1294
        %v1329 = vmul.f32 %v1325, %v1295
        %v1330 = vadd.f32 %v1320, %v1326
        %v1331 = vadd.f32 %v1321, %v1327
        %v1332 = vadd.f32 %v1322, %v1328
        %v1333 = vadd.f32 %v1323, %v1329
        %s1334 = sld [smem:[#allocation5 + $0x3]]
        %v1335 = vstv %s1334
        %v1336 = vmul.f32 %v1335, %v1296
        %v1337 = vmul.f32 %v1335, %v1297
        %v1338 = vmul.f32 %v1335, %v1298
        %v1339 = vmul.f32 %v1335, %v1299
        %v1340 = vadd.f32 %v1330, %v1336
        %v1341 = vadd.f32 %v1331, %v1337
        %v1342 = vadd.f32 %v1332, %v1338
        %v1343 = vadd.f32 %v1333, %v1339
        %s1344 = sld [smem:[#allocation5 + $0x4]]
        %v1345 = vstv %s1344
        %v1346 = vmul.f32 %v1345, %v1300
        %v1347 = vmul.f32 %v1345, %v1301
        %v1348 = vmul.f32 %v1345, %v1302
        %v1349 = vmul.f32 %v1345, %v1303
        %v1350 = vadd.f32 %v1340, %v1346
        %v1351 = vadd.f32 %v1341, %v1347
        %v1352 = vadd.f32 %v1342, %v1348
        %v1353 = vadd.f32 %v1343, %v1349
        %s1354 = sld [smem:[#allocation5 + $0x5]]
        %v1355 = vstv %s1354
        %v1356 = vmul.f32 %v1355, %v1304
        %v1357 = vmul.f32 %v1355, %v1305
        %v1358 = vmul.f32 %v1355, %v1306
        %v1359 = vmul.f32 %v1355, %v1307
        %v1360 = vadd.f32 %v1350, %v1356
        %v1361 = vadd.f32 %v1351, %v1357
        %v1362 = vadd.f32 %v1352, %v1358
        %v1363 = vadd.f32 %v1353, %v1359
        %1364 = vst.msk [vmem:[#allocation3] sm:$0xff] %vm884, 0.0
        %1365 = vst.msk [vmem:[#allocation3 + $0x8] sm:$0xff] %vm884, 0.0
        %1366 = vst.msk [vmem:[#allocation3 + $0x10] sm:$0xff] %vm884, 0.0
        %1367 = vst.msk [vmem:[#allocation3 + $0x18] sm:$0xff] %vm884, 0.0
        %1368 = vst.msk [vmem:[#allocation3 + $0x20] sm:$0xff] %vm884, 0.0
        %1369 = vst.msk [vmem:[#allocation3 + $0x28] sm:$0xff] %vm884, 0.0
        %1370 = vst.msk [vmem:[#allocation3 + $0x30] sm:$0xff] %vm884, 0.0
        %1371 = vst.msk [vmem:[#allocation3 + $0x38] sm:$0xff] %vm884, 0.0
        %1372 = vst.msk [vmem:[#allocation3 + $0x40] sm:$0xff] %vm884, 0.0
        %1373 = vst.msk [vmem:[#allocation3 + $0x48] sm:$0xff] %vm884, 0.0
        %1374 = vst.msk [vmem:[#allocation3 + $0x50] sm:$0xff] %vm884, 0.0
        %1375 = vst.msk [vmem:[#allocation3 + $0x58] sm:$0xff] %vm884, 0.0
        %1376 = vst.msk [vmem:[#allocation3 + $0x60] sm:$0xff] %vm884, 0.0
        %1377 = vst.msk [vmem:[#allocation3 + $0x68] sm:$0xff] %vm884, 0.0
        %1378 = vst.msk [vmem:[#allocation3 + $0x70] sm:$0xff] %vm884, 0.0
        %1379 = vst.msk [vmem:[#allocation3 + $0x78] sm:$0xff] %vm884, 0.0
        %1380 = vst.msk [vmem:[#allocation3 + $0x80] sm:$0xff] %vm884, 0.0
        %1381 = vst.msk [vmem:[#allocation3 + $0x88] sm:$0xff] %vm884, 0.0
        %1382 = vst.msk [vmem:[#allocation3 + $0x90] sm:$0xff] %vm884, 0.0
        %1383 = vst.msk [vmem:[#allocation3 + $0x98] sm:$0xff] %vm884, 0.0
        %1384 = vst.msk [vmem:[#allocation3 + $0xa0] sm:$0xff] %vm884, 0.0
        %1385 = vst.msk [vmem:[#allocation3 + $0xa8] sm:$0xff] %vm884, 0.0
        %1386 = vst.msk [vmem:[#allocation3 + $0xb0] sm:$0xff] %vm884, 0.0
        %1387 = vst.msk [vmem:[#allocation3 + $0xb8] sm:$0xff] %vm884, 0.0
        %1388 = vst.msk [vmem:[#allocation3 + $0xc0] sm:$0xff] %vm884, 0.0
        %1389 = vst.msk [vmem:[#allocation3 + $0xc8] sm:$0xff] %vm884, 0.0
        %1390 = vst.msk [vmem:[#allocation3 + $0xd0] sm:$0xff] %vm884, 0.0
        %1391 = vst.msk [vmem:[#allocation3 + $0xd8] sm:$0xff] %vm884, 0.0
        %1392 = vst.msk [vmem:[#allocation3 + $0xe0] sm:$0xff] %vm884, 0.0
        %1393 = vst.msk [vmem:[#allocation3 + $0xe8] sm:$0xff] %vm884, 0.0
        %1394 = vst.msk [vmem:[#allocation3 + $0xf0] sm:$0xff] %vm884, 0.0
        %1395 = vst.msk [vmem:[#allocation3 + $0xf8] sm:$0xff] %vm884, 0.0
        %1396 = vst.msk [vmem:[#allocation3 + $0x100] sm:$0xff] %vm884, 0.0
        %1397 = vst.msk [vmem:[#allocation3 + $0x108] sm:$0xff] %vm884, 0.0
        %1398 = vst.msk [vmem:[#allocation3 + $0x110] sm:$0xff] %vm884, 0.0
        %1399 = vst.msk [vmem:[#allocation3 + $0x118] sm:$0xff] %vm884, 0.0
        %1400 = vst.msk [vmem:[#allocation3 + $0x120] sm:$0xff] %vm884, 0.0
        %1401 = vst.msk [vmem:[#allocation3 + $0x128] sm:$0xff] %vm884, 0.0
        %1402 = vst.msk [vmem:[#allocation3 + $0x130] sm:$0xff] %vm884, 0.0
        %1403 = vst.msk [vmem:[#allocation3 + $0x138] sm:$0xff] %vm884, 0.0
        %1404 = vst.msk [vmem:[#allocation3 + $0x140] sm:$0xff] %vm884, 0.0
        %1405 = vst.msk [vmem:[#allocation3 + $0x148] sm:$0xff] %vm884, 0.0
        %1406 = vst.msk [vmem:[#allocation3 + $0x150] sm:$0xff] %vm884, 0.0
        %1407 = vst.msk [vmem:[#allocation3 + $0x158] sm:$0xff] %vm884, 0.0
        %1412 = vrot.lane.b32.xlu0 %v1360, 5
        %v1413 = vpop.permute.xlu0 %1412
        %1414 = vrot.lane.b32.xlu0 %v1361, 5
        %v1415 = vpop.permute.xlu0 %1414
        %1416 = vrot.lane.b32.xlu0 %v1362, 5
        %v1417 = vpop.permute.xlu0 %1416
        %1418 = vrot.lane.b32.xlu0 %v1363, 5
        %v1419 = vpop.permute.xlu0 %1418
        %vm1424 = vcmask 130088
        %1425 = vst.msk [vmem:[#allocation3] sm:$0xff] %vm1424, %v1413
        %1426 = vst.msk [vmem:[#allocation3 + $0x8] sm:$0xff] %vm1424, %v1415
        %1427 = vst.msk [vmem:[#allocation3 + $0x10] sm:$0xff] %vm1424, %v1417
        %1428 = vst.msk [vmem:[#allocation3 + $0x18] sm:$0xff] %vm1424, %v1419
        %1429 = vrot.lane.b32.xlu0 %v1360, 4
        %v1430 = vpop.permute.xlu0 %1429
        %1431 = vrot.lane.b32.xlu0 %v1361, 4
        %v1432 = vpop.permute.xlu0 %1431
        %1433 = vrot.lane.b32.xlu0 %v1362, 4
        %v1434 = vpop.permute.xlu0 %1433
        %1435 = vrot.lane.b32.xlu0 %v1363, 4
        %v1436 = vpop.permute.xlu0 %1435
        %vm1441 = vcmask 130080
        %1442 = vst.msk [vmem:[#allocation3 + $0x20] sm:$0xff] %vm1441, %v1430
        %1443 = vst.msk [vmem:[#allocation3 + $0x28] sm:$0xff] %vm1441, %v1432
        %1444 = vst.msk [vmem:[#allocation3 + $0x30] sm:$0xff] %vm1441, %v1434
        %1445 = vst.msk [vmem:[#allocation3 + $0x38] sm:$0xff] %vm1441, %v1436
        %1446 = vrot.lane.b32.xlu0 %v1360, 3
        %v1447 = vpop.permute.xlu0 %1446
        %1448 = vrot.lane.b32.xlu0 %v1361, 3
        %v1449 = vpop.permute.xlu0 %1448
        %1450 = vrot.lane.b32.xlu0 %v1362, 3
        %v1451 = vpop.permute.xlu0 %1450
        %1452 = vrot.lane.b32.xlu0 %v1363, 3
        %v1453 = vpop.permute.xlu0 %1452
        %vm1458 = vcmask 130072
        %1459 = vst.msk [vmem:[#allocation3 + $0x40] sm:$0xff] %vm1458, %v1447
        %1460 = vst.msk [vmem:[#allocation3 + $0x48] sm:$0xff] %vm1458, %v1449
        %1461 = vst.msk [vmem:[#allocation3 + $0x50] sm:$0xff] %vm1458, %v1451
        %1462 = vst.msk [vmem:[#allocation3 + $0x58] sm:$0xff] %vm1458, %v1453
        %1463 = vrot.lane.b32.xlu0 %v1360, 2
        %v1464 = vpop.permute.xlu0 %1463
        %1465 = vrot.lane.b32.xlu0 %v1361, 2
        %v1466 = vpop.permute.xlu0 %1465
        %1467 = vrot.lane.b32.xlu0 %v1362, 2
        %v1468 = vpop.permute.xlu0 %1467
        %1469 = vrot.lane.b32.xlu0 %v1363, 2
        %v1470 = vpop.permute.xlu0 %1469
        %vm1475 = vcmask 130064
        %1476 = vst.msk [vmem:[#allocation3 + $0x60] sm:$0xff] %vm1475, %v1464
        %1477 = vst.msk [vmem:[#allocation3 + $0x68] sm:$0xff] %vm1475, %v1466
        %1478 = vst.msk [vmem:[#allocation3 + $0x70] sm:$0xff] %vm1475, %v1468
        %1479 = vst.msk [vmem:[#allocation3 + $0x78] sm:$0xff] %vm1475, %v1470
        %1480 = vrot.lane.b32.xlu0 %v1360, 1
        %v1481 = vpop.permute.xlu0 %1480
        %1482 = vrot.lane.b32.xlu0 %v1361, 1
        %v1483 = vpop.permute.xlu0 %1482
        %1484 = vrot.lane.b32.xlu0 %v1362, 1
        %v1485 = vpop.permute.xlu0 %1484
        %1486 = vrot.lane.b32.xlu0 %v1363, 1
        %v1487 = vpop.permute.xlu0 %1486
        %vm1492 = vcmask 130056
        %1493 = vst.msk [vmem:[#allocation3 + $0x80] sm:$0xff] %vm1492, %v1481
        %1494 = vst.msk [vmem:[#allocation3 + $0x88] sm:$0xff] %vm1492, %v1483
        %1495 = vst.msk [vmem:[#allocation3 + $0x90] sm:$0xff] %vm1492, %v1485
        %1496 = vst.msk [vmem:[#allocation3 + $0x98] sm:$0xff] %vm1492, %v1487
        %1497 = vst.msk [vmem:[#allocation3 + $0xa0] sm:$0xff] %vm884, %v1360
        %1498 = vst.msk [vmem:[#allocation3 + $0xa8] sm:$0xff] %vm884, %v1361
        %1499 = vst.msk [vmem:[#allocation3 + $0xb0] sm:$0xff] %vm884, %v1362
        %1500 = vst.msk [vmem:[#allocation3 + $0xb8] sm:$0xff] %vm884, %v1363
        %1501 = vrot.lane.b32.xlu0 %v1360, 127
        %v1502 = vpop.permute.xlu0 %1501
        %1503 = vrot.lane.b32.xlu0 %v1361, 127
        %v1504 = vpop.permute.xlu0 %1503
        %1505 = vrot.lane.b32.xlu0 %v1362, 127
        %v1506 = vpop.permute.xlu0 %1505
        %1507 = vrot.lane.b32.xlu0 %v1363, 127
        %v1508 = vpop.permute.xlu0 %1507
        %vm1513 = vcmask 121856
        %1514 = vst.msk [vmem:[#allocation3 + $0xc0] sm:$0xff] %vm1513, %v1502
        %1515 = vst.msk [vmem:[#allocation3 + $0xc8] sm:$0xff] %vm1513, %v1504
        %1516 = vst.msk [vmem:[#allocation3 + $0xd0] sm:$0xff] %vm1513, %v1506
        %1517 = vst.msk [vmem:[#allocation3 + $0xd8] sm:$0xff] %vm1513, %v1508
        %1518 = vrot.lane.b32.xlu0 %v1360, 126
        %v1519 = vpop.permute.xlu0 %1518
        %1520 = vrot.lane.b32.xlu0 %v1361, 126
        %v1521 = vpop.permute.xlu0 %1520
        %1522 = vrot.lane.b32.xlu0 %v1362, 126
        %v1523 = vpop.permute.xlu0 %1522
        %1524 = vrot.lane.b32.xlu0 %v1363, 126
        %v1525 = vpop.permute.xlu0 %1524
        %vm1530 = vcmask 113664
        %1531 = vst.msk [vmem:[#allocation3 + $0xe0] sm:$0xff] %vm1530, %v1519
        %1532 = vst.msk [vmem:[#allocation3 + $0xe8] sm:$0xff] %vm1530, %v1521
        %1533 = vst.msk [vmem:[#allocation3 + $0xf0] sm:$0xff] %vm1530, %v1523
        %1534 = vst.msk [vmem:[#allocation3 + $0xf8] sm:$0xff] %vm1530, %v1525
        %1535 = vrot.lane.b32.xlu0 %v1360, 125
        %v1536 = vpop.permute.xlu0 %1535
        %1537 = vrot.lane.b32.xlu0 %v1361, 125
        %v1538 = vpop.permute.xlu0 %1537
        %1539 = vrot.lane.b32.xlu0 %v1362, 125
        %v1540 = vpop.permute.xlu0 %1539
        %1541 = vrot.lane.b32.xlu0 %v1363, 125
        %v1542 = vpop.permute.xlu0 %1541
        %vm1547 = vcmask 105472
        %1548 = vst.msk [vmem:[#allocation3 + $0x100] sm:$0xff] %vm1547, %v1536
        %1549 = vst.msk [vmem:[#allocation3 + $0x108] sm:$0xff] %vm1547, %v1538
        %1550 = vst.msk [vmem:[#allocation3 + $0x110] sm:$0xff] %vm1547, %v1540
        %1551 = vst.msk [vmem:[#allocation3 + $0x118] sm:$0xff] %vm1547, %v1542
        %1552 = vrot.lane.b32.xlu0 %v1360, 124
        %v1553 = vpop.permute.xlu0 %1552
        %1554 = vrot.lane.b32.xlu0 %v1361, 124
        %v1555 = vpop.permute.xlu0 %1554
        %1556 = vrot.lane.b32.xlu0 %v1362, 124
        %v1557 = vpop.permute.xlu0 %1556
        %1558 = vrot.lane.b32.xlu0 %v1363, 124
        %v1559 = vpop.permute.xlu0 %1558
        %vm1564 = vcmask 97280
        %1565 = vst.msk [vmem:[#allocation3 + $0x120] sm:$0xff] %vm1564, %v1553
        %1566 = vst.msk [vmem:[#allocation3 + $0x128] sm:$0xff] %vm1564, %v1555
        %1567 = vst.msk [vmem:[#allocation3 + $0x130] sm:$0xff] %vm1564, %v1557
        %1568 = vst.msk [vmem:[#allocation3 + $0x138] sm:$0xff] %vm1564, %v1559
        %1569 = vrot.lane.b32.xlu0 %v1360, 123
        %v1570 = vpop.permute.xlu0 %1569
        %1571 = vrot.lane.b32.xlu0 %v1361, 123
        %v1572 = vpop.permute.xlu0 %1571
        %1573 = vrot.lane.b32.xlu0 %v1362, 123
        %v1574 = vpop.permute.xlu0 %1573
        %1575 = vrot.lane.b32.xlu0 %v1363, 123
        %v1576 = vpop.permute.xlu0 %1575
        %vm1581 = vcmask 89088
        %1582 = vst.msk [vmem:[#allocation3 + $0x140] sm:$0xff] %vm1581, %v1570
        %1583 = vst.msk [vmem:[#allocation3 + $0x148] sm:$0xff] %vm1581, %v1572
        %1584 = vst.msk [vmem:[#allocation3 + $0x150] sm:$0xff] %vm1581, %v1574
        %1585 = vst.msk [vmem:[#allocation3 + $0x158] sm:$0xff] %vm1581, %v1576
        %v1586 = vld [vmem:[#allocation2] sm:$0xff]
        %v1587 = vld [vmem:[#allocation2 + $0x8] sm:$0xff]
        %v1588 = vld [vmem:[#allocation2 + $0x10] sm:$0xff]
        %v1589 = vld [vmem:[#allocation2 + $0x18] sm:$0xff]
        %v1590 = vld [vmem:[#allocation2 + $0x20] sm:$0xff]
        %v1591 = vld [vmem:[#allocation2 + $0x28] sm:$0xf]
        %v1592 = vld [vmem:[%s4] sm:$0xff]
        %v1593 = vld [vmem:[%s4 + $0x8] sm:$0xff]
        %v1594 = vld [vmem:[%s4 + $0x10] sm:$0xff]
        %v1595 = vld [vmem:[%s4 + $0x18] sm:$0xff]
        %v1596 = vld [vmem:[%s4 + $0x20] sm:$0xff]
        %v1597 = vld [vmem:[%s4 + $0x28] sm:$0xff]
        %v1598 = vld [vmem:[%s4 + $0x30] sm:$0xff]
        %v1599 = vld [vmem:[%s4 + $0x38] sm:$0xff]
        %v1600 = vld [vmem:[%s4 + $0x40] sm:$0xff]
        %v1601 = vld [vmem:[%s4 + $0x48] sm:$0xff]
        %v1602 = vld [vmem:[%s4 + $0x50] sm:$0xff]
        %v1603 = vld [vmem:[%s4 + $0x58] sm:$0xff]
        %v1604 = vld [vmem:[%s4 + $0x60] sm:$0xff]
        %v1605 = vld [vmem:[%s4 + $0x68] sm:$0xff]
        %v1606 = vld [vmem:[%s4 + $0x70] sm:$0xff]
        %v1607 = vld [vmem:[%s4 + $0x78] sm:$0xff]
        %v1608 = vld [vmem:[%s4 + $0x80] sm:$0xff]
        %v1609 = vld [vmem:[%s4 + $0x88] sm:$0xff]
        %v1610 = vld [vmem:[%s4 + $0x90] sm:$0xff]
        %v1611 = vld [vmem:[%s4 + $0x98] sm:$0xff]
        %v1612 = vld [vmem:[%s4 + $0xa0] sm:$0xff]
        %v1613 = vld [vmem:[%s4 + $0xa8] sm:$0xff]
        %v1614 = vld [vmem:[%s4 + $0xb0] sm:$0xff]
        %v1615 = vld [vmem:[%s4 + $0xb8] sm:$0xff]
        %v1616 = vld [vmem:[%s5] sm:$0xff]
        %v1617 = vld [vmem:[%s5 + $0x8] sm:$0xff]
        %v1618 = vld [vmem:[%s5 + $0x10] sm:$0xff]
        %v1619 = vld [vmem:[%s5 + $0x18] sm:$0xff]
        %v1620 = vld [vmem:[%s5 + $0x20] sm:$0xff]
        %v1621 = vld [vmem:[%s5 + $0x28] sm:$0xff]
        %v1622 = vld [vmem:[%s5 + $0x30] sm:$0xff]
        %v1623 = vld [vmem:[%s5 + $0x38] sm:$0xff]
        %v1624 = vld [vmem:[%s5 + $0x40] sm:$0xff]
        %v1625 = vld [vmem:[%s5 + $0x48] sm:$0xff]
        %v1626 = vld [vmem:[%s5 + $0x50] sm:$0xff]
        %v1627 = vld [vmem:[%s5 + $0x58] sm:$0xff]
        %v1628 = vld [vmem:[%s5 + $0x60] sm:$0xff]
        %v1629 = vld [vmem:[%s5 + $0x68] sm:$0xff]
        %v1630 = vld [vmem:[%s5 + $0x70] sm:$0xff]
        %v1631 = vld [vmem:[%s5 + $0x78] sm:$0xff]
        %v1632 = vld [vmem:[%s5 + $0x80] sm:$0xff]
        %v1633 = vld [vmem:[%s5 + $0x88] sm:$0xff]
        %v1634 = vld [vmem:[%s5 + $0x90] sm:$0xff]
        %v1635 = vld [vmem:[%s5 + $0x98] sm:$0xff]
        %v1636 = vld [vmem:[%s5 + $0xa0] sm:$0xff]
        %v1637 = vld [vmem:[%s5 + $0xa8] sm:$0xff]
        %v1638 = vld [vmem:[%s5 + $0xb0] sm:$0xff]
        %v1639 = vld [vmem:[%s5 + $0xb8] sm:$0xff]
        %1641 = vset.pattern.permute.xlu0 0
        %1642 = vperm.xlu0 %1641, %v1616
        %v1643 = vpop.permute.xlu0 %1642
        %1646 = vset.pattern.permute.xlu0 0
        %1647 = vperm.xlu0 %1646, %v1617
        %v1648 = vpop.permute.xlu0 %1647
        %1651 = vset.pattern.permute.xlu0 0
        %1652 = vperm.xlu0 %1651, %v1618
        %v1653 = vpop.permute.xlu0 %1652
        %1656 = vset.pattern.permute.xlu0 0
        %1657 = vperm.xlu0 %1656, %v1619
        %v1658 = vpop.permute.xlu0 %1657
        %1661 = vset.pattern.permute.xlu0 0
        %1662 = vperm.xlu0 %1661, %v1620
        %v1663 = vpop.permute.xlu0 %1662
        %1666 = vset.pattern.permute.xlu0 0
        %1667 = vperm.xlu0 %1666, %v1621
        %v1668 = vpop.permute.xlu0 %1667
        %1671 = vset.pattern.permute.xlu0 0
        %1672 = vperm.xlu0 %1671, %v1622
        %v1673 = vpop.permute.xlu0 %1672
        %1676 = vset.pattern.permute.xlu0 0
        %1677 = vperm.xlu0 %1676, %v1623
        %v1678 = vpop.permute.xlu0 %1677
        %1681 = vset.pattern.permute.xlu0 0
        %1682 = vperm.xlu0 %1681, %v1624
        %v1683 = vpop.permute.xlu0 %1682
        %1686 = vset.pattern.permute.xlu0 0
        %1687 = vperm.xlu0 %1686, %v1625
        %v1688 = vpop.permute.xlu0 %1687
        %1691 = vset.pattern.permute.xlu0 0
        %1692 = vperm.xlu0 %1691, %v1626
        %v1693 = vpop.permute.xlu0 %1692
        %1696 = vset.pattern.permute.xlu0 0
        %1697 = vperm.xlu0 %1696, %v1627
        %v1698 = vpop.permute.xlu0 %1697
        %1701 = vset.pattern.permute.xlu0 0
        %1702 = vperm.xlu0 %1701, %v1628
        %v1703 = vpop.permute.xlu0 %1702
        %1706 = vset.pattern.permute.xlu0 0
        %1707 = vperm.xlu0 %1706, %v1629
        %v1708 = vpop.permute.xlu0 %1707
        %1711 = vset.pattern.permute.xlu0 0
        %1712 = vperm.xlu0 %1711, %v1630
        %v1713 = vpop.permute.xlu0 %1712
        %1716 = vset.pattern.permute.xlu0 0
        %1717 = vperm.xlu0 %1716, %v1631
        %v1718 = vpop.permute.xlu0 %1717
        %1721 = vset.pattern.permute.xlu0 0
        %1722 = vperm.xlu0 %1721, %v1632
        %v1723 = vpop.permute.xlu0 %1722
        %1726 = vset.pattern.permute.xlu0 0
        %1727 = vperm.xlu0 %1726, %v1633
        %v1728 = vpop.permute.xlu0 %1727
        %1731 = vset.pattern.permute.xlu0 0
        %1732 = vperm.xlu0 %1731, %v1634
        %v1733 = vpop.permute.xlu0 %1732
        %1736 = vset.pattern.permute.xlu0 0
        %1737 = vperm.xlu0 %1736, %v1635
        %v1738 = vpop.permute.xlu0 %1737
        %1741 = vset.pattern.permute.xlu0 0
        %1742 = vperm.xlu0 %1741, %v1636
        %v1743 = vpop.permute.xlu0 %1742
        %1746 = vset.pattern.permute.xlu0 0
        %1747 = vperm.xlu0 %1746, %v1637
        %v1748 = vpop.permute.xlu0 %1747
        %1751 = vset.pattern.permute.xlu0 0
        %1752 = vperm.xlu0 %1751, %v1638
        %v1753 = vpop.permute.xlu0 %1752
        %1756 = vset.pattern.permute.xlu0 0
        %1757 = vperm.xlu0 %1756, %v1639
        %v1758 = vpop.permute.xlu0 %1757
        %v1761 = vsel %vm1118, %v1592, 0
        %v1764 = vsel %vm1118, %v1593, 0
        %v1767 = vsel %vm1118, %v1594, 0
        %v1770 = vsel %vm1118, %v1595, 0
        %v1773 = vsel %vm1118, %v1596, 0
        %v1776 = vsel %vm1118, %v1597, 0
        %v1779 = vsel %vm1118, %v1598, 0
        %v1782 = vsel %vm1118, %v1599, 0
        %v1785 = vsel %vm1118, %v1600, 0
        %v1788 = vsel %vm1118, %v1601, 0
        %v1791 = vsel %vm1118, %v1602, 0
        %v1794 = vsel %vm1118, %v1603, 0
        %v1797 = vsel %vm1118, %v1604, 0
        %v1800 = vsel %vm1118, %v1605, 0
        %v1803 = vsel %vm1118, %v1606, 0
        %v1806 = vsel %vm1118, %v1607, 0
        %v1809 = vsel %vm1118, %v1608, 0
        %v1812 = vsel %vm1118, %v1609, 0
        %v1815 = vsel %vm1118, %v1610, 0
        %v1818 = vsel %vm1118, %v1611, 0
        %v1821 = vsel %vm1118, %v1612, 0
        %v1824 = vsel %vm1118, %v1613, 0
        %v1827 = vsel %vm1118, %v1614, 0
        %v1830 = vsel %vm1118, %v1615, 0
        %v1833 = vsel %vm1191, %v1591, 0
        %1835 = vmatpush.msra.mxu0 0.0
        %1836 = vmatpush.msra.mxu0 0.0
        %1837 = vmatpush.msra.mxu0 0.0
        %1838 = vmatpush.msra.mxu0 0.0
        %1839 = vmatpush.msra.mxu0 0.0
        %1840 = vmatpush.msra.mxu0 0.0
        %1841 = vmatpush.msra.mxu0 0.0
        %1842 = vmatpush.msra.mxu0 0.0
        %1843 = vmatpush.msra.mxu0 0.0
        %1844 = vmatpush.msra.mxu0 0.0
        %1845 = vmatpush.msra.mxu0 %v1833
        %1846 = vmatpush.msra.mxu0 %v1590
        %1847 = vmatpush.msra.mxu0 %v1589
        %1848 = vmatpush.msra.mxu0 %v1588
        %1849 = vmatpush.msra.mxu0 %v1587
        %1850 = vmatpush.msra.mxu0 %v1586
        %1851 = vmatmul.f32.gmra.mxu0 %v1761
        %v1852 = vpop.f32.mrf.mxu0
        %v1853 = vadd.f32 %v1643, %v1852
        %1854 = vmatmul.f32.gmra.mxu0 %v1764
        %v1855 = vpop.f32.mrf.mxu0
        %v1856 = vadd.f32 %v1648, %v1855
        %1857 = vmatmul.f32.gmra.mxu0 %v1767
        %v1858 = vpop.f32.mrf.mxu0
        %v1859 = vadd.f32 %v1653, %v1858
        %1860 = vmatmul.f32.gmra.mxu0 %v1770
        %v1861 = vpop.f32.mrf.mxu0
        %v1862 = vadd.f32 %v1658, %v1861
        %1863 = vmatmul.f32.gmra.mxu0 %v1773
        %v1864 = vpop.f32.mrf.mxu0
        %v1865 = vadd.f32 %v1663, %v1864
        %1866 = vmatmul.f32.gmra.mxu0 %v1776
        %v1867 = vpop.f32.mrf.mxu0
        %v1868 = vadd.f32 %v1668, %v1867
        %1869 = vmatmul.f32.gmra.mxu0 %v1779
        %v1870 = vpop.f32.mrf.mxu0
        %v1871 = vadd.f32 %v1673, %v1870
        %1872 = vmatmul.f32.gmra.mxu0 %v1782
        %v1873 = vpop.f32.mrf.mxu0
        %v1874 = vadd.f32 %v1678, %v1873
        %1875 = vmatmul.f32.gmra.mxu0 %v1785
        %v1876 = vpop.f32.mrf.mxu0
        %v1877 = vadd.f32 %v1683, %v1876
        %1878 = vmatmul.f32.gmra.mxu0 %v1788
        %v1879 = vpop.f32.mrf.mxu0
        %v1880 = vadd.f32 %v1688, %v1879
        %1881 = vmatmul.f32.gmra.mxu0 %v1791
        %v1882 = vpop.f32.mrf.mxu0
        %v1883 = vadd.f32 %v1693, %v1882
        %1884 = vmatmul.f32.gmra.mxu0 %v1794
        %v1885 = vpop.f32.mrf.mxu0
        %v1886 = vadd.f32 %v1698, %v1885
        %1887 = vmatmul.f32.gmra.mxu0 %v1797
        %v1888 = vpop.f32.mrf.mxu0
        %v1889 = vadd.f32 %v1703, %v1888
        %1890 = vmatmul.f32.gmra.mxu0 %v1800
        %v1891 = vpop.f32.mrf.mxu0
        %v1892 = vadd.f32 %v1708, %v1891
        %1893 = vmatmul.f32.gmra.mxu0 %v1803
        %v1894 = vpop.f32.mrf.mxu0
        %v1895 = vadd.f32 %v1713, %v1894
        %1896 = vmatmul.f32.gmra.mxu0 %v1806
        %v1897 = vpop.f32.mrf.mxu0
        %v1898 = vadd.f32 %v1718, %v1897
        %1899 = vmatmul.f32.gmra.mxu0 %v1809
        %v1900 = vpop.f32.mrf.mxu0
        %v1901 = vadd.f32 %v1723, %v1900
        %1902 = vmatmul.f32.gmra.mxu0 %v1812
        %v1903 = vpop.f32.mrf.mxu0
        %v1904 = vadd.f32 %v1728, %v1903
        %1905 = vmatmul.f32.gmra.mxu0 %v1815
        %v1906 = vpop.f32.mrf.mxu0
        %v1907 = vadd.f32 %v1733, %v1906
        %1908 = vmatmul.f32.gmra.mxu0 %v1818
        %v1909 = vpop.f32.mrf.mxu0
        %v1910 = vadd.f32 %v1738, %v1909
        %1911 = vmatmul.f32.gmra.mxu0 %v1821
        %v1912 = vpop.f32.mrf.mxu0
        %v1913 = vadd.f32 %v1743, %v1912
        %1914 = vmatmul.f32.gmra.mxu0 %v1824
        %v1915 = vpop.f32.mrf.mxu0
        %v1916 = vadd.f32 %v1748, %v1915
        %1917 = vmatmul.f32.gmra.mxu0 %v1827
        %v1918 = vpop.f32.mrf.mxu0
        %v1919 = vadd.f32 %v1753, %v1918
        %1920 = vmatmul.f32.gmra.mxu0 %v1830
        %v1921 = vpop.f32.mrf.mxu0
        %v1922 = vadd.f32 %v1758, %v1921
        %1923 = vdwg.mxu0
        %v1924 = vmax.f32 %v1853, 0.0
        %v1925 = vmax.f32 %v1856, 0.0
        %v1926 = vmax.f32 %v1859, 0.0
        %v1927 = vmax.f32 %v1862, 0.0
        %v1928 = vmax.f32 %v1865, 0.0
        %v1929 = vmax.f32 %v1868, 0.0
        %v1930 = vmax.f32 %v1871, 0.0
        %v1931 = vmax.f32 %v1874, 0.0
        %v1932 = vmax.f32 %v1877, 0.0
        %v1933 = vmax.f32 %v1880, 0.0
        %v1934 = vmax.f32 %v1883, 0.0
        %v1935 = vmax.f32 %v1886, 0.0
        %v1936 = vmax.f32 %v1889, 0.0
        %v1937 = vmax.f32 %v1892, 0.0
        %v1938 = vmax.f32 %v1895, 0.0
        %v1939 = vmax.f32 %v1898, 0.0
        %v1940 = vmax.f32 %v1901, 0.0
        %v1941 = vmax.f32 %v1904, 0.0
        %v1942 = vmax.f32 %v1907, 0.0
        %v1943 = vmax.f32 %v1910, 0.0
        %v1944 = vmax.f32 %v1913, 0.0
        %v1945 = vmax.f32 %v1916, 0.0
        %v1946 = vmax.f32 %v1919, 0.0
        %v1947 = vmax.f32 %v1922, 0.0
        %s1948 = sld [smem:[#allocation5 + $0x80]]
        %v1949 = vstv %s1948
        %v1950 = vmul.f32 %v1949, %v1924
        %v1951 = vmul.f32 %v1949, %v1925
        %v1952 = vmul.f32 %v1949, %v1926
        %v1953 = vmul.f32 %v1949, %v1927
        %s1954 = sld [smem:[#allocation5 + $0x81]]
        %v1955 = vstv %s1954
        %v1956 = vmul.f32 %v1955, %v1928
        %v1957 = vmul.f32 %v1955, %v1929
        %v1958 = vmul.f32 %v1955, %v1930
        %v1959 = vmul.f32 %v1955, %v1931
        %v1960 = vadd.f32 %v1950, %v1956
        %v1961 = vadd.f32 %v1951, %v1957
        %v1962 = vadd.f32 %v1952, %v1958
        %v1963 = vadd.f32 %v1953, %v1959
        %s1964 = sld [smem:[#allocation5 + $0x82]]
        %v1965 = vstv %s1964
        %v1966 = vmul.f32 %v1965, %v1932
        %v1967 = vmul.f32 %v1965, %v1933
        %v1968 = vmul.f32 %v1965, %v1934
        %v1969 = vmul.f32 %v1965, %v1935
        %v1970 = vadd.f32 %v1960, %v1966
        %v1971 = vadd.f32 %v1961, %v1967
        %v1972 = vadd.f32 %v1962, %v1968
        %v1973 = vadd.f32 %v1963, %v1969
        %s1974 = sld [smem:[#allocation5 + $0x83]]
        %v1975 = vstv %s1974
        %v1976 = vmul.f32 %v1975, %v1936
        %v1977 = vmul.f32 %v1975, %v1937
        %v1978 = vmul.f32 %v1975, %v1938
        %v1979 = vmul.f32 %v1975, %v1939
        %v1980 = vadd.f32 %v1970, %v1976
        %v1981 = vadd.f32 %v1971, %v1977
        %v1982 = vadd.f32 %v1972, %v1978
        %v1983 = vadd.f32 %v1973, %v1979
        %s1984 = sld [smem:[#allocation5 + $0x84]]
        %v1985 = vstv %s1984
        %v1986 = vmul.f32 %v1985, %v1940
        %v1987 = vmul.f32 %v1985, %v1941
        %v1988 = vmul.f32 %v1985, %v1942
        %v1989 = vmul.f32 %v1985, %v1943
        %v1990 = vadd.f32 %v1980, %v1986
        %v1991 = vadd.f32 %v1981, %v1987
        %v1992 = vadd.f32 %v1982, %v1988
        %v1993 = vadd.f32 %v1983, %v1989
        %s1994 = sld [smem:[#allocation5 + $0x85]]
        %v1995 = vstv %s1994
        %v1996 = vmul.f32 %v1995, %v1944
        %v1997 = vmul.f32 %v1995, %v1945
        %v1998 = vmul.f32 %v1995, %v1946
        %v1999 = vmul.f32 %v1995, %v1947
        %v2000 = vadd.f32 %v1990, %v1996
        %v2001 = vadd.f32 %v1991, %v1997
        %v2002 = vadd.f32 %v1992, %v1998
        %v2003 = vadd.f32 %v1993, %v1999
        %v2004 = vld [vmem:[#allocation3] sm:$0xff]
        %v2005 = vld [vmem:[#allocation3 + $0x8] sm:$0xff]
        %v2006 = vld [vmem:[#allocation3 + $0x10] sm:$0xff]
        %v2007 = vld [vmem:[#allocation3 + $0x18] sm:$0xff]
        %v2008 = vld [vmem:[#allocation3 + $0x20] sm:$0xff]
        %v2009 = vld [vmem:[#allocation3 + $0x28] sm:$0xff]
        %v2010 = vld [vmem:[#allocation3 + $0x30] sm:$0xff]
        %v2011 = vld [vmem:[#allocation3 + $0x38] sm:$0xff]
        %v2012 = vld [vmem:[#allocation3 + $0x40] sm:$0xff]
        %v2013 = vld [vmem:[#allocation3 + $0x48] sm:$0xff]
        %v2014 = vld [vmem:[#allocation3 + $0x50] sm:$0xff]
        %v2015 = vld [vmem:[#allocation3 + $0x58] sm:$0xff]
        %v2016 = vld [vmem:[#allocation3 + $0x60] sm:$0xff]
        %v2017 = vld [vmem:[#allocation3 + $0x68] sm:$0xff]
        %v2018 = vld [vmem:[#allocation3 + $0x70] sm:$0xff]
        %v2019 = vld [vmem:[#allocation3 + $0x78] sm:$0xff]
        %v2020 = vld [vmem:[#allocation3 + $0x80] sm:$0xff]
        %v2021 = vld [vmem:[#allocation3 + $0x88] sm:$0xff]
        %v2022 = vld [vmem:[#allocation3 + $0x90] sm:$0xff]
        %v2023 = vld [vmem:[#allocation3 + $0x98] sm:$0xff]
        %v2024 = vld [vmem:[#allocation3 + $0xa0] sm:$0xff]
        %v2025 = vld [vmem:[#allocation3 + $0xa8] sm:$0xff]
        %v2026 = vld [vmem:[#allocation3 + $0xb0] sm:$0xff]
        %v2027 = vld [vmem:[#allocation3 + $0xb8] sm:$0xff]
        %v2028 = vld [vmem:[#allocation3 + $0xc0] sm:$0xff]
        %v2029 = vld [vmem:[#allocation3 + $0xc8] sm:$0xff]
        %v2030 = vld [vmem:[#allocation3 + $0xd0] sm:$0xff]
        %v2031 = vld [vmem:[#allocation3 + $0xd8] sm:$0xff]
        %v2032 = vld [vmem:[#allocation3 + $0xe0] sm:$0xff]
        %v2033 = vld [vmem:[#allocation3 + $0xe8] sm:$0xff]
        %v2034 = vld [vmem:[#allocation3 + $0xf0] sm:$0xff]
        %v2035 = vld [vmem:[#allocation3 + $0xf8] sm:$0xff]
        %v2036 = vld [vmem:[#allocation3 + $0x100] sm:$0xff]
        %v2037 = vld [vmem:[#allocation3 + $0x108] sm:$0xff]
        %v2038 = vld [vmem:[#allocation3 + $0x110] sm:$0xff]
        %v2039 = vld [vmem:[#allocation3 + $0x118] sm:$0xff]
        %v2040 = vld [vmem:[#allocation3 + $0x120] sm:$0xff]
        %v2041 = vld [vmem:[#allocation3 + $0x128] sm:$0xff]
        %v2042 = vld [vmem:[#allocation3 + $0x130] sm:$0xff]
        %v2043 = vld [vmem:[#allocation3 + $0x138] sm:$0xff]
        %v2044 = vld [vmem:[#allocation3 + $0x140] sm:$0xff]
        %v2045 = vld [vmem:[#allocation3 + $0x148] sm:$0xff]
        %v2046 = vld [vmem:[#allocation3 + $0x150] sm:$0xff]
        %v2047 = vld [vmem:[#allocation3 + $0x158] sm:$0xff]
        %v2048 = vld [vmem:[%s6] sm:$0xff]
        %v2049 = vld [vmem:[%s6 + $0x8] sm:$0xff]
        %v2050 = vld [vmem:[%s6 + $0x10] sm:$0xff]
        %v2051 = vld [vmem:[%s6 + $0x18] sm:$0xff]
        %v2052 = vld [vmem:[%s6 + $0x20] sm:$0xff]
        %v2053 = vld [vmem:[%s6 + $0x28] sm:$0xff]
        %v2054 = vld [vmem:[%s6 + $0x30] sm:$0xff]
        %v2055 = vld [vmem:[%s6 + $0x38] sm:$0xff]
        %v2056 = vld [vmem:[%s6 + $0x40] sm:$0xff]
        %v2057 = vld [vmem:[%s6 + $0x48] sm:$0xff]
        %v2058 = vld [vmem:[%s6 + $0x50] sm:$0xff]
        %v2059 = vld [vmem:[%s6 + $0x58] sm:$0xff]
        %v2060 = vld [vmem:[%s6 + $0x60] sm:$0xff]
        %v2061 = vld [vmem:[%s6 + $0x68] sm:$0xff]
        %v2062 = vld [vmem:[%s6 + $0x70] sm:$0xff]
        %v2063 = vld [vmem:[%s6 + $0x78] sm:$0xff]
        %v2064 = vld [vmem:[%s6 + $0x80] sm:$0xff]
        %v2065 = vld [vmem:[%s6 + $0x88] sm:$0xff]
        %v2066 = vld [vmem:[%s6 + $0x90] sm:$0xff]
        %v2067 = vld [vmem:[%s6 + $0x98] sm:$0xff]
        %v2068 = vld [vmem:[%s6 + $0xa0] sm:$0xff]
        %v2069 = vld [vmem:[%s6 + $0xa8] sm:$0xff]
        %v2070 = vld [vmem:[%s6 + $0xb0] sm:$0xff]
        %v2071 = vld [vmem:[%s6 + $0xb8] sm:$0xff]
        %v2072 = vld [vmem:[%s6 + $0xc0] sm:$0xff]
        %v2073 = vld [vmem:[%s6 + $0xc8] sm:$0xff]
        %v2074 = vld [vmem:[%s6 + $0xd0] sm:$0xff]
        %v2075 = vld [vmem:[%s6 + $0xd8] sm:$0xff]
        %v2076 = vld [vmem:[%s6 + $0xe0] sm:$0xff]
        %v2077 = vld [vmem:[%s6 + $0xe8] sm:$0xff]
        %v2078 = vld [vmem:[%s6 + $0xf0] sm:$0xff]
        %v2079 = vld [vmem:[%s6 + $0xf8] sm:$0xff]
        %v2080 = vld [vmem:[%s6 + $0x100] sm:$0xff]
        %v2081 = vld [vmem:[%s6 + $0x108] sm:$0xff]
        %v2082 = vld [vmem:[%s6 + $0x110] sm:$0xff]
        %v2083 = vld [vmem:[%s6 + $0x118] sm:$0xff]
        %v2084 = vld [vmem:[%s6 + $0x120] sm:$0xff]
        %v2085 = vld [vmem:[%s6 + $0x128] sm:$0xff]
        %v2086 = vld [vmem:[%s6 + $0x130] sm:$0xff]
        %v2087 = vld [vmem:[%s6 + $0x138] sm:$0xff]
        %v2088 = vld [vmem:[%s6 + $0x140] sm:$0xff]
        %v2089 = vld [vmem:[%s6 + $0x148] sm:$0xff]
        %v2090 = vld [vmem:[%s6 + $0x150] sm:$0xff]
        %v2091 = vld [vmem:[%s6 + $0x158] sm:$0xff]
        %v2092 = vld [vmem:[%s6 + $0x160] sm:$0xff]
        %v2093 = vld [vmem:[%s6 + $0x168] sm:$0xff]
        %v2094 = vld [vmem:[%s6 + $0x170] sm:$0xff]
        %v2095 = vld [vmem:[%s6 + $0x178] sm:$0xff]
        %v2096 = vld [vmem:[%s6 + $0x180] sm:$0xff]
        %v2097 = vld [vmem:[%s6 + $0x188] sm:$0xff]
        %v2098 = vld [vmem:[%s6 + $0x190] sm:$0xff]
        %v2099 = vld [vmem:[%s6 + $0x198] sm:$0xff]
        %v2100 = vld [vmem:[%s6 + $0x1a0] sm:$0xff]
        %v2101 = vld [vmem:[%s6 + $0x1a8] sm:$0xff]
        %v2102 = vld [vmem:[%s6 + $0x1b0] sm:$0xff]
        %v2103 = vld [vmem:[%s6 + $0x1b8] sm:$0xff]
        %v2104 = vld [vmem:[%s6 + $0x1c0] sm:$0xff]
        %v2105 = vld [vmem:[%s6 + $0x1c8] sm:$0xff]
        %v2106 = vld [vmem:[%s6 + $0x1d0] sm:$0xff]
        %v2107 = vld [vmem:[%s6 + $0x1d8] sm:$0xff]
        %v2108 = vld [vmem:[%s6 + $0x1e0] sm:$0xff]
        %v2109 = vld [vmem:[%s6 + $0x1e8] sm:$0xff]
        %v2110 = vld [vmem:[%s6 + $0x1f0] sm:$0xff]
        %v2111 = vld [vmem:[%s6 + $0x1f8] sm:$0xff]
        %v2112 = vld [vmem:[%s6 + $0x200] sm:$0xff]
        %v2113 = vld [vmem:[%s6 + $0x208] sm:$0xff]
        %v2114 = vld [vmem:[%s6 + $0x210] sm:$0xff]
        %v2115 = vld [vmem:[%s6 + $0x218] sm:$0xff]
        %v2116 = vld [vmem:[%s6 + $0x220] sm:$0xff]
        %v2117 = vld [vmem:[%s6 + $0x228] sm:$0xff]
        %v2118 = vld [vmem:[%s6 + $0x230] sm:$0xff]
        %v2119 = vld [vmem:[%s6 + $0x238] sm:$0xff]
        %v2120 = vld [vmem:[%s7] sm:$0xff]
        %v2121 = vld [vmem:[%s7 + $0x8] sm:$0xff]
        %v2122 = vld [vmem:[%s7 + $0x10] sm:$0xff]
        %v2123 = vld [vmem:[%s7 + $0x18] sm:$0xff]
        %v2124 = vld [vmem:[%s7 + $0x20] sm:$0xff]
        %v2125 = vld [vmem:[%s7 + $0x28] sm:$0xff]
        %v2126 = vld [vmem:[%s7 + $0x30] sm:$0xff]
        %v2127 = vld [vmem:[%s7 + $0x38] sm:$0xff]
        %v2128 = vld [vmem:[%s7 + $0x40] sm:$0xff]
        %v2129 = vld [vmem:[%s7 + $0x48] sm:$0xff]
        %v2130 = vld [vmem:[%s7 + $0x50] sm:$0xff]
        %v2131 = vld [vmem:[%s7 + $0x58] sm:$0xff]
        %v2132 = vld [vmem:[%s7 + $0x60] sm:$0xff]
        %v2133 = vld [vmem:[%s7 + $0x68] sm:$0xff]
        %v2134 = vld [vmem:[%s7 + $0x70] sm:$0xff]
        %v2135 = vld [vmem:[%s7 + $0x78] sm:$0xff]
        %v2136 = vld [vmem:[%s7 + $0x80] sm:$0xff]
        %v2137 = vld [vmem:[%s7 + $0x88] sm:$0xff]
        %v2138 = vld [vmem:[%s7 + $0x90] sm:$0xff]
        %v2139 = vld [vmem:[%s7 + $0x98] sm:$0xff]
        %v2140 = vld [vmem:[%s7 + $0xa0] sm:$0xff]
        %v2141 = vld [vmem:[%s7 + $0xa8] sm:$0xff]
        %v2142 = vld [vmem:[%s7 + $0xb0] sm:$0xff]
        %v2143 = vld [vmem:[%s7 + $0xb8] sm:$0xff]
        %2145 = vset.pattern.permute.xlu0 0
        %2146 = vperm.xlu0 %2145, %v2120
        %v2147 = vpop.permute.xlu0 %2146
        %2150 = vset.pattern.permute.xlu0 0
        %2151 = vperm.xlu0 %2150, %v2121
        %v2152 = vpop.permute.xlu0 %2151
        %2155 = vset.pattern.permute.xlu0 0
        %2156 = vperm.xlu0 %2155, %v2122
        %v2157 = vpop.permute.xlu0 %2156
        %2160 = vset.pattern.permute.xlu0 0
        %2161 = vperm.xlu0 %2160, %v2123
        %v2162 = vpop.permute.xlu0 %2161
        %2165 = vset.pattern.permute.xlu0 0
        %2166 = vperm.xlu0 %2165, %v2124
        %v2167 = vpop.permute.xlu0 %2166
        %2170 = vset.pattern.permute.xlu0 0
        %2171 = vperm.xlu0 %2170, %v2125
        %v2172 = vpop.permute.xlu0 %2171
        %2175 = vset.pattern.permute.xlu0 0
        %2176 = vperm.xlu0 %2175, %v2126
        %v2177 = vpop.permute.xlu0 %2176
        %2180 = vset.pattern.permute.xlu0 0
        %2181 = vperm.xlu0 %2180, %v2127
        %v2182 = vpop.permute.xlu0 %2181
        %2185 = vset.pattern.permute.xlu0 0
        %2186 = vperm.xlu0 %2185, %v2128
        %v2187 = vpop.permute.xlu0 %2186
        %2190 = vset.pattern.permute.xlu0 0
        %2191 = vperm.xlu0 %2190, %v2129
        %v2192 = vpop.permute.xlu0 %2191
        %2195 = vset.pattern.permute.xlu0 0
        %2196 = vperm.xlu0 %2195, %v2130
        %v2197 = vpop.permute.xlu0 %2196
        %2200 = vset.pattern.permute.xlu0 0
        %2201 = vperm.xlu0 %2200, %v2131
        %v2202 = vpop.permute.xlu0 %2201
        %2205 = vset.pattern.permute.xlu0 0
        %2206 = vperm.xlu0 %2205, %v2132
        %v2207 = vpop.permute.xlu0 %2206
        %2210 = vset.pattern.permute.xlu0 0
        %2211 = vperm.xlu0 %2210, %v2133
        %v2212 = vpop.permute.xlu0 %2211
        %2215 = vset.pattern.permute.xlu0 0
        %2216 = vperm.xlu0 %2215, %v2134
        %v2217 = vpop.permute.xlu0 %2216
        %2220 = vset.pattern.permute.xlu0 0
        %2221 = vperm.xlu0 %2220, %v2135
        %v2222 = vpop.permute.xlu0 %2221
        %2225 = vset.pattern.permute.xlu0 0
        %2226 = vperm.xlu0 %2225, %v2136
        %v2227 = vpop.permute.xlu0 %2226
        %2230 = vset.pattern.permute.xlu0 0
        %2231 = vperm.xlu0 %2230, %v2137
        %v2232 = vpop.permute.xlu0 %2231
        %2235 = vset.pattern.permute.xlu0 0
        %2236 = vperm.xlu0 %2235, %v2138
        %v2237 = vpop.permute.xlu0 %2236
        %2240 = vset.pattern.permute.xlu0 0
        %2241 = vperm.xlu0 %2240, %v2139
        %v2242 = vpop.permute.xlu0 %2241
        %2245 = vset.pattern.permute.xlu0 0
        %2246 = vperm.xlu0 %2245, %v2140
        %v2247 = vpop.permute.xlu0 %2246
        %2250 = vset.pattern.permute.xlu0 0
        %2251 = vperm.xlu0 %2250, %v2141
        %v2252 = vpop.permute.xlu0 %2251
        %2255 = vset.pattern.permute.xlu0 0
        %2256 = vperm.xlu0 %2255, %v2142
        %v2257 = vpop.permute.xlu0 %2256
        %2260 = vset.pattern.permute.xlu0 0
        %2261 = vperm.xlu0 %2260, %v2143
        %v2262 = vpop.permute.xlu0 %2261
        %vm2264 = vcmask 785408
        %v2266 = vsel %vm2264, %v2050, 0
        %v2269 = vsel %vm2264, %v2053, 0
        %v2272 = vsel %vm2264, %v2056, 0
        %v2275 = vsel %vm2264, %v2059, 0
        %v2278 = vsel %vm2264, %v2062, 0
        %v2281 = vsel %vm2264, %v2065, 0
        %v2284 = vsel %vm2264, %v2068, 0
        %v2287 = vsel %vm2264, %v2071, 0
        %v2290 = vsel %vm2264, %v2074, 0
        %v2293 = vsel %vm2264, %v2077, 0
        %v2296 = vsel %vm2264, %v2080, 0
        %v2299 = vsel %vm2264, %v2083, 0
        %v2302 = vsel %vm2264, %v2086, 0
        %v2305 = vsel %vm2264, %v2089, 0
        %v2308 = vsel %vm2264, %v2092, 0
        %v2311 = vsel %vm2264, %v2095, 0
        %v2314 = vsel %vm2264, %v2098, 0
        %v2317 = vsel %vm2264, %v2101, 0
        %v2320 = vsel %vm2264, %v2104, 0
        %v2323 = vsel %vm2264, %v2107, 0
        %v2326 = vsel %vm2264, %v2110, 0
        %v2329 = vsel %vm2264, %v2113, 0
        %v2332 = vsel %vm2264, %v2116, 0
        %v2335 = vsel %vm2264, %v2119, 0
        %2337 = vmatpush.msra.mxu0 %v2019
        %2338 = vmatpush.msra.mxu0 %v2018
        %2339 = vmatpush.msra.mxu0 %v2017
        %2340 = vmatpush.msra.mxu0 %v2016
        %2341 = vmatpush.msra.mxu0 %v2015
        %2342 = vmatpush.msra.mxu0 %v2014
        %2343 = vmatpush.msra.mxu0 %v2013
        %2344 = vmatpush.msra.mxu0 %v2012
        %2345 = vmatpush.msra.mxu0 %v2011
        %2346 = vmatpush.msra.mxu0 %v2010
        %2347 = vmatpush.msra.mxu0 %v2009
        %2348 = vmatpush.msra.mxu0 %v2008
        %2349 = vmatpush.msra.mxu0 %v2007
        %2350 = vmatpush.msra.mxu0 %v2006
        %2351 = vmatpush.msra.mxu0 %v2005
        %2352 = vmatpush.msra.mxu0 %v2004
        %2353 = vmatmul.f32.gmra.mxu0 %v2048
        %v2354 = vpop.f32.mrf.mxu0
        %v2355 = vadd.f32 %v2147, %v2354
        %2356 = vmatmul.f32.gmra.mxu0 %v2051
        %v2357 = vpop.f32.mrf.mxu0
        %v2358 = vadd.f32 %v2152, %v2357
        %2359 = vmatmul.f32.gmra.mxu0 %v2054
        %v2360 = vpop.f32.mrf.mxu0
        %v2361 = vadd.f32 %v2157, %v2360
        %2362 = vmatmul.f32.gmra.mxu0 %v2057
        %v2363 = vpop.f32.mrf.mxu0
        %v2364 = vadd.f32 %v2162, %v2363
        %2365 = vmatmul.f32.gmra.mxu0 %v2060
        %v2366 = vpop.f32.mrf.mxu0
        %v2367 = vadd.f32 %v2167, %v2366
        %2368 = vmatmul.f32.gmra.mxu0 %v2063
        %v2369 = vpop.f32.mrf.mxu0
        %v2370 = vadd.f32 %v2172, %v2369
        %2371 = vmatmul.f32.gmra.mxu0 %v2066
        %v2372 = vpop.f32.mrf.mxu0
        %v2373 = vadd.f32 %v2177, %v2372
        %2374 = vmatmul.f32.gmra.mxu0 %v2069
        %v2375 = vpop.f32.mrf.mxu0
        %v2376 = vadd.f32 %v2182, %v2375
        %2377 = vmatmul.f32.gmra.mxu0 %v2072
        %v2378 = vpop.f32.mrf.mxu0
        %v2379 = vadd.f32 %v2187, %v2378
        %2380 = vmatmul.f32.gmra.mxu0 %v2075
        %v2381 = vpop.f32.mrf.mxu0
        %v2382 = vadd.f32 %v2192, %v2381
        %2383 = vmatmul.f32.gmra.mxu0 %v2078
        %v2384 = vpop.f32.mrf.mxu0
        %v2385 = vadd.f32 %v2197, %v2384
        %2386 = vmatmul.f32.gmra.mxu0 %v2081
        %v2387 = vpop.f32.mrf.mxu0
        %v2388 = vadd.f32 %v2202, %v2387
        %2389 = vmatmul.f32.gmra.mxu0 %v2084
        %v2390 = vpop.f32.mrf.mxu0
        %v2391 = vadd.f32 %v2207, %v2390
        %2392 = vmatmul.f32.gmra.mxu0 %v2087
        %v2393 = vpop.f32.mrf.mxu0
        %v2394 = vadd.f32 %v2212, %v2393
        %2395 = vmatmul.f32.gmra.mxu0 %v2090
        %v2396 = vpop.f32.mrf.mxu0
        %v2397 = vadd.f32 %v2217, %v2396
        %2398 = vmatmul.f32.gmra.mxu0 %v2093
        %v2399 = vpop.f32.mrf.mxu0
        %v2400 = vadd.f32 %v2222, %v2399
        %2401 = vmatmul.f32.gmra.mxu0 %v2096
        %v2402 = vpop.f32.mrf.mxu0
        %v2403 = vadd.f32 %v2227, %v2402
        %2404 = vmatmul.f32.gmra.mxu0 %v2099
        %v2405 = vpop.f32.mrf.mxu0
        %v2406 = vadd.f32 %v2232, %v2405
        %2407 = vmatmul.f32.gmra.mxu0 %v2102
        %v2408 = vpop.f32.mrf.mxu0
        %v2409 = vadd.f32 %v2237, %v2408
        %2410 = vmatmul.f32.gmra.mxu0 %v2105
        %v2411 = vpop.f32.mrf.mxu0
        %v2412 = vadd.f32 %v2242, %v2411
        %2413 = vmatmul.f32.gmra.mxu0 %v2108
        %v2414 = vpop.f32.mrf.mxu0
        %v2415 = vadd.f32 %v2247, %v2414
        %2416 = vmatmul.f32.gmra.mxu0 %v2111
        %v2417 = vpop.f32.mrf.mxu0
        %v2418 = vadd.f32 %v2252, %v2417
        %2419 = vmatmul.f32.gmra.mxu0 %v2114
        %v2420 = vpop.f32.mrf.mxu0
        %v2421 = vadd.f32 %v2257, %v2420
        %2422 = vmatmul.f32.gmra.mxu0 %v2117
        %v2423 = vpop.f32.mrf.mxu0
        %v2424 = vadd.f32 %v2262, %v2423
        %2425 = vdwg.mxu0
        %2426 = vmatpush.msra.mxu0 %v2035
        %2427 = vmatpush.msra.mxu0 %v2034
        %2428 = vmatpush.msra.mxu0 %v2033
        %2429 = vmatpush.msra.mxu0 %v2032
        %2430 = vmatpush.msra.mxu0 %v2031
        %2431 = vmatpush.msra.mxu0 %v2030
        %2432 = vmatpush.msra.mxu0 %v2029
        %2433 = vmatpush.msra.mxu0 %v2028
        %2434 = vmatpush.msra.mxu0 %v2027
        %2435 = vmatpush.msra.mxu0 %v2026
        %2436 = vmatpush.msra.mxu0 %v2025
        %2437 = vmatpush.msra.mxu0 %v2024
        %2438 = vmatpush.msra.mxu0 %v2023
        %2439 = vmatpush.msra.mxu0 %v2022
        %2440 = vmatpush.msra.mxu0 %v2021
        %2441 = vmatpush.msra.mxu0 %v2020
        %2442 = vmatmul.f32.gmra.mxu0 %v2049
        %v2443 = vpop.f32.mrf.mxu0
        %v2444 = vadd.f32 %v2355, %v2443
        %2445 = vmatmul.f32.gmra.mxu0 %v2052
        %v2446 = vpop.f32.mrf.mxu0
        %v2447 = vadd.f32 %v2358, %v2446
        %2448 = vmatmul.f32.gmra.mxu0 %v2055
        %v2449 = vpop.f32.mrf.mxu0
        %v2450 = vadd.f32 %v2361, %v2449
        %2451 = vmatmul.f32.gmra.mxu0 %v2058
        %v2452 = vpop.f32.mrf.mxu0
        %v2453 = vadd.f32 %v2364, %v2452
        %2454 = vmatmul.f32.gmra.mxu0 %v2061
        %v2455 = vpop.f32.mrf.mxu0
        %v2456 = vadd.f32 %v2367, %v2455
        %2457 = vmatmul.f32.gmra.mxu0 %v2064
        %v2458 = vpop.f32.mrf.mxu0
        %v2459 = vadd.f32 %v2370, %v2458
        %2460 = vmatmul.f32.gmra.mxu0 %v2067
        %v2461 = vpop.f32.mrf.mxu0
        %v2462 = vadd.f32 %v2373, %v2461
        %2463 = vmatmul.f32.gmra.mxu0 %v2070
        %v2464 = vpop.f32.mrf.mxu0
        %v2465 = vadd.f32 %v2376, %v2464
        %2466 = vmatmul.f32.gmra.mxu0 %v2073
        %v2467 = vpop.f32.mrf.mxu0
        %v2468 = vadd.f32 %v2379, %v2467
        %2469 = vmatmul.f32.gmra.mxu0 %v2076
        %v2470 = vpop.f32.mrf.mxu0
        %v2471 = vadd.f32 %v2382, %v2470
        %2472 = vmatmul.f32.gmra.mxu0 %v2079
        %v2473 = vpop.f32.mrf.mxu0
        %v2474 = vadd.f32 %v2385, %v2473
        %2475 = vmatmul.f32.gmra.mxu0 %v2082
        %v2476 = vpop.f32.mrf.mxu0
        %v2477 = vadd.f32 %v2388, %v2476
        %2478 = vmatmul.f32.gmra.mxu0 %v2085
        %v2479 = vpop.f32.mrf.mxu0
        %v2480 = vadd.f32 %v2391, %v2479
        %2481 = vmatmul.f32.gmra.mxu0 %v2088
        %v2482 = vpop.f32.mrf.mxu0
        %v2483 = vadd.f32 %v2394, %v2482
        %2484 = vmatmul.f32.gmra.mxu0 %v2091
        %v2485 = vpop.f32.mrf.mxu0
        %v2486 = vadd.f32 %v2397, %v2485
        %2487 = vmatmul.f32.gmra.mxu0 %v2094
        %v2488 = vpop.f32.mrf.mxu0
        %v2489 = vadd.f32 %v2400, %v2488
        %2490 = vmatmul.f32.gmra.mxu0 %v2097
        %v2491 = vpop.f32.mrf.mxu0
        %v2492 = vadd.f32 %v2403, %v2491
        %2493 = vmatmul.f32.gmra.mxu0 %v2100
        %v2494 = vpop.f32.mrf.mxu0
        %v2495 = vadd.f32 %v2406, %v2494
        %2496 = vmatmul.f32.gmra.mxu0 %v2103
        %v2497 = vpop.f32.mrf.mxu0
        %v2498 = vadd.f32 %v2409, %v2497
        %2499 = vmatmul.f32.gmra.mxu0 %v2106
        %v2500 = vpop.f32.mrf.mxu0
        %v2501 = vadd.f32 %v2412, %v2500
        %2502 = vmatmul.f32.gmra.mxu0 %v2109
        %v2503 = vpop.f32.mrf.mxu0
        %v2504 = vadd.f32 %v2415, %v2503
        %2505 = vmatmul.f32.gmra.mxu0 %v2112
        %v2506 = vpop.f32.mrf.mxu0
        %v2507 = vadd.f32 %v2418, %v2506
        %2508 = vmatmul.f32.gmra.mxu0 %v2115
        %v2509 = vpop.f32.mrf.mxu0
        %v2510 = vadd.f32 %v2421, %v2509
        %2511 = vmatmul.f32.gmra.mxu0 %v2118
        %v2512 = vpop.f32.mrf.mxu0
        %v2513 = vadd.f32 %v2424, %v2512
        %2514 = vdwg.mxu0
        %2515 = vmatpush.msra.mxu0 0.0
        %2516 = vmatpush.msra.mxu0 0.0
        %2517 = vmatpush.msra.mxu0 0.0
        %2518 = vmatpush.msra.mxu0 0.0
        %2519 = vmatpush.msra.mxu0 %v2047
        %2520 = vmatpush.msra.mxu0 %v2046
        %2521 = vmatpush.msra.mxu0 %v2045
        %2522 = vmatpush.msra.mxu0 %v2044
        %2523 = vmatpush.msra.mxu0 %v2043
        %2524 = vmatpush.msra.mxu0 %v2042
        %2525 = vmatpush.msra.mxu0 %v2041
        %2526 = vmatpush.msra.mxu0 %v2040
        %2527 = vmatpush.msra.mxu0 %v2039
        %2528 = vmatpush.msra.mxu0 %v2038
        %2529 = vmatpush.msra.mxu0 %v2037
        %2530 = vmatpush.msra.mxu0 %v2036
        %2531 = vmatmul.f32.gmra.mxu0 %v2266
        %v2532 = vpop.f32.mrf.mxu0
        %v2533 = vadd.f32 %v2444, %v2532
        %2534 = vmatmul.f32.gmra.mxu0 %v2269
        %v2535 = vpop.f32.mrf.mxu0
        %v2536 = vadd.f32 %v2447, %v2535
        %2537 = vmatmul.f32.gmra.mxu0 %v2272
        %v2538 = vpop.f32.mrf.mxu0
        %v2539 = vadd.f32 %v2450, %v2538
        %2540 = vmatmul.f32.gmra.mxu0 %v2275
        %v2541 = vpop.f32.mrf.mxu0
        %v2542 = vadd.f32 %v2453, %v2541
        %2543 = vmatmul.f32.gmra.mxu0 %v2278
        %v2544 = vpop.f32.mrf.mxu0
        %v2545 = vadd.f32 %v2456, %v2544
        %2546 = vmatmul.f32.gmra.mxu0 %v2281
        %v2547 = vpop.f32.mrf.mxu0
        %v2548 = vadd.f32 %v2459, %v2547
        %2549 = vmatmul.f32.gmra.mxu0 %v2284
        %v2550 = vpop.f32.mrf.mxu0
        %v2551 = vadd.f32 %v2462, %v2550
        %2552 = vmatmul.f32.gmra.mxu0 %v2287
        %v2553 = vpop.f32.mrf.mxu0
        %v2554 = vadd.f32 %v2465, %v2553
        %2555 = vmatmul.f32.gmra.mxu0 %v2290
        %v2556 = vpop.f32.mrf.mxu0
        %v2557 = vadd.f32 %v2468, %v2556
        %2558 = vmatmul.f32.gmra.mxu0 %v2293
        %v2559 = vpop.f32.mrf.mxu0
        %v2560 = vadd.f32 %v2471, %v2559
        %2561 = vmatmul.f32.gmra.mxu0 %v2296
        %v2562 = vpop.f32.mrf.mxu0
        %v2563 = vadd.f32 %v2474, %v2562
        %2564 = vmatmul.f32.gmra.mxu0 %v2299
        %v2565 = vpop.f32.mrf.mxu0
        %v2566 = vadd.f32 %v2477, %v2565
        %2567 = vmatmul.f32.gmra.mxu0 %v2302
        %v2568 = vpop.f32.mrf.mxu0
        %v2569 = vadd.f32 %v2480, %v2568
        %2570 = vmatmul.f32.gmra.mxu0 %v2305
        %v2571 = vpop.f32.mrf.mxu0
        %v2572 = vadd.f32 %v2483, %v2571
        %2573 = vmatmul.f32.gmra.mxu0 %v2308
        %v2574 = vpop.f32.mrf.mxu0
        %v2575 = vadd.f32 %v2486, %v2574
        %2576 = vmatmul.f32.gmra.mxu0 %v2311
        %v2577 = vpop.f32.mrf.mxu0
        %v2578 = vadd.f32 %v2489, %v2577
        %2579 = vmatmul.f32.gmra.mxu0 %v2314
        %v2580 = vpop.f32.mrf.mxu0
        %v2581 = vadd.f32 %v2492, %v2580
        %2582 = vmatmul.f32.gmra.mxu0 %v2317
        %v2583 = vpop.f32.mrf.mxu0
        %v2584 = vadd.f32 %v2495, %v2583
        %2585 = vmatmul.f32.gmra.mxu0 %v2320
        %v2586 = vpop.f32.mrf.mxu0
        %v2587 = vadd.f32 %v2498, %v2586
        %2588 = vmatmul.f32.gmra.mxu0 %v2323
        %v2589 = vpop.f32.mrf.mxu0
        %v2590 = vadd.f32 %v2501, %v2589
        %2591 = vmatmul.f32.gmra.mxu0 %v2326
        %v2592 = vpop.f32.mrf.mxu0
        %v2593 = vadd.f32 %v2504, %v2592
        %2594 = vmatmul.f32.gmra.mxu0 %v2329
        %v2595 = vpop.f32.mrf.mxu0
        %v2596 = vadd.f32 %v2507, %v2595
        %2597 = vmatmul.f32.gmra.mxu0 %v2332
        %v2598 = vpop.f32.mrf.mxu0
        %v2599 = vadd.f32 %v2510, %v2598
        %2600 = vmatmul.f32.gmra.mxu0 %v2335
        %v2601 = vpop.f32.mrf.mxu0
        %v2602 = vadd.f32 %v2513, %v2601
        %2603 = vdwg.mxu0
        %v2604 = vmax.f32 %v2533, 0.0
        %v2605 = vmax.f32 %v2536, 0.0
        %v2606 = vmax.f32 %v2539, 0.0
        %v2607 = vmax.f32 %v2542, 0.0
        %v2608 = vmax.f32 %v2545, 0.0
        %v2609 = vmax.f32 %v2548, 0.0
        %v2610 = vmax.f32 %v2551, 0.0
        %v2611 = vmax.f32 %v2554, 0.0
        %v2612 = vmax.f32 %v2557, 0.0
        %v2613 = vmax.f32 %v2560, 0.0
        %v2614 = vmax.f32 %v2563, 0.0
        %v2615 = vmax.f32 %v2566, 0.0
        %v2616 = vmax.f32 %v2569, 0.0
        %v2617 = vmax.f32 %v2572, 0.0
        %v2618 = vmax.f32 %v2575, 0.0
        %v2619 = vmax.f32 %v2578, 0.0
        %v2620 = vmax.f32 %v2581, 0.0
        %v2621 = vmax.f32 %v2584, 0.0
        %v2622 = vmax.f32 %v2587, 0.0
        %v2623 = vmax.f32 %v2590, 0.0
        %v2624 = vmax.f32 %v2593, 0.0
        %v2625 = vmax.f32 %v2596, 0.0
        %v2626 = vmax.f32 %v2599, 0.0
        %v2627 = vmax.f32 %v2602, 0.0
        %s2628 = sld [smem:[#allocation5 + $0x100]]
        %v2629 = vstv %s2628
        %v2630 = vmul.f32 %v2629, %v2604
        %v2631 = vmul.f32 %v2629, %v2605
        %v2632 = vmul.f32 %v2629, %v2606
        %v2633 = vmul.f32 %v2629, %v2607
        %s2634 = sld [smem:[#allocation5 + $0x101]]
        %v2635 = vstv %s2634
        %v2636 = vmul.f32 %v2635, %v2608
        %v2637 = vmul.f32 %v2635, %v2609
        %v2638 = vmul.f32 %v2635, %v2610
        %v2639 = vmul.f32 %v2635, %v2611
        %v2640 = vadd.f32 %v2630, %v2636
        %v2641 = vadd.f32 %v2631, %v2637
        %v2642 = vadd.f32 %v2632, %v2638
        %v2643 = vadd.f32 %v2633, %v2639
        %s2644 = sld [smem:[#allocation5 + $0x102]]
        %v2645 = vstv %s2644
        %v2646 = vmul.f32 %v2645, %v2612
        %v2647 = vmul.f32 %v2645, %v2613
        %v2648 = vmul.f32 %v2645, %v2614
        %v2649 = vmul.f32 %v2645, %v2615
        %v2650 = vadd.f32 %v2640, %v2646
        %v2651 = vadd.f32 %v2641, %v2647
        %v2652 = vadd.f32 %v2642, %v2648
        %v2653 = vadd.f32 %v2643, %v2649
        %s2654 = sld [smem:[#allocation5 + $0x103]]
        %v2655 = vstv %s2654
        %v2656 = vmul.f32 %v2655, %v2616
        %v2657 = vmul.f32 %v2655, %v2617
        %v2658 = vmul.f32 %v2655, %v2618
        %v2659 = vmul.f32 %v2655, %v2619
        %v2660 = vadd.f32 %v2650, %v2656
        %v2661 = vadd.f32 %v2651, %v2657
        %v2662 = vadd.f32 %v2652, %v2658
        %v2663 = vadd.f32 %v2653, %v2659
        %s2664 = sld [smem:[#allocation5 + $0x104]]
        %v2665 = vstv %s2664
        %v2666 = vmul.f32 %v2665, %v2620
        %v2667 = vmul.f32 %v2665, %v2621
        %v2668 = vmul.f32 %v2665, %v2622
        %v2669 = vmul.f32 %v2665, %v2623
        %v2670 = vadd.f32 %v2660, %v2666
        %v2671 = vadd.f32 %v2661, %v2667
        %v2672 = vadd.f32 %v2662, %v2668
        %v2673 = vadd.f32 %v2663, %v2669
        %s2674 = sld [smem:[#allocation5 + $0x105]]
        %v2675 = vstv %s2674
        %v2676 = vmul.f32 %v2675, %v2624
        %v2677 = vmul.f32 %v2675, %v2625
        %v2678 = vmul.f32 %v2675, %v2626
        %v2679 = vmul.f32 %v2675, %v2627
        %v2680 = vadd.f32 %v2670, %v2676
        %v2681 = vadd.f32 %v2671, %v2677
        %v2682 = vadd.f32 %v2672, %v2678
        %v2683 = vadd.f32 %v2673, %v2679
        %v2684 = vadd.f32 %v2000, %v2680
        %v2685 = vadd.f32 %v2001, %v2681
        %v2686 = vadd.f32 %v2002, %v2682
        %v2687 = vadd.f32 %v2003, %v2683
        %2688 = vst.msk [vmem:[#allocation4] sm:$0xff] %vm884, 0.0
        %2689 = vst.msk [vmem:[#allocation4 + $0x8] sm:$0xff] %vm884, 0.0
        %2690 = vst.msk [vmem:[#allocation4 + $0x10] sm:$0xff] %vm884, 0.0
        %2691 = vst.msk [vmem:[#allocation4 + $0x18] sm:$0xff] %vm884, 0.0
        %2692 = vst.msk [vmem:[#allocation4 + $0x20] sm:$0xff] %vm884, 0.0
        %2693 = vst.msk [vmem:[#allocation4 + $0x28] sm:$0xff] %vm884, 0.0
        %2694 = vst.msk [vmem:[#allocation4 + $0x30] sm:$0xff] %vm884, 0.0
        %2695 = vst.msk [vmem:[#allocation4 + $0x38] sm:$0xff] %vm884, 0.0
        %2696 = vst.msk [vmem:[#allocation4 + $0x40] sm:$0xff] %vm884, 0.0
        %2697 = vst.msk [vmem:[#allocation4 + $0x48] sm:$0xff] %vm884, 0.0
        %2698 = vst.msk [vmem:[#allocation4 + $0x50] sm:$0xff] %vm884, 0.0
        %2699 = vst.msk [vmem:[#allocation4 + $0x58] sm:$0xff] %vm884, 0.0
        %2700 = vst.msk [vmem:[#allocation4 + $0x60] sm:$0xff] %vm884, 0.0
        %2701 = vst.msk [vmem:[#allocation4 + $0x68] sm:$0xff] %vm884, 0.0
        %2702 = vst.msk [vmem:[#allocation4 + $0x70] sm:$0xff] %vm884, 0.0
        %2703 = vst.msk [vmem:[#allocation4 + $0x78] sm:$0xff] %vm884, 0.0
        %2704 = vst.msk [vmem:[#allocation4 + $0x80] sm:$0xff] %vm884, 0.0
        %2705 = vst.msk [vmem:[#allocation4 + $0x88] sm:$0xff] %vm884, 0.0
        %2706 = vst.msk [vmem:[#allocation4 + $0x90] sm:$0xff] %vm884, 0.0
        %2707 = vst.msk [vmem:[#allocation4 + $0x98] sm:$0xff] %vm884, 0.0
        %2708 = vst.msk [vmem:[#allocation4 + $0xa0] sm:$0xff] %vm884, 0.0
        %2709 = vst.msk [vmem:[#allocation4 + $0xa8] sm:$0xff] %vm884, 0.0
        %2710 = vst.msk [vmem:[#allocation4 + $0xb0] sm:$0xff] %vm884, 0.0
        %2711 = vst.msk [vmem:[#allocation4 + $0xb8] sm:$0xff] %vm884, 0.0
        %2712 = vst.msk [vmem:[#allocation4 + $0xc0] sm:$0xff] %vm884, 0.0
        %2713 = vst.msk [vmem:[#allocation4 + $0xc8] sm:$0xff] %vm884, 0.0
        %2714 = vst.msk [vmem:[#allocation4 + $0xd0] sm:$0xff] %vm884, 0.0
        %2715 = vst.msk [vmem:[#allocation4 + $0xd8] sm:$0xff] %vm884, 0.0
        %2716 = vst.msk [vmem:[#allocation4 + $0xe0] sm:$0xff] %vm884, 0.0
        %2717 = vst.msk [vmem:[#allocation4 + $0xe8] sm:$0xff] %vm884, 0.0
        %2718 = vst.msk [vmem:[#allocation4 + $0xf0] sm:$0xff] %vm884, 0.0
        %2719 = vst.msk [vmem:[#allocation4 + $0xf8] sm:$0xff] %vm884, 0.0
        %2720 = vst.msk [vmem:[#allocation4 + $0x100] sm:$0xff] %vm884, 0.0
        %2721 = vst.msk [vmem:[#allocation4 + $0x108] sm:$0xff] %vm884, 0.0
        %2722 = vst.msk [vmem:[#allocation4 + $0x110] sm:$0xff] %vm884, 0.0
        %2723 = vst.msk [vmem:[#allocation4 + $0x118] sm:$0xff] %vm884, 0.0
        %2724 = vst.msk [vmem:[#allocation4 + $0x120] sm:$0xff] %vm884, 0.0
        %2725 = vst.msk [vmem:[#allocation4 + $0x128] sm:$0xff] %vm884, 0.0
        %2726 = vst.msk [vmem:[#allocation4 + $0x130] sm:$0xff] %vm884, 0.0
        %2727 = vst.msk [vmem:[#allocation4 + $0x138] sm:$0xff] %vm884, 0.0
        %2728 = vst.msk [vmem:[#allocation4 + $0x140] sm:$0xff] %vm884, 0.0
        %2729 = vst.msk [vmem:[#allocation4 + $0x148] sm:$0xff] %vm884, 0.0
        %2730 = vst.msk [vmem:[#allocation4 + $0x150] sm:$0xff] %vm884, 0.0
        %2731 = vst.msk [vmem:[#allocation4 + $0x158] sm:$0xff] %vm884, 0.0
        %2736 = vrot.lane.b32.xlu0 %v2684, 5
        %v2737 = vpop.permute.xlu0 %2736
        %2738 = vrot.lane.b32.xlu0 %v2685, 5
        %v2739 = vpop.permute.xlu0 %2738
        %2740 = vrot.lane.b32.xlu0 %v2686, 5
        %v2741 = vpop.permute.xlu0 %2740
        %2742 = vrot.lane.b32.xlu0 %v2687, 5
        %v2743 = vpop.permute.xlu0 %2742
        %2748 = vst.msk [vmem:[#allocation4] sm:$0xff] %vm1424, %v2737
        %2749 = vst.msk [vmem:[#allocation4 + $0x8] sm:$0xff] %vm1424, %v2739
        %2750 = vst.msk [vmem:[#allocation4 + $0x10] sm:$0xff] %vm1424, %v2741
        %2751 = vst.msk [vmem:[#allocation4 + $0x18] sm:$0xff] %vm1424, %v2743
        %2752 = vrot.lane.b32.xlu0 %v2684, 4
        %v2753 = vpop.permute.xlu0 %2752
        %2754 = vrot.lane.b32.xlu0 %v2685, 4
        %v2755 = vpop.permute.xlu0 %2754
        %2756 = vrot.lane.b32.xlu0 %v2686, 4
        %v2757 = vpop.permute.xlu0 %2756
        %2758 = vrot.lane.b32.xlu0 %v2687, 4
        %v2759 = vpop.permute.xlu0 %2758
        %2764 = vst.msk [vmem:[#allocation4 + $0x20] sm:$0xff] %vm1441, %v2753
        %2765 = vst.msk [vmem:[#allocation4 + $0x28] sm:$0xff] %vm1441, %v2755
        %2766 = vst.msk [vmem:[#allocation4 + $0x30] sm:$0xff] %vm1441, %v2757
        %2767 = vst.msk [vmem:[#allocation4 + $0x38] sm:$0xff] %vm1441, %v2759
        %2768 = vrot.lane.b32.xlu0 %v2684, 3
        %v2769 = vpop.permute.xlu0 %2768
        %2770 = vrot.lane.b32.xlu0 %v2685, 3
        %v2771 = vpop.permute.xlu0 %2770
        %2772 = vrot.lane.b32.xlu0 %v2686, 3
        %v2773 = vpop.permute.xlu0 %2772
        %2774 = vrot.lane.b32.xlu0 %v2687, 3
        %v2775 = vpop.permute.xlu0 %2774
        %2780 = vst.msk [vmem:[#allocation4 + $0x40] sm:$0xff] %vm1458, %v2769
        %2781 = vst.msk [vmem:[#allocation4 + $0x48] sm:$0xff] %vm1458, %v2771
        %2782 = vst.msk [vmem:[#allocation4 + $0x50] sm:$0xff] %vm1458, %v2773
        %2783 = vst.msk [vmem:[#allocation4 + $0x58] sm:$0xff] %vm1458, %v2775
        %2784 = vrot.lane.b32.xlu0 %v2684, 2
        %v2785 = vpop.permute.xlu0 %2784
        %2786 = vrot.lane.b32.xlu0 %v2685, 2
        %v2787 = vpop.permute.xlu0 %2786
        %2788 = vrot.lane.b32.xlu0 %v2686, 2
        %v2789 = vpop.permute.xlu0 %2788
        %2790 = vrot.lane.b32.xlu0 %v2687, 2
        %v2791 = vpop.permute.xlu0 %2790
        %2796 = vst.msk [vmem:[#allocation4 + $0x60] sm:$0xff] %vm1475, %v2785
        %2797 = vst.msk [vmem:[#allocation4 + $0x68] sm:$0xff] %vm1475, %v2787
        %2798 = vst.msk [vmem:[#allocation4 + $0x70] sm:$0xff] %vm1475, %v2789
        %2799 = vst.msk [vmem:[#allocation4 + $0x78] sm:$0xff] %vm1475, %v2791
        %2800 = vrot.lane.b32.xlu0 %v2684, 1
        %v2801 = vpop.permute.xlu0 %2800
        %2802 = vrot.lane.b32.xlu0 %v2685, 1
        %v2803 = vpop.permute.xlu0 %2802
        %2804 = vrot.lane.b32.xlu0 %v2686, 1
        %v2805 = vpop.permute.xlu0 %2804
        %2806 = vrot.lane.b32.xlu0 %v2687, 1
        %v2807 = vpop.permute.xlu0 %2806
        %2812 = vst.msk [vmem:[#allocation4 + $0x80] sm:$0xff] %vm1492, %v2801
        %2813 = vst.msk [vmem:[#allocation4 + $0x88] sm:$0xff] %vm1492, %v2803
        %2814 = vst.msk [vmem:[#allocation4 + $0x90] sm:$0xff] %vm1492, %v2805
        %2815 = vst.msk [vmem:[#allocation4 + $0x98] sm:$0xff] %vm1492, %v2807
        %2816 = vst.msk [vmem:[#allocation4 + $0xa0] sm:$0xff] %vm884, %v2684
        %2817 = vst.msk [vmem:[#allocation4 + $0xa8] sm:$0xff] %vm884, %v2685
        %2818 = vst.msk [vmem:[#allocation4 + $0xb0] sm:$0xff] %vm884, %v2686
        %2819 = vst.msk [vmem:[#allocation4 + $0xb8] sm:$0xff] %vm884, %v2687
        %2820 = vrot.lane.b32.xlu0 %v2684, 127
        %v2821 = vpop.permute.xlu0 %2820
        %2822 = vrot.lane.b32.xlu0 %v2685, 127
        %v2823 = vpop.permute.xlu0 %2822
        %2824 = vrot.lane.b32.xlu0 %v2686, 127
        %v2825 = vpop.permute.xlu0 %2824
        %2826 = vrot.lane.b32.xlu0 %v2687, 127
        %v2827 = vpop.permute.xlu0 %2826
        %2832 = vst.msk [vmem:[#allocation4 + $0xc0] sm:$0xff] %vm1513, %v2821
        %2833 = vst.msk [vmem:[#allocation4 + $0xc8] sm:$0xff] %vm1513, %v2823
        %2834 = vst.msk [vmem:[#allocation4 + $0xd0] sm:$0xff] %vm1513, %v2825
        %2835 = vst.msk [vmem:[#allocation4 + $0xd8] sm:$0xff] %vm1513, %v2827
        %2836 = vrot.lane.b32.xlu0 %v2684, 126
        %v2837 = vpop.permute.xlu0 %2836
        %2838 = vrot.lane.b32.xlu0 %v2685, 126
        %v2839 = vpop.permute.xlu0 %2838
        %2840 = vrot.lane.b32.xlu0 %v2686, 126
        %v2841 = vpop.permute.xlu0 %2840
        %2842 = vrot.lane.b32.xlu0 %v2687, 126
        %v2843 = vpop.permute.xlu0 %2842
        %2848 = vst.msk [vmem:[#allocation4 + $0xe0] sm:$0xff] %vm1530, %v2837
        %2849 = vst.msk [vmem:[#allocation4 + $0xe8] sm:$0xff] %vm1530, %v2839
        %2850 = vst.msk [vmem:[#allocation4 + $0xf0] sm:$0xff] %vm1530, %v2841
        %2851 = vst.msk [vmem:[#allocation4 + $0xf8] sm:$0xff] %vm1530, %v2843
        %2852 = vrot.lane.b32.xlu0 %v2684, 125
        %v2853 = vpop.permute.xlu0 %2852
        %2854 = vrot.lane.b32.xlu0 %v2685, 125
        %v2855 = vpop.permute.xlu0 %2854
        %2856 = vrot.lane.b32.xlu0 %v2686, 125
        %v2857 = vpop.permute.xlu0 %2856
        %2858 = vrot.lane.b32.xlu0 %v2687, 125
        %v2859 = vpop.permute.xlu0 %2858
        %2864 = vst.msk [vmem:[#allocation4 + $0x100] sm:$0xff] %vm1547, %v2853
        %2865 = vst.msk [vmem:[#allocation4 + $0x108] sm:$0xff] %vm1547, %v2855
        %2866 = vst.msk [vmem:[#allocation4 + $0x110] sm:$0xff] %vm1547, %v2857
        %2867 = vst.msk [vmem:[#allocation4 + $0x118] sm:$0xff] %vm1547, %v2859
        %2868 = vrot.lane.b32.xlu0 %v2684, 124
        %v2869 = vpop.permute.xlu0 %2868
        %2870 = vrot.lane.b32.xlu0 %v2685, 124
        %v2871 = vpop.permute.xlu0 %2870
        %2872 = vrot.lane.b32.xlu0 %v2686, 124
        %v2873 = vpop.permute.xlu0 %2872
        %2874 = vrot.lane.b32.xlu0 %v2687, 124
        %v2875 = vpop.permute.xlu0 %2874
        %2880 = vst.msk [vmem:[#allocation4 + $0x120] sm:$0xff] %vm1564, %v2869
        %2881 = vst.msk [vmem:[#allocation4 + $0x128] sm:$0xff] %vm1564, %v2871
        %2882 = vst.msk [vmem:[#allocation4 + $0x130] sm:$0xff] %vm1564, %v2873
        %2883 = vst.msk [vmem:[#allocation4 + $0x138] sm:$0xff] %vm1564, %v2875
        %2884 = vrot.lane.b32.xlu0 %v2684, 123
        %v2885 = vpop.permute.xlu0 %2884
        %2886 = vrot.lane.b32.xlu0 %v2685, 123
        %v2887 = vpop.permute.xlu0 %2886
        %2888 = vrot.lane.b32.xlu0 %v2686, 123
        %v2889 = vpop.permute.xlu0 %2888
        %2890 = vrot.lane.b32.xlu0 %v2687, 123
        %v2891 = vpop.permute.xlu0 %2890
        %2896 = vst.msk [vmem:[#allocation4 + $0x140] sm:$0xff] %vm1581, %v2885
        %2897 = vst.msk [vmem:[#allocation4 + $0x148] sm:$0xff] %vm1581, %v2887
        %2898 = vst.msk [vmem:[#allocation4 + $0x150] sm:$0xff] %vm1581, %v2889
        %2899 = vst.msk [vmem:[#allocation4 + $0x158] sm:$0xff] %vm1581, %v2891
        %v2900 = vld [vmem:[#allocation2] sm:$0xff]
        %v2901 = vld [vmem:[#allocation2 + $0x8] sm:$0xff]
        %v2902 = vld [vmem:[#allocation2 + $0x10] sm:$0xff]
        %v2903 = vld [vmem:[#allocation2 + $0x18] sm:$0xff]
        %v2904 = vld [vmem:[#allocation2 + $0x20] sm:$0xff]
        %v2905 = vld [vmem:[#allocation2 + $0x28] sm:$0xf]
        %v2906 = vld [vmem:[%s8] sm:$0x3f]
        %v2907 = vld [vmem:[%s9] sm:$0x3f]
        %2909 = vset.pattern.permute.xlu0 0
        %2910 = vperm.xlu0 %2909, %v2907
        %v2911 = vpop.permute.xlu0 %2910
        %v2914 = vsel %vm1118, %v2906, 0
        %v2917 = vsel %vm1191, %v2905, 0
        %2919 = vmatpush.msra.mxu0 0.0
        %2920 = vmatpush.msra.mxu0 0.0
        %2921 = vmatpush.msra.mxu0 0.0
        %2922 = vmatpush.msra.mxu0 0.0
        %2923 = vmatpush.msra.mxu0 0.0
        %2924 = vmatpush.msra.mxu0 0.0
        %2925 = vmatpush.msra.mxu0 0.0
        %2926 = vmatpush.msra.mxu0 0.0
        %2927 = vmatpush.msra.mxu0 0.0
        %2928 = vmatpush.msra.mxu0 0.0
        %2929 = vmatpush.msra.mxu0 %v2917
        %2930 = vmatpush.msra.mxu0 %v2904
        %2931 = vmatpush.msra.mxu0 %v2903
        %2932 = vmatpush.msra.mxu0 %v2902
        %2933 = vmatpush.msra.mxu0 %v2901
        %2934 = vmatpush.msra.mxu0 %v2900
        %2935 = vmatmul.f32.gmra.mxu0 %v2914
        %v2936 = vpop.f32.mrf.mxu0
        %v2937 = vadd.f32 %v2911, %v2936
        %2938 = vdwg.mxu0
        %v2939 = vxor.u32 %v2937, 2147483648
        %v2940 = vmul.f32 %v2939, 1.442695
        %v2941 = vpow.pop %v2940
        %v2942 = vadd.f32 %v2941, 1.0
        %v2943 = vrcp.pop %v2942
        %v2944 = vmul.f32 %v2942, %v2943
        %v2945 = vsub.f32 1.0, %v2944
        %v2946 = vmul.f32 %v2943, %v2945
        %v2947 = vadd.f32 %v2943, %v2946
        %vm2948 = vweird.f32 %v2942
        %vm2949 = vweird.f32 %v2943
        %vm2950 = vmor %vm2948, %vm2949
        %v2951 = vsel %vm2950, %v2943, %v2947
        %v2952 = vand.u32 2147483647, %v2942
        %vm2953 = vcmp.eq.f32.partialorder %v2952, 8.507059e+37
        %v2954 = vand.u32 %v2942, 2147483648
        %v2955 = vor.u32 1.1754944e-38, %v2954
        %v2956 = vsel %vm2953, %v2955, %v2951
        %v2957 = vmul.f32 1.0, %v2956
        %s2958 = sld [smem:[#allocation5 + $0x180]]
        %v2959 = vstv %s2958
        %v2960 = vmul.f32 %v2959, %v2957
        %s2961 = sld [smem:[#allocation5 + $0x181]]
        %v2962 = vstv %s2961
        %v2963 = vmul.f32 %v2962, %v2957
        %v2965 = vrot.slane %v2963, 1
        %v2967 = vadd.f32 %v2960, %v2965
        %s2968 = sld [smem:[#allocation5 + $0x182]]
        %v2969 = vstv %s2968
        %v2970 = vmul.f32 %v2969, %v2957
        %v2972 = vrot.slane %v2970, 2
        %v2974 = vadd.f32 %v2967, %v2972
        %s2975 = sld [smem:[#allocation5 + $0x183]]
        %v2976 = vstv %s2975
        %v2977 = vmul.f32 %v2976, %v2957
        %v2979 = vrot.slane %v2977, 3
        %v2981 = vadd.f32 %v2974, %v2979
        %s2982 = sld [smem:[#allocation5 + $0x184]]
        %v2983 = vstv %s2982
        %v2984 = vmul.f32 %v2983, %v2957
        %v2986 = vrot.slane %v2984, 4
        %v2988 = vadd.f32 %v2981, %v2986
        %s2989 = sld [smem:[#allocation5 + $0x185]]
        %v2990 = vstv %s2989
        %v2991 = vmul.f32 %v2990, %v2957
        %v2993 = vrot.slane %v2991, 5
        %v2995 = vadd.f32 %v2988, %v2993
        %v2996 = vld [vmem:[#allocation3] sm:$0xff]
        %v2997 = vld [vmem:[#allocation3 + $0x8] sm:$0xff]
        %v2998 = vld [vmem:[#allocation3 + $0x10] sm:$0xff]
        %v2999 = vld [vmem:[#allocation3 + $0x18] sm:$0xff]
        %v3000 = vld [vmem:[#allocation3 + $0x20] sm:$0xff]
        %v3001 = vld [vmem:[#allocation3 + $0x28] sm:$0xff]
        %v3002 = vld [vmem:[#allocation3 + $0x30] sm:$0xff]
        %v3003 = vld [vmem:[#allocation3 + $0x38] sm:$0xff]
        %v3004 = vld [vmem:[#allocation3 + $0x40] sm:$0xff]
        %v3005 = vld [vmem:[#allocation3 + $0x48] sm:$0xff]
        %v3006 = vld [vmem:[#allocation3 + $0x50] sm:$0xff]
        %v3007 = vld [vmem:[#allocation3 + $0x58] sm:$0xff]
        %v3008 = vld [vmem:[#allocation3 + $0x60] sm:$0xff]
        %v3009 = vld [vmem:[#allocation3 + $0x68] sm:$0xff]
        %v3010 = vld [vmem:[#allocation3 + $0x70] sm:$0xff]
        %v3011 = vld [vmem:[#allocation3 + $0x78] sm:$0xff]
        %v3012 = vld [vmem:[#allocation3 + $0x80] sm:$0xff]
        %v3013 = vld [vmem:[#allocation3 + $0x88] sm:$0xff]
        %v3014 = vld [vmem:[#allocation3 + $0x90] sm:$0xff]
        %v3015 = vld [vmem:[#allocation3 + $0x98] sm:$0xff]
        %v3016 = vld [vmem:[#allocation3 + $0xa0] sm:$0xff]
        %v3017 = vld [vmem:[#allocation3 + $0xa8] sm:$0xff]
        %v3018 = vld [vmem:[#allocation3 + $0xb0] sm:$0xff]
        %v3019 = vld [vmem:[#allocation3 + $0xb8] sm:$0xff]
        %v3020 = vld [vmem:[#allocation3 + $0xc0] sm:$0xff]
        %v3021 = vld [vmem:[#allocation3 + $0xc8] sm:$0xff]
        %v3022 = vld [vmem:[#allocation3 + $0xd0] sm:$0xff]
        %v3023 = vld [vmem:[#allocation3 + $0xd8] sm:$0xff]
        %v3024 = vld [vmem:[#allocation3 + $0xe0] sm:$0xff]
        %v3025 = vld [vmem:[#allocation3 + $0xe8] sm:$0xff]
        %v3026 = vld [vmem:[#allocation3 + $0xf0] sm:$0xff]
        %v3027 = vld [vmem:[#allocation3 + $0xf8] sm:$0xff]
        %v3028 = vld [vmem:[#allocation3 + $0x100] sm:$0xff]
        %v3029 = vld [vmem:[#allocation3 + $0x108] sm:$0xff]
        %v3030 = vld [vmem:[#allocation3 + $0x110] sm:$0xff]
        %v3031 = vld [vmem:[#allocation3 + $0x118] sm:$0xff]
        %v3032 = vld [vmem:[#allocation3 + $0x120] sm:$0xff]
        %v3033 = vld [vmem:[#allocation3 + $0x128] sm:$0xff]
        %v3034 = vld [vmem:[#allocation3 + $0x130] sm:$0xff]
        %v3035 = vld [vmem:[#allocation3 + $0x138] sm:$0xff]
        %v3036 = vld [vmem:[#allocation3 + $0x140] sm:$0xff]
        %v3037 = vld [vmem:[#allocation3 + $0x148] sm:$0xff]
        %v3038 = vld [vmem:[#allocation3 + $0x150] sm:$0xff]
        %v3039 = vld [vmem:[#allocation3 + $0x158] sm:$0xff]
        %v3040 = vld [vmem:[%s10] sm:$0x3f]
        %v3041 = vld [vmem:[%s10 + $0x8] sm:$0x3f]
        %v3042 = vld [vmem:[%s10 + $0x10] sm:$0x3f]
        %v3043 = vld [vmem:[%s11] sm:$0x3f]
        %3045 = vset.pattern.permute.xlu0 0
        %3046 = vperm.xlu0 %3045, %v3043
        %v3047 = vpop.permute.xlu0 %3046
        %v3050 = vsel %vm2264, %v3042, 0
        %3052 = vmatpush.msra.mxu0 %v3011
        %3053 = vmatpush.msra.mxu0 %v3010
        %3054 = vmatpush.msra.mxu0 %v3009
        %3055 = vmatpush.msra.mxu0 %v3008
        %3056 = vmatpush.msra.mxu0 %v3007
        %3057 = vmatpush.msra.mxu0 %v3006
        %3058 = vmatpush.msra.mxu0 %v3005
        %3059 = vmatpush.msra.mxu0 %v3004
        %3060 = vmatpush.msra.mxu0 %v3003
        %3061 = vmatpush.msra.mxu0 %v3002
        %3062 = vmatpush.msra.mxu0 %v3001
        %3063 = vmatpush.msra.mxu0 %v3000
        %3064 = vmatpush.msra.mxu0 %v2999
        %3065 = vmatpush.msra.mxu0 %v2998
        %3066 = vmatpush.msra.mxu0 %v2997
        %3067 = vmatpush.msra.mxu0 %v2996
        %3068 = vmatmul.f32.gmra.mxu0 %v3040
        %v3069 = vpop.f32.mrf.mxu0
        %v3070 = vadd.f32 %v3047, %v3069
        %3071 = vdwg.mxu0
        %3072 = vmatpush.msra.mxu0 %v3027
        %3073 = vmatpush.msra.mxu0 %v3026
        %3074 = vmatpush.msra.mxu0 %v3025
        %3075 = vmatpush.msra.mxu0 %v3024
        %3076 = vmatpush.msra.mxu0 %v3023
        %3077 = vmatpush.msra.mxu0 %v3022
        %3078 = vmatpush.msra.mxu0 %v3021
        %3079 = vmatpush.msra.mxu0 %v3020
        %3080 = vmatpush.msra.mxu0 %v3019
        %3081 = vmatpush.msra.mxu0 %v3018
        %3082 = vmatpush.msra.mxu0 %v3017
        %3083 = vmatpush.msra.mxu0 %v3016
        %3084 = vmatpush.msra.mxu0 %v3015
        %3085 = vmatpush.msra.mxu0 %v3014
        %3086 = vmatpush.msra.mxu0 %v3013
        %3087 = vmatpush.msra.mxu0 %v3012
        %3088 = vmatmul.f32.gmra.mxu0 %v3041
        %v3089 = vpop.f32.mrf.mxu0
        %v3090 = vadd.f32 %v3070, %v3089
        %3091 = vdwg.mxu0
        %3092 = vmatpush.msra.mxu0 0.0
        %3093 = vmatpush.msra.mxu0 0.0
        %3094 = vmatpush.msra.mxu0 0.0
        %3095 = vmatpush.msra.mxu0 0.0
        %3096 = vmatpush.msra.mxu0 %v3039
        %3097 = vmatpush.msra.mxu0 %v3038
        %3098 = vmatpush.msra.mxu0 %v3037
        %3099 = vmatpush.msra.mxu0 %v3036
        %3100 = vmatpush.msra.mxu0 %v3035
        %3101 = vmatpush.msra.mxu0 %v3034
        %3102 = vmatpush.msra.mxu0 %v3033
        %3103 = vmatpush.msra.mxu0 %v3032
        %3104 = vmatpush.msra.mxu0 %v3031
        %3105 = vmatpush.msra.mxu0 %v3030
        %3106 = vmatpush.msra.mxu0 %v3029
        %3107 = vmatpush.msra.mxu0 %v3028
        %3108 = vmatmul.f32.gmra.mxu0 %v3050
        %v3109 = vpop.f32.mrf.mxu0
        %v3110 = vadd.f32 %v3090, %v3109
        %3111 = vdwg.mxu0
        %v3112 = vxor.u32 %v3110, 2147483648
        %v3113 = vmul.f32 %v3112, 1.442695
        %v3114 = vpow.pop %v3113
        %v3115 = vadd.f32 %v3114, 1.0
        %v3116 = vrcp.pop %v3115
        %v3117 = vmul.f32 %v3115, %v3116
        %v3118 = vsub.f32 1.0, %v3117
        %v3119 = vmul.f32 %v3116, %v3118
        %v3120 = vadd.f32 %v3116, %v3119
        %vm3121 = vweird.f32 %v3115
        %vm3122 = vweird.f32 %v3116
        %vm3123 = vmor %vm3121, %vm3122
        %v3124 = vsel %vm3123, %v3116, %v3120
        %v3125 = vand.u32 2147483647, %v3115
        %vm3126 = vcmp.eq.f32.partialorder %v3125, 8.507059e+37
        %v3127 = vand.u32 %v3115, 2147483648
        %v3128 = vor.u32 1.1754944e-38, %v3127
        %v3129 = vsel %vm3126, %v3128, %v3124
        %v3130 = vmul.f32 1.0, %v3129
        %s3131 = sld [smem:[#allocation5 + $0x200]]
        %v3132 = vstv %s3131
        %v3133 = vmul.f32 %v3132, %v3130
        %s3134 = sld [smem:[#allocation5 + $0x201]]
        %v3135 = vstv %s3134
        %v3136 = vmul.f32 %v3135, %v3130
        %v3138 = vrot.slane %v3136, 1
        %v3140 = vadd.f32 %v3133, %v3138
        %s3141 = sld [smem:[#allocation5 + $0x202]]
        %v3142 = vstv %s3141
        %v3143 = vmul.f32 %v3142, %v3130
        %v3145 = vrot.slane %v3143, 2
        %v3147 = vadd.f32 %v3140, %v3145
        %s3148 = sld [smem:[#allocation5 + $0x203]]
        %v3149 = vstv %s3148
        %v3150 = vmul.f32 %v3149, %v3130
        %v3152 = vrot.slane %v3150, 3
        %v3154 = vadd.f32 %v3147, %v3152
        %s3155 = sld [smem:[#allocation5 + $0x204]]
        %v3156 = vstv %s3155
        %v3157 = vmul.f32 %v3156, %v3130
        %v3159 = vrot.slane %v3157, 4
        %v3161 = vadd.f32 %v3154, %v3159
        %s3162 = sld [smem:[#allocation5 + $0x205]]
        %v3163 = vstv %s3162
        %v3164 = vmul.f32 %v3163, %v3130
        %v3166 = vrot.slane %v3164, 5
        %v3168 = vadd.f32 %v3161, %v3166
        %v3169 = vadd.f32 %v2995, %v3168
        %v3170 = vld [vmem:[#allocation4] sm:$0xff]
        %v3171 = vld [vmem:[#allocation4 + $0x8] sm:$0xff]
        %v3172 = vld [vmem:[#allocation4 + $0x10] sm:$0xff]
        %v3173 = vld [vmem:[#allocation4 + $0x18] sm:$0xff]
        %v3174 = vld [vmem:[#allocation4 + $0x20] sm:$0xff]
        %v3175 = vld [vmem:[#allocation4 + $0x28] sm:$0xff]
        %v3176 = vld [vmem:[#allocation4 + $0x30] sm:$0xff]
        %v3177 = vld [vmem:[#allocation4 + $0x38] sm:$0xff]
        %v3178 = vld [vmem:[#allocation4 + $0x40] sm:$0xff]
        %v3179 = vld [vmem:[#allocation4 + $0x48] sm:$0xff]
        %v3180 = vld [vmem:[#allocation4 + $0x50] sm:$0xff]
        %v3181 = vld [vmem:[#allocation4 + $0x58] sm:$0xff]
        %v3182 = vld [vmem:[#allocation4 + $0x60] sm:$0xff]
        %v3183 = vld [vmem:[#allocation4 + $0x68] sm:$0xff]
        %v3184 = vld [vmem:[#allocation4 + $0x70] sm:$0xff]
        %v3185 = vld [vmem:[#allocation4 + $0x78] sm:$0xff]
        %v3186 = vld [vmem:[#allocation4 + $0x80] sm:$0xff]
        %v3187 = vld [vmem:[#allocation4 + $0x88] sm:$0xff]
        %v3188 = vld [vmem:[#allocation4 + $0x90] sm:$0xff]
        %v3189 = vld [vmem:[#allocation4 + $0x98] sm:$0xff]
        %v3190 = vld [vmem:[#allocation4 + $0xa0] sm:$0xff]
        %v3191 = vld [vmem:[#allocation4 + $0xa8] sm:$0xff]
        %v3192 = vld [vmem:[#allocation4 + $0xb0] sm:$0xff]
        %v3193 = vld [vmem:[#allocation4 + $0xb8] sm:$0xff]
        %v3194 = vld [vmem:[#allocation4 + $0xc0] sm:$0xff]
        %v3195 = vld [vmem:[#allocation4 + $0xc8] sm:$0xff]
        %v3196 = vld [vmem:[#allocation4 + $0xd0] sm:$0xff]
        %v3197 = vld [vmem:[#allocation4 + $0xd8] sm:$0xff]
        %v3198 = vld [vmem:[#allocation4 + $0xe0] sm:$0xff]
        %v3199 = vld [vmem:[#allocation4 + $0xe8] sm:$0xff]
        %v3200 = vld [vmem:[#allocation4 + $0xf0] sm:$0xff]
        %v3201 = vld [vmem:[#allocation4 + $0xf8] sm:$0xff]
        %v3202 = vld [vmem:[#allocation4 + $0x100] sm:$0xff]
        %v3203 = vld [vmem:[#allocation4 + $0x108] sm:$0xff]
        %v3204 = vld [vmem:[#allocation4 + $0x110] sm:$0xff]
        %v3205 = vld [vmem:[#allocation4 + $0x118] sm:$0xff]
        %v3206 = vld [vmem:[#allocation4 + $0x120] sm:$0xff]
        %v3207 = vld [vmem:[#allocation4 + $0x128] sm:$0xff]
        %v3208 = vld [vmem:[#allocation4 + $0x130] sm:$0xff]
        %v3209 = vld [vmem:[#allocation4 + $0x138] sm:$0xff]
        %v3210 = vld [vmem:[#allocation4 + $0x140] sm:$0xff]
        %v3211 = vld [vmem:[#allocation4 + $0x148] sm:$0xff]
        %v3212 = vld [vmem:[#allocation4 + $0x150] sm:$0xff]
        %v3213 = vld [vmem:[#allocation4 + $0x158] sm:$0xff]
        %v3214 = vld [vmem:[%s12] sm:$0x3f]
        %v3215 = vld [vmem:[%s12 + $0x8] sm:$0x3f]
        %v3216 = vld [vmem:[%s12 + $0x10] sm:$0x3f]
        %v3217 = vld [vmem:[%s13] sm:$0x3f]
        %3219 = vset.pattern.permute.xlu0 0
        %3220 = vperm.xlu0 %3219, %v3217
        %v3221 = vpop.permute.xlu0 %3220
        %v3224 = vsel %vm2264, %v3216, 0
        %3226 = vmatpush.msra.mxu0 %v3185
        %3227 = vmatpush.msra.mxu0 %v3184
        %3228 = vmatpush.msra.mxu0 %v3183
        %3229 = vmatpush.msra.mxu0 %v3182
        %3230 = vmatpush.msra.mxu0 %v3181
        %3231 = vmatpush.msra.mxu0 %v3180
        %3232 = vmatpush.msra.mxu0 %v3179
        %3233 = vmatpush.msra.mxu0 %v3178
        %3234 = vmatpush.msra.mxu0 %v3177
        %3235 = vmatpush.msra.mxu0 %v3176
        %3236 = vmatpush.msra.mxu0 %v3175
        %3237 = vmatpush.msra.mxu0 %v3174
        %3238 = vmatpush.msra.mxu0 %v3173
        %3239 = vmatpush.msra.mxu0 %v3172
        %3240 = vmatpush.msra.mxu0 %v3171
        %3241 = vmatpush.msra.mxu0 %v3170
        %3242 = vmatmul.f32.gmra.mxu0 %v3214
        %v3243 = vpop.f32.mrf.mxu0
        %v3244 = vadd.f32 %v3221, %v3243
        %3245 = vdwg.mxu0
        %3246 = vmatpush.msra.mxu0 %v3201
        %3247 = vmatpush.msra.mxu0 %v3200
        %3248 = vmatpush.msra.mxu0 %v3199
        %3249 = vmatpush.msra.mxu0 %v3198
        %3250 = vmatpush.msra.mxu0 %v3197
        %3251 = vmatpush.msra.mxu0 %v3196
        %3252 = vmatpush.msra.mxu0 %v3195
        %3253 = vmatpush.msra.mxu0 %v3194
        %3254 = vmatpush.msra.mxu0 %v3193
        %3255 = vmatpush.msra.mxu0 %v3192
        %3256 = vmatpush.msra.mxu0 %v3191
        %3257 = vmatpush.msra.mxu0 %v3190
        %3258 = vmatpush.msra.mxu0 %v3189
        %3259 = vmatpush.msra.mxu0 %v3188
        %3260 = vmatpush.msra.mxu0 %v3187
        %3261 = vmatpush.msra.mxu0 %v3186
        %3262 = vmatmul.f32.gmra.mxu0 %v3215
        %v3263 = vpop.f32.mrf.mxu0
        %v3264 = vadd.f32 %v3244, %v3263
        %3265 = vdwg.mxu0
        %3266 = vmatpush.msra.mxu0 0.0
        %3267 = vmatpush.msra.mxu0 0.0
        %3268 = vmatpush.msra.mxu0 0.0
        %3269 = vmatpush.msra.mxu0 0.0
        %3270 = vmatpush.msra.mxu0 %v3213
        %3271 = vmatpush.msra.mxu0 %v3212
        %3272 = vmatpush.msra.mxu0 %v3211
        %3273 = vmatpush.msra.mxu0 %v3210
        %3274 = vmatpush.msra.mxu0 %v3209
        %3275 = vmatpush.msra.mxu0 %v3208
        %3276 = vmatpush.msra.mxu0 %v3207
        %3277 = vmatpush.msra.mxu0 %v3206
        %3278 = vmatpush.msra.mxu0 %v3205
        %3279 = vmatpush.msra.mxu0 %v3204
        %3280 = vmatpush.msra.mxu0 %v3203
        %3281 = vmatpush.msra.mxu0 %v3202
        %3282 = vmatmul.f32.gmra.mxu0 %v3224
        %v3283 = vpop.f32.mrf.mxu0
        %v3284 = vadd.f32 %v3264, %v3283
        %3285 = vdwg.mxu0
        %v3286 = vxor.u32 %v3284, 2147483648
        %v3287 = vmul.f32 %v3286, 1.442695
        %v3288 = vpow.pop %v3287
        %v3289 = vadd.f32 %v3288, 1.0
        %v3290 = vrcp.pop %v3289
        %v3291 = vmul.f32 %v3289, %v3290
        %v3292 = vsub.f32 1.0, %v3291
        %v3293 = vmul.f32 %v3290, %v3292
        %v3294 = vadd.f32 %v3290, %v3293
        %vm3295 = vweird.f32 %v3289
        %vm3296 = vweird.f32 %v3290
        %vm3297 = vmor %vm3295, %vm3296
        %v3298 = vsel %vm3297, %v3290, %v3294
        %v3299 = vand.u32 2147483647, %v3289
        %vm3300 = vcmp.eq.f32.partialorder %v3299, 8.507059e+37
        %v3301 = vand.u32 %v3289, 2147483648
        %v3302 = vor.u32 1.1754944e-38, %v3301
        %v3303 = vsel %vm3300, %v3302, %v3298
        %v3304 = vmul.f32 1.0, %v3303
        %s3305 = sld [smem:[#allocation5 + $0x280]]
        %v3306 = vstv %s3305
        %v3307 = vmul.f32 %v3306, %v3304
        %s3308 = sld [smem:[#allocation5 + $0x281]]
        %v3309 = vstv %s3308
        %v3310 = vmul.f32 %v3309, %v3304
        %v3312 = vrot.slane %v3310, 1
        %v3314 = vadd.f32 %v3307, %v3312
        %s3315 = sld [smem:[#allocation5 + $0x282]]
        %v3316 = vstv %s3315
        %v3317 = vmul.f32 %v3316, %v3304
        %v3319 = vrot.slane %v3317, 2
        %v3321 = vadd.f32 %v3314, %v3319
        %s3322 = sld [smem:[#allocation5 + $0x283]]
        %v3323 = vstv %s3322
        %v3324 = vmul.f32 %v3323, %v3304
        %v3326 = vrot.slane %v3324, 3
        %v3328 = vadd.f32 %v3321, %v3326
        %s3329 = sld [smem:[#allocation5 + $0x284]]
        %v3330 = vstv %s3329
        %v3331 = vmul.f32 %v3330, %v3304
        %v3333 = vrot.slane %v3331, 4
        %v3335 = vadd.f32 %v3328, %v3333
        %s3336 = sld [smem:[#allocation5 + $0x285]]
        %v3337 = vstv %s3336
        %v3338 = vmul.f32 %v3337, %v3304
        %v3340 = vrot.slane %v3338, 5
        %v3342 = vadd.f32 %v3335, %v3340
        %v3343 = vadd.f32 %v3169, %v3342
        %v3344 = vmul.f32 %v3343, 0.33333334
        %v3345 = vperm.slane %v3344, 0
        %v3346 = vmul.f32 %v882, %v3345
        %vm3347 = vcmask 31744
        %3348 = vst.msk [vmem:[#allocation2] sm:$0xff] %vm3347, 0.0
        %vm3349 = vcmask 30720
        %3350 = vst.msk [vmem:[#allocation2 + $0x8] sm:$0x7f] %vm3349, 0.0
        %v3352 = vperm.slane %v883, 0
        %3353 = vrot.lane.b32.xlu0 %v3352, 3
        %v3354 = vpop.permute.xlu0 %3353
        %vm3356 = vcmask 24600
        %3357 = vst.msk [vmem:[#allocation2 + $0x4] sm:$0x1] %vm3356, %v3354
        %3358 = vrot.lane.b32.xlu0 %v3352, 2
        %v3359 = vpop.permute.xlu0 %3358
        %vm3361 = vcmask 24592
        %3362 = vst.msk [vmem:[#allocation2 + $0x5] sm:$0x1] %vm3361, %v3359
        %3363 = vrot.lane.b32.xlu0 %v3352, 1
        %v3364 = vpop.permute.xlu0 %3363
        %vm3366 = vcmask 24584
        %3367 = vst.msk [vmem:[#allocation2 + $0x6] sm:$0x1] %vm3366, %v3364
        %vm3368 = vcmask 24576
        %3369 = vst.msk [vmem:[#allocation2 + $0x7] sm:$0x1] %vm3368, %v883
        %3370 = vrot.lane.b32.xlu0 %v3352, 127
        %v3371 = vpop.permute.xlu0 %3370
        %vm3373 = vcmask 16384
        %3374 = vst.msk [vmem:[#allocation2 + $0x8] sm:$0x1] %vm3373, %v3371
        %3375 = vrot.lane.b32.xlu0 %v3352, 126
        %v3376 = vpop.permute.xlu0 %3375
        %vm3378 = vcmask 8192
        %3379 = vst.msk [vmem:[#allocation2 + $0x9] sm:$0x1] %vm3378, %v3376
        %3380 = vrot.lane.b32.xlu0 %v3352, 125
        %v3381 = vpop.permute.xlu0 %3380
        %vm3383 = vcmask 0
        %3384 = vst.msk [vmem:[#allocation2 + $0xa] sm:$0x1] %vm3383, %v3381
        %v3385 = vld [vmem:[#allocation2] sm:$0xff]
        %v3386 = vld [vmem:[#allocation2 + $0x8] sm:$0x7f]
        %v3387 = vld [vmem:[%s14] sm:$0xff]
        %v3388 = vld [vmem:[%s14 + $0x8] sm:$0xff]
        %v3389 = vld [vmem:[%s14 + $0x10] sm:$0xff]
        %v3390 = vld [vmem:[%s14 + $0x18] sm:$0xff]
        %v3391 = vld [vmem:[%s14 + $0x20] sm:$0xff]
        %v3392 = vld [vmem:[%s14 + $0x28] sm:$0xff]
        %v3393 = vld [vmem:[%s14 + $0x30] sm:$0xff]
        %v3394 = vld [vmem:[%s14 + $0x38] sm:$0xff]
        %v3395 = vld [vmem:[%s14 + $0x40] sm:$0xff]
        %v3396 = vld [vmem:[%s14 + $0x48] sm:$0xff]
        %v3397 = vld [vmem:[%s14 + $0x50] sm:$0xff]
        %v3398 = vld [vmem:[%s14 + $0x58] sm:$0xff]
        %v3399 = vld [vmem:[%s14 + $0x60] sm:$0xff]
        %v3400 = vld [vmem:[%s14 + $0x68] sm:$0xff]
        %v3401 = vld [vmem:[%s14 + $0x70] sm:$0xff]
        %v3402 = vld [vmem:[%s14 + $0x78] sm:$0xff]
        %v3403 = vld [vmem:[%s14 + $0x80] sm:$0xff]
        %v3404 = vld [vmem:[%s14 + $0x88] sm:$0xff]
        %v3405 = vld [vmem:[%s14 + $0x90] sm:$0xff]
        %v3406 = vld [vmem:[%s14 + $0x98] sm:$0xff]
        %v3407 = vld [vmem:[%s14 + $0xa0] sm:$0xff]
        %v3408 = vld [vmem:[%s14 + $0xa8] sm:$0xff]
        %v3409 = vld [vmem:[%s14 + $0xb0] sm:$0xff]
        %v3410 = vld [vmem:[%s14 + $0xb8] sm:$0xff]
        %v3411 = vld [vmem:[%s14 + $0xc0] sm:$0xff]
        %v3412 = vld [vmem:[%s14 + $0xc8] sm:$0xff]
        %v3413 = vld [vmem:[%s14 + $0xd0] sm:$0xff]
        %v3414 = vld [vmem:[%s14 + $0xd8] sm:$0xff]
        %v3415 = vld [vmem:[%s14 + $0xe0] sm:$0xff]
        %v3416 = vld [vmem:[%s14 + $0xe8] sm:$0xff]
        %v3417 = vld [vmem:[%s14 + $0xf0] sm:$0xff]
        %v3418 = vld [vmem:[%s14 + $0xf8] sm:$0xff]
        %v3419 = vld [vmem:[%s15] sm:$0xff]
        %v3420 = vld [vmem:[%s15 + $0x8] sm:$0xff]
        %v3421 = vld [vmem:[%s15 + $0x10] sm:$0xff]
        %v3422 = vld [vmem:[%s15 + $0x18] sm:$0xff]
        %v3423 = vld [vmem:[%s15 + $0x20] sm:$0xff]
        %v3424 = vld [vmem:[%s15 + $0x28] sm:$0xff]
        %v3425 = vld [vmem:[%s15 + $0x30] sm:$0xff]
        %v3426 = vld [vmem:[%s15 + $0x38] sm:$0xff]
        %v3427 = vld [vmem:[%s15 + $0x40] sm:$0xff]
        %v3428 = vld [vmem:[%s15 + $0x48] sm:$0xff]
        %v3429 = vld [vmem:[%s15 + $0x50] sm:$0xff]
        %v3430 = vld [vmem:[%s15 + $0x58] sm:$0xff]
        %v3431 = vld [vmem:[%s15 + $0x60] sm:$0xff]
        %v3432 = vld [vmem:[%s15 + $0x68] sm:$0xff]
        %v3433 = vld [vmem:[%s15 + $0x70] sm:$0xff]
        %v3434 = vld [vmem:[%s15 + $0x78] sm:$0xff]
        %v3435 = vld [vmem:[%s15 + $0x80] sm:$0xff]
        %v3436 = vld [vmem:[%s15 + $0x88] sm:$0xff]
        %v3437 = vld [vmem:[%s15 + $0x90] sm:$0xff]
        %v3438 = vld [vmem:[%s15 + $0x98] sm:$0xff]
        %v3439 = vld [vmem:[%s15 + $0xa0] sm:$0xff]
        %v3440 = vld [vmem:[%s15 + $0xa8] sm:$0xff]
        %v3441 = vld [vmem:[%s15 + $0xb0] sm:$0xff]
        %v3442 = vld [vmem:[%s15 + $0xb8] sm:$0xff]
        %v3443 = vld [vmem:[%s15 + $0xc0] sm:$0xff]
        %v3444 = vld [vmem:[%s15 + $0xc8] sm:$0xff]
        %v3445 = vld [vmem:[%s15 + $0xd0] sm:$0xff]
        %v3446 = vld [vmem:[%s15 + $0xd8] sm:$0xff]
        %v3447 = vld [vmem:[%s15 + $0xe0] sm:$0xff]
        %v3448 = vld [vmem:[%s15 + $0xe8] sm:$0xff]
        %v3449 = vld [vmem:[%s15 + $0xf0] sm:$0xff]
        %v3450 = vld [vmem:[%s15 + $0xf8] sm:$0xff]
        %3452 = vset.pattern.permute.xlu0 0
        %3453 = vperm.xlu0 %3452, %v3419
        %v3454 = vpop.permute.xlu0 %3453
        %3457 = vset.pattern.permute.xlu0 0
        %3458 = vperm.xlu0 %3457, %v3420
        %v3459 = vpop.permute.xlu0 %3458
        %3462 = vset.pattern.permute.xlu0 0
        %3463 = vperm.xlu0 %3462, %v3421
        %v3464 = vpop.permute.xlu0 %3463
        %3467 = vset.pattern.permute.xlu0 0
        %3468 = vperm.xlu0 %3467, %v3422
        %v3469 = vpop.permute.xlu0 %3468
        %3472 = vset.pattern.permute.xlu0 0
        %3473 = vperm.xlu0 %3472, %v3423
        %v3474 = vpop.permute.xlu0 %3473
        %3477 = vset.pattern.permute.xlu0 0
        %3478 = vperm.xlu0 %3477, %v3424
        %v3479 = vpop.permute.xlu0 %3478
        %3482 = vset.pattern.permute.xlu0 0
        %3483 = vperm.xlu0 %3482, %v3425
        %v3484 = vpop.permute.xlu0 %3483
        %3487 = vset.pattern.permute.xlu0 0
        %3488 = vperm.xlu0 %3487, %v3426
        %v3489 = vpop.permute.xlu0 %3488
        %3492 = vset.pattern.permute.xlu0 0
        %3493 = vperm.xlu0 %3492, %v3427
        %v3494 = vpop.permute.xlu0 %3493
        %3497 = vset.pattern.permute.xlu0 0
        %3498 = vperm.xlu0 %3497, %v3428
        %v3499 = vpop.permute.xlu0 %3498
        %3502 = vset.pattern.permute.xlu0 0
        %3503 = vperm.xlu0 %3502, %v3429
        %v3504 = vpop.permute.xlu0 %3503
        %3507 = vset.pattern.permute.xlu0 0
        %3508 = vperm.xlu0 %3507, %v3430
        %v3509 = vpop.permute.xlu0 %3508
        %3512 = vset.pattern.permute.xlu0 0
        %3513 = vperm.xlu0 %3512, %v3431
        %v3514 = vpop.permute.xlu0 %3513
        %3517 = vset.pattern.permute.xlu0 0
        %3518 = vperm.xlu0 %3517, %v3432
        %v3519 = vpop.permute.xlu0 %3518
        %3522 = vset.pattern.permute.xlu0 0
        %3523 = vperm.xlu0 %3522, %v3433
        %v3524 = vpop.permute.xlu0 %3523
        %3527 = vset.pattern.permute.xlu0 0
        %3528 = vperm.xlu0 %3527, %v3434
        %v3529 = vpop.permute.xlu0 %3528
        %3532 = vset.pattern.permute.xlu0 0
        %3533 = vperm.xlu0 %3532, %v3435
        %v3534 = vpop.permute.xlu0 %3533
        %3537 = vset.pattern.permute.xlu0 0
        %3538 = vperm.xlu0 %3537, %v3436
        %v3539 = vpop.permute.xlu0 %3538
        %3542 = vset.pattern.permute.xlu0 0
        %3543 = vperm.xlu0 %3542, %v3437
        %v3544 = vpop.permute.xlu0 %3543
        %3547 = vset.pattern.permute.xlu0 0
        %3548 = vperm.xlu0 %3547, %v3438
        %v3549 = vpop.permute.xlu0 %3548
        %3552 = vset.pattern.permute.xlu0 0
        %3553 = vperm.xlu0 %3552, %v3439
        %v3554 = vpop.permute.xlu0 %3553
        %3557 = vset.pattern.permute.xlu0 0
        %3558 = vperm.xlu0 %3557, %v3440
        %v3559 = vpop.permute.xlu0 %3558
        %3562 = vset.pattern.permute.xlu0 0
        %3563 = vperm.xlu0 %3562, %v3441
        %v3564 = vpop.permute.xlu0 %3563
        %3567 = vset.pattern.permute.xlu0 0
        %3568 = vperm.xlu0 %3567, %v3442
        %v3569 = vpop.permute.xlu0 %3568
        %3572 = vset.pattern.permute.xlu0 0
        %3573 = vperm.xlu0 %3572, %v3443
        %v3574 = vpop.permute.xlu0 %3573
        %3577 = vset.pattern.permute.xlu0 0
        %3578 = vperm.xlu0 %3577, %v3444
        %v3579 = vpop.permute.xlu0 %3578
        %3582 = vset.pattern.permute.xlu0 0
        %3583 = vperm.xlu0 %3582, %v3445
        %v3584 = vpop.permute.xlu0 %3583
        %3587 = vset.pattern.permute.xlu0 0
        %3588 = vperm.xlu0 %3587, %v3446
        %v3589 = vpop.permute.xlu0 %3588
        %3592 = vset.pattern.permute.xlu0 0
        %3593 = vperm.xlu0 %3592, %v3447
        %v3594 = vpop.permute.xlu0 %3593
        %3597 = vset.pattern.permute.xlu0 0
        %3598 = vperm.xlu0 %3597, %v3448
        %v3599 = vpop.permute.xlu0 %3598
        %3602 = vset.pattern.permute.xlu0 0
        %3603 = vperm.xlu0 %3602, %v3449
        %v3604 = vpop.permute.xlu0 %3603
        %3607 = vset.pattern.permute.xlu0 0
        %3608 = vperm.xlu0 %3607, %v3450
        %v3609 = vpop.permute.xlu0 %3608
        %v3612 = vsel %vm1513, %v3387, 0
        %v3615 = vsel %vm1513, %v3388, 0
        %v3618 = vsel %vm1513, %v3389, 0
        %v3621 = vsel %vm1513, %v3390, 0
        %v3624 = vsel %vm1513, %v3391, 0
        %v3627 = vsel %vm1513, %v3392, 0
        %v3630 = vsel %vm1513, %v3393, 0
        %v3633 = vsel %vm1513, %v3394, 0
        %v3636 = vsel %vm1513, %v3395, 0
        %v3639 = vsel %vm1513, %v3396, 0
        %v3642 = vsel %vm1513, %v3397, 0
        %v3645 = vsel %vm1513, %v3398, 0
        %v3648 = vsel %vm1513, %v3399, 0
        %v3651 = vsel %vm1513, %v3400, 0
        %v3654 = vsel %vm1513, %v3401, 0
        %v3657 = vsel %vm1513, %v3402, 0
        %v3660 = vsel %vm1513, %v3403, 0
        %v3663 = vsel %vm1513, %v3404, 0
        %v3666 = vsel %vm1513, %v3405, 0
        %v3669 = vsel %vm1513, %v3406, 0
        %v3672 = vsel %vm1513, %v3407, 0
        %v3675 = vsel %vm1513, %v3408, 0
        %v3678 = vsel %vm1513, %v3409, 0
        %v3681 = vsel %vm1513, %v3410, 0
        %v3684 = vsel %vm1513, %v3411, 0
        %v3687 = vsel %vm1513, %v3412, 0
        %v3690 = vsel %vm1513, %v3413, 0
        %v3693 = vsel %vm1513, %v3414, 0
        %v3696 = vsel %vm1513, %v3415, 0
        %v3699 = vsel %vm1513, %v3416, 0
        %v3702 = vsel %vm1513, %v3417, 0
        %v3705 = vsel %vm1513, %v3418, 0
        %vm3707 = vcmask 1046528
        %v3709 = vsel %vm3707, %v3386, 0
        %3711 = vmatpush.msra.mxu0 0.0
        %3712 = vmatpush.msra.mxu0 0.0
        %3713 = vmatpush.msra.mxu0 0.0
        %3714 = vmatpush.msra.mxu0 0.0
        %3715 = vmatpush.msra.mxu0 0.0
        %3716 = vmatpush.msra.mxu0 0.0
        %3717 = vmatpush.msra.mxu0 0.0
        %3718 = vmatpush.msra.mxu0 0.0
        %3719 = vmatpush.msra.mxu0 0.0
        %3720 = vmatpush.msra.mxu0 0.0
        %3721 = vmatpush.msra.mxu0 0.0
        %3722 = vmatpush.msra.mxu0 0.0
        %3723 = vmatpush.msra.mxu0 0.0
        %3724 = vmatpush.msra.mxu0 0.0
        %3725 = vmatpush.msra.mxu0 %v3709
        %3726 = vmatpush.msra.mxu0 %v3385
        %3727 = vmatmul.f32.gmra.mxu0 %v3612
        %v3728 = vpop.f32.mrf.mxu0
        %v3729 = vadd.f32 %v3454, %v3728
        %3730 = vmatmul.f32.gmra.mxu0 %v3615
        %v3731 = vpop.f32.mrf.mxu0
        %v3732 = vadd.f32 %v3459, %v3731
        %3733 = vmatmul.f32.gmra.mxu0 %v3618
        %v3734 = vpop.f32.mrf.mxu0
        %v3735 = vadd.f32 %v3464, %v3734
        %3736 = vmatmul.f32.gmra.mxu0 %v3621
        %v3737 = vpop.f32.mrf.mxu0
        %v3738 = vadd.f32 %v3469, %v3737
        %3739 = vmatmul.f32.gmra.mxu0 %v3624
        %v3740 = vpop.f32.mrf.mxu0
        %v3741 = vadd.f32 %v3474, %v3740
        %3742 = vmatmul.f32.gmra.mxu0 %v3627
        %v3743 = vpop.f32.mrf.mxu0
        %v3744 = vadd.f32 %v3479, %v3743
        %3745 = vmatmul.f32.gmra.mxu0 %v3630
        %v3746 = vpop.f32.mrf.mxu0
        %v3747 = vadd.f32 %v3484, %v3746
        %3748 = vmatmul.f32.gmra.mxu0 %v3633
        %v3749 = vpop.f32.mrf.mxu0
        %v3750 = vadd.f32 %v3489, %v3749
        %3751 = vmatmul.f32.gmra.mxu0 %v3636
        %v3752 = vpop.f32.mrf.mxu0
        %v3753 = vadd.f32 %v3494, %v3752
        %3754 = vmatmul.f32.gmra.mxu0 %v3639
        %v3755 = vpop.f32.mrf.mxu0
        %v3756 = vadd.f32 %v3499, %v3755
        %3757 = vmatmul.f32.gmra.mxu0 %v3642
        %v3758 = vpop.f32.mrf.mxu0
        %v3759 = vadd.f32 %v3504, %v3758
        %3760 = vmatmul.f32.gmra.mxu0 %v3645
        %v3761 = vpop.f32.mrf.mxu0
        %v3762 = vadd.f32 %v3509, %v3761
        %3763 = vmatmul.f32.gmra.mxu0 %v3648
        %v3764 = vpop.f32.mrf.mxu0
        %v3765 = vadd.f32 %v3514, %v3764
        %3766 = vmatmul.f32.gmra.mxu0 %v3651
        %v3767 = vpop.f32.mrf.mxu0
        %v3768 = vadd.f32 %v3519, %v3767
        %3769 = vmatmul.f32.gmra.mxu0 %v3654
        %v3770 = vpop.f32.mrf.mxu0
        %v3771 = vadd.f32 %v3524, %v3770
        %3772 = vmatmul.f32.gmra.mxu0 %v3657
        %v3773 = vpop.f32.mrf.mxu0
        %v3774 = vadd.f32 %v3529, %v3773
        %3775 = vmatmul.f32.gmra.mxu0 %v3660
        %v3776 = vpop.f32.mrf.mxu0
        %v3777 = vadd.f32 %v3534, %v3776
        %3778 = vmatmul.f32.gmra.mxu0 %v3663
        %v3779 = vpop.f32.mrf.mxu0
        %v3780 = vadd.f32 %v3539, %v3779
        %3781 = vmatmul.f32.gmra.mxu0 %v3666
        %v3782 = vpop.f32.mrf.mxu0
        %v3783 = vadd.f32 %v3544, %v3782
        %3784 = vmatmul.f32.gmra.mxu0 %v3669
        %v3785 = vpop.f32.mrf.mxu0
        %v3786 = vadd.f32 %v3549, %v3785
        %3787 = vmatmul.f32.gmra.mxu0 %v3672
        %v3788 = vpop.f32.mrf.mxu0
        %v3789 = vadd.f32 %v3554, %v3788
        %3790 = vmatmul.f32.gmra.mxu0 %v3675
        %v3791 = vpop.f32.mrf.mxu0
        %v3792 = vadd.f32 %v3559, %v3791
        %3793 = vmatmul.f32.gmra.mxu0 %v3678
        %v3794 = vpop.f32.mrf.mxu0
        %v3795 = vadd.f32 %v3564, %v3794
        %3796 = vmatmul.f32.gmra.mxu0 %v3681
        %v3797 = vpop.f32.mrf.mxu0
        %v3798 = vadd.f32 %v3569, %v3797
        %3799 = vmatmul.f32.gmra.mxu0 %v3684
        %v3800 = vpop.f32.mrf.mxu0
        %v3801 = vadd.f32 %v3574, %v3800
        %3802 = vmatmul.f32.gmra.mxu0 %v3687
        %v3803 = vpop.f32.mrf.mxu0
        %v3804 = vadd.f32 %v3579, %v3803
        %3805 = vmatmul.f32.gmra.mxu0 %v3690
        %v3806 = vpop.f32.mrf.mxu0
        %v3807 = vadd.f32 %v3584, %v3806
        %3808 = vmatmul.f32.gmra.mxu0 %v3693
        %v3809 = vpop.f32.mrf.mxu0
        %v3810 = vadd.f32 %v3589, %v3809
        %3811 = vmatmul.f32.gmra.mxu0 %v3696
        %v3812 = vpop.f32.mrf.mxu0
        %v3813 = vadd.f32 %v3594, %v3812
        %3814 = vmatmul.f32.gmra.mxu0 %v3699
        %v3815 = vpop.f32.mrf.mxu0
        %v3816 = vadd.f32 %v3599, %v3815
        %3817 = vmatmul.f32.gmra.mxu0 %v3702
        %v3818 = vpop.f32.mrf.mxu0
        %v3819 = vadd.f32 %v3604, %v3818
        %3820 = vmatmul.f32.gmra.mxu0 %v3705
        %v3821 = vpop.f32.mrf.mxu0
        %v3822 = vadd.f32 %v3609, %v3821
        %3823 = vdwg.mxu0
        %v3824 = vmax.f32 %v3729, 0.0
        %v3825 = vmax.f32 %v3732, 0.0
        %v3826 = vmax.f32 %v3735, 0.0
        %v3827 = vmax.f32 %v3738, 0.0
        %v3828 = vmax.f32 %v3741, 0.0
        %v3829 = vmax.f32 %v3744, 0.0
        %v3830 = vmax.f32 %v3747, 0.0
        %v3831 = vmax.f32 %v3750, 0.0
        %v3832 = vmax.f32 %v3753, 0.0
        %v3833 = vmax.f32 %v3756, 0.0
        %v3834 = vmax.f32 %v3759, 0.0
        %v3835 = vmax.f32 %v3762, 0.0
        %v3836 = vmax.f32 %v3765, 0.0
        %v3837 = vmax.f32 %v3768, 0.0
        %v3838 = vmax.f32 %v3771, 0.0
        %v3839 = vmax.f32 %v3774, 0.0
        %v3840 = vmax.f32 %v3777, 0.0
        %v3841 = vmax.f32 %v3780, 0.0
        %v3842 = vmax.f32 %v3783, 0.0
        %v3843 = vmax.f32 %v3786, 0.0
        %v3844 = vmax.f32 %v3789, 0.0
        %v3845 = vmax.f32 %v3792, 0.0
        %v3846 = vmax.f32 %v3795, 0.0
        %v3847 = vmax.f32 %v3798, 0.0
        %v3848 = vmax.f32 %v3801, 0.0
        %v3849 = vmax.f32 %v3804, 0.0
        %v3850 = vmax.f32 %v3807, 0.0
        %v3851 = vmax.f32 %v3810, 0.0
        %v3852 = vmax.f32 %v3813, 0.0
        %v3853 = vmax.f32 %v3816, 0.0
        %v3854 = vmax.f32 %v3819, 0.0
        %v3855 = vmax.f32 %v3822, 0.0
        %s3856 = sld [smem:[#allocation8]]
        %v3857 = vstv %s3856
        %v3858 = vmul.f32 %v3857, %v3824
        %v3859 = vmul.f32 %v3857, %v3825
        %v3860 = vmul.f32 %v3857, %v3826
        %v3861 = vmul.f32 %v3857, %v3827
        %s3862 = sld [smem:[#allocation8 + $0x1]]
        %v3863 = vstv %s3862
        %v3864 = vmul.f32 %v3863, %v3828
        %v3865 = vmul.f32 %v3863, %v3829
        %v3866 = vmul.f32 %v3863, %v3830
        %v3867 = vmul.f32 %v3863, %v3831
        %v3868 = vadd.f32 %v3858, %v3864
        %v3869 = vadd.f32 %v3859, %v3865
        %v3870 = vadd.f32 %v3860, %v3866
        %v3871 = vadd.f32 %v3861, %v3867
        %s3872 = sld [smem:[#allocation8 + $0x2]]
        %v3873 = vstv %s3872
        %v3874 = vmul.f32 %v3873, %v3832
        %v3875 = vmul.f32 %v3873, %v3833
        %v3876 = vmul.f32 %v3873, %v3834
        %v3877 = vmul.f32 %v3873, %v3835
        %v3878 = vadd.f32 %v3868, %v3874
        %v3879 = vadd.f32 %v3869, %v3875
        %v3880 = vadd.f32 %v3870, %v3876
        %v3881 = vadd.f32 %v3871, %v3877
        %s3882 = sld [smem:[#allocation8 + $0x3]]
        %v3883 = vstv %s3882
        %v3884 = vmul.f32 %v3883, %v3836
        %v3885 = vmul.f32 %v3883, %v3837
        %v3886 = vmul.f32 %v3883, %v3838
        %v3887 = vmul.f32 %v3883, %v3839
        %v3888 = vadd.f32 %v3878, %v3884
        %v3889 = vadd.f32 %v3879, %v3885
        %v3890 = vadd.f32 %v3880, %v3886
        %v3891 = vadd.f32 %v3881, %v3887
        %s3892 = sld [smem:[#allocation8 + $0x4]]
        %v3893 = vstv %s3892
        %v3894 = vmul.f32 %v3893, %v3840
        %v3895 = vmul.f32 %v3893, %v3841
        %v3896 = vmul.f32 %v3893, %v3842
        %v3897 = vmul.f32 %v3893, %v3843
        %v3898 = vadd.f32 %v3888, %v3894
        %v3899 = vadd.f32 %v3889, %v3895
        %v3900 = vadd.f32 %v3890, %v3896
        %v3901 = vadd.f32 %v3891, %v3897
        %s3902 = sld [smem:[#allocation8 + $0x5]]
        %v3903 = vstv %s3902
        %v3904 = vmul.f32 %v3903, %v3844
        %v3905 = vmul.f32 %v3903, %v3845
        %v3906 = vmul.f32 %v3903, %v3846
        %v3907 = vmul.f32 %v3903, %v3847
        %v3908 = vadd.f32 %v3898, %v3904
        %v3909 = vadd.f32 %v3899, %v3905
        %v3910 = vadd.f32 %v3900, %v3906
        %v3911 = vadd.f32 %v3901, %v3907
        %s3912 = sld [smem:[#allocation8 + $0x6]]
        %v3913 = vstv %s3912
        %v3914 = vmul.f32 %v3913, %v3848
        %v3915 = vmul.f32 %v3913, %v3849
        %v3916 = vmul.f32 %v3913, %v3850
        %v3917 = vmul.f32 %v3913, %v3851
        %v3918 = vadd.f32 %v3908, %v3914
        %v3919 = vadd.f32 %v3909, %v3915
        %v3920 = vadd.f32 %v3910, %v3916
        %v3921 = vadd.f32 %v3911, %v3917
        %s3922 = sld [smem:[#allocation8 + $0x7]]
        %v3923 = vstv %s3922
        %v3924 = vmul.f32 %v3923, %v3852
        %v3925 = vmul.f32 %v3923, %v3853
        %v3926 = vmul.f32 %v3923, %v3854
        %v3927 = vmul.f32 %v3923, %v3855
        %v3928 = vadd.f32 %v3918, %v3924
        %v3929 = vadd.f32 %v3919, %v3925
        %v3930 = vadd.f32 %v3920, %v3926
        %v3931 = vadd.f32 %v3921, %v3927
        %3932 = vst.msk [vmem:[#allocation3] sm:$0xff] %vm3347, 0.0
        %3933 = vst.msk [vmem:[#allocation3 + $0x8] sm:$0xff] %vm3347, 0.0
        %3934 = vst.msk [vmem:[#allocation3 + $0x10] sm:$0xff] %vm3347, 0.0
        %3935 = vst.msk [vmem:[#allocation3 + $0x18] sm:$0xff] %vm3347, 0.0
        %3936 = vst.msk [vmem:[#allocation3 + $0x20] sm:$0xff] %vm3347, 0.0
        %3937 = vst.msk [vmem:[#allocation3 + $0x28] sm:$0xff] %vm3347, 0.0
        %3938 = vst.msk [vmem:[#allocation3 + $0x30] sm:$0xff] %vm3347, 0.0
        %3939 = vst.msk [vmem:[#allocation3 + $0x38] sm:$0xff] %vm3347, 0.0
        %3940 = vst.msk [vmem:[#allocation3 + $0x40] sm:$0xff] %vm3347, 0.0
        %3941 = vst.msk [vmem:[#allocation3 + $0x48] sm:$0xff] %vm3347, 0.0
        %3942 = vst.msk [vmem:[#allocation3 + $0x50] sm:$0xff] %vm3347, 0.0
        %3943 = vst.msk [vmem:[#allocation3 + $0x58] sm:$0xff] %vm3347, 0.0
        %3944 = vst.msk [vmem:[#allocation3 + $0x60] sm:$0xff] %vm3347, 0.0
        %3945 = vst.msk [vmem:[#allocation3 + $0x68] sm:$0xff] %vm3347, 0.0
        %3946 = vst.msk [vmem:[#allocation3 + $0x70] sm:$0xff] %vm3347, 0.0
        %3947 = vst.msk [vmem:[#allocation3 + $0x78] sm:$0xff] %vm3347, 0.0
        %3948 = vst.msk [vmem:[#allocation3 + $0x80] sm:$0xff] %vm3347, 0.0
        %3949 = vst.msk [vmem:[#allocation3 + $0x88] sm:$0xff] %vm3347, 0.0
        %3950 = vst.msk [vmem:[#allocation3 + $0x90] sm:$0xff] %vm3347, 0.0
        %3951 = vst.msk [vmem:[#allocation3 + $0x98] sm:$0xff] %vm3347, 0.0
        %3952 = vst.msk [vmem:[#allocation3 + $0xa0] sm:$0xff] %vm3347, 0.0
        %3953 = vst.msk [vmem:[#allocation3 + $0xa8] sm:$0xff] %vm3347, 0.0
        %3954 = vst.msk [vmem:[#allocation3 + $0xb0] sm:$0xff] %vm3347, 0.0
        %3955 = vst.msk [vmem:[#allocation3 + $0xb8] sm:$0xff] %vm3347, 0.0
        %3956 = vst.msk [vmem:[#allocation3 + $0xc0] sm:$0xff] %vm3347, 0.0
        %3957 = vst.msk [vmem:[#allocation3 + $0xc8] sm:$0xff] %vm3347, 0.0
        %3958 = vst.msk [vmem:[#allocation3 + $0xd0] sm:$0xff] %vm3347, 0.0
        %3959 = vst.msk [vmem:[#allocation3 + $0xd8] sm:$0xff] %vm3347, 0.0
        %3960 = vst.msk [vmem:[#allocation3 + $0xe0] sm:$0xff] %vm3347, 0.0
        %3961 = vst.msk [vmem:[#allocation3 + $0xe8] sm:$0xff] %vm3347, 0.0
        %3962 = vst.msk [vmem:[#allocation3 + $0xf0] sm:$0xff] %vm3347, 0.0
        %3963 = vst.msk [vmem:[#allocation3 + $0xf8] sm:$0xff] %vm3347, 0.0
        %3964 = vst.msk [vmem:[#allocation3 + $0x100] sm:$0xff] %vm3347, 0.0
        %3965 = vst.msk [vmem:[#allocation3 + $0x108] sm:$0xff] %vm3347, 0.0
        %3966 = vst.msk [vmem:[#allocation3 + $0x110] sm:$0xff] %vm3347, 0.0
        %3967 = vst.msk [vmem:[#allocation3 + $0x118] sm:$0xff] %vm3347, 0.0
        %3968 = vst.msk [vmem:[#allocation3 + $0x120] sm:$0xff] %vm3347, 0.0
        %3969 = vst.msk [vmem:[#allocation3 + $0x128] sm:$0xff] %vm3347, 0.0
        %3970 = vst.msk [vmem:[#allocation3 + $0x130] sm:$0xff] %vm3347, 0.0
        %3971 = vst.msk [vmem:[#allocation3 + $0x138] sm:$0xff] %vm3347, 0.0
        %3972 = vst.msk [vmem:[#allocation3 + $0x140] sm:$0xff] %vm3347, 0.0
        %3973 = vst.msk [vmem:[#allocation3 + $0x148] sm:$0xff] %vm3347, 0.0
        %3974 = vst.msk [vmem:[#allocation3 + $0x150] sm:$0xff] %vm3347, 0.0
        %3975 = vst.msk [vmem:[#allocation3 + $0x158] sm:$0xff] %vm3347, 0.0
        %3976 = vst.msk [vmem:[#allocation3 + $0x160] sm:$0xff] %vm3347, 0.0
        %3977 = vst.msk [vmem:[#allocation3 + $0x168] sm:$0xff] %vm3347, 0.0
        %3978 = vst.msk [vmem:[#allocation3 + $0x170] sm:$0xff] %vm3347, 0.0
        %3979 = vst.msk [vmem:[#allocation3 + $0x178] sm:$0xff] %vm3347, 0.0
        %3980 = vst.msk [vmem:[#allocation3 + $0x180] sm:$0xff] %vm3347, 0.0
        %3981 = vst.msk [vmem:[#allocation3 + $0x188] sm:$0xff] %vm3347, 0.0
        %3982 = vst.msk [vmem:[#allocation3 + $0x190] sm:$0xff] %vm3347, 0.0
        %3983 = vst.msk [vmem:[#allocation3 + $0x198] sm:$0xff] %vm3347, 0.0
        %3984 = vst.msk [vmem:[#allocation3 + $0x1a0] sm:$0xff] %vm3347, 0.0
        %3985 = vst.msk [vmem:[#allocation3 + $0x1a8] sm:$0xff] %vm3347, 0.0
        %3986 = vst.msk [vmem:[#allocation3 + $0x1b0] sm:$0xff] %vm3347, 0.0
        %3987 = vst.msk [vmem:[#allocation3 + $0x1b8] sm:$0xff] %vm3347, 0.0
        %3988 = vst.msk [vmem:[#allocation3 + $0x1c0] sm:$0xff] %vm3347, 0.0
        %3989 = vst.msk [vmem:[#allocation3 + $0x1c8] sm:$0xff] %vm3347, 0.0
        %3990 = vst.msk [vmem:[#allocation3 + $0x1d0] sm:$0xff] %vm3347, 0.0
        %3991 = vst.msk [vmem:[#allocation3 + $0x1d8] sm:$0xff] %vm3347, 0.0
        %3996 = vrot.lane.b32.xlu0 %v3928, 3
        %v3997 = vpop.permute.xlu0 %3996
        %3998 = vrot.lane.b32.xlu0 %v3929, 3
        %v3999 = vpop.permute.xlu0 %3998
        %4000 = vrot.lane.b32.xlu0 %v3930, 3
        %v4001 = vpop.permute.xlu0 %4000
        %4002 = vrot.lane.b32.xlu0 %v3931, 3
        %v4003 = vpop.permute.xlu0 %4002
        %vm4008 = vcmask 31768
        %4009 = vst.msk [vmem:[#allocation3 + $0x80] sm:$0xff] %vm4008, %v3997
        %4010 = vst.msk [vmem:[#allocation3 + $0x88] sm:$0xff] %vm4008, %v3999
        %4011 = vst.msk [vmem:[#allocation3 + $0x90] sm:$0xff] %vm4008, %v4001
        %4012 = vst.msk [vmem:[#allocation3 + $0x98] sm:$0xff] %vm4008, %v4003
        %4013 = vrot.lane.b32.xlu0 %v3928, 2
        %v4014 = vpop.permute.xlu0 %4013
        %4015 = vrot.lane.b32.xlu0 %v3929, 2
        %v4016 = vpop.permute.xlu0 %4015
        %4017 = vrot.lane.b32.xlu0 %v3930, 2
        %v4018 = vpop.permute.xlu0 %4017
        %4019 = vrot.lane.b32.xlu0 %v3931, 2
        %v4020 = vpop.permute.xlu0 %4019
        %vm4025 = vcmask 31760
        %4026 = vst.msk [vmem:[#allocation3 + $0xa0] sm:$0xff] %vm4025, %v4014
        %4027 = vst.msk [vmem:[#allocation3 + $0xa8] sm:$0xff] %vm4025, %v4016
        %4028 = vst.msk [vmem:[#allocation3 + $0xb0] sm:$0xff] %vm4025, %v4018
        %4029 = vst.msk [vmem:[#allocation3 + $0xb8] sm:$0xff] %vm4025, %v4020
        %4030 = vrot.lane.b32.xlu0 %v3928, 1
        %v4031 = vpop.permute.xlu0 %4030
        %4032 = vrot.lane.b32.xlu0 %v3929, 1
        %v4033 = vpop.permute.xlu0 %4032
        %4034 = vrot.lane.b32.xlu0 %v3930, 1
        %v4035 = vpop.permute.xlu0 %4034
        %4036 = vrot.lane.b32.xlu0 %v3931, 1
        %v4037 = vpop.permute.xlu0 %4036
        %vm4042 = vcmask 31752
        %4043 = vst.msk [vmem:[#allocation3 + $0xc0] sm:$0xff] %vm4042, %v4031
        %4044 = vst.msk [vmem:[#allocation3 + $0xc8] sm:$0xff] %vm4042, %v4033
        %4045 = vst.msk [vmem:[#allocation3 + $0xd0] sm:$0xff] %vm4042, %v4035
        %4046 = vst.msk [vmem:[#allocation3 + $0xd8] sm:$0xff] %vm4042, %v4037
        %4047 = vst.msk [vmem:[#allocation3 + $0xe0] sm:$0xff] %vm3347, %v3928
        %4048 = vst.msk [vmem:[#allocation3 + $0xe8] sm:$0xff] %vm3347, %v3929
        %4049 = vst.msk [vmem:[#allocation3 + $0xf0] sm:$0xff] %vm3347, %v3930
        %4050 = vst.msk [vmem:[#allocation3 + $0xf8] sm:$0xff] %vm3347, %v3931
        %4051 = vrot.lane.b32.xlu0 %v3928, 127
        %v4052 = vpop.permute.xlu0 %4051
        %4053 = vrot.lane.b32.xlu0 %v3929, 127
        %v4054 = vpop.permute.xlu0 %4053
        %4055 = vrot.lane.b32.xlu0 %v3930, 127
        %v4056 = vpop.permute.xlu0 %4055
        %4057 = vrot.lane.b32.xlu0 %v3931, 127
        %v4058 = vpop.permute.xlu0 %4057
        %vm4063 = vcmask 23552
        %4064 = vst.msk [vmem:[#allocation3 + $0x100] sm:$0xff] %vm4063, %v4052
        %4065 = vst.msk [vmem:[#allocation3 + $0x108] sm:$0xff] %vm4063, %v4054
        %4066 = vst.msk [vmem:[#allocation3 + $0x110] sm:$0xff] %vm4063, %v4056
        %4067 = vst.msk [vmem:[#allocation3 + $0x118] sm:$0xff] %vm4063, %v4058
        %4068 = vrot.lane.b32.xlu0 %v3928, 126
        %v4069 = vpop.permute.xlu0 %4068
        %4070 = vrot.lane.b32.xlu0 %v3929, 126
        %v4071 = vpop.permute.xlu0 %4070
        %4072 = vrot.lane.b32.xlu0 %v3930, 126
        %v4073 = vpop.permute.xlu0 %4072
        %4074 = vrot.lane.b32.xlu0 %v3931, 126
        %v4075 = vpop.permute.xlu0 %4074
        %vm4080 = vcmask 15360
        %4081 = vst.msk [vmem:[#allocation3 + $0x120] sm:$0xff] %vm4080, %v4069
        %4082 = vst.msk [vmem:[#allocation3 + $0x128] sm:$0xff] %vm4080, %v4071
        %4083 = vst.msk [vmem:[#allocation3 + $0x130] sm:$0xff] %vm4080, %v4073
        %4084 = vst.msk [vmem:[#allocation3 + $0x138] sm:$0xff] %vm4080, %v4075
        %4085 = vrot.lane.b32.xlu0 %v3928, 125
        %v4086 = vpop.permute.xlu0 %4085
        %4087 = vrot.lane.b32.xlu0 %v3929, 125
        %v4088 = vpop.permute.xlu0 %4087
        %4089 = vrot.lane.b32.xlu0 %v3930, 125
        %v4090 = vpop.permute.xlu0 %4089
        %4091 = vrot.lane.b32.xlu0 %v3931, 125
        %v4092 = vpop.permute.xlu0 %4091
        %vm4097 = vcmask 7168
        %4098 = vst.msk [vmem:[#allocation3 + $0x140] sm:$0xff] %vm4097, %v4086
        %4099 = vst.msk [vmem:[#allocation3 + $0x148] sm:$0xff] %vm4097, %v4088
        %4100 = vst.msk [vmem:[#allocation3 + $0x150] sm:$0xff] %vm4097, %v4090
        %4101 = vst.msk [vmem:[#allocation3 + $0x158] sm:$0xff] %vm4097, %v4092
        %v4102 = vld [vmem:[#allocation2] sm:$0xff]
        %v4103 = vld [vmem:[#allocation2 + $0x8] sm:$0x7f]
        %v4104 = vld [vmem:[%s16] sm:$0xff]
        %v4105 = vld [vmem:[%s16 + $0x8] sm:$0xff]
        %v4106 = vld [vmem:[%s16 + $0x10] sm:$0xff]
        %v4107 = vld [vmem:[%s16 + $0x18] sm:$0xff]
        %v4108 = vld [vmem:[%s16 + $0x20] sm:$0xff]
        %v4109 = vld [vmem:[%s16 + $0x28] sm:$0xff]
        %v4110 = vld [vmem:[%s16 + $0x30] sm:$0xff]
        %v4111 = vld [vmem:[%s16 + $0x38] sm:$0xff]
        %v4112 = vld [vmem:[%s16 + $0x40] sm:$0xff]
        %v4113 = vld [vmem:[%s16 + $0x48] sm:$0xff]
        %v4114 = vld [vmem:[%s16 + $0x50] sm:$0xff]
        %v4115 = vld [vmem:[%s16 + $0x58] sm:$0xff]
        %v4116 = vld [vmem:[%s16 + $0x60] sm:$0xff]
        %v4117 = vld [vmem:[%s16 + $0x68] sm:$0xff]
        %v4118 = vld [vmem:[%s16 + $0x70] sm:$0xff]
        %v4119 = vld [vmem:[%s16 + $0x78] sm:$0xff]
        %v4120 = vld [vmem:[%s16 + $0x80] sm:$0xff]
        %v4121 = vld [vmem:[%s16 + $0x88] sm:$0xff]
        %v4122 = vld [vmem:[%s16 + $0x90] sm:$0xff]
        %v4123 = vld [vmem:[%s16 + $0x98] sm:$0xff]
        %v4124 = vld [vmem:[%s16 + $0xa0] sm:$0xff]
        %v4125 = vld [vmem:[%s16 + $0xa8] sm:$0xff]
        %v4126 = vld [vmem:[%s16 + $0xb0] sm:$0xff]
        %v4127 = vld [vmem:[%s16 + $0xb8] sm:$0xff]
        %v4128 = vld [vmem:[%s16 + $0xc0] sm:$0xff]
        %v4129 = vld [vmem:[%s16 + $0xc8] sm:$0xff]
        %v4130 = vld [vmem:[%s16 + $0xd0] sm:$0xff]
        %v4131 = vld [vmem:[%s16 + $0xd8] sm:$0xff]
        %v4132 = vld [vmem:[%s16 + $0xe0] sm:$0xff]
        %v4133 = vld [vmem:[%s16 + $0xe8] sm:$0xff]
        %v4134 = vld [vmem:[%s16 + $0xf0] sm:$0xff]
        %v4135 = vld [vmem:[%s16 + $0xf8] sm:$0xff]
        %v4136 = vld [vmem:[%s17] sm:$0xff]
        %v4137 = vld [vmem:[%s17 + $0x8] sm:$0xff]
        %v4138 = vld [vmem:[%s17 + $0x10] sm:$0xff]
        %v4139 = vld [vmem:[%s17 + $0x18] sm:$0xff]
        %v4140 = vld [vmem:[%s17 + $0x20] sm:$0xff]
        %v4141 = vld [vmem:[%s17 + $0x28] sm:$0xff]
        %v4142 = vld [vmem:[%s17 + $0x30] sm:$0xff]
        %v4143 = vld [vmem:[%s17 + $0x38] sm:$0xff]
        %v4144 = vld [vmem:[%s17 + $0x40] sm:$0xff]
        %v4145 = vld [vmem:[%s17 + $0x48] sm:$0xff]
        %v4146 = vld [vmem:[%s17 + $0x50] sm:$0xff]
        %v4147 = vld [vmem:[%s17 + $0x58] sm:$0xff]
        %v4148 = vld [vmem:[%s17 + $0x60] sm:$0xff]
        %v4149 = vld [vmem:[%s17 + $0x68] sm:$0xff]
        %v4150 = vld [vmem:[%s17 + $0x70] sm:$0xff]
        %v4151 = vld [vmem:[%s17 + $0x78] sm:$0xff]
        %v4152 = vld [vmem:[%s17 + $0x80] sm:$0xff]
        %v4153 = vld [vmem:[%s17 + $0x88] sm:$0xff]
        %v4154 = vld [vmem:[%s17 + $0x90] sm:$0xff]
        %v4155 = vld [vmem:[%s17 + $0x98] sm:$0xff]
        %v4156 = vld [vmem:[%s17 + $0xa0] sm:$0xff]
        %v4157 = vld [vmem:[%s17 + $0xa8] sm:$0xff]
        %v4158 = vld [vmem:[%s17 + $0xb0] sm:$0xff]
        %v4159 = vld [vmem:[%s17 + $0xb8] sm:$0xff]
        %v4160 = vld [vmem:[%s17 + $0xc0] sm:$0xff]
        %v4161 = vld [vmem:[%s17 + $0xc8] sm:$0xff]
        %v4162 = vld [vmem:[%s17 + $0xd0] sm:$0xff]
        %v4163 = vld [vmem:[%s17 + $0xd8] sm:$0xff]
        %v4164 = vld [vmem:[%s17 + $0xe0] sm:$0xff]
        %v4165 = vld [vmem:[%s17 + $0xe8] sm:$0xff]
        %v4166 = vld [vmem:[%s17 + $0xf0] sm:$0xff]
        %v4167 = vld [vmem:[%s17 + $0xf8] sm:$0xff]
        %4169 = vset.pattern.permute.xlu0 0
        %4170 = vperm.xlu0 %4169, %v4136
        %v4171 = vpop.permute.xlu0 %4170
        %4174 = vset.pattern.permute.xlu0 0
        %4175 = vperm.xlu0 %4174, %v4137
        %v4176 = vpop.permute.xlu0 %4175
        %4179 = vset.pattern.permute.xlu0 0
        %4180 = vperm.xlu0 %4179, %v4138
        %v4181 = vpop.permute.xlu0 %4180
        %4184 = vset.pattern.permute.xlu0 0
        %4185 = vperm.xlu0 %4184, %v4139
        %v4186 = vpop.permute.xlu0 %4185
        %4189 = vset.pattern.permute.xlu0 0
        %4190 = vperm.xlu0 %4189, %v4140
        %v4191 = vpop.permute.xlu0 %4190
        %4194 = vset.pattern.permute.xlu0 0
        %4195 = vperm.xlu0 %4194, %v4141
        %v4196 = vpop.permute.xlu0 %4195
        %4199 = vset.pattern.permute.xlu0 0
        %4200 = vperm.xlu0 %4199, %v4142
        %v4201 = vpop.permute.xlu0 %4200
        %4204 = vset.pattern.permute.xlu0 0
        %4205 = vperm.xlu0 %4204, %v4143
        %v4206 = vpop.permute.xlu0 %4205
        %4209 = vset.pattern.permute.xlu0 0
        %4210 = vperm.xlu0 %4209, %v4144
        %v4211 = vpop.permute.xlu0 %4210
        %4214 = vset.pattern.permute.xlu0 0
        %4215 = vperm.xlu0 %4214, %v4145
        %v4216 = vpop.permute.xlu0 %4215
        %4219 = vset.pattern.permute.xlu0 0
        %4220 = vperm.xlu0 %4219, %v4146
        %v4221 = vpop.permute.xlu0 %4220
        %4224 = vset.pattern.permute.xlu0 0
        %4225 = vperm.xlu0 %4224, %v4147
        %v4226 = vpop.permute.xlu0 %4225
        %4229 = vset.pattern.permute.xlu0 0
        %4230 = vperm.xlu0 %4229, %v4148
        %v4231 = vpop.permute.xlu0 %4230
        %4234 = vset.pattern.permute.xlu0 0
        %4235 = vperm.xlu0 %4234, %v4149
        %v4236 = vpop.permute.xlu0 %4235
        %4239 = vset.pattern.permute.xlu0 0
        %4240 = vperm.xlu0 %4239, %v4150
        %v4241 = vpop.permute.xlu0 %4240
        %4244 = vset.pattern.permute.xlu0 0
        %4245 = vperm.xlu0 %4244, %v4151
        %v4246 = vpop.permute.xlu0 %4245
        %4249 = vset.pattern.permute.xlu0 0
        %4250 = vperm.xlu0 %4249, %v4152
        %v4251 = vpop.permute.xlu0 %4250
        %4254 = vset.pattern.permute.xlu0 0
        %4255 = vperm.xlu0 %4254, %v4153
        %v4256 = vpop.permute.xlu0 %4255
        %4259 = vset.pattern.permute.xlu0 0
        %4260 = vperm.xlu0 %4259, %v4154
        %v4261 = vpop.permute.xlu0 %4260
        %4264 = vset.pattern.permute.xlu0 0
        %4265 = vperm.xlu0 %4264, %v4155
        %v4266 = vpop.permute.xlu0 %4265
        %4269 = vset.pattern.permute.xlu0 0
        %4270 = vperm.xlu0 %4269, %v4156
        %v4271 = vpop.permute.xlu0 %4270
        %4274 = vset.pattern.permute.xlu0 0
        %4275 = vperm.xlu0 %4274, %v4157
        %v4276 = vpop.permute.xlu0 %4275
        %4279 = vset.pattern.permute.xlu0 0
        %4280 = vperm.xlu0 %4279, %v4158
        %v4281 = vpop.permute.xlu0 %4280
        %4284 = vset.pattern.permute.xlu0 0
        %4285 = vperm.xlu0 %4284, %v4159
        %v4286 = vpop.permute.xlu0 %4285
        %4289 = vset.pattern.permute.xlu0 0
        %4290 = vperm.xlu0 %4289, %v4160
        %v4291 = vpop.permute.xlu0 %4290
        %4294 = vset.pattern.permute.xlu0 0
        %4295 = vperm.xlu0 %4294, %v4161
        %v4296 = vpop.permute.xlu0 %4295
        %4299 = vset.pattern.permute.xlu0 0
        %4300 = vperm.xlu0 %4299, %v4162
        %v4301 = vpop.permute.xlu0 %4300
        %4304 = vset.pattern.permute.xlu0 0
        %4305 = vperm.xlu0 %4304, %v4163
        %v4306 = vpop.permute.xlu0 %4305
        %4309 = vset.pattern.permute.xlu0 0
        %4310 = vperm.xlu0 %4309, %v4164
        %v4311 = vpop.permute.xlu0 %4310
        %4314 = vset.pattern.permute.xlu0 0
        %4315 = vperm.xlu0 %4314, %v4165
        %v4316 = vpop.permute.xlu0 %4315
        %4319 = vset.pattern.permute.xlu0 0
        %4320 = vperm.xlu0 %4319, %v4166
        %v4321 = vpop.permute.xlu0 %4320
        %4324 = vset.pattern.permute.xlu0 0
        %4325 = vperm.xlu0 %4324, %v4167
        %v4326 = vpop.permute.xlu0 %4325
        %v4329 = vsel %vm1513, %v4104, 0
        %v4332 = vsel %vm1513, %v4105, 0
        %v4335 = vsel %vm1513, %v4106, 0
        %v4338 = vsel %vm1513, %v4107, 0
        %v4341 = vsel %vm1513, %v4108, 0
        %v4344 = vsel %vm1513, %v4109, 0
        %v4347 = vsel %vm1513, %v4110, 0
        %v4350 = vsel %vm1513, %v4111, 0
        %v4353 = vsel %vm1513, %v4112, 0
        %v4356 = vsel %vm1513, %v4113, 0
        %v4359 = vsel %vm1513, %v4114, 0
        %v4362 = vsel %vm1513, %v4115, 0
        %v4365 = vsel %vm1513, %v4116, 0
        %v4368 = vsel %vm1513, %v4117, 0
        %v4371 = vsel %vm1513, %v4118, 0
        %v4374 = vsel %vm1513, %v4119, 0
        %v4377 = vsel %vm1513, %v4120, 0
        %v4380 = vsel %vm1513, %v4121, 0
        %v4383 = vsel %vm1513, %v4122, 0
        %v4386 = vsel %vm1513, %v4123, 0
        %v4389 = vsel %vm1513, %v4124, 0
        %v4392 = vsel %vm1513, %v4125, 0
        %v4395 = vsel %vm1513, %v4126, 0
        %v4398 = vsel %vm1513, %v4127, 0
        %v4401 = vsel %vm1513, %v4128, 0
        %v4404 = vsel %vm1513, %v4129, 0
        %v4407 = vsel %vm1513, %v4130, 0
        %v4410 = vsel %vm1513, %v4131, 0
        %v4413 = vsel %vm1513, %v4132, 0
        %v4416 = vsel %vm1513, %v4133, 0
        %v4419 = vsel %vm1513, %v4134, 0
        %v4422 = vsel %vm1513, %v4135, 0
        %v4425 = vsel %vm3707, %v4103, 0
        %4427 = vmatpush.msra.mxu0 0.0
        %4428 = vmatpush.msra.mxu0 0.0
        %4429 = vmatpush.msra.mxu0 0.0
        %4430 = vmatpush.msra.mxu0 0.0
        %4431 = vmatpush.msra.mxu0 0.0
        %4432 = vmatpush.msra.mxu0 0.0
        %4433 = vmatpush.msra.mxu0 0.0
        %4434 = vmatpush.msra.mxu0 0.0
        %4435 = vmatpush.msra.mxu0 0.0
        %4436 = vmatpush.msra.mxu0 0.0
        %4437 = vmatpush.msra.mxu0 0.0
        %4438 = vmatpush.msra.mxu0 0.0
        %4439 = vmatpush.msra.mxu0 0.0
        %4440 = vmatpush.msra.mxu0 0.0
        %4441 = vmatpush.msra.mxu0 %v4425
        %4442 = vmatpush.msra.mxu0 %v4102
        %4443 = vmatmul.f32.gmra.mxu0 %v4329
        %v4444 = vpop.f32.mrf.mxu0
        %v4445 = vadd.f32 %v4171, %v4444
        %4446 = vmatmul.f32.gmra.mxu0 %v4332
        %v4447 = vpop.f32.mrf.mxu0
        %v4448 = vadd.f32 %v4176, %v4447
        %4449 = vmatmul.f32.gmra.mxu0 %v4335
        %v4450 = vpop.f32.mrf.mxu0
        %v4451 = vadd.f32 %v4181, %v4450
        %4452 = vmatmul.f32.gmra.mxu0 %v4338
        %v4453 = vpop.f32.mrf.mxu0
        %v4454 = vadd.f32 %v4186, %v4453
        %4455 = vmatmul.f32.gmra.mxu0 %v4341
        %v4456 = vpop.f32.mrf.mxu0
        %v4457 = vadd.f32 %v4191, %v4456
        %4458 = vmatmul.f32.gmra.mxu0 %v4344
        %v4459 = vpop.f32.mrf.mxu0
        %v4460 = vadd.f32 %v4196, %v4459
        %4461 = vmatmul.f32.gmra.mxu0 %v4347
        %v4462 = vpop.f32.mrf.mxu0
        %v4463 = vadd.f32 %v4201, %v4462
        %4464 = vmatmul.f32.gmra.mxu0 %v4350
        %v4465 = vpop.f32.mrf.mxu0
        %v4466 = vadd.f32 %v4206, %v4465
        %4467 = vmatmul.f32.gmra.mxu0 %v4353
        %v4468 = vpop.f32.mrf.mxu0
        %v4469 = vadd.f32 %v4211, %v4468
        %4470 = vmatmul.f32.gmra.mxu0 %v4356
        %v4471 = vpop.f32.mrf.mxu0
        %v4472 = vadd.f32 %v4216, %v4471
        %4473 = vmatmul.f32.gmra.mxu0 %v4359
        %v4474 = vpop.f32.mrf.mxu0
        %v4475 = vadd.f32 %v4221, %v4474
        %4476 = vmatmul.f32.gmra.mxu0 %v4362
        %v4477 = vpop.f32.mrf.mxu0
        %v4478 = vadd.f32 %v4226, %v4477
        %4479 = vmatmul.f32.gmra.mxu0 %v4365
        %v4480 = vpop.f32.mrf.mxu0
        %v4481 = vadd.f32 %v4231, %v4480
        %4482 = vmatmul.f32.gmra.mxu0 %v4368
        %v4483 = vpop.f32.mrf.mxu0
        %v4484 = vadd.f32 %v4236, %v4483
        %4485 = vmatmul.f32.gmra.mxu0 %v4371
        %v4486 = vpop.f32.mrf.mxu0
        %v4487 = vadd.f32 %v4241, %v4486
        %4488 = vmatmul.f32.gmra.mxu0 %v4374
        %v4489 = vpop.f32.mrf.mxu0
        %v4490 = vadd.f32 %v4246, %v4489
        %4491 = vmatmul.f32.gmra.mxu0 %v4377
        %v4492 = vpop.f32.mrf.mxu0
        %v4493 = vadd.f32 %v4251, %v4492
        %4494 = vmatmul.f32.gmra.mxu0 %v4380
        %v4495 = vpop.f32.mrf.mxu0
        %v4496 = vadd.f32 %v4256, %v4495
        %4497 = vmatmul.f32.gmra.mxu0 %v4383
        %v4498 = vpop.f32.mrf.mxu0
        %v4499 = vadd.f32 %v4261, %v4498
        %4500 = vmatmul.f32.gmra.mxu0 %v4386
        %v4501 = vpop.f32.mrf.mxu0
        %v4502 = vadd.f32 %v4266, %v4501
        %4503 = vmatmul.f32.gmra.mxu0 %v4389
        %v4504 = vpop.f32.mrf.mxu0
        %v4505 = vadd.f32 %v4271, %v4504
        %4506 = vmatmul.f32.gmra.mxu0 %v4392
        %v4507 = vpop.f32.mrf.mxu0
        %v4508 = vadd.f32 %v4276, %v4507
        %4509 = vmatmul.f32.gmra.mxu0 %v4395
        %v4510 = vpop.f32.mrf.mxu0
        %v4511 = vadd.f32 %v4281, %v4510
        %4512 = vmatmul.f32.gmra.mxu0 %v4398
        %v4513 = vpop.f32.mrf.mxu0
        %v4514 = vadd.f32 %v4286, %v4513
        %4515 = vmatmul.f32.gmra.mxu0 %v4401
        %v4516 = vpop.f32.mrf.mxu0
        %v4517 = vadd.f32 %v4291, %v4516
        %4518 = vmatmul.f32.gmra.mxu0 %v4404
        %v4519 = vpop.f32.mrf.mxu0
        %v4520 = vadd.f32 %v4296, %v4519
        %4521 = vmatmul.f32.gmra.mxu0 %v4407
        %v4522 = vpop.f32.mrf.mxu0
        %v4523 = vadd.f32 %v4301, %v4522
        %4524 = vmatmul.f32.gmra.mxu0 %v4410
        %v4525 = vpop.f32.mrf.mxu0
        %v4526 = vadd.f32 %v4306, %v4525
        %4527 = vmatmul.f32.gmra.mxu0 %v4413
        %v4528 = vpop.f32.mrf.mxu0
        %v4529 = vadd.f32 %v4311, %v4528
        %4530 = vmatmul.f32.gmra.mxu0 %v4416
        %v4531 = vpop.f32.mrf.mxu0
        %v4532 = vadd.f32 %v4316, %v4531
        %4533 = vmatmul.f32.gmra.mxu0 %v4419
        %v4534 = vpop.f32.mrf.mxu0
        %v4535 = vadd.f32 %v4321, %v4534
        %4536 = vmatmul.f32.gmra.mxu0 %v4422
        %v4537 = vpop.f32.mrf.mxu0
        %v4538 = vadd.f32 %v4326, %v4537
        %4539 = vdwg.mxu0
        %v4540 = vmax.f32 %v4445, 0.0
        %v4541 = vmax.f32 %v4448, 0.0
        %v4542 = vmax.f32 %v4451, 0.0
        %v4543 = vmax.f32 %v4454, 0.0
        %v4544 = vmax.f32 %v4457, 0.0
        %v4545 = vmax.f32 %v4460, 0.0
        %v4546 = vmax.f32 %v4463, 0.0
        %v4547 = vmax.f32 %v4466, 0.0
        %v4548 = vmax.f32 %v4469, 0.0
        %v4549 = vmax.f32 %v4472, 0.0
        %v4550 = vmax.f32 %v4475, 0.0
        %v4551 = vmax.f32 %v4478, 0.0
        %v4552 = vmax.f32 %v4481, 0.0
        %v4553 = vmax.f32 %v4484, 0.0
        %v4554 = vmax.f32 %v4487, 0.0
        %v4555 = vmax.f32 %v4490, 0.0
        %v4556 = vmax.f32 %v4493, 0.0
        %v4557 = vmax.f32 %v4496, 0.0
        %v4558 = vmax.f32 %v4499, 0.0
        %v4559 = vmax.f32 %v4502, 0.0
        %v4560 = vmax.f32 %v4505, 0.0
        %v4561 = vmax.f32 %v4508, 0.0
        %v4562 = vmax.f32 %v4511, 0.0
        %v4563 = vmax.f32 %v4514, 0.0
        %v4564 = vmax.f32 %v4517, 0.0
        %v4565 = vmax.f32 %v4520, 0.0
        %v4566 = vmax.f32 %v4523, 0.0
        %v4567 = vmax.f32 %v4526, 0.0
        %v4568 = vmax.f32 %v4529, 0.0
        %v4569 = vmax.f32 %v4532, 0.0
        %v4570 = vmax.f32 %v4535, 0.0
        %v4571 = vmax.f32 %v4538, 0.0
        %s4572 = sld [smem:[#allocation8 + $0x80]]
        %v4573 = vstv %s4572
        %v4574 = vmul.f32 %v4573, %v4540
        %v4575 = vmul.f32 %v4573, %v4541
        %v4576 = vmul.f32 %v4573, %v4542
        %v4577 = vmul.f32 %v4573, %v4543
        %s4578 = sld [smem:[#allocation8 + $0x81]]
        %v4579 = vstv %s4578
        %v4580 = vmul.f32 %v4579, %v4544
        %v4581 = vmul.f32 %v4579, %v4545
        %v4582 = vmul.f32 %v4579, %v4546
        %v4583 = vmul.f32 %v4579, %v4547
        %v4584 = vadd.f32 %v4574, %v4580
        %v4585 = vadd.f32 %v4575, %v4581
        %v4586 = vadd.f32 %v4576, %v4582
        %v4587 = vadd.f32 %v4577, %v4583
        %s4588 = sld [smem:[#allocation8 + $0x82]]
        %v4589 = vstv %s4588
        %v4590 = vmul.f32 %v4589, %v4548
        %v4591 = vmul.f32 %v4589, %v4549
        %v4592 = vmul.f32 %v4589, %v4550
        %v4593 = vmul.f32 %v4589, %v4551
        %v4594 = vadd.f32 %v4584, %v4590
        %v4595 = vadd.f32 %v4585, %v4591
        %v4596 = vadd.f32 %v4586, %v4592
        %v4597 = vadd.f32 %v4587, %v4593
        %s4598 = sld [smem:[#allocation8 + $0x83]]
        %v4599 = vstv %s4598
        %v4600 = vmul.f32 %v4599, %v4552
        %v4601 = vmul.f32 %v4599, %v4553
        %v4602 = vmul.f32 %v4599, %v4554
        %v4603 = vmul.f32 %v4599, %v4555
        %v4604 = vadd.f32 %v4594, %v4600
        %v4605 = vadd.f32 %v4595, %v4601
        %v4606 = vadd.f32 %v4596, %v4602
        %v4607 = vadd.f32 %v4597, %v4603
        %s4608 = sld [smem:[#allocation8 + $0x84]]
        %v4609 = vstv %s4608
        %v4610 = vmul.f32 %v4609, %v4556
        %v4611 = vmul.f32 %v4609, %v4557
        %v4612 = vmul.f32 %v4609, %v4558
        %v4613 = vmul.f32 %v4609, %v4559
        %v4614 = vadd.f32 %v4604, %v4610
        %v4615 = vadd.f32 %v4605, %v4611
        %v4616 = vadd.f32 %v4606, %v4612
        %v4617 = vadd.f32 %v4607, %v4613
        %s4618 = sld [smem:[#allocation8 + $0x85]]
        %v4619 = vstv %s4618
        %v4620 = vmul.f32 %v4619, %v4560
        %v4621 = vmul.f32 %v4619, %v4561
        %v4622 = vmul.f32 %v4619, %v4562
        %v4623 = vmul.f32 %v4619, %v4563
        %v4624 = vadd.f32 %v4614, %v4620
        %v4625 = vadd.f32 %v4615, %v4621
        %v4626 = vadd.f32 %v4616, %v4622
        %v4627 = vadd.f32 %v4617, %v4623
        %s4628 = sld [smem:[#allocation8 + $0x86]]
        %v4629 = vstv %s4628
        %v4630 = vmul.f32 %v4629, %v4564
        %v4631 = vmul.f32 %v4629, %v4565
        %v4632 = vmul.f32 %v4629, %v4566
        %v4633 = vmul.f32 %v4629, %v4567
        %v4634 = vadd.f32 %v4624, %v4630
        %v4635 = vadd.f32 %v4625, %v4631
        %v4636 = vadd.f32 %v4626, %v4632
        %v4637 = vadd.f32 %v4627, %v4633
        %s4638 = sld [smem:[#allocation8 + $0x87]]
        %v4639 = vstv %s4638
        %v4640 = vmul.f32 %v4639, %v4568
        %v4641 = vmul.f32 %v4639, %v4569
        %v4642 = vmul.f32 %v4639, %v4570
        %v4643 = vmul.f32 %v4639, %v4571
        %v4644 = vadd.f32 %v4634, %v4640
        %v4645 = vadd.f32 %v4635, %v4641
        %v4646 = vadd.f32 %v4636, %v4642
        %v4647 = vadd.f32 %v4637, %v4643
        %v4648 = vld [vmem:[#allocation3] sm:$0xff]
        %v4649 = vld [vmem:[#allocation3 + $0x8] sm:$0xff]
        %v4650 = vld [vmem:[#allocation3 + $0x10] sm:$0xff]
        %v4651 = vld [vmem:[#allocation3 + $0x18] sm:$0xff]
        %v4652 = vld [vmem:[#allocation3 + $0x20] sm:$0xff]
        %v4653 = vld [vmem:[#allocation3 + $0x28] sm:$0xff]
        %v4654 = vld [vmem:[#allocation3 + $0x30] sm:$0xff]
        %v4655 = vld [vmem:[#allocation3 + $0x38] sm:$0xff]
        %v4656 = vld [vmem:[#allocation3 + $0x40] sm:$0xff]
        %v4657 = vld [vmem:[#allocation3 + $0x48] sm:$0xff]
        %v4658 = vld [vmem:[#allocation3 + $0x50] sm:$0xff]
        %v4659 = vld [vmem:[#allocation3 + $0x58] sm:$0xff]
        %v4660 = vld [vmem:[#allocation3 + $0x60] sm:$0xff]
        %v4661 = vld [vmem:[#allocation3 + $0x68] sm:$0xff]
        %v4662 = vld [vmem:[#allocation3 + $0x70] sm:$0xff]
        %v4663 = vld [vmem:[#allocation3 + $0x78] sm:$0xff]
        %v4664 = vld [vmem:[#allocation3 + $0x80] sm:$0xff]
        %v4665 = vld [vmem:[#allocation3 + $0x88] sm:$0xff]
        %v4666 = vld [vmem:[#allocation3 + $0x90] sm:$0xff]
        %v4667 = vld [vmem:[#allocation3 + $0x98] sm:$0xff]
        %v4668 = vld [vmem:[#allocation3 + $0xa0] sm:$0xff]
        %v4669 = vld [vmem:[#allocation3 + $0xa8] sm:$0xff]
        %v4670 = vld [vmem:[#allocation3 + $0xb0] sm:$0xff]
        %v4671 = vld [vmem:[#allocation3 + $0xb8] sm:$0xff]
        %v4672 = vld [vmem:[#allocation3 + $0xc0] sm:$0xff]
        %v4673 = vld [vmem:[#allocation3 + $0xc8] sm:$0xff]
        %v4674 = vld [vmem:[#allocation3 + $0xd0] sm:$0xff]
        %v4675 = vld [vmem:[#allocation3 + $0xd8] sm:$0xff]
        %v4676 = vld [vmem:[#allocation3 + $0xe0] sm:$0xff]
        %v4677 = vld [vmem:[#allocation3 + $0xe8] sm:$0xff]
        %v4678 = vld [vmem:[#allocation3 + $0xf0] sm:$0xff]
        %v4679 = vld [vmem:[#allocation3 + $0xf8] sm:$0xff]
        %v4680 = vld [vmem:[#allocation3 + $0x100] sm:$0xff]
        %v4681 = vld [vmem:[#allocation3 + $0x108] sm:$0xff]
        %v4682 = vld [vmem:[#allocation3 + $0x110] sm:$0xff]
        %v4683 = vld [vmem:[#allocation3 + $0x118] sm:$0xff]
        %v4684 = vld [vmem:[#allocation3 + $0x120] sm:$0xff]
        %v4685 = vld [vmem:[#allocation3 + $0x128] sm:$0xff]
        %v4686 = vld [vmem:[#allocation3 + $0x130] sm:$0xff]
        %v4687 = vld [vmem:[#allocation3 + $0x138] sm:$0xff]
        %v4688 = vld [vmem:[#allocation3 + $0x140] sm:$0xff]
        %v4689 = vld [vmem:[#allocation3 + $0x148] sm:$0xff]
        %v4690 = vld [vmem:[#allocation3 + $0x150] sm:$0xff]
        %v4691 = vld [vmem:[#allocation3 + $0x158] sm:$0xff]
        %v4692 = vld [vmem:[#allocation3 + $0x160] sm:$0xff]
        %v4693 = vld [vmem:[#allocation3 + $0x168] sm:$0xff]
        %v4694 = vld [vmem:[#allocation3 + $0x170] sm:$0xff]
        %v4695 = vld [vmem:[#allocation3 + $0x178] sm:$0xff]
        %v4696 = vld [vmem:[#allocation3 + $0x180] sm:$0xff]
        %v4697 = vld [vmem:[#allocation3 + $0x188] sm:$0xff]
        %v4698 = vld [vmem:[#allocation3 + $0x190] sm:$0xff]
        %v4699 = vld [vmem:[#allocation3 + $0x198] sm:$0xff]
        %v4700 = vld [vmem:[#allocation3 + $0x1a0] sm:$0xff]
        %v4701 = vld [vmem:[#allocation3 + $0x1a8] sm:$0xff]
        %v4702 = vld [vmem:[#allocation3 + $0x1b0] sm:$0xff]
        %v4703 = vld [vmem:[#allocation3 + $0x1b8] sm:$0xff]
        %v4704 = vld [vmem:[#allocation3 + $0x1c0] sm:$0xff]
        %v4705 = vld [vmem:[#allocation3 + $0x1c8] sm:$0xff]
        %v4706 = vld [vmem:[#allocation3 + $0x1d0] sm:$0xff]
        %v4707 = vld [vmem:[#allocation3 + $0x1d8] sm:$0xff]
        %v4708 = vld [vmem:[%s18] sm:$0xff]
        %v4709 = vld [vmem:[%s18 + $0x8] sm:$0xff]
        %v4710 = vld [vmem:[%s18 + $0x10] sm:$0xff]
        %v4711 = vld [vmem:[%s18 + $0x18] sm:$0xff]
        %v4712 = vld [vmem:[%s18 + $0x20] sm:$0xff]
        %v4713 = vld [vmem:[%s18 + $0x28] sm:$0xff]
        %v4714 = vld [vmem:[%s18 + $0x30] sm:$0xff]
        %v4715 = vld [vmem:[%s18 + $0x38] sm:$0xff]
        %v4716 = vld [vmem:[%s18 + $0x40] sm:$0xff]
        %v4717 = vld [vmem:[%s18 + $0x48] sm:$0xff]
        %v4718 = vld [vmem:[%s18 + $0x50] sm:$0xff]
        %v4719 = vld [vmem:[%s18 + $0x58] sm:$0xff]
        %v4720 = vld [vmem:[%s18 + $0x60] sm:$0xff]
        %v4721 = vld [vmem:[%s18 + $0x68] sm:$0xff]
        %v4722 = vld [vmem:[%s18 + $0x70] sm:$0xff]
        %v4723 = vld [vmem:[%s18 + $0x78] sm:$0xff]
        %v4724 = vld [vmem:[%s18 + $0x80] sm:$0xff]
        %v4725 = vld [vmem:[%s18 + $0x88] sm:$0xff]
        %v4726 = vld [vmem:[%s18 + $0x90] sm:$0xff]
        %v4727 = vld [vmem:[%s18 + $0x98] sm:$0xff]
        %v4728 = vld [vmem:[%s18 + $0xa0] sm:$0xff]
        %v4729 = vld [vmem:[%s18 + $0xa8] sm:$0xff]
        %v4730 = vld [vmem:[%s18 + $0xb0] sm:$0xff]
        %v4731 = vld [vmem:[%s18 + $0xb8] sm:$0xff]
        %v4732 = vld [vmem:[%s18 + $0xc0] sm:$0xff]
        %v4733 = vld [vmem:[%s18 + $0xc8] sm:$0xff]
        %v4734 = vld [vmem:[%s18 + $0xd0] sm:$0xff]
        %v4735 = vld [vmem:[%s18 + $0xd8] sm:$0xff]
        %v4736 = vld [vmem:[%s18 + $0xe0] sm:$0xff]
        %v4737 = vld [vmem:[%s18 + $0xe8] sm:$0xff]
        %v4738 = vld [vmem:[%s18 + $0xf0] sm:$0xff]
        %v4739 = vld [vmem:[%s18 + $0xf8] sm:$0xff]
        %v4740 = vld [vmem:[%s18 + $0x100] sm:$0xff]
        %v4741 = vld [vmem:[%s18 + $0x108] sm:$0xff]
        %v4742 = vld [vmem:[%s18 + $0x110] sm:$0xff]
        %v4743 = vld [vmem:[%s18 + $0x118] sm:$0xff]
        %v4744 = vld [vmem:[%s18 + $0x120] sm:$0xff]
        %v4745 = vld [vmem:[%s18 + $0x128] sm:$0xff]
        %v4746 = vld [vmem:[%s18 + $0x130] sm:$0xff]
        %v4747 = vld [vmem:[%s18 + $0x138] sm:$0xff]
        %v4748 = vld [vmem:[%s18 + $0x140] sm:$0xff]
        %v4749 = vld [vmem:[%s18 + $0x148] sm:$0xff]
        %v4750 = vld [vmem:[%s18 + $0x150] sm:$0xff]
        %v4751 = vld [vmem:[%s18 + $0x158] sm:$0xff]
        %v4752 = vld [vmem:[%s18 + $0x160] sm:$0xff]
        %v4753 = vld [vmem:[%s18 + $0x168] sm:$0xff]
        %v4754 = vld [vmem:[%s18 + $0x170] sm:$0xff]
        %v4755 = vld [vmem:[%s18 + $0x178] sm:$0xff]
        %v4756 = vld [vmem:[%s18 + $0x180] sm:$0xff]
        %v4757 = vld [vmem:[%s18 + $0x188] sm:$0xff]
        %v4758 = vld [vmem:[%s18 + $0x190] sm:$0xff]
        %v4759 = vld [vmem:[%s18 + $0x198] sm:$0xff]
        %v4760 = vld [vmem:[%s18 + $0x1a0] sm:$0xff]
        %v4761 = vld [vmem:[%s18 + $0x1a8] sm:$0xff]
        %v4762 = vld [vmem:[%s18 + $0x1b0] sm:$0xff]
        %v4763 = vld [vmem:[%s18 + $0x1b8] sm:$0xff]
        %v4764 = vld [vmem:[%s18 + $0x1c0] sm:$0xff]
        %v4765 = vld [vmem:[%s18 + $0x1c8] sm:$0xff]
        %v4766 = vld [vmem:[%s18 + $0x1d0] sm:$0xff]
        %v4767 = vld [vmem:[%s18 + $0x1d8] sm:$0xff]
        %v4768 = vld [vmem:[%s18 + $0x1e0] sm:$0xff]
        %v4769 = vld [vmem:[%s18 + $0x1e8] sm:$0xff]
        %v4770 = vld [vmem:[%s18 + $0x1f0] sm:$0xff]
        %v4771 = vld [vmem:[%s18 + $0x1f8] sm:$0xff]
        %v4772 = vld [vmem:[%s18 + $0x200] sm:$0xff]
        %v4773 = vld [vmem:[%s18 + $0x208] sm:$0xff]
        %v4774 = vld [vmem:[%s18 + $0x210] sm:$0xff]
        %v4775 = vld [vmem:[%s18 + $0x218] sm:$0xff]
        %v4776 = vld [vmem:[%s18 + $0x220] sm:$0xff]
        %v4777 = vld [vmem:[%s18 + $0x228] sm:$0xff]
        %v4778 = vld [vmem:[%s18 + $0x230] sm:$0xff]
        %v4779 = vld [vmem:[%s18 + $0x238] sm:$0xff]
        %v4780 = vld [vmem:[%s18 + $0x240] sm:$0xff]
        %v4781 = vld [vmem:[%s18 + $0x248] sm:$0xff]
        %v4782 = vld [vmem:[%s18 + $0x250] sm:$0xff]
        %v4783 = vld [vmem:[%s18 + $0x258] sm:$0xff]
        %v4784 = vld [vmem:[%s18 + $0x260] sm:$0xff]
        %v4785 = vld [vmem:[%s18 + $0x268] sm:$0xff]
        %v4786 = vld [vmem:[%s18 + $0x270] sm:$0xff]
        %v4787 = vld [vmem:[%s18 + $0x278] sm:$0xff]
        %v4788 = vld [vmem:[%s18 + $0x280] sm:$0xff]
        %v4789 = vld [vmem:[%s18 + $0x288] sm:$0xff]
        %v4790 = vld [vmem:[%s18 + $0x290] sm:$0xff]
        %v4791 = vld [vmem:[%s18 + $0x298] sm:$0xff]
        %v4792 = vld [vmem:[%s18 + $0x2a0] sm:$0xff]
        %v4793 = vld [vmem:[%s18 + $0x2a8] sm:$0xff]
        %v4794 = vld [vmem:[%s18 + $0x2b0] sm:$0xff]
        %v4795 = vld [vmem:[%s18 + $0x2b8] sm:$0xff]
        %v4796 = vld [vmem:[%s18 + $0x2c0] sm:$0xff]
        %v4797 = vld [vmem:[%s18 + $0x2c8] sm:$0xff]
        %v4798 = vld [vmem:[%s18 + $0x2d0] sm:$0xff]
        %v4799 = vld [vmem:[%s18 + $0x2d8] sm:$0xff]
        %v4800 = vld [vmem:[%s18 + $0x2e0] sm:$0xff]
        %v4801 = vld [vmem:[%s18 + $0x2e8] sm:$0xff]
        %v4802 = vld [vmem:[%s18 + $0x2f0] sm:$0xff]
        %v4803 = vld [vmem:[%s18 + $0x2f8] sm:$0xff]
        %v4804 = vld [vmem:[%s18 + $0x300] sm:$0xff]
        %v4805 = vld [vmem:[%s18 + $0x308] sm:$0xff]
        %v4806 = vld [vmem:[%s18 + $0x310] sm:$0xff]
        %v4807 = vld [vmem:[%s18 + $0x318] sm:$0xff]
        %v4808 = vld [vmem:[%s18 + $0x320] sm:$0xff]
        %v4809 = vld [vmem:[%s18 + $0x328] sm:$0xff]
        %v4810 = vld [vmem:[%s18 + $0x330] sm:$0xff]
        %v4811 = vld [vmem:[%s18 + $0x338] sm:$0xff]
        %v4812 = vld [vmem:[%s18 + $0x340] sm:$0xff]
        %v4813 = vld [vmem:[%s18 + $0x348] sm:$0xff]
        %v4814 = vld [vmem:[%s18 + $0x350] sm:$0xff]
        %v4815 = vld [vmem:[%s18 + $0x358] sm:$0xff]
        %v4816 = vld [vmem:[%s18 + $0x360] sm:$0xff]
        %v4817 = vld [vmem:[%s18 + $0x368] sm:$0xff]
        %v4818 = vld [vmem:[%s18 + $0x370] sm:$0xff]
        %v4819 = vld [vmem:[%s18 + $0x378] sm:$0xff]
        %v4820 = vld [vmem:[%s18 + $0x380] sm:$0xff]
        %v4821 = vld [vmem:[%s18 + $0x388] sm:$0xff]
        %v4822 = vld [vmem:[%s18 + $0x390] sm:$0xff]
        %v4823 = vld [vmem:[%s18 + $0x398] sm:$0xff]
        %v4824 = vld [vmem:[%s18 + $0x3a0] sm:$0xff]
        %v4825 = vld [vmem:[%s18 + $0x3a8] sm:$0xff]
        %v4826 = vld [vmem:[%s18 + $0x3b0] sm:$0xff]
        %v4827 = vld [vmem:[%s18 + $0x3b8] sm:$0xff]
        %v4828 = vld [vmem:[%s18 + $0x3c0] sm:$0xff]
        %v4829 = vld [vmem:[%s18 + $0x3c8] sm:$0xff]
        %v4830 = vld [vmem:[%s18 + $0x3d0] sm:$0xff]
        %v4831 = vld [vmem:[%s18 + $0x3d8] sm:$0xff]
        %v4832 = vld [vmem:[%s18 + $0x3e0] sm:$0xff]
        %v4833 = vld [vmem:[%s18 + $0x3e8] sm:$0xff]
        %v4834 = vld [vmem:[%s18 + $0x3f0] sm:$0xff]
        %v4835 = vld [vmem:[%s18 + $0x3f8] sm:$0xff]
        %v4836 = vld [vmem:[%s19] sm:$0xff]
        %v4837 = vld [vmem:[%s19 + $0x8] sm:$0xff]
        %v4838 = vld [vmem:[%s19 + $0x10] sm:$0xff]
        %v4839 = vld [vmem:[%s19 + $0x18] sm:$0xff]
        %v4840 = vld [vmem:[%s19 + $0x20] sm:$0xff]
        %v4841 = vld [vmem:[%s19 + $0x28] sm:$0xff]
        %v4842 = vld [vmem:[%s19 + $0x30] sm:$0xff]
        %v4843 = vld [vmem:[%s19 + $0x38] sm:$0xff]
        %v4844 = vld [vmem:[%s19 + $0x40] sm:$0xff]
        %v4845 = vld [vmem:[%s19 + $0x48] sm:$0xff]
        %v4846 = vld [vmem:[%s19 + $0x50] sm:$0xff]
        %v4847 = vld [vmem:[%s19 + $0x58] sm:$0xff]
        %v4848 = vld [vmem:[%s19 + $0x60] sm:$0xff]
        %v4849 = vld [vmem:[%s19 + $0x68] sm:$0xff]
        %v4850 = vld [vmem:[%s19 + $0x70] sm:$0xff]
        %v4851 = vld [vmem:[%s19 + $0x78] sm:$0xff]
        %v4852 = vld [vmem:[%s19 + $0x80] sm:$0xff]
        %v4853 = vld [vmem:[%s19 + $0x88] sm:$0xff]
        %v4854 = vld [vmem:[%s19 + $0x90] sm:$0xff]
        %v4855 = vld [vmem:[%s19 + $0x98] sm:$0xff]
        %v4856 = vld [vmem:[%s19 + $0xa0] sm:$0xff]
        %v4857 = vld [vmem:[%s19 + $0xa8] sm:$0xff]
        %v4858 = vld [vmem:[%s19 + $0xb0] sm:$0xff]
        %v4859 = vld [vmem:[%s19 + $0xb8] sm:$0xff]
        %v4860 = vld [vmem:[%s19 + $0xc0] sm:$0xff]
        %v4861 = vld [vmem:[%s19 + $0xc8] sm:$0xff]
        %v4862 = vld [vmem:[%s19 + $0xd0] sm:$0xff]
        %v4863 = vld [vmem:[%s19 + $0xd8] sm:$0xff]
        %v4864 = vld [vmem:[%s19 + $0xe0] sm:$0xff]
        %v4865 = vld [vmem:[%s19 + $0xe8] sm:$0xff]
        %v4866 = vld [vmem:[%s19 + $0xf0] sm:$0xff]
        %v4867 = vld [vmem:[%s19 + $0xf8] sm:$0xff]
        %4869 = vset.pattern.permute.xlu0 0
        %4870 = vperm.xlu0 %4869, %v4836
        %v4871 = vpop.permute.xlu0 %4870
        %4874 = vset.pattern.permute.xlu0 0
        %4875 = vperm.xlu0 %4874, %v4837
        %v4876 = vpop.permute.xlu0 %4875
        %4879 = vset.pattern.permute.xlu0 0
        %4880 = vperm.xlu0 %4879, %v4838
        %v4881 = vpop.permute.xlu0 %4880
        %4884 = vset.pattern.permute.xlu0 0
        %4885 = vperm.xlu0 %4884, %v4839
        %v4886 = vpop.permute.xlu0 %4885
        %4889 = vset.pattern.permute.xlu0 0
        %4890 = vperm.xlu0 %4889, %v4840
        %v4891 = vpop.permute.xlu0 %4890
        %4894 = vset.pattern.permute.xlu0 0
        %4895 = vperm.xlu0 %4894, %v4841
        %v4896 = vpop.permute.xlu0 %4895
        %4899 = vset.pattern.permute.xlu0 0
        %4900 = vperm.xlu0 %4899, %v4842
        %v4901 = vpop.permute.xlu0 %4900
        %4904 = vset.pattern.permute.xlu0 0
        %4905 = vperm.xlu0 %4904, %v4843
        %v4906 = vpop.permute.xlu0 %4905
        %4909 = vset.pattern.permute.xlu0 0
        %4910 = vperm.xlu0 %4909, %v4844
        %v4911 = vpop.permute.xlu0 %4910
        %4914 = vset.pattern.permute.xlu0 0
        %4915 = vperm.xlu0 %4914, %v4845
        %v4916 = vpop.permute.xlu0 %4915
        %4919 = vset.pattern.permute.xlu0 0
        %4920 = vperm.xlu0 %4919, %v4846
        %v4921 = vpop.permute.xlu0 %4920
        %4924 = vset.pattern.permute.xlu0 0
        %4925 = vperm.xlu0 %4924, %v4847
        %v4926 = vpop.permute.xlu0 %4925
        %4929 = vset.pattern.permute.xlu0 0
        %4930 = vperm.xlu0 %4929, %v4848
        %v4931 = vpop.permute.xlu0 %4930
        %4934 = vset.pattern.permute.xlu0 0
        %4935 = vperm.xlu0 %4934, %v4849
        %v4936 = vpop.permute.xlu0 %4935
        %4939 = vset.pattern.permute.xlu0 0
        %4940 = vperm.xlu0 %4939, %v4850
        %v4941 = vpop.permute.xlu0 %4940
        %4944 = vset.pattern.permute.xlu0 0
        %4945 = vperm.xlu0 %4944, %v4851
        %v4946 = vpop.permute.xlu0 %4945
        %4949 = vset.pattern.permute.xlu0 0
        %4950 = vperm.xlu0 %4949, %v4852
        %v4951 = vpop.permute.xlu0 %4950
        %4954 = vset.pattern.permute.xlu0 0
        %4955 = vperm.xlu0 %4954, %v4853
        %v4956 = vpop.permute.xlu0 %4955
        %4959 = vset.pattern.permute.xlu0 0
        %4960 = vperm.xlu0 %4959, %v4854
        %v4961 = vpop.permute.xlu0 %4960
        %4964 = vset.pattern.permute.xlu0 0
        %4965 = vperm.xlu0 %4964, %v4855
        %v4966 = vpop.permute.xlu0 %4965
        %4969 = vset.pattern.permute.xlu0 0
        %4970 = vperm.xlu0 %4969, %v4856
        %v4971 = vpop.permute.xlu0 %4970
        %4974 = vset.pattern.permute.xlu0 0
        %4975 = vperm.xlu0 %4974, %v4857
        %v4976 = vpop.permute.xlu0 %4975
        %4979 = vset.pattern.permute.xlu0 0
        %4980 = vperm.xlu0 %4979, %v4858
        %v4981 = vpop.permute.xlu0 %4980
        %4984 = vset.pattern.permute.xlu0 0
        %4985 = vperm.xlu0 %4984, %v4859
        %v4986 = vpop.permute.xlu0 %4985
        %4989 = vset.pattern.permute.xlu0 0
        %4990 = vperm.xlu0 %4989, %v4860
        %v4991 = vpop.permute.xlu0 %4990
        %4994 = vset.pattern.permute.xlu0 0
        %4995 = vperm.xlu0 %4994, %v4861
        %v4996 = vpop.permute.xlu0 %4995
        %4999 = vset.pattern.permute.xlu0 0
        %5000 = vperm.xlu0 %4999, %v4862
        %v5001 = vpop.permute.xlu0 %5000
        %5004 = vset.pattern.permute.xlu0 0
        %5005 = vperm.xlu0 %5004, %v4863
        %v5006 = vpop.permute.xlu0 %5005
        %5009 = vset.pattern.permute.xlu0 0
        %5010 = vperm.xlu0 %5009, %v4864
        %v5011 = vpop.permute.xlu0 %5010
        %5014 = vset.pattern.permute.xlu0 0
        %5015 = vperm.xlu0 %5014, %v4865
        %v5016 = vpop.permute.xlu0 %5015
        %5019 = vset.pattern.permute.xlu0 0
        %5020 = vperm.xlu0 %5019, %v4866
        %v5021 = vpop.permute.xlu0 %5020
        %5024 = vset.pattern.permute.xlu0 0
        %5025 = vperm.xlu0 %5024, %v4867
        %v5026 = vpop.permute.xlu0 %5025
        %v5029 = vsel %vm2264, %v4711, 0
        %v5032 = vsel %vm2264, %v4715, 0
        %v5035 = vsel %vm2264, %v4719, 0
        %v5038 = vsel %vm2264, %v4723, 0
        %v5041 = vsel %vm2264, %v4727, 0
        %v5044 = vsel %vm2264, %v4731, 0
        %v5047 = vsel %vm2264, %v4735, 0
        %v5050 = vsel %vm2264, %v4739, 0
        %v5053 = vsel %vm2264, %v4743, 0
        %v5056 = vsel %vm2264, %v4747, 0
        %v5059 = vsel %vm2264, %v4751, 0
        %v5062 = vsel %vm2264, %v4755, 0
        %v5065 = vsel %vm2264, %v4759, 0
        %v5068 = vsel %vm2264, %v4763, 0
        %v5071 = vsel %vm2264, %v4767, 0
        %v5074 = vsel %vm2264, %v4771, 0
        %v5077 = vsel %vm2264, %v4775, 0
        %v5080 = vsel %vm2264, %v4779, 0
        %v5083 = vsel %vm2264, %v4783, 0
        %v5086 = vsel %vm2264, %v4787, 0
        %v5089 = vsel %vm2264, %v4791, 0
        %v5092 = vsel %vm2264, %v4795, 0
        %v5095 = vsel %vm2264, %v4799, 0
        %v5098 = vsel %vm2264, %v4803, 0
        %v5101 = vsel %vm2264, %v4807, 0
        %v5104 = vsel %vm2264, %v4811, 0
        %v5107 = vsel %vm2264, %v4815, 0
        %v5110 = vsel %vm2264, %v4819, 0
        %v5113 = vsel %vm2264, %v4823, 0
        %v5116 = vsel %vm2264, %v4827, 0
        %v5119 = vsel %vm2264, %v4831, 0
        %v5122 = vsel %vm2264, %v4835, 0
        %5124 = vmatpush.msra.mxu0 %v4663
        %5125 = vmatpush.msra.mxu0 %v4662
        %5126 = vmatpush.msra.mxu0 %v4661
        %5127 = vmatpush.msra.mxu0 %v4660
        %5128 = vmatpush.msra.mxu0 %v4659
        %5129 = vmatpush.msra.mxu0 %v4658
        %5130 = vmatpush.msra.mxu0 %v4657
        %5131 = vmatpush.msra.mxu0 %v4656
        %5132 = vmatpush.msra.mxu0 %v4655
        %5133 = vmatpush.msra.mxu0 %v4654
        %5134 = vmatpush.msra.mxu0 %v4653
        %5135 = vmatpush.msra.mxu0 %v4652
        %5136 = vmatpush.msra.mxu0 %v4651
        %5137 = vmatpush.msra.mxu0 %v4650
        %5138 = vmatpush.msra.mxu0 %v4649
        %5139 = vmatpush.msra.mxu0 %v4648
        %5140 = vmatmul.f32.gmra.mxu0 %v4708
        %v5141 = vpop.f32.mrf.mxu0
        %v5142 = vadd.f32 %v4871, %v5141
        %5143 = vmatmul.f32.gmra.mxu0 %v4712
        %v5144 = vpop.f32.mrf.mxu0
        %v5145 = vadd.f32 %v4876, %v5144
        %5146 = vmatmul.f32.gmra.mxu0 %v4716
        %v5147 = vpop.f32.mrf.mxu0
        %v5148 = vadd.f32 %v4881, %v5147
        %5149 = vmatmul.f32.gmra.mxu0 %v4720
        %v5150 = vpop.f32.mrf.mxu0
        %v5151 = vadd.f32 %v4886, %v5150
        %5152 = vmatmul.f32.gmra.mxu0 %v4724
        %v5153 = vpop.f32.mrf.mxu0
        %v5154 = vadd.f32 %v4891, %v5153
        %5155 = vmatmul.f32.gmra.mxu0 %v4728
        %v5156 = vpop.f32.mrf.mxu0
        %v5157 = vadd.f32 %v4896, %v5156
        %5158 = vmatmul.f32.gmra.mxu0 %v4732
        %v5159 = vpop.f32.mrf.mxu0
        %v5160 = vadd.f32 %v4901, %v5159
        %5161 = vmatmul.f32.gmra.mxu0 %v4736
        %v5162 = vpop.f32.mrf.mxu0
        %v5163 = vadd.f32 %v4906, %v5162
        %5164 = vmatmul.f32.gmra.mxu0 %v4740
        %v5165 = vpop.f32.mrf.mxu0
        %v5166 = vadd.f32 %v4911, %v5165
        %5167 = vmatmul.f32.gmra.mxu0 %v4744
        %v5168 = vpop.f32.mrf.mxu0
        %v5169 = vadd.f32 %v4916, %v5168
        %5170 = vmatmul.f32.gmra.mxu0 %v4748
        %v5171 = vpop.f32.mrf.mxu0
        %v5172 = vadd.f32 %v4921, %v5171
        %5173 = vmatmul.f32.gmra.mxu0 %v4752
        %v5174 = vpop.f32.mrf.mxu0
        %v5175 = vadd.f32 %v4926, %v5174
        %5176 = vmatmul.f32.gmra.mxu0 %v4756
        %v5177 = vpop.f32.mrf.mxu0
        %v5178 = vadd.f32 %v4931, %v5177
        %5179 = vmatmul.f32.gmra.mxu0 %v4760
        %v5180 = vpop.f32.mrf.mxu0
        %v5181 = vadd.f32 %v4936, %v5180
        %5182 = vmatmul.f32.gmra.mxu0 %v4764
        %v5183 = vpop.f32.mrf.mxu0
        %v5184 = vadd.f32 %v4941, %v5183
        %5185 = vmatmul.f32.gmra.mxu0 %v4768
        %v5186 = vpop.f32.mrf.mxu0
        %v5187 = vadd.f32 %v4946, %v5186
        %5188 = vmatmul.f32.gmra.mxu0 %v4772
        %v5189 = vpop.f32.mrf.mxu0
        %v5190 = vadd.f32 %v4951, %v5189
        %5191 = vmatmul.f32.gmra.mxu0 %v4776
        %v5192 = vpop.f32.mrf.mxu0
        %v5193 = vadd.f32 %v4956, %v5192
        %5194 = vmatmul.f32.gmra.mxu0 %v4780
        %v5195 = vpop.f32.mrf.mxu0
        %v5196 = vadd.f32 %v4961, %v5195
        %5197 = vmatmul.f32.gmra.mxu0 %v4784
        %v5198 = vpop.f32.mrf.mxu0
        %v5199 = vadd.f32 %v4966, %v5198
        %5200 = vmatmul.f32.gmra.mxu0 %v4788
        %v5201 = vpop.f32.mrf.mxu0
        %v5202 = vadd.f32 %v4971, %v5201
        %5203 = vmatmul.f32.gmra.mxu0 %v4792
        %v5204 = vpop.f32.mrf.mxu0
        %v5205 = vadd.f32 %v4976, %v5204
        %5206 = vmatmul.f32.gmra.mxu0 %v4796
        %v5207 = vpop.f32.mrf.mxu0
        %v5208 = vadd.f32 %v4981, %v5207
        %5209 = vmatmul.f32.gmra.mxu0 %v4800
        %v5210 = vpop.f32.mrf.mxu0
        %v5211 = vadd.f32 %v4986, %v5210
        %5212 = vmatmul.f32.gmra.mxu0 %v4804
        %v5213 = vpop.f32.mrf.mxu0
        %v5214 = vadd.f32 %v4991, %v5213
        %5215 = vmatmul.f32.gmra.mxu0 %v4808
        %v5216 = vpop.f32.mrf.mxu0
        %v5217 = vadd.f32 %v4996, %v5216
        %5218 = vmatmul.f32.gmra.mxu0 %v4812
        %v5219 = vpop.f32.mrf.mxu0
        %v5220 = vadd.f32 %v5001, %v5219
        %5221 = vmatmul.f32.gmra.mxu0 %v4816
        %v5222 = vpop.f32.mrf.mxu0
        %v5223 = vadd.f32 %v5006, %v5222
        %5224 = vmatmul.f32.gmra.mxu0 %v4820
        %v5225 = vpop.f32.mrf.mxu0
        %v5226 = vadd.f32 %v5011, %v5225
        %5227 = vmatmul.f32.gmra.mxu0 %v4824
        %v5228 = vpop.f32.mrf.mxu0
        %v5229 = vadd.f32 %v5016, %v5228
        %5230 = vmatmul.f32.gmra.mxu0 %v4828
        %v5231 = vpop.f32.mrf.mxu0
        %v5232 = vadd.f32 %v5021, %v5231
        %5233 = vmatmul.f32.gmra.mxu0 %v4832
        %v5234 = vpop.f32.mrf.mxu0
        %v5235 = vadd.f32 %v5026, %v5234
        %5236 = vdwg.mxu0
        %5237 = vmatpush.msra.mxu0 %v4679
        %5238 = vmatpush.msra.mxu0 %v4678
        %5239 = vmatpush.msra.mxu0 %v4677
        %5240 = vmatpush.msra.mxu0 %v4676
        %5241 = vmatpush.msra.mxu0 %v4675
        %5242 = vmatpush.msra.mxu0 %v4674
        %5243 = vmatpush.msra.mxu0 %v4673
        %5244 = vmatpush.msra.mxu0 %v4672
        %5245 = vmatpush.msra.mxu0 %v4671
        %5246 = vmatpush.msra.mxu0 %v4670
        %5247 = vmatpush.msra.mxu0 %v4669
        %5248 = vmatpush.msra.mxu0 %v4668
        %5249 = vmatpush.msra.mxu0 %v4667
        %5250 = vmatpush.msra.mxu0 %v4666
        %5251 = vmatpush.msra.mxu0 %v4665
        %5252 = vmatpush.msra.mxu0 %v4664
        %5253 = vmatmul.f32.gmra.mxu0 %v4709
        %v5254 = vpop.f32.mrf.mxu0
        %v5255 = vadd.f32 %v5142, %v5254
        %5256 = vmatmul.f32.gmra.mxu0 %v4713
        %v5257 = vpop.f32.mrf.mxu0
        %v5258 = vadd.f32 %v5145, %v5257
        %5259 = vmatmul.f32.gmra.mxu0 %v4717
        %v5260 = vpop.f32.mrf.mxu0
        %v5261 = vadd.f32 %v5148, %v5260
        %5262 = vmatmul.f32.gmra.mxu0 %v4721
        %v5263 = vpop.f32.mrf.mxu0
        %v5264 = vadd.f32 %v5151, %v5263
        %5265 = vmatmul.f32.gmra.mxu0 %v4725
        %v5266 = vpop.f32.mrf.mxu0
        %v5267 = vadd.f32 %v5154, %v5266
        %5268 = vmatmul.f32.gmra.mxu0 %v4729
        %v5269 = vpop.f32.mrf.mxu0
        %v5270 = vadd.f32 %v5157, %v5269
        %5271 = vmatmul.f32.gmra.mxu0 %v4733
        %v5272 = vpop.f32.mrf.mxu0
        %v5273 = vadd.f32 %v5160, %v5272
        %5274 = vmatmul.f32.gmra.mxu0 %v4737
        %v5275 = vpop.f32.mrf.mxu0
        %v5276 = vadd.f32 %v5163, %v5275
        %5277 = vmatmul.f32.gmra.mxu0 %v4741
        %v5278 = vpop.f32.mrf.mxu0
        %v5279 = vadd.f32 %v5166, %v5278
        %5280 = vmatmul.f32.gmra.mxu0 %v4745
        %v5281 = vpop.f32.mrf.mxu0
        %v5282 = vadd.f32 %v5169, %v5281
        %5283 = vmatmul.f32.gmra.mxu0 %v4749
        %v5284 = vpop.f32.mrf.mxu0
        %v5285 = vadd.f32 %v5172, %v5284
        %5286 = vmatmul.f32.gmra.mxu0 %v4753
        %v5287 = vpop.f32.mrf.mxu0
        %v5288 = vadd.f32 %v5175, %v5287
        %5289 = vmatmul.f32.gmra.mxu0 %v4757
        %v5290 = vpop.f32.mrf.mxu0
        %v5291 = vadd.f32 %v5178, %v5290
        %5292 = vmatmul.f32.gmra.mxu0 %v4761
        %v5293 = vpop.f32.mrf.mxu0
        %v5294 = vadd.f32 %v5181, %v5293
        %5295 = vmatmul.f32.gmra.mxu0 %v4765
        %v5296 = vpop.f32.mrf.mxu0
        %v5297 = vadd.f32 %v5184, %v5296
        %5298 = vmatmul.f32.gmra.mxu0 %v4769
        %v5299 = vpop.f32.mrf.mxu0
        %v5300 = vadd.f32 %v5187, %v5299
        %5301 = vmatmul.f32.gmra.mxu0 %v4773
        %v5302 = vpop.f32.mrf.mxu0
        %v5303 = vadd.f32 %v5190, %v5302
        %5304 = vmatmul.f32.gmra.mxu0 %v4777
        %v5305 = vpop.f32.mrf.mxu0
        %v5306 = vadd.f32 %v5193, %v5305
        %5307 = vmatmul.f32.gmra.mxu0 %v4781
        %v5308 = vpop.f32.mrf.mxu0
        %v5309 = vadd.f32 %v5196, %v5308
        %5310 = vmatmul.f32.gmra.mxu0 %v4785
        %v5311 = vpop.f32.mrf.mxu0
        %v5312 = vadd.f32 %v5199, %v5311
        %5313 = vmatmul.f32.gmra.mxu0 %v4789
        %v5314 = vpop.f32.mrf.mxu0
        %v5315 = vadd.f32 %v5202, %v5314
        %5316 = vmatmul.f32.gmra.mxu0 %v4793
        %v5317 = vpop.f32.mrf.mxu0
        %v5318 = vadd.f32 %v5205, %v5317
        %5319 = vmatmul.f32.gmra.mxu0 %v4797
        %v5320 = vpop.f32.mrf.mxu0
        %v5321 = vadd.f32 %v5208, %v5320
        %5322 = vmatmul.f32.gmra.mxu0 %v4801
        %v5323 = vpop.f32.mrf.mxu0
        %v5324 = vadd.f32 %v5211, %v5323
        %5325 = vmatmul.f32.gmra.mxu0 %v4805
        %v5326 = vpop.f32.mrf.mxu0
        %v5327 = vadd.f32 %v5214, %v5326
        %5328 = vmatmul.f32.gmra.mxu0 %v4809
        %v5329 = vpop.f32.mrf.mxu0
        %v5330 = vadd.f32 %v5217, %v5329
        %5331 = vmatmul.f32.gmra.mxu0 %v4813
        %v5332 = vpop.f32.mrf.mxu0
        %v5333 = vadd.f32 %v5220, %v5332
        %5334 = vmatmul.f32.gmra.mxu0 %v4817
        %v5335 = vpop.f32.mrf.mxu0
        %v5336 = vadd.f32 %v5223, %v5335
        %5337 = vmatmul.f32.gmra.mxu0 %v4821
        %v5338 = vpop.f32.mrf.mxu0
        %v5339 = vadd.f32 %v5226, %v5338
        %5340 = vmatmul.f32.gmra.mxu0 %v4825
        %v5341 = vpop.f32.mrf.mxu0
        %v5342 = vadd.f32 %v5229, %v5341
        %5343 = vmatmul.f32.gmra.mxu0 %v4829
        %v5344 = vpop.f32.mrf.mxu0
        %v5345 = vadd.f32 %v5232, %v5344
        %5346 = vmatmul.f32.gmra.mxu0 %v4833
        %v5347 = vpop.f32.mrf.mxu0
        %v5348 = vadd.f32 %v5235, %v5347
        %5349 = vdwg.mxu0
        %5350 = vmatpush.msra.mxu0 %v4695
        %5351 = vmatpush.msra.mxu0 %v4694
        %5352 = vmatpush.msra.mxu0 %v4693
        %5353 = vmatpush.msra.mxu0 %v4692
        %5354 = vmatpush.msra.mxu0 %v4691
        %5355 = vmatpush.msra.mxu0 %v4690
        %5356 = vmatpush.msra.mxu0 %v4689
        %5357 = vmatpush.msra.mxu0 %v4688
        %5358 = vmatpush.msra.mxu0 %v4687
        %5359 = vmatpush.msra.mxu0 %v4686
        %5360 = vmatpush.msra.mxu0 %v4685
        %5361 = vmatpush.msra.mxu0 %v4684
        %5362 = vmatpush.msra.mxu0 %v4683
        %5363 = vmatpush.msra.mxu0 %v4682
        %5364 = vmatpush.msra.mxu0 %v4681
        %5365 = vmatpush.msra.mxu0 %v4680
        %5366 = vmatmul.f32.gmra.mxu0 %v4710
        %v5367 = vpop.f32.mrf.mxu0
        %v5368 = vadd.f32 %v5255, %v5367
        %5369 = vmatmul.f32.gmra.mxu0 %v4714
        %v5370 = vpop.f32.mrf.mxu0
        %v5371 = vadd.f32 %v5258, %v5370
        %5372 = vmatmul.f32.gmra.mxu0 %v4718
        %v5373 = vpop.f32.mrf.mxu0
        %v5374 = vadd.f32 %v5261, %v5373
        %5375 = vmatmul.f32.gmra.mxu0 %v4722
        %v5376 = vpop.f32.mrf.mxu0
        %v5377 = vadd.f32 %v5264, %v5376
        %5378 = vmatmul.f32.gmra.mxu0 %v4726
        %v5379 = vpop.f32.mrf.mxu0
        %v5380 = vadd.f32 %v5267, %v5379
        %5381 = vmatmul.f32.gmra.mxu0 %v4730
        %v5382 = vpop.f32.mrf.mxu0
        %v5383 = vadd.f32 %v5270, %v5382
        %5384 = vmatmul.f32.gmra.mxu0 %v4734
        %v5385 = vpop.f32.mrf.mxu0
        %v5386 = vadd.f32 %v5273, %v5385
        %5387 = vmatmul.f32.gmra.mxu0 %v4738
        %v5388 = vpop.f32.mrf.mxu0
        %v5389 = vadd.f32 %v5276, %v5388
        %5390 = vmatmul.f32.gmra.mxu0 %v4742
        %v5391 = vpop.f32.mrf.mxu0
        %v5392 = vadd.f32 %v5279, %v5391
        %5393 = vmatmul.f32.gmra.mxu0 %v4746
        %v5394 = vpop.f32.mrf.mxu0
        %v5395 = vadd.f32 %v5282, %v5394
        %5396 = vmatmul.f32.gmra.mxu0 %v4750
        %v5397 = vpop.f32.mrf.mxu0
        %v5398 = vadd.f32 %v5285, %v5397
        %5399 = vmatmul.f32.gmra.mxu0 %v4754
        %v5400 = vpop.f32.mrf.mxu0
        %v5401 = vadd.f32 %v5288, %v5400
        %5402 = vmatmul.f32.gmra.mxu0 %v4758
        %v5403 = vpop.f32.mrf.mxu0
        %v5404 = vadd.f32 %v5291, %v5403
        %5405 = vmatmul.f32.gmra.mxu0 %v4762
        %v5406 = vpop.f32.mrf.mxu0
        %v5407 = vadd.f32 %v5294, %v5406
        %5408 = vmatmul.f32.gmra.mxu0 %v4766
        %v5409 = vpop.f32.mrf.mxu0
        %v5410 = vadd.f32 %v5297, %v5409
        %5411 = vmatmul.f32.gmra.mxu0 %v4770
        %v5412 = vpop.f32.mrf.mxu0
        %v5413 = vadd.f32 %v5300, %v5412
        %5414 = vmatmul.f32.gmra.mxu0 %v4774
        %v5415 = vpop.f32.mrf.mxu0
        %v5416 = vadd.f32 %v5303, %v5415
        %5417 = vmatmul.f32.gmra.mxu0 %v4778
        %v5418 = vpop.f32.mrf.mxu0
        %v5419 = vadd.f32 %v5306, %v5418
        %5420 = vmatmul.f32.gmra.mxu0 %v4782
        %v5421 = vpop.f32.mrf.mxu0
        %v5422 = vadd.f32 %v5309, %v5421
        %5423 = vmatmul.f32.gmra.mxu0 %v4786
        %v5424 = vpop.f32.mrf.mxu0
        %v5425 = vadd.f32 %v5312, %v5424
        %5426 = vmatmul.f32.gmra.mxu0 %v4790
        %v5427 = vpop.f32.mrf.mxu0
        %v5428 = vadd.f32 %v5315, %v5427
        %5429 = vmatmul.f32.gmra.mxu0 %v4794
        %v5430 = vpop.f32.mrf.mxu0
        %v5431 = vadd.f32 %v5318, %v5430
        %5432 = vmatmul.f32.gmra.mxu0 %v4798
        %v5433 = vpop.f32.mrf.mxu0
        %v5434 = vadd.f32 %v5321, %v5433
        %5435 = vmatmul.f32.gmra.mxu0 %v4802
        %v5436 = vpop.f32.mrf.mxu0
        %v5437 = vadd.f32 %v5324, %v5436
        %5438 = vmatmul.f32.gmra.mxu0 %v4806
        %v5439 = vpop.f32.mrf.mxu0
        %v5440 = vadd.f32 %v5327, %v5439
        %5441 = vmatmul.f32.gmra.mxu0 %v4810
        %v5442 = vpop.f32.mrf.mxu0
        %v5443 = vadd.f32 %v5330, %v5442
        %5444 = vmatmul.f32.gmra.mxu0 %v4814
        %v5445 = vpop.f32.mrf.mxu0
        %v5446 = vadd.f32 %v5333, %v5445
        %5447 = vmatmul.f32.gmra.mxu0 %v4818
        %v5448 = vpop.f32.mrf.mxu0
        %v5449 = vadd.f32 %v5336, %v5448
        %5450 = vmatmul.f32.gmra.mxu0 %v4822
        %v5451 = vpop.f32.mrf.mxu0
        %v5452 = vadd.f32 %v5339, %v5451
        %5453 = vmatmul.f32.gmra.mxu0 %v4826
        %v5454 = vpop.f32.mrf.mxu0
        %v5455 = vadd.f32 %v5342, %v5454
        %5456 = vmatmul.f32.gmra.mxu0 %v4830
        %v5457 = vpop.f32.mrf.mxu0
        %v5458 = vadd.f32 %v5345, %v5457
        %5459 = vmatmul.f32.gmra.mxu0 %v4834
        %v5460 = vpop.f32.mrf.mxu0
        %v5461 = vadd.f32 %v5348, %v5460
        %5462 = vdwg.mxu0
        %5463 = vmatpush.msra.mxu0 0.0
        %5464 = vmatpush.msra.mxu0 0.0
        %5465 = vmatpush.msra.mxu0 0.0
        %5466 = vmatpush.msra.mxu0 0.0
        %5467 = vmatpush.msra.mxu0 %v4707
        %5468 = vmatpush.msra.mxu0 %v4706
        %5469 = vmatpush.msra.mxu0 %v4705
        %5470 = vmatpush.msra.mxu0 %v4704
        %5471 = vmatpush.msra.mxu0 %v4703
        %5472 = vmatpush.msra.mxu0 %v4702
        %5473 = vmatpush.msra.mxu0 %v4701
        %5474 = vmatpush.msra.mxu0 %v4700
        %5475 = vmatpush.msra.mxu0 %v4699
        %5476 = vmatpush.msra.mxu0 %v4698
        %5477 = vmatpush.msra.mxu0 %v4697
        %5478 = vmatpush.msra.mxu0 %v4696
        %5479 = vmatmul.f32.gmra.mxu0 %v5029
        %v5480 = vpop.f32.mrf.mxu0
        %v5481 = vadd.f32 %v5368, %v5480
        %5482 = vmatmul.f32.gmra.mxu0 %v5032
        %v5483 = vpop.f32.mrf.mxu0
        %v5484 = vadd.f32 %v5371, %v5483
        %5485 = vmatmul.f32.gmra.mxu0 %v5035
        %v5486 = vpop.f32.mrf.mxu0
        %v5487 = vadd.f32 %v5374, %v5486
        %5488 = vmatmul.f32.gmra.mxu0 %v5038
        %v5489 = vpop.f32.mrf.mxu0
        %v5490 = vadd.f32 %v5377, %v5489
        %5491 = vmatmul.f32.gmra.mxu0 %v5041
        %v5492 = vpop.f32.mrf.mxu0
        %v5493 = vadd.f32 %v5380, %v5492
        %5494 = vmatmul.f32.gmra.mxu0 %v5044
        %v5495 = vpop.f32.mrf.mxu0
        %v5496 = vadd.f32 %v5383, %v5495
        %5497 = vmatmul.f32.gmra.mxu0 %v5047
        %v5498 = vpop.f32.mrf.mxu0
        %v5499 = vadd.f32 %v5386, %v5498
        %5500 = vmatmul.f32.gmra.mxu0 %v5050
        %v5501 = vpop.f32.mrf.mxu0
        %v5502 = vadd.f32 %v5389, %v5501
        %5503 = vmatmul.f32.gmra.mxu0 %v5053
        %v5504 = vpop.f32.mrf.mxu0
        %v5505 = vadd.f32 %v5392, %v5504
        %5506 = vmatmul.f32.gmra.mxu0 %v5056
        %v5507 = vpop.f32.mrf.mxu0
        %v5508 = vadd.f32 %v5395, %v5507
        %5509 = vmatmul.f32.gmra.mxu0 %v5059
        %v5510 = vpop.f32.mrf.mxu0
        %v5511 = vadd.f32 %v5398, %v5510
        %5512 = vmatmul.f32.gmra.mxu0 %v5062
        %v5513 = vpop.f32.mrf.mxu0
        %v5514 = vadd.f32 %v5401, %v5513
        %5515 = vmatmul.f32.gmra.mxu0 %v5065
        %v5516 = vpop.f32.mrf.mxu0
        %v5517 = vadd.f32 %v5404, %v5516
        %5518 = vmatmul.f32.gmra.mxu0 %v5068
        %v5519 = vpop.f32.mrf.mxu0
        %v5520 = vadd.f32 %v5407, %v5519
        %5521 = vmatmul.f32.gmra.mxu0 %v5071
        %v5522 = vpop.f32.mrf.mxu0
        %v5523 = vadd.f32 %v5410, %v5522
        %5524 = vmatmul.f32.gmra.mxu0 %v5074
        %v5525 = vpop.f32.mrf.mxu0
        %v5526 = vadd.f32 %v5413, %v5525
        %5527 = vmatmul.f32.gmra.mxu0 %v5077
        %v5528 = vpop.f32.mrf.mxu0
        %v5529 = vadd.f32 %v5416, %v5528
        %5530 = vmatmul.f32.gmra.mxu0 %v5080
        %v5531 = vpop.f32.mrf.mxu0
        %v5532 = vadd.f32 %v5419, %v5531
        %5533 = vmatmul.f32.gmra.mxu0 %v5083
        %v5534 = vpop.f32.mrf.mxu0
        %v5535 = vadd.f32 %v5422, %v5534
        %5536 = vmatmul.f32.gmra.mxu0 %v5086
        %v5537 = vpop.f32.mrf.mxu0
        %v5538 = vadd.f32 %v5425, %v5537
        %5539 = vmatmul.f32.gmra.mxu0 %v5089
        %v5540 = vpop.f32.mrf.mxu0
        %v5541 = vadd.f32 %v5428, %v5540
        %5542 = vmatmul.f32.gmra.mxu0 %v5092
        %v5543 = vpop.f32.mrf.mxu0
        %v5544 = vadd.f32 %v5431, %v5543
        %5545 = vmatmul.f32.gmra.mxu0 %v5095
        %v5546 = vpop.f32.mrf.mxu0
        %v5547 = vadd.f32 %v5434, %v5546
        %5548 = vmatmul.f32.gmra.mxu0 %v5098
        %v5549 = vpop.f32.mrf.mxu0
        %v5550 = vadd.f32 %v5437, %v5549
        %5551 = vmatmul.f32.gmra.mxu0 %v5101
        %v5552 = vpop.f32.mrf.mxu0
        %v5553 = vadd.f32 %v5440, %v5552
        %5554 = vmatmul.f32.gmra.mxu0 %v5104
        %v5555 = vpop.f32.mrf.mxu0
        %v5556 = vadd.f32 %v5443, %v5555
        %5557 = vmatmul.f32.gmra.mxu0 %v5107
        %v5558 = vpop.f32.mrf.mxu0
        %v5559 = vadd.f32 %v5446, %v5558
        %5560 = vmatmul.f32.gmra.mxu0 %v5110
        %v5561 = vpop.f32.mrf.mxu0
        %v5562 = vadd.f32 %v5449, %v5561
        %5563 = vmatmul.f32.gmra.mxu0 %v5113
        %v5564 = vpop.f32.mrf.mxu0
        %v5565 = vadd.f32 %v5452, %v5564
        %5566 = vmatmul.f32.gmra.mxu0 %v5116
        %v5567 = vpop.f32.mrf.mxu0
        %v5568 = vadd.f32 %v5455, %v5567
        %5569 = vmatmul.f32.gmra.mxu0 %v5119
        %v5570 = vpop.f32.mrf.mxu0
        %v5571 = vadd.f32 %v5458, %v5570
        %5572 = vmatmul.f32.gmra.mxu0 %v5122
        %v5573 = vpop.f32.mrf.mxu0
        %v5574 = vadd.f32 %v5461, %v5573
        %5575 = vdwg.mxu0
        %v5576 = vmax.f32 %v5481, 0.0
        %v5577 = vmax.f32 %v5484, 0.0
        %v5578 = vmax.f32 %v5487, 0.0
        %v5579 = vmax.f32 %v5490, 0.0
        %v5580 = vmax.f32 %v5493, 0.0
        %v5581 = vmax.f32 %v5496, 0.0
        %v5582 = vmax.f32 %v5499, 0.0
        %v5583 = vmax.f32 %v5502, 0.0
        %v5584 = vmax.f32 %v5505, 0.0
        %v5585 = vmax.f32 %v5508, 0.0
        %v5586 = vmax.f32 %v5511, 0.0
        %v5587 = vmax.f32 %v5514, 0.0
        %v5588 = vmax.f32 %v5517, 0.0
        %v5589 = vmax.f32 %v5520, 0.0
        %v5590 = vmax.f32 %v5523, 0.0
        %v5591 = vmax.f32 %v5526, 0.0
        %v5592 = vmax.f32 %v5529, 0.0
        %v5593 = vmax.f32 %v5532, 0.0
        %v5594 = vmax.f32 %v5535, 0.0
        %v5595 = vmax.f32 %v5538, 0.0
        %v5596 = vmax.f32 %v5541, 0.0
        %v5597 = vmax.f32 %v5544, 0.0
        %v5598 = vmax.f32 %v5547, 0.0
        %v5599 = vmax.f32 %v5550, 0.0
        %v5600 = vmax.f32 %v5553, 0.0
        %v5601 = vmax.f32 %v5556, 0.0
        %v5602 = vmax.f32 %v5559, 0.0
        %v5603 = vmax.f32 %v5562, 0.0
        %v5604 = vmax.f32 %v5565, 0.0
        %v5605 = vmax.f32 %v5568, 0.0
        %v5606 = vmax.f32 %v5571, 0.0
        %v5607 = vmax.f32 %v5574, 0.0
        %s5608 = sld [smem:[#allocation8 + $0x100]]
        %v5609 = vstv %s5608
        %v5610 = vmul.f32 %v5609, %v5576
        %v5611 = vmul.f32 %v5609, %v5577
        %v5612 = vmul.f32 %v5609, %v5578
        %v5613 = vmul.f32 %v5609, %v5579
        %s5614 = sld [smem:[#allocation8 + $0x101]]
        %v5615 = vstv %s5614
        %v5616 = vmul.f32 %v5615, %v5580
        %v5617 = vmul.f32 %v5615, %v5581
        %v5618 = vmul.f32 %v5615, %v5582
        %v5619 = vmul.f32 %v5615, %v5583
        %v5620 = vadd.f32 %v5610, %v5616
        %v5621 = vadd.f32 %v5611, %v5617
        %v5622 = vadd.f32 %v5612, %v5618
        %v5623 = vadd.f32 %v5613, %v5619
        %s5624 = sld [smem:[#allocation8 + $0x102]]
        %v5625 = vstv %s5624
        %v5626 = vmul.f32 %v5625, %v5584
        %v5627 = vmul.f32 %v5625, %v5585
        %v5628 = vmul.f32 %v5625, %v5586
        %v5629 = vmul.f32 %v5625, %v5587
        %v5630 = vadd.f32 %v5620, %v5626
        %v5631 = vadd.f32 %v5621, %v5627
        %v5632 = vadd.f32 %v5622, %v5628
        %v5633 = vadd.f32 %v5623, %v5629
        %s5634 = sld [smem:[#allocation8 + $0x103]]
        %v5635 = vstv %s5634
        %v5636 = vmul.f32 %v5635, %v5588
        %v5637 = vmul.f32 %v5635, %v5589
        %v5638 = vmul.f32 %v5635, %v5590
        %v5639 = vmul.f32 %v5635, %v5591
        %v5640 = vadd.f32 %v5630, %v5636
        %v5641 = vadd.f32 %v5631, %v5637
        %v5642 = vadd.f32 %v5632, %v5638
        %v5643 = vadd.f32 %v5633, %v5639
        %s5644 = sld [smem:[#allocation8 + $0x104]]
        %v5645 = vstv %s5644
        %v5646 = vmul.f32 %v5645, %v5592
        %v5647 = vmul.f32 %v5645, %v5593
        %v5648 = vmul.f32 %v5645, %v5594
        %v5649 = vmul.f32 %v5645, %v5595
        %v5650 = vadd.f32 %v5640, %v5646
        %v5651 = vadd.f32 %v5641, %v5647
        %v5652 = vadd.f32 %v5642, %v5648
        %v5653 = vadd.f32 %v5643, %v5649
        %s5654 = sld [smem:[#allocation8 + $0x105]]
        %v5655 = vstv %s5654
        %v5656 = vmul.f32 %v5655, %v5596
        %v5657 = vmul.f32 %v5655, %v5597
        %v5658 = vmul.f32 %v5655, %v5598
        %v5659 = vmul.f32 %v5655, %v5599
        %v5660 = vadd.f32 %v5650, %v5656
        %v5661 = vadd.f32 %v5651, %v5657
        %v5662 = vadd.f32 %v5652, %v5658
        %v5663 = vadd.f32 %v5653, %v5659
        %s5664 = sld [smem:[#allocation8 + $0x106]]
        %v5665 = vstv %s5664
        %v5666 = vmul.f32 %v5665, %v5600
        %v5667 = vmul.f32 %v5665, %v5601
        %v5668 = vmul.f32 %v5665, %v5602
        %v5669 = vmul.f32 %v5665, %v5603
        %v5670 = vadd.f32 %v5660, %v5666
        %v5671 = vadd.f32 %v5661, %v5667
        %v5672 = vadd.f32 %v5662, %v5668
        %v5673 = vadd.f32 %v5663, %v5669
        %s5674 = sld [smem:[#allocation8 + $0x107]]
        %v5675 = vstv %s5674
        %v5676 = vmul.f32 %v5675, %v5604
        %v5677 = vmul.f32 %v5675, %v5605
        %v5678 = vmul.f32 %v5675, %v5606
        %v5679 = vmul.f32 %v5675, %v5607
        %v5680 = vadd.f32 %v5670, %v5676
        %v5681 = vadd.f32 %v5671, %v5677
        %v5682 = vadd.f32 %v5672, %v5678
        %v5683 = vadd.f32 %v5673, %v5679
        %v5684 = vadd.f32 %v4644, %v5680
        %v5685 = vadd.f32 %v4645, %v5681
        %v5686 = vadd.f32 %v4646, %v5682
        %v5687 = vadd.f32 %v4647, %v5683
        %5688 = vst.msk [vmem:[#allocation4] sm:$0xff] %vm3347, 0.0
        %5689 = vst.msk [vmem:[#allocation4 + $0x8] sm:$0xff] %vm3347, 0.0
        %5690 = vst.msk [vmem:[#allocation4 + $0x10] sm:$0xff] %vm3347, 0.0
        %5691 = vst.msk [vmem:[#allocation4 + $0x18] sm:$0xff] %vm3347, 0.0
        %5692 = vst.msk [vmem:[#allocation4 + $0x20] sm:$0xff] %vm3347, 0.0
        %5693 = vst.msk [vmem:[#allocation4 + $0x28] sm:$0xff] %vm3347, 0.0
        %5694 = vst.msk [vmem:[#allocation4 + $0x30] sm:$0xff] %vm3347, 0.0
        %5695 = vst.msk [vmem:[#allocation4 + $0x38] sm:$0xff] %vm3347, 0.0
        %5696 = vst.msk [vmem:[#allocation4 + $0x40] sm:$0xff] %vm3347, 0.0
        %5697 = vst.msk [vmem:[#allocation4 + $0x48] sm:$0xff] %vm3347, 0.0
        %5698 = vst.msk [vmem:[#allocation4 + $0x50] sm:$0xff] %vm3347, 0.0
        %5699 = vst.msk [vmem:[#allocation4 + $0x58] sm:$0xff] %vm3347, 0.0
        %5700 = vst.msk [vmem:[#allocation4 + $0x60] sm:$0xff] %vm3347, 0.0
        %5701 = vst.msk [vmem:[#allocation4 + $0x68] sm:$0xff] %vm3347, 0.0
        %5702 = vst.msk [vmem:[#allocation4 + $0x70] sm:$0xff] %vm3347, 0.0
        %5703 = vst.msk [vmem:[#allocation4 + $0x78] sm:$0xff] %vm3347, 0.0
        %5704 = vst.msk [vmem:[#allocation4 + $0x80] sm:$0xff] %vm3347, 0.0
        %5705 = vst.msk [vmem:[#allocation4 + $0x88] sm:$0xff] %vm3347, 0.0
        %5706 = vst.msk [vmem:[#allocation4 + $0x90] sm:$0xff] %vm3347, 0.0
        %5707 = vst.msk [vmem:[#allocation4 + $0x98] sm:$0xff] %vm3347, 0.0
        %5708 = vst.msk [vmem:[#allocation4 + $0xa0] sm:$0xff] %vm3347, 0.0
        %5709 = vst.msk [vmem:[#allocation4 + $0xa8] sm:$0xff] %vm3347, 0.0
        %5710 = vst.msk [vmem:[#allocation4 + $0xb0] sm:$0xff] %vm3347, 0.0
        %5711 = vst.msk [vmem:[#allocation4 + $0xb8] sm:$0xff] %vm3347, 0.0
        %5712 = vst.msk [vmem:[#allocation4 + $0xc0] sm:$0xff] %vm3347, 0.0
        %5713 = vst.msk [vmem:[#allocation4 + $0xc8] sm:$0xff] %vm3347, 0.0
        %5714 = vst.msk [vmem:[#allocation4 + $0xd0] sm:$0xff] %vm3347, 0.0
        %5715 = vst.msk [vmem:[#allocation4 + $0xd8] sm:$0xff] %vm3347, 0.0
        %5716 = vst.msk [vmem:[#allocation4 + $0xe0] sm:$0xff] %vm3347, 0.0
        %5717 = vst.msk [vmem:[#allocation4 + $0xe8] sm:$0xff] %vm3347, 0.0
        %5718 = vst.msk [vmem:[#allocation4 + $0xf0] sm:$0xff] %vm3347, 0.0
        %5719 = vst.msk [vmem:[#allocation4 + $0xf8] sm:$0xff] %vm3347, 0.0
        %5720 = vst.msk [vmem:[#allocation4 + $0x100] sm:$0xff] %vm3347, 0.0
        %5721 = vst.msk [vmem:[#allocation4 + $0x108] sm:$0xff] %vm3347, 0.0
        %5722 = vst.msk [vmem:[#allocation4 + $0x110] sm:$0xff] %vm3347, 0.0
        %5723 = vst.msk [vmem:[#allocation4 + $0x118] sm:$0xff] %vm3347, 0.0
        %5724 = vst.msk [vmem:[#allocation4 + $0x120] sm:$0xff] %vm3347, 0.0
        %5725 = vst.msk [vmem:[#allocation4 + $0x128] sm:$0xff] %vm3347, 0.0
        %5726 = vst.msk [vmem:[#allocation4 + $0x130] sm:$0xff] %vm3347, 0.0
        %5727 = vst.msk [vmem:[#allocation4 + $0x138] sm:$0xff] %vm3347, 0.0
        %5728 = vst.msk [vmem:[#allocation4 + $0x140] sm:$0xff] %vm3347, 0.0
        %5729 = vst.msk [vmem:[#allocation4 + $0x148] sm:$0xff] %vm3347, 0.0
        %5730 = vst.msk [vmem:[#allocation4 + $0x150] sm:$0xff] %vm3347, 0.0
        %5731 = vst.msk [vmem:[#allocation4 + $0x158] sm:$0xff] %vm3347, 0.0
        %5732 = vst.msk [vmem:[#allocation4 + $0x160] sm:$0xff] %vm3347, 0.0
        %5733 = vst.msk [vmem:[#allocation4 + $0x168] sm:$0xff] %vm3347, 0.0
        %5734 = vst.msk [vmem:[#allocation4 + $0x170] sm:$0xff] %vm3347, 0.0
        %5735 = vst.msk [vmem:[#allocation4 + $0x178] sm:$0xff] %vm3347, 0.0
        %5736 = vst.msk [vmem:[#allocation4 + $0x180] sm:$0xff] %vm3347, 0.0
        %5737 = vst.msk [vmem:[#allocation4 + $0x188] sm:$0xff] %vm3347, 0.0
        %5738 = vst.msk [vmem:[#allocation4 + $0x190] sm:$0xff] %vm3347, 0.0
        %5739 = vst.msk [vmem:[#allocation4 + $0x198] sm:$0xff] %vm3347, 0.0
        %5740 = vst.msk [vmem:[#allocation4 + $0x1a0] sm:$0xff] %vm3347, 0.0
        %5741 = vst.msk [vmem:[#allocation4 + $0x1a8] sm:$0xff] %vm3347, 0.0
        %5742 = vst.msk [vmem:[#allocation4 + $0x1b0] sm:$0xff] %vm3347, 0.0
        %5743 = vst.msk [vmem:[#allocation4 + $0x1b8] sm:$0xff] %vm3347, 0.0
        %5744 = vst.msk [vmem:[#allocation4 + $0x1c0] sm:$0xff] %vm3347, 0.0
        %5745 = vst.msk [vmem:[#allocation4 + $0x1c8] sm:$0xff] %vm3347, 0.0
        %5746 = vst.msk [vmem:[#allocation4 + $0x1d0] sm:$0xff] %vm3347, 0.0
        %5747 = vst.msk [vmem:[#allocation4 + $0x1d8] sm:$0xff] %vm3347, 0.0
        %5752 = vrot.lane.b32.xlu0 %v5684, 3
        %v5753 = vpop.permute.xlu0 %5752
        %5754 = vrot.lane.b32.xlu0 %v5685, 3
        %v5755 = vpop.permute.xlu0 %5754
        %5756 = vrot.lane.b32.xlu0 %v5686, 3
        %v5757 = vpop.permute.xlu0 %5756
        %5758 = vrot.lane.b32.xlu0 %v5687, 3
        %v5759 = vpop.permute.xlu0 %5758
        %5764 = vst.msk [vmem:[#allocation4 + $0x80] sm:$0xff] %vm4008, %v5753
        %5765 = vst.msk [vmem:[#allocation4 + $0x88] sm:$0xff] %vm4008, %v5755
        %5766 = vst.msk [vmem:[#allocation4 + $0x90] sm:$0xff] %vm4008, %v5757
        %5767 = vst.msk [vmem:[#allocation4 + $0x98] sm:$0xff] %vm4008, %v5759
        %5768 = vrot.lane.b32.xlu0 %v5684, 2
        %v5769 = vpop.permute.xlu0 %5768
        %5770 = vrot.lane.b32.xlu0 %v5685, 2
        %v5771 = vpop.permute.xlu0 %5770
        %5772 = vrot.lane.b32.xlu0 %v5686, 2
        %v5773 = vpop.permute.xlu0 %5772
        %5774 = vrot.lane.b32.xlu0 %v5687, 2
        %v5775 = vpop.permute.xlu0 %5774
        %5780 = vst.msk [vmem:[#allocation4 + $0xa0] sm:$0xff] %vm4025, %v5769
        %5781 = vst.msk [vmem:[#allocation4 + $0xa8] sm:$0xff] %vm4025, %v5771
        %5782 = vst.msk [vmem:[#allocation4 + $0xb0] sm:$0xff] %vm4025, %v5773
        %5783 = vst.msk [vmem:[#allocation4 + $0xb8] sm:$0xff] %vm4025, %v5775
        %5784 = vrot.lane.b32.xlu0 %v5684, 1
        %v5785 = vpop.permute.xlu0 %5784
        %5786 = vrot.lane.b32.xlu0 %v5685, 1
        %v5787 = vpop.permute.xlu0 %5786
        %5788 = vrot.lane.b32.xlu0 %v5686, 1
        %v5789 = vpop.permute.xlu0 %5788
        %5790 = vrot.lane.b32.xlu0 %v5687, 1
        %v5791 = vpop.permute.xlu0 %5790
        %5796 = vst.msk [vmem:[#allocation4 + $0xc0] sm:$0xff] %vm4042, %v5785
        %5797 = vst.msk [vmem:[#allocation4 + $0xc8] sm:$0xff] %vm4042, %v5787
        %5798 = vst.msk [vmem:[#allocation4 + $0xd0] sm:$0xff] %vm4042, %v5789
        %5799 = vst.msk [vmem:[#allocation4 + $0xd8] sm:$0xff] %vm4042, %v5791
        %5800 = vst.msk [vmem:[#allocation4 + $0xe0] sm:$0xff] %vm3347, %v5684
        %5801 = vst.msk [vmem:[#allocation4 + $0xe8] sm:$0xff] %vm3347, %v5685
        %5802 = vst.msk [vmem:[#allocation4 + $0xf0] sm:$0xff] %vm3347, %v5686
        %5803 = vst.msk [vmem:[#allocation4 + $0xf8] sm:$0xff] %vm3347, %v5687
        %5804 = vrot.lane.b32.xlu0 %v5684, 127
        %v5805 = vpop.permute.xlu0 %5804
        %5806 = vrot.lane.b32.xlu0 %v5685, 127
        %v5807 = vpop.permute.xlu0 %5806
        %5808 = vrot.lane.b32.xlu0 %v5686, 127
        %v5809 = vpop.permute.xlu0 %5808
        %5810 = vrot.lane.b32.xlu0 %v5687, 127
        %v5811 = vpop.permute.xlu0 %5810
        %5816 = vst.msk [vmem:[#allocation4 + $0x100] sm:$0xff] %vm4063, %v5805
        %5817 = vst.msk [vmem:[#allocation4 + $0x108] sm:$0xff] %vm4063, %v5807
        %5818 = vst.msk [vmem:[#allocation4 + $0x110] sm:$0xff] %vm4063, %v5809
        %5819 = vst.msk [vmem:[#allocation4 + $0x118] sm:$0xff] %vm4063, %v5811
        %5820 = vrot.lane.b32.xlu0 %v5684, 126
        %v5821 = vpop.permute.xlu0 %5820
        %5822 = vrot.lane.b32.xlu0 %v5685, 126
        %v5823 = vpop.permute.xlu0 %5822
        %5824 = vrot.lane.b32.xlu0 %v5686, 126
        %v5825 = vpop.permute.xlu0 %5824
        %5826 = vrot.lane.b32.xlu0 %v5687, 126
        %v5827 = vpop.permute.xlu0 %5826
        %5832 = vst.msk [vmem:[#allocation4 + $0x120] sm:$0xff] %vm4080, %v5821
        %5833 = vst.msk [vmem:[#allocation4 + $0x128] sm:$0xff] %vm4080, %v5823
        %5834 = vst.msk [vmem:[#allocation4 + $0x130] sm:$0xff] %vm4080, %v5825
        %5835 = vst.msk [vmem:[#allocation4 + $0x138] sm:$0xff] %vm4080, %v5827
        %5836 = vrot.lane.b32.xlu0 %v5684, 125
        %v5837 = vpop.permute.xlu0 %5836
        %5838 = vrot.lane.b32.xlu0 %v5685, 125
        %v5839 = vpop.permute.xlu0 %5838
        %5840 = vrot.lane.b32.xlu0 %v5686, 125
        %v5841 = vpop.permute.xlu0 %5840
        %5842 = vrot.lane.b32.xlu0 %v5687, 125
        %v5843 = vpop.permute.xlu0 %5842
        %5848 = vst.msk [vmem:[#allocation4 + $0x140] sm:$0xff] %vm4097, %v5837
        %5849 = vst.msk [vmem:[#allocation4 + $0x148] sm:$0xff] %vm4097, %v5839
        %5850 = vst.msk [vmem:[#allocation4 + $0x150] sm:$0xff] %vm4097, %v5841
        %5851 = vst.msk [vmem:[#allocation4 + $0x158] sm:$0xff] %vm4097, %v5843
        %v5852 = vld [vmem:[#allocation2] sm:$0xff]
        %v5853 = vld [vmem:[#allocation2 + $0x8] sm:$0x7f]
        %v5854 = vld [vmem:[%s20] sm:$0xff]
        %v5855 = vld [vmem:[%s21] sm:$0xff]
        %5857 = vset.pattern.permute.xlu0 0
        %5858 = vperm.xlu0 %5857, %v5855
        %v5859 = vpop.permute.xlu0 %5858
        %v5862 = vsel %vm1513, %v5854, 0
        %v5865 = vsel %vm3707, %v5853, 0
        %5867 = vmatpush.msra.mxu0 0.0
        %5868 = vmatpush.msra.mxu0 0.0
        %5869 = vmatpush.msra.mxu0 0.0
        %5870 = vmatpush.msra.mxu0 0.0
        %5871 = vmatpush.msra.mxu0 0.0
        %5872 = vmatpush.msra.mxu0 0.0
        %5873 = vmatpush.msra.mxu0 0.0
        %5874 = vmatpush.msra.mxu0 0.0
        %5875 = vmatpush.msra.mxu0 0.0
        %5876 = vmatpush.msra.mxu0 0.0
        %5877 = vmatpush.msra.mxu0 0.0
        %5878 = vmatpush.msra.mxu0 0.0
        %5879 = vmatpush.msra.mxu0 0.0
        %5880 = vmatpush.msra.mxu0 0.0
        %5881 = vmatpush.msra.mxu0 %v5865
        %5882 = vmatpush.msra.mxu0 %v5852
        %5883 = vmatmul.f32.gmra.mxu0 %v5862
        %v5884 = vpop.f32.mrf.mxu0
        %v5885 = vadd.f32 %v5859, %v5884
        %5886 = vdwg.mxu0
        %v5887 = vxor.u32 %v5885, 2147483648
        %v5888 = vmul.f32 %v5887, 1.442695
        %v5889 = vpow.pop %v5888
        %v5890 = vadd.f32 %v5889, 1.0
        %v5891 = vrcp.pop %v5890
        %v5892 = vmul.f32 %v5890, %v5891
        %v5893 = vsub.f32 1.0, %v5892
        %v5894 = vmul.f32 %v5891, %v5893
        %v5895 = vadd.f32 %v5891, %v5894
        %vm5896 = vweird.f32 %v5890
        %vm5897 = vweird.f32 %v5891
        %vm5898 = vmor %vm5896, %vm5897
        %v5899 = vsel %vm5898, %v5891, %v5895
        %v5900 = vand.u32 2147483647, %v5890
        %vm5901 = vcmp.eq.f32.partialorder %v5900, 8.507059e+37
        %v5902 = vand.u32 %v5890, 2147483648
        %v5903 = vor.u32 1.1754944e-38, %v5902
        %v5904 = vsel %vm5901, %v5903, %v5899
        %v5905 = vmul.f32 1.0, %v5904
        %s5906 = sld [smem:[#allocation8 + $0x180]]
        %v5907 = vstv %s5906
        %v5908 = vmul.f32 %v5907, %v5905
        %s5909 = sld [smem:[#allocation8 + $0x181]]
        %v5910 = vstv %s5909
        %v5911 = vmul.f32 %v5910, %v5905
        %v5913 = vrot.slane %v5911, 1
        %v5915 = vadd.f32 %v5908, %v5913
        %s5916 = sld [smem:[#allocation8 + $0x182]]
        %v5917 = vstv %s5916
        %v5918 = vmul.f32 %v5917, %v5905
        %v5920 = vrot.slane %v5918, 2
        %v5922 = vadd.f32 %v5915, %v5920
        %s5923 = sld [smem:[#allocation8 + $0x183]]
        %v5924 = vstv %s5923
        %v5925 = vmul.f32 %v5924, %v5905
        %v5927 = vrot.slane %v5925, 3
        %v5929 = vadd.f32 %v5922, %v5927
        %s5930 = sld [smem:[#allocation8 + $0x184]]
        %v5931 = vstv %s5930
        %v5932 = vmul.f32 %v5931, %v5905
        %v5934 = vrot.slane %v5932, 4
        %v5936 = vadd.f32 %v5929, %v5934
        %s5937 = sld [smem:[#allocation8 + $0x185]]
        %v5938 = vstv %s5937
        %v5939 = vmul.f32 %v5938, %v5905
        %v5941 = vrot.slane %v5939, 5
        %v5943 = vadd.f32 %v5936, %v5941
        %s5944 = sld [smem:[#allocation8 + $0x186]]
        %v5945 = vstv %s5944
        %v5946 = vmul.f32 %v5945, %v5905
        %v5948 = vrot.slane %v5946, 6
        %v5950 = vadd.f32 %v5943, %v5948
        %s5951 = sld [smem:[#allocation8 + $0x187]]
        %v5952 = vstv %s5951
        %v5953 = vmul.f32 %v5952, %v5905
        %v5955 = vrot.slane %v5953, 7
        %v5957 = vadd.f32 %v5950, %v5955
        %v5958 = vld [vmem:[#allocation3] sm:$0xff]
        %v5959 = vld [vmem:[#allocation3 + $0x8] sm:$0xff]
        %v5960 = vld [vmem:[#allocation3 + $0x10] sm:$0xff]
        %v5961 = vld [vmem:[#allocation3 + $0x18] sm:$0xff]
        %v5962 = vld [vmem:[#allocation3 + $0x20] sm:$0xff]
        %v5963 = vld [vmem:[#allocation3 + $0x28] sm:$0xff]
        %v5964 = vld [vmem:[#allocation3 + $0x30] sm:$0xff]
        %v5965 = vld [vmem:[#allocation3 + $0x38] sm:$0xff]
        %v5966 = vld [vmem:[#allocation3 + $0x40] sm:$0xff]
        %v5967 = vld [vmem:[#allocation3 + $0x48] sm:$0xff]
        %v5968 = vld [vmem:[#allocation3 + $0x50] sm:$0xff]
        %v5969 = vld [vmem:[#allocation3 + $0x58] sm:$0xff]
        %v5970 = vld [vmem:[#allocation3 + $0x60] sm:$0xff]
        %v5971 = vld [vmem:[#allocation3 + $0x68] sm:$0xff]
        %v5972 = vld [vmem:[#allocation3 + $0x70] sm:$0xff]
        %v5973 = vld [vmem:[#allocation3 + $0x78] sm:$0xff]
        %v5974 = vld [vmem:[#allocation3 + $0x80] sm:$0xff]
        %v5975 = vld [vmem:[#allocation3 + $0x88] sm:$0xff]
        %v5976 = vld [vmem:[#allocation3 + $0x90] sm:$0xff]
        %v5977 = vld [vmem:[#allocation3 + $0x98] sm:$0xff]
        %v5978 = vld [vmem:[#allocation3 + $0xa0] sm:$0xff]
        %v5979 = vld [vmem:[#allocation3 + $0xa8] sm:$0xff]
        %v5980 = vld [vmem:[#allocation3 + $0xb0] sm:$0xff]
        %v5981 = vld [vmem:[#allocation3 + $0xb8] sm:$0xff]
        %v5982 = vld [vmem:[#allocation3 + $0xc0] sm:$0xff]
        %v5983 = vld [vmem:[#allocation3 + $0xc8] sm:$0xff]
        %v5984 = vld [vmem:[#allocation3 + $0xd0] sm:$0xff]
        %v5985 = vld [vmem:[#allocation3 + $0xd8] sm:$0xff]
        %v5986 = vld [vmem:[#allocation3 + $0xe0] sm:$0xff]
        %v5987 = vld [vmem:[#allocation3 + $0xe8] sm:$0xff]
        %v5988 = vld [vmem:[#allocation3 + $0xf0] sm:$0xff]
        %v5989 = vld [vmem:[#allocation3 + $0xf8] sm:$0xff]
        %v5990 = vld [vmem:[#allocation3 + $0x100] sm:$0xff]
        %v5991 = vld [vmem:[#allocation3 + $0x108] sm:$0xff]
        %v5992 = vld [vmem:[#allocation3 + $0x110] sm:$0xff]
        %v5993 = vld [vmem:[#allocation3 + $0x118] sm:$0xff]
        %v5994 = vld [vmem:[#allocation3 + $0x120] sm:$0xff]
        %v5995 = vld [vmem:[#allocation3 + $0x128] sm:$0xff]
        %v5996 = vld [vmem:[#allocation3 + $0x130] sm:$0xff]
        %v5997 = vld [vmem:[#allocation3 + $0x138] sm:$0xff]
        %v5998 = vld [vmem:[#allocation3 + $0x140] sm:$0xff]
        %v5999 = vld [vmem:[#allocation3 + $0x148] sm:$0xff]
        %v6000 = vld [vmem:[#allocation3 + $0x150] sm:$0xff]
        %v6001 = vld [vmem:[#allocation3 + $0x158] sm:$0xff]
        %v6002 = vld [vmem:[#allocation3 + $0x160] sm:$0xff]
        %v6003 = vld [vmem:[#allocation3 + $0x168] sm:$0xff]
        %v6004 = vld [vmem:[#allocation3 + $0x170] sm:$0xff]
        %v6005 = vld [vmem:[#allocation3 + $0x178] sm:$0xff]
        %v6006 = vld [vmem:[#allocation3 + $0x180] sm:$0xff]
        %v6007 = vld [vmem:[#allocation3 + $0x188] sm:$0xff]
        %v6008 = vld [vmem:[#allocation3 + $0x190] sm:$0xff]
        %v6009 = vld [vmem:[#allocation3 + $0x198] sm:$0xff]
        %v6010 = vld [vmem:[#allocation3 + $0x1a0] sm:$0xff]
        %v6011 = vld [vmem:[#allocation3 + $0x1a8] sm:$0xff]
        %v6012 = vld [vmem:[#allocation3 + $0x1b0] sm:$0xff]
        %v6013 = vld [vmem:[#allocation3 + $0x1b8] sm:$0xff]
        %v6014 = vld [vmem:[#allocation3 + $0x1c0] sm:$0xff]
        %v6015 = vld [vmem:[#allocation3 + $0x1c8] sm:$0xff]
        %v6016 = vld [vmem:[#allocation3 + $0x1d0] sm:$0xff]
        %v6017 = vld [vmem:[#allocation3 + $0x1d8] sm:$0xff]
        %v6018 = vld [vmem:[%s22] sm:$0xff]
        %v6019 = vld [vmem:[%s22 + $0x8] sm:$0xff]
        %v6020 = vld [vmem:[%s22 + $0x10] sm:$0xff]
        %v6021 = vld [vmem:[%s22 + $0x18] sm:$0xff]
        %v6022 = vld [vmem:[%s23] sm:$0xff]
        %6024 = vset.pattern.permute.xlu0 0
        %6025 = vperm.xlu0 %6024, %v6022
        %v6026 = vpop.permute.xlu0 %6025
        %v6029 = vsel %vm2264, %v6021, 0
        %6031 = vmatpush.msra.mxu0 %v5973
        %6032 = vmatpush.msra.mxu0 %v5972
        %6033 = vmatpush.msra.mxu0 %v5971
        %6034 = vmatpush.msra.mxu0 %v5970
        %6035 = vmatpush.msra.mxu0 %v5969
        %6036 = vmatpush.msra.mxu0 %v5968
        %6037 = vmatpush.msra.mxu0 %v5967
        %6038 = vmatpush.msra.mxu0 %v5966
        %6039 = vmatpush.msra.mxu0 %v5965
        %6040 = vmatpush.msra.mxu0 %v5964
        %6041 = vmatpush.msra.mxu0 %v5963
        %6042 = vmatpush.msra.mxu0 %v5962
        %6043 = vmatpush.msra.mxu0 %v5961
        %6044 = vmatpush.msra.mxu0 %v5960
        %6045 = vmatpush.msra.mxu0 %v5959
        %6046 = vmatpush.msra.mxu0 %v5958
        %6047 = vmatmul.f32.gmra.mxu0 %v6018
        %v6048 = vpop.f32.mrf.mxu0
        %v6049 = vadd.f32 %v6026, %v6048
        %6050 = vdwg.mxu0
        %6051 = vmatpush.msra.mxu0 %v5989
        %6052 = vmatpush.msra.mxu0 %v5988
        %6053 = vmatpush.msra.mxu0 %v5987
        %6054 = vmatpush.msra.mxu0 %v5986
        %6055 = vmatpush.msra.mxu0 %v5985
        %6056 = vmatpush.msra.mxu0 %v5984
        %6057 = vmatpush.msra.mxu0 %v5983
        %6058 = vmatpush.msra.mxu0 %v5982
        %6059 = vmatpush.msra.mxu0 %v5981
        %6060 = vmatpush.msra.mxu0 %v5980
        %6061 = vmatpush.msra.mxu0 %v5979
        %6062 = vmatpush.msra.mxu0 %v5978
        %6063 = vmatpush.msra.mxu0 %v5977
        %6064 = vmatpush.msra.mxu0 %v5976
        %6065 = vmatpush.msra.mxu0 %v5975
        %6066 = vmatpush.msra.mxu0 %v5974
        %6067 = vmatmul.f32.gmra.mxu0 %v6019
        %v6068 = vpop.f32.mrf.mxu0
        %v6069 = vadd.f32 %v6049, %v6068
        %6070 = vdwg.mxu0
        %6071 = vmatpush.msra.mxu0 %v6005
        %6072 = vmatpush.msra.mxu0 %v6004
        %6073 = vmatpush.msra.mxu0 %v6003
        %6074 = vmatpush.msra.mxu0 %v6002
        %6075 = vmatpush.msra.mxu0 %v6001
        %6076 = vmatpush.msra.mxu0 %v6000
        %6077 = vmatpush.msra.mxu0 %v5999
        %6078 = vmatpush.msra.mxu0 %v5998
        %6079 = vmatpush.msra.mxu0 %v5997
        %6080 = vmatpush.msra.mxu0 %v5996
        %6081 = vmatpush.msra.mxu0 %v5995
        %6082 = vmatpush.msra.mxu0 %v5994
        %6083 = vmatpush.msra.mxu0 %v5993
        %6084 = vmatpush.msra.mxu0 %v5992
        %6085 = vmatpush.msra.mxu0 %v5991
        %6086 = vmatpush.msra.mxu0 %v5990
        %6087 = vmatmul.f32.gmra.mxu0 %v6020
        %v6088 = vpop.f32.mrf.mxu0
        %v6089 = vadd.f32 %v6069, %v6088
        %6090 = vdwg.mxu0
        %6091 = vmatpush.msra.mxu0 0.0
        %6092 = vmatpush.msra.mxu0 0.0
        %6093 = vmatpush.msra.mxu0 0.0
        %6094 = vmatpush.msra.mxu0 0.0
        %6095 = vmatpush.msra.mxu0 %v6017
        %6096 = vmatpush.msra.mxu0 %v6016
        %6097 = vmatpush.msra.mxu0 %v6015
        %6098 = vmatpush.msra.mxu0 %v6014
        %6099 = vmatpush.msra.mxu0 %v6013
        %6100 = vmatpush.msra.mxu0 %v6012
        %6101 = vmatpush.msra.mxu0 %v6011
        %6102 = vmatpush.msra.mxu0 %v6010
        %6103 = vmatpush.msra.mxu0 %v6009
        %6104 = vmatpush.msra.mxu0 %v6008
        %6105 = vmatpush.msra.mxu0 %v6007
        %6106 = vmatpush.msra.mxu0 %v6006
        %6107 = vmatmul.f32.gmra.mxu0 %v6029
        %v6108 = vpop.f32.mrf.mxu0
        %v6109 = vadd.f32 %v6089, %v6108
        %6110 = vdwg.mxu0
        %v6111 = vxor.u32 %v6109, 2147483648
        %v6112 = vmul.f32 %v6111, 1.442695
        %v6113 = vpow.pop %v6112
        %v6114 = vadd.f32 %v6113, 1.0
        %v6115 = vrcp.pop %v6114
        %v6116 = vmul.f32 %v6114, %v6115
        %v6117 = vsub.f32 1.0, %v6116
        %v6118 = vmul.f32 %v6115, %v6117
        %v6119 = vadd.f32 %v6115, %v6118
        %vm6120 = vweird.f32 %v6114
        %vm6121 = vweird.f32 %v6115
        %vm6122 = vmor %vm6120, %vm6121
        %v6123 = vsel %vm6122, %v6115, %v6119
        %v6124 = vand.u32 2147483647, %v6114
        %vm6125 = vcmp.eq.f32.partialorder %v6124, 8.507059e+37
        %v6126 = vand.u32 %v6114, 2147483648
        %v6127 = vor.u32 1.1754944e-38, %v6126
        %v6128 = vsel %vm6125, %v6127, %v6123
        %v6129 = vmul.f32 1.0, %v6128
        %s6130 = sld [smem:[#allocation8 + $0x200]]
        %v6131 = vstv %s6130
        %v6132 = vmul.f32 %v6131, %v6129
        %s6133 = sld [smem:[#allocation8 + $0x201]]
        %v6134 = vstv %s6133
        %v6135 = vmul.f32 %v6134, %v6129
        %v6137 = vrot.slane %v6135, 1
        %v6139 = vadd.f32 %v6132, %v6137
        %s6140 = sld [smem:[#allocation8 + $0x202]]
        %v6141 = vstv %s6140
        %v6142 = vmul.f32 %v6141, %v6129
        %v6144 = vrot.slane %v6142, 2
        %v6146 = vadd.f32 %v6139, %v6144
        %s6147 = sld [smem:[#allocation8 + $0x203]]
        %v6148 = vstv %s6147
        %v6149 = vmul.f32 %v6148, %v6129
        %v6151 = vrot.slane %v6149, 3
        %v6153 = vadd.f32 %v6146, %v6151
        %s6154 = sld [smem:[#allocation8 + $0x204]]
        %v6155 = vstv %s6154
        %v6156 = vmul.f32 %v6155, %v6129
        %v6158 = vrot.slane %v6156, 4
        %v6160 = vadd.f32 %v6153, %v6158
        %s6161 = sld [smem:[#allocation8 + $0x205]]
        %v6162 = vstv %s6161
        %v6163 = vmul.f32 %v6162, %v6129
        %v6165 = vrot.slane %v6163, 5
        %v6167 = vadd.f32 %v6160, %v6165
        %s6168 = sld [smem:[#allocation8 + $0x206]]
        %v6169 = vstv %s6168
        %v6170 = vmul.f32 %v6169, %v6129
        %v6172 = vrot.slane %v6170, 6
        %v6174 = vadd.f32 %v6167, %v6172
        %s6175 = sld [smem:[#allocation8 + $0x207]]
        %v6176 = vstv %s6175
        %v6177 = vmul.f32 %v6176, %v6129
        %v6179 = vrot.slane %v6177, 7
        %v6181 = vadd.f32 %v6174, %v6179
        %v6182 = vadd.f32 %v5957, %v6181
        %v6183 = vld [vmem:[#allocation4] sm:$0xff]
        %v6184 = vld [vmem:[#allocation4 + $0x8] sm:$0xff]
        %v6185 = vld [vmem:[#allocation4 + $0x10] sm:$0xff]
        %v6186 = vld [vmem:[#allocation4 + $0x18] sm:$0xff]
        %v6187 = vld [vmem:[#allocation4 + $0x20] sm:$0xff]
        %v6188 = vld [vmem:[#allocation4 + $0x28] sm:$0xff]
        %v6189 = vld [vmem:[#allocation4 + $0x30] sm:$0xff]
        %v6190 = vld [vmem:[#allocation4 + $0x38] sm:$0xff]
        %v6191 = vld [vmem:[#allocation4 + $0x40] sm:$0xff]
        %v6192 = vld [vmem:[#allocation4 + $0x48] sm:$0xff]
        %v6193 = vld [vmem:[#allocation4 + $0x50] sm:$0xff]
        %v6194 = vld [vmem:[#allocation4 + $0x58] sm:$0xff]
        %v6195 = vld [vmem:[#allocation4 + $0x60] sm:$0xff]
        %v6196 = vld [vmem:[#allocation4 + $0x68] sm:$0xff]
        %v6197 = vld [vmem:[#allocation4 + $0x70] sm:$0xff]
        %v6198 = vld [vmem:[#allocation4 + $0x78] sm:$0xff]
        %v6199 = vld [vmem:[#allocation4 + $0x80] sm:$0xff]
        %v6200 = vld [vmem:[#allocation4 + $0x88] sm:$0xff]
        %v6201 = vld [vmem:[#allocation4 + $0x90] sm:$0xff]
        %v6202 = vld [vmem:[#allocation4 + $0x98] sm:$0xff]
        %v6203 = vld [vmem:[#allocation4 + $0xa0] sm:$0xff]
        %v6204 = vld [vmem:[#allocation4 + $0xa8] sm:$0xff]
        %v6205 = vld [vmem:[#allocation4 + $0xb0] sm:$0xff]
        %v6206 = vld [vmem:[#allocation4 + $0xb8] sm:$0xff]
        %v6207 = vld [vmem:[#allocation4 + $0xc0] sm:$0xff]
        %v6208 = vld [vmem:[#allocation4 + $0xc8] sm:$0xff]
        %v6209 = vld [vmem:[#allocation4 + $0xd0] sm:$0xff]
        %v6210 = vld [vmem:[#allocation4 + $0xd8] sm:$0xff]
        %v6211 = vld [vmem:[#allocation4 + $0xe0] sm:$0xff]
        %v6212 = vld [vmem:[#allocation4 + $0xe8] sm:$0xff]
        %v6213 = vld [vmem:[#allocation4 + $0xf0] sm:$0xff]
        %v6214 = vld [vmem:[#allocation4 + $0xf8] sm:$0xff]
        %v6215 = vld [vmem:[#allocation4 + $0x100] sm:$0xff]
        %v6216 = vld [vmem:[#allocation4 + $0x108] sm:$0xff]
        %v6217 = vld [vmem:[#allocation4 + $0x110] sm:$0xff]
        %v6218 = vld [vmem:[#allocation4 + $0x118] sm:$0xff]
        %v6219 = vld [vmem:[#allocation4 + $0x120] sm:$0xff]
        %v6220 = vld [vmem:[#allocation4 + $0x128] sm:$0xff]
        %v6221 = vld [vmem:[#allocation4 + $0x130] sm:$0xff]
        %v6222 = vld [vmem:[#allocation4 + $0x138] sm:$0xff]
        %v6223 = vld [vmem:[#allocation4 + $0x140] sm:$0xff]
        %v6224 = vld [vmem:[#allocation4 + $0x148] sm:$0xff]
        %v6225 = vld [vmem:[#allocation4 + $0x150] sm:$0xff]
        %v6226 = vld [vmem:[#allocation4 + $0x158] sm:$0xff]
        %v6227 = vld [vmem:[#allocation4 + $0x160] sm:$0xff]
        %v6228 = vld [vmem:[#allocation4 + $0x168] sm:$0xff]
        %v6229 = vld [vmem:[#allocation4 + $0x170] sm:$0xff]
        %v6230 = vld [vmem:[#allocation4 + $0x178] sm:$0xff]
        %v6231 = vld [vmem:[#allocation4 + $0x180] sm:$0xff]
        %v6232 = vld [vmem:[#allocation4 + $0x188] sm:$0xff]
        %v6233 = vld [vmem:[#allocation4 + $0x190] sm:$0xff]
        %v6234 = vld [vmem:[#allocation4 + $0x198] sm:$0xff]
        %v6235 = vld [vmem:[#allocation4 + $0x1a0] sm:$0xff]
        %v6236 = vld [vmem:[#allocation4 + $0x1a8] sm:$0xff]
        %v6237 = vld [vmem:[#allocation4 + $0x1b0] sm:$0xff]
        %v6238 = vld [vmem:[#allocation4 + $0x1b8] sm:$0xff]
        %v6239 = vld [vmem:[#allocation4 + $0x1c0] sm:$0xff]
        %v6240 = vld [vmem:[#allocation4 + $0x1c8] sm:$0xff]
        %v6241 = vld [vmem:[#allocation4 + $0x1d0] sm:$0xff]
        %v6242 = vld [vmem:[#allocation4 + $0x1d8] sm:$0xff]
        %v6243 = vld [vmem:[%s24] sm:$0xff]
        %v6244 = vld [vmem:[%s24 + $0x8] sm:$0xff]
        %v6245 = vld [vmem:[%s24 + $0x10] sm:$0xff]
        %v6246 = vld [vmem:[%s24 + $0x18] sm:$0xff]
        %v6247 = vld [vmem:[%s25] sm:$0xff]
        %6249 = vset.pattern.permute.xlu0 0
        %6250 = vperm.xlu0 %6249, %v6247
        %v6251 = vpop.permute.xlu0 %6250
        %v6254 = vsel %vm2264, %v6246, 0
        %6256 = vmatpush.msra.mxu0 %v6198
        %6257 = vmatpush.msra.mxu0 %v6197
        %6258 = vmatpush.msra.mxu0 %v6196
        %6259 = vmatpush.msra.mxu0 %v6195
        %6260 = vmatpush.msra.mxu0 %v6194
        %6261 = vmatpush.msra.mxu0 %v6193
        %6262 = vmatpush.msra.mxu0 %v6192
        %6263 = vmatpush.msra.mxu0 %v6191
        %6264 = vmatpush.msra.mxu0 %v6190
        %6265 = vmatpush.msra.mxu0 %v6189
        %6266 = vmatpush.msra.mxu0 %v6188
        %6267 = vmatpush.msra.mxu0 %v6187
        %6268 = vmatpush.msra.mxu0 %v6186
        %6269 = vmatpush.msra.mxu0 %v6185
        %6270 = vmatpush.msra.mxu0 %v6184
        %6271 = vmatpush.msra.mxu0 %v6183
        %6272 = vmatmul.f32.gmra.mxu0 %v6243
        %v6273 = vpop.f32.mrf.mxu0
        %v6274 = vadd.f32 %v6251, %v6273
        %6275 = vdwg.mxu0
        %6276 = vmatpush.msra.mxu0 %v6214
        %6277 = vmatpush.msra.mxu0 %v6213
        %6278 = vmatpush.msra.mxu0 %v6212
        %6279 = vmatpush.msra.mxu0 %v6211
        %6280 = vmatpush.msra.mxu0 %v6210
        %6281 = vmatpush.msra.mxu0 %v6209
        %6282 = vmatpush.msra.mxu0 %v6208
        %6283 = vmatpush.msra.mxu0 %v6207
        %6284 = vmatpush.msra.mxu0 %v6206
        %6285 = vmatpush.msra.mxu0 %v6205
        %6286 = vmatpush.msra.mxu0 %v6204
        %6287 = vmatpush.msra.mxu0 %v6203
        %6288 = vmatpush.msra.mxu0 %v6202
        %6289 = vmatpush.msra.mxu0 %v6201
        %6290 = vmatpush.msra.mxu0 %v6200
        %6291 = vmatpush.msra.mxu0 %v6199
        %6292 = vmatmul.f32.gmra.mxu0 %v6244
        %v6293 = vpop.f32.mrf.mxu0
        %v6294 = vadd.f32 %v6274, %v6293
        %6295 = vdwg.mxu0
        %6296 = vmatpush.msra.mxu0 %v6230
        %6297 = vmatpush.msra.mxu0 %v6229
        %6298 = vmatpush.msra.mxu0 %v6228
        %6299 = vmatpush.msra.mxu0 %v6227
        %6300 = vmatpush.msra.mxu0 %v6226
        %6301 = vmatpush.msra.mxu0 %v6225
        %6302 = vmatpush.msra.mxu0 %v6224
        %6303 = vmatpush.msra.mxu0 %v6223
        %6304 = vmatpush.msra.mxu0 %v6222
        %6305 = vmatpush.msra.mxu0 %v6221
        %6306 = vmatpush.msra.mxu0 %v6220
        %6307 = vmatpush.msra.mxu0 %v6219
        %6308 = vmatpush.msra.mxu0 %v6218
        %6309 = vmatpush.msra.mxu0 %v6217
        %6310 = vmatpush.msra.mxu0 %v6216
        %6311 = vmatpush.msra.mxu0 %v6215
        %6312 = vmatmul.f32.gmra.mxu0 %v6245
        %v6313 = vpop.f32.mrf.mxu0
        %v6314 = vadd.f32 %v6294, %v6313
        %6315 = vdwg.mxu0
        %6316 = vmatpush.msra.mxu0 0.0
        %6317 = vmatpush.msra.mxu0 0.0
        %6318 = vmatpush.msra.mxu0 0.0
        %6319 = vmatpush.msra.mxu0 0.0
        %6320 = vmatpush.msra.mxu0 %v6242
        %6321 = vmatpush.msra.mxu0 %v6241
        %6322 = vmatpush.msra.mxu0 %v6240
        %6323 = vmatpush.msra.mxu0 %v6239
        %6324 = vmatpush.msra.mxu0 %v6238
        %6325 = vmatpush.msra.mxu0 %v6237
        %6326 = vmatpush.msra.mxu0 %v6236
        %6327 = vmatpush.msra.mxu0 %v6235
        %6328 = vmatpush.msra.mxu0 %v6234
        %6329 = vmatpush.msra.mxu0 %v6233
        %6330 = vmatpush.msra.mxu0 %v6232
        %6331 = vmatpush.msra.mxu0 %v6231
        %6332 = vmatmul.f32.gmra.mxu0 %v6254
        %v6333 = vpop.f32.mrf.mxu0
        %v6334 = vadd.f32 %v6314, %v6333
        %6335 = vdwg.mxu0
        %v6336 = vxor.u32 %v6334, 2147483648
        %v6337 = vmul.f32 %v6336, 1.442695
        %v6338 = vpow.pop %v6337
        %v6339 = vadd.f32 %v6338, 1.0
        %v6340 = vrcp.pop %v6339
        %v6341 = vmul.f32 %v6339, %v6340
        %v6342 = vsub.f32 1.0, %v6341
        %v6343 = vmul.f32 %v6340, %v6342
        %v6344 = vadd.f32 %v6340, %v6343
        %vm6345 = vweird.f32 %v6339
        %vm6346 = vweird.f32 %v6340
        %vm6347 = vmor %vm6345, %vm6346
        %v6348 = vsel %vm6347, %v6340, %v6344
        %v6349 = vand.u32 2147483647, %v6339
        %vm6350 = vcmp.eq.f32.partialorder %v6349, 8.507059e+37
        %v6351 = vand.u32 %v6339, 2147483648
        %v6352 = vor.u32 1.1754944e-38, %v6351
        %v6353 = vsel %vm6350, %v6352, %v6348
        %v6354 = vmul.f32 1.0, %v6353
        %s6355 = sld [smem:[#allocation8 + $0x280]]
        %v6356 = vstv %s6355
        %v6357 = vmul.f32 %v6356, %v6354
        %s6358 = sld [smem:[#allocation8 + $0x281]]
        %v6359 = vstv %s6358
        %v6360 = vmul.f32 %v6359, %v6354
        %v6362 = vrot.slane %v6360, 1
        %v6364 = vadd.f32 %v6357, %v6362
        %s6365 = sld [smem:[#allocation8 + $0x282]]
        %v6366 = vstv %s6365
        %v6367 = vmul.f32 %v6366, %v6354
        %v6369 = vrot.slane %v6367, 2
        %v6371 = vadd.f32 %v6364, %v6369
        %s6372 = sld [smem:[#allocation8 + $0x283]]
        %v6373 = vstv %s6372
        %v6374 = vmul.f32 %v6373, %v6354
        %v6376 = vrot.slane %v6374, 3
        %v6378 = vadd.f32 %v6371, %v6376
        %s6379 = sld [smem:[#allocation8 + $0x284]]
        %v6380 = vstv %s6379
        %v6381 = vmul.f32 %v6380, %v6354
        %v6383 = vrot.slane %v6381, 4
        %v6385 = vadd.f32 %v6378, %v6383
        %s6386 = sld [smem:[#allocation8 + $0x285]]
        %v6387 = vstv %s6386
        %v6388 = vmul.f32 %v6387, %v6354
        %v6390 = vrot.slane %v6388, 5
        %v6392 = vadd.f32 %v6385, %v6390
        %s6393 = sld [smem:[#allocation8 + $0x286]]
        %v6394 = vstv %s6393
        %v6395 = vmul.f32 %v6394, %v6354
        %v6397 = vrot.slane %v6395, 6
        %v6399 = vadd.f32 %v6392, %v6397
        %s6400 = sld [smem:[#allocation8 + $0x287]]
        %v6401 = vstv %s6400
        %v6402 = vmul.f32 %v6401, %v6354
        %v6404 = vrot.slane %v6402, 7
        %v6406 = vadd.f32 %v6399, %v6404
        %v6407 = vadd.f32 %v6182, %v6406
        %v6408 = vmul.f32 %v6407, 0.33333334
        %v6409 = vlaneseq
        %v6410 = vshrl.u32 %v6409, 7
        %v6411 = vlaneseq
        %v6412 = vand.u32 %v6411, 127
        %vm6413 = vcmp.eq.s32.totalorder %v6410, %v6412
        %v6414 = vsel %vm6413, 1, 0
        %v6415 = vcvt.s32.f32 %v6414
        %v6416 = vperm.slane %v6408, 0
        %v6417 = vmul.f32 %v6415, %v6416
        %vm6418 = vcmask 27648
        %v6419 = vsel %vm6418, %v6417, 0.0
        %6420 = vadd.xlane.f32.xlu0 %v6419
        %v6421 = vpop.xlane.xlu0 %6420
        %v6422 = vmul.f32 %v882, %v6421
        %v6423 = vmax.f32 %v3346, %v6422
        %6424 = vst.msk [vmem:[%s874] sm:$0xf] %vm890, %v6423
        %s6425 = sand.u32 %s650, 1
        %s6426 = scalar_lea.sflag [#allocation6], %s6425
        %s6427 = sand.u32 %s650, 1
        %s6428 = smul.addr %s6427, 4
        %s6429 = scalar_lea.vmem [#allocation10], %s6428
        // Predicated region
        $region141: #{run_pallas.1} parent=131 // pred_check
          %p6430 = pneg %p660
        $region142: #{run_pallas.1} parent=131 // pred_check_branch
          %6432 = sbr.rel (%p6430) target = $region144
        $region143: #{run_pallas.1} parent=131 // pred_region
          %6434 = vsyncadd %s6426, 0
          %s6435 = smul.addr %s44, 4
          %s6436 = scalar_lea.hbm %s28, %s6435
          %s6438 = sshll.u32 %s6429, 4
          %s6439 = int_to_ptr.vmem [resolvable:$true] %s6438
          %s6440 = sshll.u32 %s6436, 4
          %s6441 = int_to_ptr.hbm [resolvable:$true] %s6440
          %6443 = dma.vmem_to_hbm [thread:$0]  %s6439, 64, %s6441, %s6426
        $region144: #{run_pallas.1} parent=131 // pred_fallthru
          _
      $region132: #{run_pallas.1} parent=5 // pred_fallthru
        _
      %p6444 = scmp.le.s32.totalorder 2, %s39
      // Predicated region
      $region145: #{run_pallas.1} parent=5 // pred_check
        %p6445 = pneg %p6444
      $region146: #{run_pallas.1} parent=5 // pred_check_branch
        %6447 = sbr.rel (%p6445) target = $region148
      $region147: #{run_pallas.1} parent=5 // pred_region
        %s6448 = ssub.s32 %s39, 2
        // Predicated region
        $region149: #{run_pallas.1} parent=147 // pred_check
          %p6449 = pneg %p666
        $region150: #{run_pallas.1} parent=147 // pred_check_branch
          %6451 = sbr.rel (%p6449) target = $region152
        $region151: #{run_pallas.1} parent=147 // pred_region
          %s6452 = sand.u32 %s651, 1
          %s6453 = scalar_lea.sflag [#allocation6], %s6452
          %s6454 = sand.u32 %s651, 1
          %s6455 = smul.addr %s6454, 4
          %s6456 = scalar_lea.vmem [#allocation10], %s6455
          %6458 = dma.done %s6453, 64
        $region152: #{run_pallas.1} parent=147 // pred_fallthru
          _
      $region148: #{run_pallas.1} parent=5 // pred_fallthru
        _
    $region6: #{run_pallas.1} parent=1 // loop_footer
      %s43 = sadd.s32 1, %s39
    $region7: #{run_pallas.1} parent=1 // loop_footer_branch
      %38 = sbr.rel target = $region3
    $region8: #{run_pallas.1} parent=1 // loop_exit
      _
    %6459 = vsyncpa [#allocation6], 1
    %s6460 = scalar_lea.sflag [#allocation6], 1
    %6461 = vsyncpa %s6460, 1
    %6462 = vsyncpa [#allocation7], 1
    %s6463 = scalar_lea.sflag [#allocation7], 1
    %6464 = vsyncpa %s6463, 1
    %6465 = vsyncpa [#allocation9], 1

</llo_original>
